<compile_context>
chip_gen: v6e
topology: v6e:2x2x1
jax: 0.10.0
libtpu: 0.0.40
codegen_flags: <defaults>
</compile_context>

<pallas_src>
import math

import jax
import jax.numpy as jnp
from jax.experimental import pallas as pl
from jax.experimental.pallas import tpu as pltpu

OUT_PAD = 128   # lane-dense width of the decoder output written to HBM


# -----------------------------------------------------------------------------
# Fused forward kernel
# -----------------------------------------------------------------------------
def make_fused_kernel(num_layers, passes, dim_hidden):
    """Kernel ref order:
       x0, e0, src_col (E,1), dest_col (E,1),
       enc_node (W,b)*L, enc_edge (W,b)*L,
       per pass: edge_mlp (W,b)*L, node_mlp (W,b)*L,
       decoder (W,b)*L (last layer zero-padded to OUT_PAD cols),
       out_ref
       Weights arrive pre-cast to bf16; biases are f32.
    """
    L, H = num_layers, dim_hidden

    def mm(a, b):
        # bf16 MXU matmul, f32 accumulation. astype is a trace-time no-op when the
        # operand is already bf16 (pre-cast weights / one-hots).
        return jnp.dot(a.astype(jnp.bfloat16), b.astype(jnp.bfloat16),
                       preferred_element_type=jnp.float32)

    relu = lambda v: jnp.maximum(v, 0.0)
    silu = lambda v: v * jax.nn.sigmoid(v)

    def kernel(*refs):
        x0_ref, e0_ref, src_ref, dst_ref = refs[:4]
        out_ref = refs[-1]
        wrefs = refs[4:-1]

        def take_mlp(off):
            return ([(wrefs[off + 2 * l], wrefs[off + 2 * l + 1]) for l in range(L)],
                    off + 2 * L)

        enc_node, off = take_mlp(0)
        enc_edge, off = take_mlp(off)
        proc = []
        for _ in range(passes):
            e_mlp, off = take_mlp(off)
            n_mlp, off = take_mlp(off)
            proc.append((e_mlp, n_mlp))
        dec, off = take_mlp(off)

        def finish_mlp(h, mlp, act):
            # `h` is the pre-activation output of layer 0 of `mlp`.
            if L > 1:
                h = act(h)
            for l in range(1, L):
                w_ref, b_ref = mlp[l]
                h = mm(h, w_ref[...]) + b_ref[...]
                if l != L - 1:
                    h = act(h)
            return h

        N = x0_ref.shape[0]
        E = e0_ref.shape[0]

        # ---- one-hot gather / scatter structure: built ONCE, reused every pass
        col_ids = jax.lax.broadcasted_iota(jnp.int32, (E, N), 1)
        oh_src = (col_ids == src_ref[...]).astype(jnp.bfloat16)       # (E, N)
        oh_dst = (col_ids == dst_ref[...]).astype(jnp.bfloat16)       # (E, N)
        # combined gather operator [oh_src | oh_dst]: one K=2N contraction per pass
        oh_comb = jnp.concatenate([oh_src, oh_dst], axis=1)           # (E, 2N)
        # scatter_add(., dest) == oh_dst^T @ .  (f32 XLU transpose, hoisted once)
        oh_scat = jnp.transpose(oh_dst.astype(jnp.float32)).astype(jnp.bfloat16)  # (N, E)

        # ---- Encode (ReLU MLPs) ----
        w0, b0 = enc_node[0]
        x = finish_mlp(mm(x0_ref[...], w0[...]) + b0[...], enc_node, relu)
        w0, b0 = enc_edge[0]
        e = finish_mlp(mm(e0_ref[...], w0[...]) + b0[...], enc_edge, relu)

        # ---- Process ----
        for e_mlp, n_mlp in proc:
            # EdgeModel: MLP(cat(edge_attr, x[src], x[dest]))
            # project-then-gather: gather and per-node projection commute, so
            #   x[src] @ W0[H:2H] + x[dest] @ W0[2H:3H]
            #     == oh_comb @ stack(x @ W0[H:2H], x @ W0[2H:3H])
            w0, b0 = e_mlp[0]
            p_s = mm(x, w0[H:2 * H, :])           # (N, H)
            p_d = mm(x, w0[2 * H:3 * H, :])       # (N, H)
            p_stack = jnp.concatenate([p_s, p_d], axis=0).astype(jnp.bfloat16)  # (2N, H)
            h = mm(e, w0[0:H, :]) + mm(oh_comb, p_stack) + b0[...]
            e_res = finish_mlp(h, e_mlp, relu)
            # NodeModel: MLP(cat(x, scatter_add(e_res, dest)))
            agg = mm(oh_scat, e_res)
            w0, b0 = n_mlp[0]
            h = mm(x, w0[0:H, :]) + mm(agg, w0[H:2 * H, :]) + b0[...]
            x_res = finish_mlp(h, n_mlp, relu)
            # residual updates
            x = x + x_res
            e = e + e_res

        # ---- Decode (SiLU MLP; last layer zero-padded to OUT_PAD columns) ----
        w0, b0 = dec[0]
        out_ref[...] = finish_mlp(mm(x, w0[...]) + b0[...], dec, silu)

    return kernel


# -----------------------------------------------------------------------------
# Parameter init (matches torch.nn.Linear default U(-1/sqrt(fan_in), 1/sqrt(fan_in)))
# -----------------------------------------------------------------------------
def init_linear(key, d_in, d_out):
    kw, kb = jax.random.split(key)
    bound = 1.0 / math.sqrt(d_in)
    w = jax.random.uniform(kw, (d_in, d_out), jnp.float32, -bound, bound)
    b = jax.random.uniform(kb, (1, d_out), jnp.float32, -bound, bound)
    return w, b


def init_mlp(key, layer_vec):
    keys = jax.random.split(key, len(layer_vec) - 1)
    return [init_linear(k, layer_vec[i], layer_vec[i + 1]) for i, k in enumerate(keys)]


def init_node_movement(key, dims, passes, n_hidden, dim_hidden):
    assert dims.get('f', 0) == 0, "forward() passes f=None -> dims['f'] must be 0"
    dim_node = dims['n'] + 1          # cat(n, t)
    dim_edge = dims['q_0'] + 1        # cat(u, |u|)
    H = dim_hidden
    keys = jax.random.split(key, 3 + 2 * passes)
    params = {
        'encoder_node': init_mlp(keys[0], [dim_node] + n_hidden * [H] + [H]),
        'encoder_edge': init_mlp(keys[1], [dim_edge] + n_hidden * [H] + [H]),
        'decoder_node': init_mlp(keys[2], [H] + n_hidden * [H] + [dims['q_0']]),
        'processor': [],
    }
    for p in range(passes):
        edge_mlp = init_mlp(keys[3 + 2 * p], [3 * H] + n_hidden * [H] + [H])
        node_mlp = init_mlp(keys[4 + 2 * p],
                            [2 * H + dims.get('f', 0)] + n_hidden * [H] + [H])
        params['processor'].append({'edge_mlp': edge_mlp, 'node_mlp': node_mlp})
    return params


def _flatten_params(params):
    """Flatten params for the kernel; weights pre-cast to bf16 (MXU operand dtype,
    halves weight DMA bytes and removes in-kernel casts), biases kept f32."""
    flat = []

    def add(w, b):
        flat.append(w.astype(jnp.bfloat16))
        flat.append(b.astype(jnp.float32))

    for w, b in params['encoder_node']:
        add(w, b)
    for w, b in params['encoder_edge']:
        add(w, b)
    for layer in params['processor']:
        for w, b in layer['edge_mlp']:
            add(w, b)
        for w, b in layer['node_mlp']:
            add(w, b)
    dec = params['decoder_node']
    for li, (w, b) in enumerate(dec):
        if li == len(dec) - 1:
            pad = OUT_PAD - w.shape[1]
            assert pad >= 0, "decoder output wider than OUT_PAD"
            w = jnp.pad(w, ((0, 0), (0, pad)))   # zero cols -> lane-dense final store
            b = jnp.pad(b, ((0, 0), (0, pad)))
        add(w, b)
    return flat


# -----------------------------------------------------------------------------
# NodeMovement forward
# -----------------------------------------------------------------------------
@jax.jit
def node_movement_forward(params, q_0, n, t, edge_index):
    N = n.shape[0]
    E = edge_index.shape[1]
    src = edge_index[0].astype(jnp.int32)
    dest = edge_index[1].astype(jnp.int32)

    # Tiny one-off pre-processing (kept in f32 outside the kernel for precision).
    x0 = jnp.concatenate([n, t], axis=1).astype(jnp.float32)
    u = q_0[src] - q_0[dest]
    u_norm = jnp.sqrt(jnp.sum(u * u, axis=1, keepdims=True))
    e0 = jnp.concatenate([u, u_norm], axis=1).astype(jnp.float32)

    L = len(params['encoder_node'])
    passes = len(params['processor'])
    H = params['encoder_node'][-1][0].shape[1]
    q0_dim = params['decoder_node'][-1][0].shape[1]
    d_node = x0.shape[1]
    d_edge = e0.shape[1]

    flat = _flatten_params(params)

    # Advisory cost estimate: this call is launch/latency-bound at these sizes, so
    # telling XLA its true cost lets the scheduler overlap it with surrounding HLO.
    mxu_mac = (
        N * d_node * H + N * H * H * (L - 1)            # node encoder
        + E * d_edge * H + E * H * H * (L - 1)          # edge encoder
        + passes * (
            2 * N * H * H                               # p_s / p_d projections
            + E * (2 * N) * H                           # combined one-hot gather
            + E * H * H * L                             # e-part + rest of edge MLP
            + N * E * H                                 # scatter (oh_dst^T @ e_res)
            + N * H * H * (L + 1))                      # x/agg parts + rest of node MLP
        + N * H * H * (L - 1) + N * H * OUT_PAD)        # decoder (last layer padded)
    param_bytes = sum(int(a.size) * int(a.dtype.itemsize) for a in flat)
    in_bytes = int(x0.size) * 4 + int(e0.size) * 4 + 2 * E * 4
    out_bytes = N * OUT_PAD * 4
    cost = pl.CostEstimate(flops=2 * mxu_mac,
                           transcendentals=N * H * (L - 1),
                           bytes_accessed=in_bytes + param_bytes + out_bytes)

    out_padded = pl.pallas_call(
        make_fused_kernel(L, passes, H),
        out_shape=jax.ShapeDtypeStruct((N, OUT_PAD), jnp.float32),
        compiler_params=pltpu.CompilerParams(vmem_limit_bytes=8 * 1024 * 1024),
        cost_estimate=cost,
    )(x0, e0, src.reshape(E, 1), dest.reshape(E, 1), *flat)

    return out_padded[:, :q0_dim]


# -----------------------------------------------------------------------------
# Pure-JAX f32 reference (mirrors the PyTorch module) for validation
# -----------------------------------------------------------------------------
def reference_forward(params, q_0, n, t, edge_index):
    def mlp(h, ps, act):
        for li, (w, b) in enumerate(ps):
            h = h @ w + b
            if li != len(ps) - 1:
                h = act(h)
        return h
    relu = lambda v: jnp.maximum(v, 0.0)
    silu = lambda v: v * jax.nn.sigmoid(v)
    src, dest = edge_index[0], edge_index[1]
    x = jnp.concatenate([n, t], axis=1)
    u = q_0[src] - q_0[dest]
    u_norm = jnp.sqrt(jnp.sum(u * u, axis=1, keepdims=True))
    e = jnp.concatenate([u, u_norm], axis=1)
    x = mlp(x, params['encoder_node'], relu)
    e = mlp(e, params['encoder_edge'], relu)
    for layer in params['processor']:
        e_res = mlp(jnp.concatenate([e, x[src], x[dest]], axis=1),
                    layer['edge_mlp'], relu)
        agg = jnp.zeros((x.shape[0], e_res.shape[1]), jnp.float32).at[dest].add(e_res)
        x_res = mlp(jnp.concatenate([x, agg], axis=1), layer['node_mlp'], relu)
        x = x + x_res
        e = e + e_res
    return mlp(x, params['decoder_node'], silu)


# -----------------------------------------------------------------------------
if __name__ == "__main__":
    key = jax.random.PRNGKey(0)

    N_NODES, N_EDGES = 128, 512
    dims = {'n': 3, 'q_0': 3, 'f': 0}
    passes, n_hidden, dim_hidden = 2, 2, 32

    k_par, k_q, k_n, k_t, k_e = jax.random.split(key, 5)
    params = init_node_movement(k_par, dims, passes, n_hidden, dim_hidden)

    q_0 = jax.random.normal(k_q, (N_NODES, dims['q_0']), dtype=jnp.float32)
    n = jax.random.normal(k_n, (N_NODES, dims['n']), dtype=jnp.float32)
    t = jax.random.normal(k_t, (N_NODES, 1), dtype=jnp.float32)
    edge_index = jax.random.randint(k_e, (2, N_EDGES), 0, N_NODES, dtype=jnp.int32)

    out = node_movement_forward(params, q_0, n, t, edge_index)
    out = jax.block_until_ready(out)

    assert out.shape == (N_NODES, dims['q_0'])
    assert bool(jnp.all(jnp.isfinite(out)))

    # bf16-MXU kernel vs f32 reference. Summation order of the scatter differs and
    # project-then-gather rounds the per-node projections to bf16 before the
    # one-hot sum, so use a generous (but still tight-in-practice) tolerance.
    ref = reference_forward(params, q_0, n, t, edge_index)
    err = float(jnp.max(jnp.abs(out - ref)))
    assert err < 0.25, f"mismatch vs f32 reference: max abs err {err}"

    print("KERNEL_OK")
</pallas_src>

<mosaic_0001>
module attributes {stable_mosaic.version = 11 : i64} {
  func.func @kernel(%arg0: memref<128x4xf32, #tpu.memory_space<vmem>>, %arg1: memref<512x4xf32, #tpu.memory_space<vmem>>, %arg2: memref<512x1xi32, #tpu.memory_space<vmem>>, %arg3: memref<512x1xi32, #tpu.memory_space<vmem>>, %arg4: memref<4x32xbf16, #tpu.memory_space<vmem>>, %arg5: memref<1x32xf32, #tpu.memory_space<vmem>>, %arg6: memref<32x32xbf16, #tpu.memory_space<vmem>>, %arg7: memref<1x32xf32, #tpu.memory_space<vmem>>, %arg8: memref<32x32xbf16, #tpu.memory_space<vmem>>, %arg9: memref<1x32xf32, #tpu.memory_space<vmem>>, %arg10: memref<4x32xbf16, #tpu.memory_space<vmem>>, %arg11: memref<1x32xf32, #tpu.memory_space<vmem>>, %arg12: memref<32x32xbf16, #tpu.memory_space<vmem>>, %arg13: memref<1x32xf32, #tpu.memory_space<vmem>>, %arg14: memref<32x32xbf16, #tpu.memory_space<vmem>>, %arg15: memref<1x32xf32, #tpu.memory_space<vmem>>, %arg16: memref<96x32xbf16, #tpu.memory_space<vmem>>, %arg17: memref<1x32xf32, #tpu.memory_space<vmem>>, %arg18: memref<32x32xbf16, #tpu.memory_space<vmem>>, %arg19: memref<1x32xf32, #tpu.memory_space<vmem>>, %arg20: memref<32x32xbf16, #tpu.memory_space<vmem>>, %arg21: memref<1x32xf32, #tpu.memory_space<vmem>>, %arg22: memref<64x32xbf16, #tpu.memory_space<vmem>>, %arg23: memref<1x32xf32, #tpu.memory_space<vmem>>, %arg24: memref<32x32xbf16, #tpu.memory_space<vmem>>, %arg25: memref<1x32xf32, #tpu.memory_space<vmem>>, %arg26: memref<32x32xbf16, #tpu.memory_space<vmem>>, %arg27: memref<1x32xf32, #tpu.memory_space<vmem>>, %arg28: memref<96x32xbf16, #tpu.memory_space<vmem>>, %arg29: memref<1x32xf32, #tpu.memory_space<vmem>>, %arg30: memref<32x32xbf16, #tpu.memory_space<vmem>>, %arg31: memref<1x32xf32, #tpu.memory_space<vmem>>, %arg32: memref<32x32xbf16, #tpu.memory_space<vmem>>, %arg33: memref<1x32xf32, #tpu.memory_space<vmem>>, %arg34: memref<64x32xbf16, #tpu.memory_space<vmem>>, %arg35: memref<1x32xf32, #tpu.memory_space<vmem>>, %arg36: memref<32x32xbf16, #tpu.memory_space<vmem>>, %arg37: memref<1x32xf32, #tpu.memory_space<vmem>>, %arg38: memref<32x32xbf16, #tpu.memory_space<vmem>>, %arg39: memref<1x32xf32, #tpu.memory_space<vmem>>, %arg40: memref<32x32xbf16, #tpu.memory_space<vmem>>, %arg41: memref<1x32xf32, #tpu.memory_space<vmem>>, %arg42: memref<32x32xbf16, #tpu.memory_space<vmem>>, %arg43: memref<1x32xf32, #tpu.memory_space<vmem>>, %arg44: memref<32x128xbf16, #tpu.memory_space<vmem>>, %arg45: memref<1x128xf32, #tpu.memory_space<vmem>>, %arg46: memref<128x128xf32, #tpu.memory_space<vmem>>) attributes {dimension_semantics = [], scalar_prefetch = 0 : i64, scratch_operands = 0 : i64, tpu.core_type = #tpu.core_type<tc>} {
    %0 = tpu.iota {dimensions = array<i32: 1>} : vector<512x128xi32>
    %c0 = arith.constant 0 : index
    %c0_0 = arith.constant 0 : index
    %1 = vector.load %arg2[%c0, %c0_0] : memref<512x1xi32, #tpu.memory_space<vmem>>, vector<512x1xi32>
    %2 = vector.broadcast %1 : vector<512x1xi32> to vector<512x128xi32>
    %3 = arith.cmpi eq, %0, %2 : vector<512x128xi32>
    %4 = arith.extui %3 : vector<512x128xi1> to vector<512x128xi32>
    %5 = arith.sitofp %4 : vector<512x128xi32> to vector<512x128xf32>
    %6 = arith.truncf %5 : vector<512x128xf32> to vector<512x128xbf16>
    %c0_1 = arith.constant 0 : index
    %c0_2 = arith.constant 0 : index
    %7 = vector.load %arg3[%c0_1, %c0_2] : memref<512x1xi32, #tpu.memory_space<vmem>>, vector<512x1xi32>
    %8 = vector.broadcast %7 : vector<512x1xi32> to vector<512x128xi32>
    %9 = arith.cmpi eq, %0, %8 : vector<512x128xi32>
    %10 = arith.extui %9 : vector<512x128xi1> to vector<512x128xi32>
    %11 = arith.sitofp %10 : vector<512x128xi32> to vector<512x128xf32>
    %12 = arith.truncf %11 : vector<512x128xf32> to vector<512x128xbf16>
    %13 = tpu.concatenate %6, %12 in 1 : vector<512x128xbf16>, vector<512x128xbf16> -> vector<512x256xbf16>
    %14 = arith.extf %12 : vector<512x128xbf16> to vector<512x128xf32>
    %15 = tpu.transpose %14, [1, 0] : vector<512x128xf32> -> vector<128x512xf32>
    %16 = arith.truncf %15 : vector<128x512xf32> to vector<128x512xbf16>
    %c0_3 = arith.constant 0 : index
    %c0_4 = arith.constant 0 : index
    %17 = vector.load %arg0[%c0_3, %c0_4] : memref<128x4xf32, #tpu.memory_space<vmem>>, vector<128x4xf32>
    %c0_5 = arith.constant 0 : index
    %c0_6 = arith.constant 0 : index
    %18 = vector.load %arg4[%c0_5, %c0_6] : memref<4x32xbf16, #tpu.memory_space<vmem>>, vector<4x32xbf16>
    %19 = arith.truncf %17 : vector<128x4xf32> to vector<128x4xbf16>
    %cst = arith.constant dense<0.000000e+00> : vector<128x32xf32>
    %20 = tpu.matmul %19, %18, %cst {dimension_numbers = #tpu.dot_dimension_numbers<[1], [0], [0], [1], [0, 0, 1, 1], [], []>} : vector<128x4xbf16>, vector<4x32xbf16>, vector<128x32xf32> -> vector<128x32xf32>
    %c0_7 = arith.constant 0 : index
    %c0_8 = arith.constant 0 : index
    %21 = vector.load %arg5[%c0_7, %c0_8] : memref<1x32xf32, #tpu.memory_space<vmem>>, vector<1x32xf32>
    %22 = vector.broadcast %21 : vector<1x32xf32> to vector<128x32xf32>
    %23 = arith.addf %20, %22 : vector<128x32xf32>
    %cst_9 = arith.constant 0.000000e+00 : f32
    %24 = vector.broadcast %cst_9 : f32 to vector<128x32xf32>
    %25 = arith.maximumf %23, %24 : vector<128x32xf32>
    %c0_10 = arith.constant 0 : index
    %c0_11 = arith.constant 0 : index
    %26 = vector.load %arg6[%c0_10, %c0_11] : memref<32x32xbf16, #tpu.memory_space<vmem>>, vector<32x32xbf16>
    %27 = arith.truncf %25 : vector<128x32xf32> to vector<128x32xbf16>
    %cst_12 = arith.constant dense<0.000000e+00> : vector<128x32xf32>
    %28 = tpu.matmul %27, %26, %cst_12 {dimension_numbers = #tpu.dot_dimension_numbers<[1], [0], [0], [1], [0, 0, 1, 1], [], []>} : vector<128x32xbf16>, vector<32x32xbf16>, vector<128x32xf32> -> vector<128x32xf32>
    %c0_13 = arith.constant 0 : index
    %c0_14 = arith.constant 0 : index
    %29 = vector.load %arg7[%c0_13, %c0_14] : memref<1x32xf32, #tpu.memory_space<vmem>>, vector<1x32xf32>
    %30 = vector.broadcast %29 : vector<1x32xf32> to vector<128x32xf32>
    %31 = arith.addf %28, %30 : vector<128x32xf32>
    %cst_15 = arith.constant 0.000000e+00 : f32
    %32 = vector.broadcast %cst_15 : f32 to vector<128x32xf32>
    %33 = arith.maximumf %31, %32 : vector<128x32xf32>
    %c0_16 = arith.constant 0 : index
    %c0_17 = arith.constant 0 : index
    %34 = vector.load %arg8[%c0_16, %c0_17] : memref<32x32xbf16, #tpu.memory_space<vmem>>, vector<32x32xbf16>
    %35 = arith.truncf %33 : vector<128x32xf32> to vector<128x32xbf16>
    %cst_18 = arith.constant dense<0.000000e+00> : vector<128x32xf32>
    %36 = tpu.matmul %35, %34, %cst_18 {dimension_numbers = #tpu.dot_dimension_numbers<[1], [0], [0], [1], [0, 0, 1, 1], [], []>} : vector<128x32xbf16>, vector<32x32xbf16>, vector<128x32xf32> -> vector<128x32xf32>
    %c0_19 = arith.constant 0 : index
    %c0_20 = arith.constant 0 : index
    %37 = vector.load %arg9[%c0_19, %c0_20] : memref<1x32xf32, #tpu.memory_space<vmem>>, vector<1x32xf32>
    %38 = vector.broadcast %37 : vector<1x32xf32> to vector<128x32xf32>
    %39 = arith.addf %36, %38 : vector<128x32xf32>
    %c0_21 = arith.constant 0 : index
    %c0_22 = arith.constant 0 : index
    %40 = vector.load %arg1[%c0_21, %c0_22] : memref<512x4xf32, #tpu.memory_space<vmem>>, vector<512x4xf32>
    %c0_23 = arith.constant 0 : index
    %c0_24 = arith.constant 0 : index
    %41 = vector.load %arg10[%c0_23, %c0_24] : memref<4x32xbf16, #tpu.memory_space<vmem>>, vector<4x32xbf16>
    %42 = arith.truncf %40 : vector<512x4xf32> to vector<512x4xbf16>
    %cst_25 = arith.constant dense<0.000000e+00> : vector<512x32xf32>
    %43 = tpu.matmul %42, %41, %cst_25 {dimension_numbers = #tpu.dot_dimension_numbers<[1], [0], [0], [1], [0, 0, 1, 1], [], []>} : vector<512x4xbf16>, vector<4x32xbf16>, vector<512x32xf32> -> vector<512x32xf32>
    %c0_26 = arith.constant 0 : index
    %c0_27 = arith.constant 0 : index
    %44 = vector.load %arg11[%c0_26, %c0_27] : memref<1x32xf32, #tpu.memory_space<vmem>>, vector<1x32xf32>
    %45 = vector.broadcast %44 : vector<1x32xf32> to vector<512x32xf32>
    %46 = arith.addf %43, %45 : vector<512x32xf32>
    %cst_28 = arith.constant 0.000000e+00 : f32
    %47 = vector.broadcast %cst_28 : f32 to vector<512x32xf32>
    %48 = arith.maximumf %46, %47 : vector<512x32xf32>
    %c0_29 = arith.constant 0 : index
    %c0_30 = arith.constant 0 : index
    %49 = vector.load %arg12[%c0_29, %c0_30] : memref<32x32xbf16, #tpu.memory_space<vmem>>, vector<32x32xbf16>
    %50 = arith.truncf %48 : vector<512x32xf32> to vector<512x32xbf16>
    %cst_31 = arith.constant dense<0.000000e+00> : vector<512x32xf32>
    %51 = tpu.matmul %50, %49, %cst_31 {dimension_numbers = #tpu.dot_dimension_numbers<[1], [0], [0], [1], [0, 0, 1, 1], [], []>} : vector<512x32xbf16>, vector<32x32xbf16>, vector<512x32xf32> -> vector<512x32xf32>
    %c0_32 = arith.constant 0 : index
    %c0_33 = arith.constant 0 : index
    %52 = vector.load %arg13[%c0_32, %c0_33] : memref<1x32xf32, #tpu.memory_space<vmem>>, vector<1x32xf32>
    %53 = vector.broadcast %52 : vector<1x32xf32> to vector<512x32xf32>
    %54 = arith.addf %51, %53 : vector<512x32xf32>
    %cst_34 = arith.constant 0.000000e+00 : f32
    %55 = vector.broadcast %cst_34 : f32 to vector<512x32xf32>
    %56 = arith.maximumf %54, %55 : vector<512x32xf32>
    %c0_35 = arith.constant 0 : index
    %c0_36 = arith.constant 0 : index
    %57 = vector.load %arg14[%c0_35, %c0_36] : memref<32x32xbf16, #tpu.memory_space<vmem>>, vector<32x32xbf16>
    %58 = arith.truncf %56 : vector<512x32xf32> to vector<512x32xbf16>
    %cst_37 = arith.constant dense<0.000000e+00> : vector<512x32xf32>
    %59 = tpu.matmul %58, %57, %cst_37 {dimension_numbers = #tpu.dot_dimension_numbers<[1], [0], [0], [1], [0, 0, 1, 1], [], []>} : vector<512x32xbf16>, vector<32x32xbf16>, vector<512x32xf32> -> vector<512x32xf32>
    %c0_38 = arith.constant 0 : index
    %c0_39 = arith.constant 0 : index
    %60 = vector.load %arg15[%c0_38, %c0_39] : memref<1x32xf32, #tpu.memory_space<vmem>>, vector<1x32xf32>
    %61 = vector.broadcast %60 : vector<1x32xf32> to vector<512x32xf32>
    %62 = arith.addf %59, %61 : vector<512x32xf32>
    %c32 = arith.constant 32 : index
    %c0_40 = arith.constant 0 : index
    %63 = vector.load %arg16[%c32, %c0_40] : memref<96x32xbf16, #tpu.memory_space<vmem>>, vector<32x32xbf16>
    %64 = arith.truncf %39 : vector<128x32xf32> to vector<128x32xbf16>
    %cst_41 = arith.constant dense<0.000000e+00> : vector<128x32xf32>
    %65 = tpu.matmul %64, %63, %cst_41 {dimension_numbers = #tpu.dot_dimension_numbers<[1], [0], [0], [1], [0, 0, 1, 1], [], []>} : vector<128x32xbf16>, vector<32x32xbf16>, vector<128x32xf32> -> vector<128x32xf32>
    %c64 = arith.constant 64 : index
    %c0_42 = arith.constant 0 : index
    %66 = vector.load %arg16[%c64, %c0_42] : memref<96x32xbf16, #tpu.memory_space<vmem>>, vector<32x32xbf16>
    %67 = arith.truncf %39 : vector<128x32xf32> to vector<128x32xbf16>
    %cst_43 = arith.constant dense<0.000000e+00> : vector<128x32xf32>
    %68 = tpu.matmul %67, %66, %cst_43 {dimension_numbers = #tpu.dot_dimension_numbers<[1], [0], [0], [1], [0, 0, 1, 1], [], []>} : vector<128x32xbf16>, vector<32x32xbf16>, vector<128x32xf32> -> vector<128x32xf32>
    %69 = tpu.concatenate %65, %68 in 0 : vector<128x32xf32>, vector<128x32xf32> -> vector<256x32xf32>
    %70 = arith.truncf %69 : vector<256x32xf32> to vector<256x32xbf16>
    %c0_44 = arith.constant 0 : index
    %c0_45 = arith.constant 0 : index
    %71 = vector.load %arg16[%c0_44, %c0_45] : memref<96x32xbf16, #tpu.memory_space<vmem>>, vector<32x32xbf16>
    %72 = arith.truncf %62 : vector<512x32xf32> to vector<512x32xbf16>
    %cst_46 = arith.constant dense<0.000000e+00> : vector<512x32xf32>
    %73 = tpu.matmul %72, %71, %cst_46 {dimension_numbers = #tpu.dot_dimension_numbers<[1], [0], [0], [1], [0, 0, 1, 1], [], []>} : vector<512x32xbf16>, vector<32x32xbf16>, vector<512x32xf32> -> vector<512x32xf32>
    %cst_47 = arith.constant dense<0.000000e+00> : vector<512x32xf32>
    %74 = tpu.matmul %13, %70, %cst_47 {dimension_numbers = #tpu.dot_dimension_numbers<[1], [0], [0], [1], [0, 0, 1, 1], [], []>} : vector<512x256xbf16>, vector<256x32xbf16>, vector<512x32xf32> -> vector<512x32xf32>
    %75 = arith.addf %73, %74 : vector<512x32xf32>
    %c0_48 = arith.constant 0 : index
    %c0_49 = arith.constant 0 : index
    %76 = vector.load %arg17[%c0_48, %c0_49] : memref<1x32xf32, #tpu.memory_space<vmem>>, vector<1x32xf32>
    %77 = vector.broadcast %76 : vector<1x32xf32> to vector<512x32xf32>
    %78 = arith.addf %75, %77 : vector<512x32xf32>
    %cst_50 = arith.constant 0.000000e+00 : f32
    %79 = vector.broadcast %cst_50 : f32 to vector<512x32xf32>
    %80 = arith.maximumf %78, %79 : vector<512x32xf32>
    %c0_51 = arith.constant 0 : index
    %c0_52 = arith.constant 0 : index
    %81 = vector.load %arg18[%c0_51, %c0_52] : memref<32x32xbf16, #tpu.memory_space<vmem>>, vector<32x32xbf16>
    %82 = arith.truncf %80 : vector<512x32xf32> to vector<512x32xbf16>
    %cst_53 = arith.constant dense<0.000000e+00> : vector<512x32xf32>
    %83 = tpu.matmul %82, %81, %cst_53 {dimension_numbers = #tpu.dot_dimension_numbers<[1], [0], [0], [1], [0, 0, 1, 1], [], []>} : vector<512x32xbf16>, vector<32x32xbf16>, vector<512x32xf32> -> vector<512x32xf32>
    %c0_54 = arith.constant 0 : index
    %c0_55 = arith.constant 0 : index
    %84 = vector.load %arg19[%c0_54, %c0_55] : memref<1x32xf32, #tpu.memory_space<vmem>>, vector<1x32xf32>
    %85 = vector.broadcast %84 : vector<1x32xf32> to vector<512x32xf32>
    %86 = arith.addf %83, %85 : vector<512x32xf32>
    %cst_56 = arith.constant 0.000000e+00 : f32
    %87 = vector.broadcast %cst_56 : f32 to vector<512x32xf32>
    %88 = arith.maximumf %86, %87 : vector<512x32xf32>
    %c0_57 = arith.constant 0 : index
    %c0_58 = arith.constant 0 : index
    %89 = vector.load %arg20[%c0_57, %c0_58] : memref<32x32xbf16, #tpu.memory_space<vmem>>, vector<32x32xbf16>
    %90 = arith.truncf %88 : vector<512x32xf32> to vector<512x32xbf16>
    %cst_59 = arith.constant dense<0.000000e+00> : vector<512x32xf32>
    %91 = tpu.matmul %90, %89, %cst_59 {dimension_numbers = #tpu.dot_dimension_numbers<[1], [0], [0], [1], [0, 0, 1, 1], [], []>} : vector<512x32xbf16>, vector<32x32xbf16>, vector<512x32xf32> -> vector<512x32xf32>
    %c0_60 = arith.constant 0 : index
    %c0_61 = arith.constant 0 : index
    %92 = vector.load %arg21[%c0_60, %c0_61] : memref<1x32xf32, #tpu.memory_space<vmem>>, vector<1x32xf32>
    %93 = vector.broadcast %92 : vector<1x32xf32> to vector<512x32xf32>
    %94 = arith.addf %91, %93 : vector<512x32xf32>
    %95 = arith.truncf %94 : vector<512x32xf32> to vector<512x32xbf16>
    %cst_62 = arith.constant dense<0.000000e+00> : vector<128x32xf32>
    %96 = tpu.matmul %16, %95, %cst_62 {dimension_numbers = #tpu.dot_dimension_numbers<[1], [0], [0], [1], [0, 0, 1, 1], [], []>} : vector<128x512xbf16>, vector<512x32xbf16>, vector<128x32xf32> -> vector<128x32xf32>
    %c0_63 = arith.constant 0 : index
    %c0_64 = arith.constant 0 : index
    %97 = vector.load %arg22[%c0_63, %c0_64] : memref<64x32xbf16, #tpu.memory_space<vmem>>, vector<32x32xbf16>
    %98 = arith.truncf %39 : vector<128x32xf32> to vector<128x32xbf16>
    %cst_65 = arith.constant dense<0.000000e+00> : vector<128x32xf32>
    %99 = tpu.matmul %98, %97, %cst_65 {dimension_numbers = #tpu.dot_dimension_numbers<[1], [0], [0], [1], [0, 0, 1, 1], [], []>} : vector<128x32xbf16>, vector<32x32xbf16>, vector<128x32xf32> -> vector<128x32xf32>
    %c32_66 = arith.constant 32 : index
    %c0_67 = arith.constant 0 : index
    %100 = vector.load %arg22[%c32_66, %c0_67] : memref<64x32xbf16, #tpu.memory_space<vmem>>, vector<32x32xbf16>
    %101 = arith.truncf %96 : vector<128x32xf32> to vector<128x32xbf16>
    %cst_68 = arith.constant dense<0.000000e+00> : vector<128x32xf32>
    %102 = tpu.matmul %101, %100, %cst_68 {dimension_numbers = #tpu.dot_dimension_numbers<[1], [0], [0], [1], [0, 0, 1, 1], [], []>} : vector<128x32xbf16>, vector<32x32xbf16>, vector<128x32xf32> -> vector<128x32xf32>
    %103 = arith.addf %99, %102 : vector<128x32xf32>
    %c0_69 = arith.constant 0 : index
    %c0_70 = arith.constant 0 : index
    %104 = vector.load %arg23[%c0_69, %c0_70] : memref<1x32xf32, #tpu.memory_space<vmem>>, vector<1x32xf32>
    %105 = vector.broadcast %104 : vector<1x32xf32> to vector<128x32xf32>
    %106 = arith.addf %103, %105 : vector<128x32xf32>
    %cst_71 = arith.constant 0.000000e+00 : f32
    %107 = vector.broadcast %cst_71 : f32 to vector<128x32xf32>
    %108 = arith.maximumf %106, %107 : vector<128x32xf32>
    %c0_72 = arith.constant 0 : index
    %c0_73 = arith.constant 0 : index
    %109 = vector.load %arg24[%c0_72, %c0_73] : memref<32x32xbf16, #tpu.memory_space<vmem>>, vector<32x32xbf16>
    %110 = arith.truncf %108 : vector<128x32xf32> to vector<128x32xbf16>
    %cst_74 = arith.constant dense<0.000000e+00> : vector<128x32xf32>
    %111 = tpu.matmul %110, %109, %cst_74 {dimension_numbers = #tpu.dot_dimension_numbers<[1], [0], [0], [1], [0, 0, 1, 1], [], []>} : vector<128x32xbf16>, vector<32x32xbf16>, vector<128x32xf32> -> vector<128x32xf32>
    %c0_75 = arith.constant 0 : index
    %c0_76 = arith.constant 0 : index
    %112 = vector.load %arg25[%c0_75, %c0_76] : memref<1x32xf32, #tpu.memory_space<vmem>>, vector<1x32xf32>
    %113 = vector.broadcast %112 : vector<1x32xf32> to vector<128x32xf32>
    %114 = arith.addf %111, %113 : vector<128x32xf32>
    %cst_77 = arith.constant 0.000000e+00 : f32
    %115 = vector.broadcast %cst_77 : f32 to vector<128x32xf32>
    %116 = arith.maximumf %114, %115 : vector<128x32xf32>
    %c0_78 = arith.constant 0 : index
    %c0_79 = arith.constant 0 : index
    %117 = vector.load %arg26[%c0_78, %c0_79] : memref<32x32xbf16, #tpu.memory_space<vmem>>, vector<32x32xbf16>
    %118 = arith.truncf %116 : vector<128x32xf32> to vector<128x32xbf16>
    %cst_80 = arith.constant dense<0.000000e+00> : vector<128x32xf32>
    %119 = tpu.matmul %118, %117, %cst_80 {dimension_numbers = #tpu.dot_dimension_numbers<[1], [0], [0], [1], [0, 0, 1, 1], [], []>} : vector<128x32xbf16>, vector<32x32xbf16>, vector<128x32xf32> -> vector<128x32xf32>
    %c0_81 = arith.constant 0 : index
    %c0_82 = arith.constant 0 : index
    %120 = vector.load %arg27[%c0_81, %c0_82] : memref<1x32xf32, #tpu.memory_space<vmem>>, vector<1x32xf32>
    %121 = vector.broadcast %120 : vector<1x32xf32> to vector<128x32xf32>
    %122 = arith.addf %119, %121 : vector<128x32xf32>
    %123 = arith.addf %39, %122 : vector<128x32xf32>
    %124 = arith.addf %62, %94 : vector<512x32xf32>
    %c32_83 = arith.constant 32 : index
    %c0_84 = arith.constant 0 : index
    %125 = vector.load %arg28[%c32_83, %c0_84] : memref<96x32xbf16, #tpu.memory_space<vmem>>, vector<32x32xbf16>
    %126 = arith.truncf %123 : vector<128x32xf32> to vector<128x32xbf16>
    %cst_85 = arith.constant dense<0.000000e+00> : vector<128x32xf32>
    %127 = tpu.matmul %126, %125, %cst_85 {dimension_numbers = #tpu.dot_dimension_numbers<[1], [0], [0], [1], [0, 0, 1, 1], [], []>} : vector<128x32xbf16>, vector<32x32xbf16>, vector<128x32xf32> -> vector<128x32xf32>
    %c64_86 = arith.constant 64 : index
    %c0_87 = arith.constant 0 : index
    %128 = vector.load %arg28[%c64_86, %c0_87] : memref<96x32xbf16, #tpu.memory_space<vmem>>, vector<32x32xbf16>
    %129 = arith.truncf %123 : vector<128x32xf32> to vector<128x32xbf16>
    %cst_88 = arith.constant dense<0.000000e+00> : vector<128x32xf32>
    %130 = tpu.matmul %129, %128, %cst_88 {dimension_numbers = #tpu.dot_dimension_numbers<[1], [0], [0], [1], [0, 0, 1, 1], [], []>} : vector<128x32xbf16>, vector<32x32xbf16>, vector<128x32xf32> -> vector<128x32xf32>
    %131 = tpu.concatenate %127, %130 in 0 : vector<128x32xf32>, vector<128x32xf32> -> vector<256x32xf32>
    %132 = arith.truncf %131 : vector<256x32xf32> to vector<256x32xbf16>
    %c0_89 = arith.constant 0 : index
    %c0_90 = arith.constant 0 : index
    %133 = vector.load %arg28[%c0_89, %c0_90] : memref<96x32xbf16, #tpu.memory_space<vmem>>, vector<32x32xbf16>
    %134 = arith.truncf %124 : vector<512x32xf32> to vector<512x32xbf16>
    %cst_91 = arith.constant dense<0.000000e+00> : vector<512x32xf32>
    %135 = tpu.matmul %134, %133, %cst_91 {dimension_numbers = #tpu.dot_dimension_numbers<[1], [0], [0], [1], [0, 0, 1, 1], [], []>} : vector<512x32xbf16>, vector<32x32xbf16>, vector<512x32xf32> -> vector<512x32xf32>
    %cst_92 = arith.constant dense<0.000000e+00> : vector<512x32xf32>
    %136 = tpu.matmul %13, %132, %cst_92 {dimension_numbers = #tpu.dot_dimension_numbers<[1], [0], [0], [1], [0, 0, 1, 1], [], []>} : vector<512x256xbf16>, vector<256x32xbf16>, vector<512x32xf32> -> vector<512x32xf32>
    %137 = arith.addf %135, %136 : vector<512x32xf32>
    %c0_93 = arith.constant 0 : index
    %c0_94 = arith.constant 0 : index
    %138 = vector.load %arg29[%c0_93, %c0_94] : memref<1x32xf32, #tpu.memory_space<vmem>>, vector<1x32xf32>
    %139 = vector.broadcast %138 : vector<1x32xf32> to vector<512x32xf32>
    %140 = arith.addf %137, %139 : vector<512x32xf32>
    %cst_95 = arith.constant 0.000000e+00 : f32
    %141 = vector.broadcast %cst_95 : f32 to vector<512x32xf32>
    %142 = arith.maximumf %140, %141 : vector<512x32xf32>
    %c0_96 = arith.constant 0 : index
    %c0_97 = arith.constant 0 : index
    %143 = vector.load %arg30[%c0_96, %c0_97] : memref<32x32xbf16, #tpu.memory_space<vmem>>, vector<32x32xbf16>
    %144 = arith.truncf %142 : vector<512x32xf32> to vector<512x32xbf16>
    %cst_98 = arith.constant dense<0.000000e+00> : vector<512x32xf32>
    %145 = tpu.matmul %144, %143, %cst_98 {dimension_numbers = #tpu.dot_dimension_numbers<[1], [0], [0], [1], [0, 0, 1, 1], [], []>} : vector<512x32xbf16>, vector<32x32xbf16>, vector<512x32xf32> -> vector<512x32xf32>
    %c0_99 = arith.constant 0 : index
    %c0_100 = arith.constant 0 : index
    %146 = vector.load %arg31[%c0_99, %c0_100] : memref<1x32xf32, #tpu.memory_space<vmem>>, vector<1x32xf32>
    %147 = vector.broadcast %146 : vector<1x32xf32> to vector<512x32xf32>
    %148 = arith.addf %145, %147 : vector<512x32xf32>
    %cst_101 = arith.constant 0.000000e+00 : f32
    %149 = vector.broadcast %cst_101 : f32 to vector<512x32xf32>
    %150 = arith.maximumf %148, %149 : vector<512x32xf32>
    %c0_102 = arith.constant 0 : index
    %c0_103 = arith.constant 0 : index
    %151 = vector.load %arg32[%c0_102, %c0_103] : memref<32x32xbf16, #tpu.memory_space<vmem>>, vector<32x32xbf16>
    %152 = arith.truncf %150 : vector<512x32xf32> to vector<512x32xbf16>
    %cst_104 = arith.constant dense<0.000000e+00> : vector<512x32xf32>
    %153 = tpu.matmul %152, %151, %cst_104 {dimension_numbers = #tpu.dot_dimension_numbers<[1], [0], [0], [1], [0, 0, 1, 1], [], []>} : vector<512x32xbf16>, vector<32x32xbf16>, vector<512x32xf32> -> vector<512x32xf32>
    %c0_105 = arith.constant 0 : index
    %c0_106 = arith.constant 0 : index
    %154 = vector.load %arg33[%c0_105, %c0_106] : memref<1x32xf32, #tpu.memory_space<vmem>>, vector<1x32xf32>
    %155 = vector.broadcast %154 : vector<1x32xf32> to vector<512x32xf32>
    %156 = arith.addf %153, %155 : vector<512x32xf32>
    %157 = arith.truncf %156 : vector<512x32xf32> to vector<512x32xbf16>
    %cst_107 = arith.constant dense<0.000000e+00> : vector<128x32xf32>
    %158 = tpu.matmul %16, %157, %cst_107 {dimension_numbers = #tpu.dot_dimension_numbers<[1], [0], [0], [1], [0, 0, 1, 1], [], []>} : vector<128x512xbf16>, vector<512x32xbf16>, vector<128x32xf32> -> vector<128x32xf32>
    %c0_108 = arith.constant 0 : index
    %c0_109 = arith.constant 0 : index
    %159 = vector.load %arg34[%c0_108, %c0_109] : memref<64x32xbf16, #tpu.memory_space<vmem>>, vector<32x32xbf16>
    %160 = arith.truncf %123 : vector<128x32xf32> to vector<128x32xbf16>
    %cst_110 = arith.constant dense<0.000000e+00> : vector<128x32xf32>
    %161 = tpu.matmul %160, %159, %cst_110 {dimension_numbers = #tpu.dot_dimension_numbers<[1], [0], [0], [1], [0, 0, 1, 1], [], []>} : vector<128x32xbf16>, vector<32x32xbf16>, vector<128x32xf32> -> vector<128x32xf32>
    %c32_111 = arith.constant 32 : index
    %c0_112 = arith.constant 0 : index
    %162 = vector.load %arg34[%c32_111, %c0_112] : memref<64x32xbf16, #tpu.memory_space<vmem>>, vector<32x32xbf16>
    %163 = arith.truncf %158 : vector<128x32xf32> to vector<128x32xbf16>
    %cst_113 = arith.constant dense<0.000000e+00> : vector<128x32xf32>
    %164 = tpu.matmul %163, %162, %cst_113 {dimension_numbers = #tpu.dot_dimension_numbers<[1], [0], [0], [1], [0, 0, 1, 1], [], []>} : vector<128x32xbf16>, vector<32x32xbf16>, vector<128x32xf32> -> vector<128x32xf32>
    %165 = arith.addf %161, %164 : vector<128x32xf32>
    %c0_114 = arith.constant 0 : index
    %c0_115 = arith.constant 0 : index
    %166 = vector.load %arg35[%c0_114, %c0_115] : memref<1x32xf32, #tpu.memory_space<vmem>>, vector<1x32xf32>
    %167 = vector.broadcast %166 : vector<1x32xf32> to vector<128x32xf32>
    %168 = arith.addf %165, %167 : vector<128x32xf32>
    %cst_116 = arith.constant 0.000000e+00 : f32
    %169 = vector.broadcast %cst_116 : f32 to vector<128x32xf32>
    %170 = arith.maximumf %168, %169 : vector<128x32xf32>
    %c0_117 = arith.constant 0 : index
    %c0_118 = arith.constant 0 : index
    %171 = vector.load %arg36[%c0_117, %c0_118] : memref<32x32xbf16, #tpu.memory_space<vmem>>, vector<32x32xbf16>
    %172 = arith.truncf %170 : vector<128x32xf32> to vector<128x32xbf16>
    %cst_119 = arith.constant dense<0.000000e+00> : vector<128x32xf32>
    %173 = tpu.matmul %172, %171, %cst_119 {dimension_numbers = #tpu.dot_dimension_numbers<[1], [0], [0], [1], [0, 0, 1, 1], [], []>} : vector<128x32xbf16>, vector<32x32xbf16>, vector<128x32xf32> -> vector<128x32xf32>
    %c0_120 = arith.constant 0 : index
    %c0_121 = arith.constant 0 : index
    %174 = vector.load %arg37[%c0_120, %c0_121] : memref<1x32xf32, #tpu.memory_space<vmem>>, vector<1x32xf32>
    %175 = vector.broadcast %174 : vector<1x32xf32> to vector<128x32xf32>
    %176 = arith.addf %173, %175 : vector<128x32xf32>
    %cst_122 = arith.constant 0.000000e+00 : f32
    %177 = vector.broadcast %cst_122 : f32 to vector<128x32xf32>
    %178 = arith.maximumf %176, %177 : vector<128x32xf32>
    %c0_123 = arith.constant 0 : index
    %c0_124 = arith.constant 0 : index
    %179 = vector.load %arg38[%c0_123, %c0_124] : memref<32x32xbf16, #tpu.memory_space<vmem>>, vector<32x32xbf16>
    %180 = arith.truncf %178 : vector<128x32xf32> to vector<128x32xbf16>
    %cst_125 = arith.constant dense<0.000000e+00> : vector<128x32xf32>
    %181 = tpu.matmul %180, %179, %cst_125 {dimension_numbers = #tpu.dot_dimension_numbers<[1], [0], [0], [1], [0, 0, 1, 1], [], []>} : vector<128x32xbf16>, vector<32x32xbf16>, vector<128x32xf32> -> vector<128x32xf32>
    %c0_126 = arith.constant 0 : index
    %c0_127 = arith.constant 0 : index
    %182 = vector.load %arg39[%c0_126, %c0_127] : memref<1x32xf32, #tpu.memory_space<vmem>>, vector<1x32xf32>
    %183 = vector.broadcast %182 : vector<1x32xf32> to vector<128x32xf32>
    %184 = arith.addf %181, %183 : vector<128x32xf32>
    %185 = arith.addf %123, %184 : vector<128x32xf32>
    %c0_128 = arith.constant 0 : index
    %c0_129 = arith.constant 0 : index
    %186 = vector.load %arg40[%c0_128, %c0_129] : memref<32x32xbf16, #tpu.memory_space<vmem>>, vector<32x32xbf16>
    %187 = arith.truncf %185 : vector<128x32xf32> to vector<128x32xbf16>
    %cst_130 = arith.constant dense<0.000000e+00> : vector<128x32xf32>
    %188 = tpu.matmul %187, %186, %cst_130 {dimension_numbers = #tpu.dot_dimension_numbers<[1], [0], [0], [1], [0, 0, 1, 1], [], []>} : vector<128x32xbf16>, vector<32x32xbf16>, vector<128x32xf32> -> vector<128x32xf32>
    %c0_131 = arith.constant 0 : index
    %c0_132 = arith.constant 0 : index
    %189 = vector.load %arg41[%c0_131, %c0_132] : memref<1x32xf32, #tpu.memory_space<vmem>>, vector<1x32xf32>
    %190 = vector.broadcast %189 : vector<1x32xf32> to vector<128x32xf32>
    %191 = arith.addf %188, %190 : vector<128x32xf32>
    %192 = arith.negf %191 : vector<128x32xf32>
    %193 = math.exp %192 : vector<128x32xf32>
    %cst_133 = arith.constant 1.000000e+00 : f32
    %194 = vector.broadcast %cst_133 : f32 to vector<128x32xf32>
    %195 = arith.addf %194, %193 : vector<128x32xf32>
    %196 = arith.divf %194, %195 : vector<128x32xf32>
    %197 = arith.mulf %191, %196 : vector<128x32xf32>
    %c0_134 = arith.constant 0 : index
    %c0_135 = arith.constant 0 : index
    %198 = vector.load %arg42[%c0_134, %c0_135] : memref<32x32xbf16, #tpu.memory_space<vmem>>, vector<32x32xbf16>
    %199 = arith.truncf %197 : vector<128x32xf32> to vector<128x32xbf16>
    %cst_136 = arith.constant dense<0.000000e+00> : vector<128x32xf32>
    %200 = tpu.matmul %199, %198, %cst_136 {dimension_numbers = #tpu.dot_dimension_numbers<[1], [0], [0], [1], [0, 0, 1, 1], [], []>} : vector<128x32xbf16>, vector<32x32xbf16>, vector<128x32xf32> -> vector<128x32xf32>
    %c0_137 = arith.constant 0 : index
    %c0_138 = arith.constant 0 : index
    %201 = vector.load %arg43[%c0_137, %c0_138] : memref<1x32xf32, #tpu.memory_space<vmem>>, vector<1x32xf32>
    %202 = vector.broadcast %201 : vector<1x32xf32> to vector<128x32xf32>
    %203 = arith.addf %200, %202 : vector<128x32xf32>
    %204 = arith.negf %203 : vector<128x32xf32>
    %205 = math.exp %204 : vector<128x32xf32>
    %cst_139 = arith.constant 1.000000e+00 : f32
    %206 = vector.broadcast %cst_139 : f32 to vector<128x32xf32>
    %207 = arith.addf %206, %205 : vector<128x32xf32>
    %208 = arith.divf %206, %207 : vector<128x32xf32>
    %209 = arith.mulf %203, %208 : vector<128x32xf32>
    %c0_140 = arith.constant 0 : index
    %c0_141 = arith.constant 0 : index
    %210 = vector.load %arg44[%c0_140, %c0_141] : memref<32x128xbf16, #tpu.memory_space<vmem>>, vector<32x128xbf16>
    %211 = arith.truncf %209 : vector<128x32xf32> to vector<128x32xbf16>
    %cst_142 = arith.constant dense<0.000000e+00> : vector<128x128xf32>
    %212 = tpu.matmul %211, %210, %cst_142 {dimension_numbers = #tpu.dot_dimension_numbers<[1], [0], [0], [1], [0, 0, 1, 1], [], []>} : vector<128x32xbf16>, vector<32x128xbf16>, vector<128x128xf32> -> vector<128x128xf32>
    %c0_143 = arith.constant 0 : index
    %c0_144 = arith.constant 0 : index
    %213 = vector.load %arg45[%c0_143, %c0_144] : memref<1x128xf32, #tpu.memory_space<vmem>>, vector<1x128xf32>
    %214 = vector.broadcast %213 : vector<1x128xf32> to vector<128x128xf32>
    %215 = arith.addf %212, %214 : vector<128x128xf32>
    %c0_145 = arith.constant 0 : index
    %c0_146 = arith.constant 0 : index
    %216 = vector.load %arg46[%c0_145, %c0_146] : memref<128x128xf32, #tpu.memory_space<vmem>>, vector<128x128xf32>
    tpu.vector_store %arg46[%c0_145, %c0_146], %215 {strides = array<i32>} : memref<128x128xf32, #tpu.memory_space<vmem>>, vector<128x128xf32>,
    return
  }
}

</mosaic_0001>

<llo_original>
// kernel: node_movement_forward.1
$region0: #{node_movement_forward.1}
  #allocation0 [shape = 'u32[]', space=smem, size = 0x4, offset = 0x4, fixed_abs, tag = 'smem constant byte address 0x4 - core index']
  #allocation1 [shape = 'u32[144,128]{1,0:T(1,128)}', space=vmem, size = 0x12000, scoped, tag = 'internal scratch']
  %s0 = inlined_call_operand.smem [shape: u32[47], index: -1, kind: input, shape index: {}]
  %s1 = sld [smem:[%s0]]
  %s2 = scalar_lea.smem %s0, 1
  %s3 = sld [smem:[%s2]]
  %s4 = scalar_lea.smem %s0, 2
  %s5 = sld [smem:[%s4]]
  %s6 = scalar_lea.smem %s0, 3
  %s7 = sld [smem:[%s6]]
  %s8 = scalar_lea.smem %s0, 4
  %s9 = sld [smem:[%s8]]
  %s10 = scalar_lea.smem %s0, 5
  %s11 = sld [smem:[%s10]]
  %s12 = scalar_lea.smem %s0, 6
  %s13 = sld [smem:[%s12]]
  %s14 = scalar_lea.smem %s0, 7
  %s15 = sld [smem:[%s14]]
  %s16 = scalar_lea.smem %s0, 8
  %s17 = sld [smem:[%s16]]
  %s18 = scalar_lea.smem %s0, 9
  %s19 = sld [smem:[%s18]]
  %s20 = scalar_lea.smem %s0, 10
  %s21 = sld [smem:[%s20]]
  %s22 = scalar_lea.smem %s0, 11
  %s23 = sld [smem:[%s22]]
  %s24 = scalar_lea.smem %s0, 12
  %s25 = sld [smem:[%s24]]
  %s26 = scalar_lea.smem %s0, 13
  %s27 = sld [smem:[%s26]]
  %s28 = scalar_lea.smem %s0, 14
  %s29 = sld [smem:[%s28]]
  %s30 = scalar_lea.smem %s0, 15
  %s31 = sld [smem:[%s30]]
  %s32 = scalar_lea.smem %s0, 16
  %s33 = sld [smem:[%s32]]
  %s34 = scalar_lea.smem %s0, 17
  %s35 = sld [smem:[%s34]]
  %s36 = scalar_lea.smem %s0, 18
  %s37 = sld [smem:[%s36]]
  %s38 = scalar_lea.smem %s0, 19
  %s39 = sld [smem:[%s38]]
  %s40 = scalar_lea.smem %s0, 20
  %s41 = sld [smem:[%s40]]
  %s42 = scalar_lea.smem %s0, 21
  %s43 = sld [smem:[%s42]]
  %s44 = scalar_lea.smem %s0, 22
  %s45 = sld [smem:[%s44]]
  %s46 = scalar_lea.smem %s0, 23
  %s47 = sld [smem:[%s46]]
  %s48 = scalar_lea.smem %s0, 24
  %s49 = sld [smem:[%s48]]
  %s50 = scalar_lea.smem %s0, 25
  %s51 = sld [smem:[%s50]]
  %s52 = scalar_lea.smem %s0, 26
  %s53 = sld [smem:[%s52]]
  %s54 = scalar_lea.smem %s0, 27
  %s55 = sld [smem:[%s54]]
  %s56 = scalar_lea.smem %s0, 28
  %s57 = sld [smem:[%s56]]
  %s58 = scalar_lea.smem %s0, 29
  %s59 = sld [smem:[%s58]]
  %s60 = scalar_lea.smem %s0, 30
  %s61 = sld [smem:[%s60]]
  %s62 = scalar_lea.smem %s0, 31
  %s63 = sld [smem:[%s62]]
  %s64 = scalar_lea.smem %s0, 32
  %s65 = sld [smem:[%s64]]
  %s66 = scalar_lea.smem %s0, 33
  %s67 = sld [smem:[%s66]]
  %s68 = scalar_lea.smem %s0, 34
  %s69 = sld [smem:[%s68]]
  %s70 = scalar_lea.smem %s0, 35
  %s71 = sld [smem:[%s70]]
  %s72 = scalar_lea.smem %s0, 36
  %s73 = sld [smem:[%s72]]
  %s74 = scalar_lea.smem %s0, 37
  %s75 = sld [smem:[%s74]]
  %s76 = scalar_lea.smem %s0, 38
  %s77 = sld [smem:[%s76]]
  %s78 = scalar_lea.smem %s0, 39
  %s79 = sld [smem:[%s78]]
  %s80 = scalar_lea.smem %s0, 40
  %s81 = sld [smem:[%s80]]
  %s82 = scalar_lea.smem %s0, 41
  %s83 = sld [smem:[%s82]]
  %s84 = scalar_lea.smem %s0, 42
  %s85 = sld [smem:[%s84]]
  %s86 = scalar_lea.smem %s0, 43
  %s87 = sld [smem:[%s86]]
  %s88 = scalar_lea.smem %s0, 44
  %s89 = sld [smem:[%s88]]
  %s90 = scalar_lea.smem %s0, 45
  %s91 = sld [smem:[%s90]]
  %s92 = scalar_lea.smem %s0, 46
  %s93 = sld [smem:[%s92]]
  %s94 = sld [smem:[#allocation0]]
  $region194: #{node_movement_forward.1} parent=0
    _
  %s96 = ssub.s32 1, %s94
  %s97 = scalar_select 0, %s96, %s94
  // Predicated region
  $region2: #{node_movement_forward.1} parent=0 // pred_check
    _
  $region3: #{node_movement_forward.1} parent=0 // pred_check_branch
    %99 = sbr.rel (0) target = $region5
  $region4: #{node_movement_forward.1} parent=0 // pred_region
    _
  $region5: #{node_movement_forward.1} parent=0 // pred_fallthru
    _
  // Predicated region
  $region6: #{node_movement_forward.1} parent=0 // pred_check
    _
  $region7: #{node_movement_forward.1} parent=0 // pred_check_branch
    %101 = sbr.rel (0) target = $region9
  $region8: #{node_movement_forward.1} parent=0 // pred_region
    _
  $region9: #{node_movement_forward.1} parent=0 // pred_fallthru
    _
  // Predicated region
  $region10: #{node_movement_forward.1} parent=0 // pred_check
    _
  $region11: #{node_movement_forward.1} parent=0 // pred_check_branch
    %103 = sbr.rel (0) target = $region13
  $region12: #{node_movement_forward.1} parent=0 // pred_region
    _
  $region13: #{node_movement_forward.1} parent=0 // pred_fallthru
    _
  // Predicated region
  $region14: #{node_movement_forward.1} parent=0 // pred_check
    _
  $region15: #{node_movement_forward.1} parent=0 // pred_check_branch
    %105 = sbr.rel (0) target = $region17
  $region16: #{node_movement_forward.1} parent=0 // pred_region
    _
  $region17: #{node_movement_forward.1} parent=0 // pred_fallthru
    _
  // Predicated region
  $region18: #{node_movement_forward.1} parent=0 // pred_check
    _
  $region19: #{node_movement_forward.1} parent=0 // pred_check_branch
    %107 = sbr.rel (0) target = $region21
  $region20: #{node_movement_forward.1} parent=0 // pred_region
    _
  $region21: #{node_movement_forward.1} parent=0 // pred_fallthru
    _
  // Predicated region
  $region22: #{node_movement_forward.1} parent=0 // pred_check
    _
  $region23: #{node_movement_forward.1} parent=0 // pred_check_branch
    %109 = sbr.rel (0) target = $region25
  $region24: #{node_movement_forward.1} parent=0 // pred_region
    _
  $region25: #{node_movement_forward.1} parent=0 // pred_fallthru
    _
  // Predicated region
  $region26: #{node_movement_forward.1} parent=0 // pred_check
    _
  $region27: #{node_movement_forward.1} parent=0 // pred_check_branch
    %111 = sbr.rel (0) target = $region29
  $region28: #{node_movement_forward.1} parent=0 // pred_region
    _
  $region29: #{node_movement_forward.1} parent=0 // pred_fallthru
    _
  // Predicated region
  $region30: #{node_movement_forward.1} parent=0 // pred_check
    _
  $region31: #{node_movement_forward.1} parent=0 // pred_check_branch
    %113 = sbr.rel (0) target = $region33
  $region32: #{node_movement_forward.1} parent=0 // pred_region
    _
  $region33: #{node_movement_forward.1} parent=0 // pred_fallthru
    _
  // Predicated region
  $region34: #{node_movement_forward.1} parent=0 // pred_check
    _
  $region35: #{node_movement_forward.1} parent=0 // pred_check_branch
    %115 = sbr.rel (0) target = $region37
  $region36: #{node_movement_forward.1} parent=0 // pred_region
    _
  $region37: #{node_movement_forward.1} parent=0 // pred_fallthru
    _
  // Predicated region
  $region38: #{node_movement_forward.1} parent=0 // pred_check
    _
  $region39: #{node_movement_forward.1} parent=0 // pred_check_branch
    %117 = sbr.rel (0) target = $region41
  $region40: #{node_movement_forward.1} parent=0 // pred_region
    _
  $region41: #{node_movement_forward.1} parent=0 // pred_fallthru
    _
  // Predicated region
  $region42: #{node_movement_forward.1} parent=0 // pred_check
    _
  $region43: #{node_movement_forward.1} parent=0 // pred_check_branch
    %119 = sbr.rel (0) target = $region45
  $region44: #{node_movement_forward.1} parent=0 // pred_region
    _
  $region45: #{node_movement_forward.1} parent=0 // pred_fallthru
    _
  // Predicated region
  $region46: #{node_movement_forward.1} parent=0 // pred_check
    _
  $region47: #{node_movement_forward.1} parent=0 // pred_check_branch
    %121 = sbr.rel (0) target = $region49
  $region48: #{node_movement_forward.1} parent=0 // pred_region
    _
  $region49: #{node_movement_forward.1} parent=0 // pred_fallthru
    _
  // Predicated region
  $region50: #{node_movement_forward.1} parent=0 // pred_check
    _
  $region51: #{node_movement_forward.1} parent=0 // pred_check_branch
    %123 = sbr.rel (0) target = $region53
  $region52: #{node_movement_forward.1} parent=0 // pred_region
    _
  $region53: #{node_movement_forward.1} parent=0 // pred_fallthru
    _
  // Predicated region
  $region54: #{node_movement_forward.1} parent=0 // pred_check
    _
  $region55: #{node_movement_forward.1} parent=0 // pred_check_branch
    %125 = sbr.rel (0) target = $region57
  $region56: #{node_movement_forward.1} parent=0 // pred_region
    _
  $region57: #{node_movement_forward.1} parent=0 // pred_fallthru
    _
  // Predicated region
  $region58: #{node_movement_forward.1} parent=0 // pred_check
    _
  $region59: #{node_movement_forward.1} parent=0 // pred_check_branch
    %127 = sbr.rel (0) target = $region61
  $region60: #{node_movement_forward.1} parent=0 // pred_region
    _
  $region61: #{node_movement_forward.1} parent=0 // pred_fallthru
    _
  // Predicated region
  $region62: #{node_movement_forward.1} parent=0 // pred_check
    _
  $region63: #{node_movement_forward.1} parent=0 // pred_check_branch
    %129 = sbr.rel (0) target = $region65
  $region64: #{node_movement_forward.1} parent=0 // pred_region
    _
  $region65: #{node_movement_forward.1} parent=0 // pred_fallthru
    _
  // Predicated region
  $region66: #{node_movement_forward.1} parent=0 // pred_check
    _
  $region67: #{node_movement_forward.1} parent=0 // pred_check_branch
    %131 = sbr.rel (0) target = $region69
  $region68: #{node_movement_forward.1} parent=0 // pred_region
    _
  $region69: #{node_movement_forward.1} parent=0 // pred_fallthru
    _
  // Predicated region
  $region70: #{node_movement_forward.1} parent=0 // pred_check
    _
  $region71: #{node_movement_forward.1} parent=0 // pred_check_branch
    %133 = sbr.rel (0) target = $region73
  $region72: #{node_movement_forward.1} parent=0 // pred_region
    _
  $region73: #{node_movement_forward.1} parent=0 // pred_fallthru
    _
  // Predicated region
  $region74: #{node_movement_forward.1} parent=0 // pred_check
    _
  $region75: #{node_movement_forward.1} parent=0 // pred_check_branch
    %135 = sbr.rel (0) target = $region77
  $region76: #{node_movement_forward.1} parent=0 // pred_region
    _
  $region77: #{node_movement_forward.1} parent=0 // pred_fallthru
    _
  // Predicated region
  $region78: #{node_movement_forward.1} parent=0 // pred_check
    _
  $region79: #{node_movement_forward.1} parent=0 // pred_check_branch
    %137 = sbr.rel (0) target = $region81
  $region80: #{node_movement_forward.1} parent=0 // pred_region
    _
  $region81: #{node_movement_forward.1} parent=0 // pred_fallthru
    _
  // Predicated region
  $region82: #{node_movement_forward.1} parent=0 // pred_check
    _
  $region83: #{node_movement_forward.1} parent=0 // pred_check_branch
    %139 = sbr.rel (0) target = $region85
  $region84: #{node_movement_forward.1} parent=0 // pred_region
    _
  $region85: #{node_movement_forward.1} parent=0 // pred_fallthru
    _
  // Predicated region
  $region86: #{node_movement_forward.1} parent=0 // pred_check
    _
  $region87: #{node_movement_forward.1} parent=0 // pred_check_branch
    %141 = sbr.rel (0) target = $region89
  $region88: #{node_movement_forward.1} parent=0 // pred_region
    _
  $region89: #{node_movement_forward.1} parent=0 // pred_fallthru
    _
  // Predicated region
  $region90: #{node_movement_forward.1} parent=0 // pred_check
    _
  $region91: #{node_movement_forward.1} parent=0 // pred_check_branch
    %143 = sbr.rel (0) target = $region93
  $region92: #{node_movement_forward.1} parent=0 // pred_region
    _
  $region93: #{node_movement_forward.1} parent=0 // pred_fallthru
    _
  // Predicated region
  $region94: #{node_movement_forward.1} parent=0 // pred_check
    _
  $region95: #{node_movement_forward.1} parent=0 // pred_check_branch
    %145 = sbr.rel (0) target = $region97
  $region96: #{node_movement_forward.1} parent=0 // pred_region
    _
  $region97: #{node_movement_forward.1} parent=0 // pred_fallthru
    _
  // Predicated region
  $region98: #{node_movement_forward.1} parent=0 // pred_check
    _
  $region99: #{node_movement_forward.1} parent=0 // pred_check_branch
    %147 = sbr.rel (0) target = $region101
  $region100: #{node_movement_forward.1} parent=0 // pred_region
    _
  $region101: #{node_movement_forward.1} parent=0 // pred_fallthru
    _
  // Predicated region
  $region102: #{node_movement_forward.1} parent=0 // pred_check
    _
  $region103: #{node_movement_forward.1} parent=0 // pred_check_branch
    %149 = sbr.rel (0) target = $region105
  $region104: #{node_movement_forward.1} parent=0 // pred_region
    _
  $region105: #{node_movement_forward.1} parent=0 // pred_fallthru
    _
  // Predicated region
  $region106: #{node_movement_forward.1} parent=0 // pred_check
    _
  $region107: #{node_movement_forward.1} parent=0 // pred_check_branch
    %151 = sbr.rel (0) target = $region109
  $region108: #{node_movement_forward.1} parent=0 // pred_region
    _
  $region109: #{node_movement_forward.1} parent=0 // pred_fallthru
    _
  // Predicated region
  $region110: #{node_movement_forward.1} parent=0 // pred_check
    _
  $region111: #{node_movement_forward.1} parent=0 // pred_check_branch
    %153 = sbr.rel (0) target = $region113
  $region112: #{node_movement_forward.1} parent=0 // pred_region
    _
  $region113: #{node_movement_forward.1} parent=0 // pred_fallthru
    _
  // Predicated region
  $region114: #{node_movement_forward.1} parent=0 // pred_check
    _
  $region115: #{node_movement_forward.1} parent=0 // pred_check_branch
    %155 = sbr.rel (0) target = $region117
  $region116: #{node_movement_forward.1} parent=0 // pred_region
    _
  $region117: #{node_movement_forward.1} parent=0 // pred_fallthru
    _
  // Predicated region
  $region118: #{node_movement_forward.1} parent=0 // pred_check
    _
  $region119: #{node_movement_forward.1} parent=0 // pred_check_branch
    %157 = sbr.rel (0) target = $region121
  $region120: #{node_movement_forward.1} parent=0 // pred_region
    _
  $region121: #{node_movement_forward.1} parent=0 // pred_fallthru
    _
  // Predicated region
  $region122: #{node_movement_forward.1} parent=0 // pred_check
    _
  $region123: #{node_movement_forward.1} parent=0 // pred_check_branch
    %159 = sbr.rel (0) target = $region125
  $region124: #{node_movement_forward.1} parent=0 // pred_region
    _
  $region125: #{node_movement_forward.1} parent=0 // pred_fallthru
    _
  // Predicated region
  $region126: #{node_movement_forward.1} parent=0 // pred_check
    _
  $region127: #{node_movement_forward.1} parent=0 // pred_check_branch
    %161 = sbr.rel (0) target = $region129
  $region128: #{node_movement_forward.1} parent=0 // pred_region
    _
  $region129: #{node_movement_forward.1} parent=0 // pred_fallthru
    _
  // Predicated region
  $region130: #{node_movement_forward.1} parent=0 // pred_check
    _
  $region131: #{node_movement_forward.1} parent=0 // pred_check_branch
    %163 = sbr.rel (0) target = $region133
  $region132: #{node_movement_forward.1} parent=0 // pred_region
    _
  $region133: #{node_movement_forward.1} parent=0 // pred_fallthru
    _
  // Predicated region
  $region134: #{node_movement_forward.1} parent=0 // pred_check
    _
  $region135: #{node_movement_forward.1} parent=0 // pred_check_branch
    %165 = sbr.rel (0) target = $region137
  $region136: #{node_movement_forward.1} parent=0 // pred_region
    _
  $region137: #{node_movement_forward.1} parent=0 // pred_fallthru
    _
  // Predicated region
  $region138: #{node_movement_forward.1} parent=0 // pred_check
    _
  $region139: #{node_movement_forward.1} parent=0 // pred_check_branch
    %167 = sbr.rel (0) target = $region141
  $region140: #{node_movement_forward.1} parent=0 // pred_region
    _
  $region141: #{node_movement_forward.1} parent=0 // pred_fallthru
    _
  // Predicated region
  $region142: #{node_movement_forward.1} parent=0 // pred_check
    _
  $region143: #{node_movement_forward.1} parent=0 // pred_check_branch
    %169 = sbr.rel (0) target = $region145
  $region144: #{node_movement_forward.1} parent=0 // pred_region
    _
  $region145: #{node_movement_forward.1} parent=0 // pred_fallthru
    _
  // Predicated region
  $region146: #{node_movement_forward.1} parent=0 // pred_check
    _
  $region147: #{node_movement_forward.1} parent=0 // pred_check_branch
    %171 = sbr.rel (0) target = $region149
  $region148: #{node_movement_forward.1} parent=0 // pred_region
    _
  $region149: #{node_movement_forward.1} parent=0 // pred_fallthru
    _
  // Predicated region
  $region150: #{node_movement_forward.1} parent=0 // pred_check
    _
  $region151: #{node_movement_forward.1} parent=0 // pred_check_branch
    %173 = sbr.rel (0) target = $region153
  $region152: #{node_movement_forward.1} parent=0 // pred_region
    _
  $region153: #{node_movement_forward.1} parent=0 // pred_fallthru
    _
  // Predicated region
  $region154: #{node_movement_forward.1} parent=0 // pred_check
    _
  $region155: #{node_movement_forward.1} parent=0 // pred_check_branch
    %175 = sbr.rel (0) target = $region157
  $region156: #{node_movement_forward.1} parent=0 // pred_region
    _
  $region157: #{node_movement_forward.1} parent=0 // pred_fallthru
    _
  // Predicated region
  $region158: #{node_movement_forward.1} parent=0 // pred_check
    _
  $region159: #{node_movement_forward.1} parent=0 // pred_check_branch
    %177 = sbr.rel (0) target = $region161
  $region160: #{node_movement_forward.1} parent=0 // pred_region
    _
  $region161: #{node_movement_forward.1} parent=0 // pred_fallthru
    _
  // Predicated region
  $region162: #{node_movement_forward.1} parent=0 // pred_check
    _
  $region163: #{node_movement_forward.1} parent=0 // pred_check_branch
    %179 = sbr.rel (0) target = $region165
  $region164: #{node_movement_forward.1} parent=0 // pred_region
    _
  $region165: #{node_movement_forward.1} parent=0 // pred_fallthru
    _
  // Predicated region
  $region166: #{node_movement_forward.1} parent=0 // pred_check
    _
  $region167: #{node_movement_forward.1} parent=0 // pred_check_branch
    %181 = sbr.rel (0) target = $region169
  $region168: #{node_movement_forward.1} parent=0 // pred_region
    _
  $region169: #{node_movement_forward.1} parent=0 // pred_fallthru
    _
  // Predicated region
  $region170: #{node_movement_forward.1} parent=0 // pred_check
    _
  $region171: #{node_movement_forward.1} parent=0 // pred_check_branch
    %183 = sbr.rel (0) target = $region173
  $region172: #{node_movement_forward.1} parent=0 // pred_region
    _
  $region173: #{node_movement_forward.1} parent=0 // pred_fallthru
    _
  // Predicated region
  $region174: #{node_movement_forward.1} parent=0 // pred_check
    _
  $region175: #{node_movement_forward.1} parent=0 // pred_check_branch
    %185 = sbr.rel (0) target = $region177
  $region176: #{node_movement_forward.1} parent=0 // pred_region
    _
  $region177: #{node_movement_forward.1} parent=0 // pred_fallthru
    _
  // Predicated region
  $region178: #{node_movement_forward.1} parent=0 // pred_check
    _
  $region179: #{node_movement_forward.1} parent=0 // pred_check_branch
    %187 = sbr.rel (0) target = $region181
  $region180: #{node_movement_forward.1} parent=0 // pred_region
    _
  $region181: #{node_movement_forward.1} parent=0 // pred_fallthru
    _
  // Predicated region
  $region182: #{node_movement_forward.1} parent=0 // pred_check
    _
  $region183: #{node_movement_forward.1} parent=0 // pred_check_branch
    %189 = sbr.rel (0) target = $region185
  $region184: #{node_movement_forward.1} parent=0 // pred_region
    _
  $region185: #{node_movement_forward.1} parent=0 // pred_fallthru
    _
  %v191 = vlaneseq
  %v192 = vand.u32 %v191, 127
  %v193 = vld [vmem:[%s5] sm:$0xff]
  %v194 = vld [vmem:[%s5 + $0x8] sm:$0xff]
  %v195 = vld [vmem:[%s5 + $0x10] sm:$0xff]
  %v196 = vld [vmem:[%s5 + $0x18] sm:$0xff]
  %v197 = vld [vmem:[%s5 + $0x20] sm:$0xff]
  %v198 = vld [vmem:[%s5 + $0x28] sm:$0xff]
  %v199 = vld [vmem:[%s5 + $0x30] sm:$0xff]
  %v200 = vld [vmem:[%s5 + $0x38] sm:$0xff]
  %v201 = vld [vmem:[%s5 + $0x40] sm:$0xff]
  %v202 = vld [vmem:[%s5 + $0x48] sm:$0xff]
  %v203 = vld [vmem:[%s5 + $0x50] sm:$0xff]
  %v204 = vld [vmem:[%s5 + $0x58] sm:$0xff]
  %v205 = vld [vmem:[%s5 + $0x60] sm:$0xff]
  %v206 = vld [vmem:[%s5 + $0x68] sm:$0xff]
  %v207 = vld [vmem:[%s5 + $0x70] sm:$0xff]
  %v208 = vld [vmem:[%s5 + $0x78] sm:$0xff]
  %v209 = vld [vmem:[%s5 + $0x80] sm:$0xff]
  %v210 = vld [vmem:[%s5 + $0x88] sm:$0xff]
  %v211 = vld [vmem:[%s5 + $0x90] sm:$0xff]
  %v212 = vld [vmem:[%s5 + $0x98] sm:$0xff]
  %v213 = vld [vmem:[%s5 + $0xa0] sm:$0xff]
  %v214 = vld [vmem:[%s5 + $0xa8] sm:$0xff]
  %v215 = vld [vmem:[%s5 + $0xb0] sm:$0xff]
  %v216 = vld [vmem:[%s5 + $0xb8] sm:$0xff]
  %v217 = vld [vmem:[%s5 + $0xc0] sm:$0xff]
  %v218 = vld [vmem:[%s5 + $0xc8] sm:$0xff]
  %v219 = vld [vmem:[%s5 + $0xd0] sm:$0xff]
  %v220 = vld [vmem:[%s5 + $0xd8] sm:$0xff]
  %v221 = vld [vmem:[%s5 + $0xe0] sm:$0xff]
  %v222 = vld [vmem:[%s5 + $0xe8] sm:$0xff]
  %v223 = vld [vmem:[%s5 + $0xf0] sm:$0xff]
  %v224 = vld [vmem:[%s5 + $0xf8] sm:$0xff]
  %v225 = vld [vmem:[%s5 + $0x100] sm:$0xff]
  %v226 = vld [vmem:[%s5 + $0x108] sm:$0xff]
  %v227 = vld [vmem:[%s5 + $0x110] sm:$0xff]
  %v228 = vld [vmem:[%s5 + $0x118] sm:$0xff]
  %v229 = vld [vmem:[%s5 + $0x120] sm:$0xff]
  %v230 = vld [vmem:[%s5 + $0x128] sm:$0xff]
  %v231 = vld [vmem:[%s5 + $0x130] sm:$0xff]
  %v232 = vld [vmem:[%s5 + $0x138] sm:$0xff]
  %v233 = vld [vmem:[%s5 + $0x140] sm:$0xff]
  %v234 = vld [vmem:[%s5 + $0x148] sm:$0xff]
  %v235 = vld [vmem:[%s5 + $0x150] sm:$0xff]
  %v236 = vld [vmem:[%s5 + $0x158] sm:$0xff]
  %v237 = vld [vmem:[%s5 + $0x160] sm:$0xff]
  %v238 = vld [vmem:[%s5 + $0x168] sm:$0xff]
  %v239 = vld [vmem:[%s5 + $0x170] sm:$0xff]
  %v240 = vld [vmem:[%s5 + $0x178] sm:$0xff]
  %v241 = vld [vmem:[%s5 + $0x180] sm:$0xff]
  %v242 = vld [vmem:[%s5 + $0x188] sm:$0xff]
  %v243 = vld [vmem:[%s5 + $0x190] sm:$0xff]
  %v244 = vld [vmem:[%s5 + $0x198] sm:$0xff]
  %v245 = vld [vmem:[%s5 + $0x1a0] sm:$0xff]
  %v246 = vld [vmem:[%s5 + $0x1a8] sm:$0xff]
  %v247 = vld [vmem:[%s5 + $0x1b0] sm:$0xff]
  %v248 = vld [vmem:[%s5 + $0x1b8] sm:$0xff]
  %v249 = vld [vmem:[%s5 + $0x1c0] sm:$0xff]
  %v250 = vld [vmem:[%s5 + $0x1c8] sm:$0xff]
  %v251 = vld [vmem:[%s5 + $0x1d0] sm:$0xff]
  %v252 = vld [vmem:[%s5 + $0x1d8] sm:$0xff]
  %v253 = vld [vmem:[%s5 + $0x1e0] sm:$0xff]
  %v254 = vld [vmem:[%s5 + $0x1e8] sm:$0xff]
  %v255 = vld [vmem:[%s5 + $0x1f0] sm:$0xff]
  %v256 = vld [vmem:[%s5 + $0x1f8] sm:$0xff]
  %257 = vset.pattern.permute.xlu0 0
  %258 = vperm.xlu0 %257, %v193
  %v259 = vpop.permute.xlu0 %258
  %260 = vset.pattern.permute.xlu0 0
  %261 = vperm.xlu0 %260, %v194
  %v262 = vpop.permute.xlu0 %261
  %263 = vset.pattern.permute.xlu0 0
  %264 = vperm.xlu0 %263, %v195
  %v265 = vpop.permute.xlu0 %264
  %266 = vset.pattern.permute.xlu0 0
  %267 = vperm.xlu0 %266, %v196
  %v268 = vpop.permute.xlu0 %267
  %269 = vset.pattern.permute.xlu0 0
  %270 = vperm.xlu0 %269, %v197
  %v271 = vpop.permute.xlu0 %270
  %272 = vset.pattern.permute.xlu0 0
  %273 = vperm.xlu0 %272, %v198
  %v274 = vpop.permute.xlu0 %273
  %275 = vset.pattern.permute.xlu0 0
  %276 = vperm.xlu0 %275, %v199
  %v277 = vpop.permute.xlu0 %276
  %278 = vset.pattern.permute.xlu0 0
  %279 = vperm.xlu0 %278, %v200
  %v280 = vpop.permute.xlu0 %279
  %281 = vset.pattern.permute.xlu0 0
  %282 = vperm.xlu0 %281, %v201
  %v283 = vpop.permute.xlu0 %282
  %284 = vset.pattern.permute.xlu0 0
  %285 = vperm.xlu0 %284, %v202
  %v286 = vpop.permute.xlu0 %285
  %287 = vset.pattern.permute.xlu0 0
  %288 = vperm.xlu0 %287, %v203
  %v289 = vpop.permute.xlu0 %288
  %290 = vset.pattern.permute.xlu0 0
  %291 = vperm.xlu0 %290, %v204
  %v292 = vpop.permute.xlu0 %291
  %293 = vset.pattern.permute.xlu0 0
  %294 = vperm.xlu0 %293, %v205
  %v295 = vpop.permute.xlu0 %294
  %296 = vset.pattern.permute.xlu0 0
  %297 = vperm.xlu0 %296, %v206
  %v298 = vpop.permute.xlu0 %297
  %299 = vset.pattern.permute.xlu0 0
  %300 = vperm.xlu0 %299, %v207
  %v301 = vpop.permute.xlu0 %300
  %302 = vset.pattern.permute.xlu0 0
  %303 = vperm.xlu0 %302, %v208
  %v304 = vpop.permute.xlu0 %303
  %305 = vset.pattern.permute.xlu0 0
  %306 = vperm.xlu0 %305, %v209
  %v307 = vpop.permute.xlu0 %306
  %308 = vset.pattern.permute.xlu0 0
  %309 = vperm.xlu0 %308, %v210
  %v310 = vpop.permute.xlu0 %309
  %311 = vset.pattern.permute.xlu0 0
  %312 = vperm.xlu0 %311, %v211
  %v313 = vpop.permute.xlu0 %312
  %314 = vset.pattern.permute.xlu0 0
  %315 = vperm.xlu0 %314, %v212
  %v316 = vpop.permute.xlu0 %315
  %317 = vset.pattern.permute.xlu0 0
  %318 = vperm.xlu0 %317, %v213
  %v319 = vpop.permute.xlu0 %318
  %320 = vset.pattern.permute.xlu0 0
  %321 = vperm.xlu0 %320, %v214
  %v322 = vpop.permute.xlu0 %321
  %323 = vset.pattern.permute.xlu0 0
  %324 = vperm.xlu0 %323, %v215
  %v325 = vpop.permute.xlu0 %324
  %326 = vset.pattern.permute.xlu0 0
  %327 = vperm.xlu0 %326, %v216
  %v328 = vpop.permute.xlu0 %327
  %329 = vset.pattern.permute.xlu0 0
  %330 = vperm.xlu0 %329, %v217
  %v331 = vpop.permute.xlu0 %330
  %332 = vset.pattern.permute.xlu0 0
  %333 = vperm.xlu0 %332, %v218
  %v334 = vpop.permute.xlu0 %333
  %335 = vset.pattern.permute.xlu0 0
  %336 = vperm.xlu0 %335, %v219
  %v337 = vpop.permute.xlu0 %336
  %338 = vset.pattern.permute.xlu0 0
  %339 = vperm.xlu0 %338, %v220
  %v340 = vpop.permute.xlu0 %339
  %341 = vset.pattern.permute.xlu0 0
  %342 = vperm.xlu0 %341, %v221
  %v343 = vpop.permute.xlu0 %342
  %344 = vset.pattern.permute.xlu0 0
  %345 = vperm.xlu0 %344, %v222
  %v346 = vpop.permute.xlu0 %345
  %347 = vset.pattern.permute.xlu0 0
  %348 = vperm.xlu0 %347, %v223
  %v349 = vpop.permute.xlu0 %348
  %350 = vset.pattern.permute.xlu0 0
  %351 = vperm.xlu0 %350, %v224
  %v352 = vpop.permute.xlu0 %351
  %353 = vset.pattern.permute.xlu0 0
  %354 = vperm.xlu0 %353, %v225
  %v355 = vpop.permute.xlu0 %354
  %356 = vset.pattern.permute.xlu0 0
  %357 = vperm.xlu0 %356, %v226
  %v358 = vpop.permute.xlu0 %357
  %359 = vset.pattern.permute.xlu0 0
  %360 = vperm.xlu0 %359, %v227
  %v361 = vpop.permute.xlu0 %360
  %362 = vset.pattern.permute.xlu0 0
  %363 = vperm.xlu0 %362, %v228
  %v364 = vpop.permute.xlu0 %363
  %365 = vset.pattern.permute.xlu0 0
  %366 = vperm.xlu0 %365, %v229
  %v367 = vpop.permute.xlu0 %366
  %368 = vset.pattern.permute.xlu0 0
  %369 = vperm.xlu0 %368, %v230
  %v370 = vpop.permute.xlu0 %369
  %371 = vset.pattern.permute.xlu0 0
  %372 = vperm.xlu0 %371, %v231
  %v373 = vpop.permute.xlu0 %372
  %374 = vset.pattern.permute.xlu0 0
  %375 = vperm.xlu0 %374, %v232
  %v376 = vpop.permute.xlu0 %375
  %377 = vset.pattern.permute.xlu0 0
  %378 = vperm.xlu0 %377, %v233
  %v379 = vpop.permute.xlu0 %378
  %380 = vset.pattern.permute.xlu0 0
  %381 = vperm.xlu0 %380, %v234
  %v382 = vpop.permute.xlu0 %381
  %383 = vset.pattern.permute.xlu0 0
  %384 = vperm.xlu0 %383, %v235
  %v385 = vpop.permute.xlu0 %384
  %386 = vset.pattern.permute.xlu0 0
  %387 = vperm.xlu0 %386, %v236
  %v388 = vpop.permute.xlu0 %387
  %389 = vset.pattern.permute.xlu0 0
  %390 = vperm.xlu0 %389, %v237
  %v391 = vpop.permute.xlu0 %390
  %392 = vset.pattern.permute.xlu0 0
  %393 = vperm.xlu0 %392, %v238
  %v394 = vpop.permute.xlu0 %393
  %395 = vset.pattern.permute.xlu0 0
  %396 = vperm.xlu0 %395, %v239
  %v397 = vpop.permute.xlu0 %396
  %398 = vset.pattern.permute.xlu0 0
  %399 = vperm.xlu0 %398, %v240
  %v400 = vpop.permute.xlu0 %399
  %401 = vset.pattern.permute.xlu0 0
  %402 = vperm.xlu0 %401, %v241
  %v403 = vpop.permute.xlu0 %402
  %404 = vset.pattern.permute.xlu0 0
  %405 = vperm.xlu0 %404, %v242
  %v406 = vpop.permute.xlu0 %405
  %407 = vset.pattern.permute.xlu0 0
  %408 = vperm.xlu0 %407, %v243
  %v409 = vpop.permute.xlu0 %408
  %410 = vset.pattern.permute.xlu0 0
  %411 = vperm.xlu0 %410, %v244
  %v412 = vpop.permute.xlu0 %411
  %413 = vset.pattern.permute.xlu0 0
  %414 = vperm.xlu0 %413, %v245
  %v415 = vpop.permute.xlu0 %414
  %416 = vset.pattern.permute.xlu0 0
  %417 = vperm.xlu0 %416, %v246
  %v418 = vpop.permute.xlu0 %417
  %419 = vset.pattern.permute.xlu0 0
  %420 = vperm.xlu0 %419, %v247
  %v421 = vpop.permute.xlu0 %420
  %422 = vset.pattern.permute.xlu0 0
  %423 = vperm.xlu0 %422, %v248
  %v424 = vpop.permute.xlu0 %423
  %425 = vset.pattern.permute.xlu0 0
  %426 = vperm.xlu0 %425, %v249
  %v427 = vpop.permute.xlu0 %426
  %428 = vset.pattern.permute.xlu0 0
  %429 = vperm.xlu0 %428, %v250
  %v430 = vpop.permute.xlu0 %429
  %431 = vset.pattern.permute.xlu0 0
  %432 = vperm.xlu0 %431, %v251
  %v433 = vpop.permute.xlu0 %432
  %434 = vset.pattern.permute.xlu0 0
  %435 = vperm.xlu0 %434, %v252
  %v436 = vpop.permute.xlu0 %435
  %437 = vset.pattern.permute.xlu0 0
  %438 = vperm.xlu0 %437, %v253
  %v439 = vpop.permute.xlu0 %438
  %440 = vset.pattern.permute.xlu0 0
  %441 = vperm.xlu0 %440, %v254
  %v442 = vpop.permute.xlu0 %441
  %443 = vset.pattern.permute.xlu0 0
  %444 = vperm.xlu0 %443, %v255
  %v445 = vpop.permute.xlu0 %444
  %446 = vset.pattern.permute.xlu0 0
  %447 = vperm.xlu0 %446, %v256
  %v448 = vpop.permute.xlu0 %447
  %vm449 = vcmp.eq.s32.totalorder %v192, %v259
  %vm450 = vcmp.eq.s32.totalorder %v192, %v262
  %vm451 = vcmp.eq.s32.totalorder %v192, %v265
  %vm452 = vcmp.eq.s32.totalorder %v192, %v268
  %vm453 = vcmp.eq.s32.totalorder %v192, %v271
  %vm454 = vcmp.eq.s32.totalorder %v192, %v274
  %vm455 = vcmp.eq.s32.totalorder %v192, %v277
  %vm456 = vcmp.eq.s32.totalorder %v192, %v280
  %vm457 = vcmp.eq.s32.totalorder %v192, %v283
  %vm458 = vcmp.eq.s32.totalorder %v192, %v286
  %vm459 = vcmp.eq.s32.totalorder %v192, %v289
  %vm460 = vcmp.eq.s32.totalorder %v192, %v292
  %vm461 = vcmp.eq.s32.totalorder %v192, %v295
  %vm462 = vcmp.eq.s32.totalorder %v192, %v298
  %vm463 = vcmp.eq.s32.totalorder %v192, %v301
  %vm464 = vcmp.eq.s32.totalorder %v192, %v304
  %vm465 = vcmp.eq.s32.totalorder %v192, %v307
  %vm466 = vcmp.eq.s32.totalorder %v192, %v310
  %vm467 = vcmp.eq.s32.totalorder %v192, %v313
  %vm468 = vcmp.eq.s32.totalorder %v192, %v316
  %vm469 = vcmp.eq.s32.totalorder %v192, %v319
  %vm470 = vcmp.eq.s32.totalorder %v192, %v322
  %vm471 = vcmp.eq.s32.totalorder %v192, %v325
  %vm472 = vcmp.eq.s32.totalorder %v192, %v328
  %vm473 = vcmp.eq.s32.totalorder %v192, %v331
  %vm474 = vcmp.eq.s32.totalorder %v192, %v334
  %vm475 = vcmp.eq.s32.totalorder %v192, %v337
  %vm476 = vcmp.eq.s32.totalorder %v192, %v340
  %vm477 = vcmp.eq.s32.totalorder %v192, %v343
  %vm478 = vcmp.eq.s32.totalorder %v192, %v346
  %vm479 = vcmp.eq.s32.totalorder %v192, %v349
  %vm480 = vcmp.eq.s32.totalorder %v192, %v352
  %vm481 = vcmp.eq.s32.totalorder %v192, %v355
  %vm482 = vcmp.eq.s32.totalorder %v192, %v358
  %vm483 = vcmp.eq.s32.totalorder %v192, %v361
  %vm484 = vcmp.eq.s32.totalorder %v192, %v364
  %vm485 = vcmp.eq.s32.totalorder %v192, %v367
  %vm486 = vcmp.eq.s32.totalorder %v192, %v370
  %vm487 = vcmp.eq.s32.totalorder %v192, %v373
  %vm488 = vcmp.eq.s32.totalorder %v192, %v376
  %vm489 = vcmp.eq.s32.totalorder %v192, %v379
  %vm490 = vcmp.eq.s32.totalorder %v192, %v382
  %vm491 = vcmp.eq.s32.totalorder %v192, %v385
  %vm492 = vcmp.eq.s32.totalorder %v192, %v388
  %vm493 = vcmp.eq.s32.totalorder %v192, %v391
  %vm494 = vcmp.eq.s32.totalorder %v192, %v394
  %vm495 = vcmp.eq.s32.totalorder %v192, %v397
  %vm496 = vcmp.eq.s32.totalorder %v192, %v400
  %vm497 = vcmp.eq.s32.totalorder %v192, %v403
  %vm498 = vcmp.eq.s32.totalorder %v192, %v406
  %vm499 = vcmp.eq.s32.totalorder %v192, %v409
  %vm500 = vcmp.eq.s32.totalorder %v192, %v412
  %vm501 = vcmp.eq.s32.totalorder %v192, %v415
  %vm502 = vcmp.eq.s32.totalorder %v192, %v418
  %vm503 = vcmp.eq.s32.totalorder %v192, %v421
  %vm504 = vcmp.eq.s32.totalorder %v192, %v424
  %vm505 = vcmp.eq.s32.totalorder %v192, %v427
  %vm506 = vcmp.eq.s32.totalorder %v192, %v430
  %vm507 = vcmp.eq.s32.totalorder %v192, %v433
  %vm508 = vcmp.eq.s32.totalorder %v192, %v436
  %vm509 = vcmp.eq.s32.totalorder %v192, %v439
  %vm510 = vcmp.eq.s32.totalorder %v192, %v442
  %vm511 = vcmp.eq.s32.totalorder %v192, %v445
  %vm512 = vcmp.eq.s32.totalorder %v192, %v448
  %v513 = vsel %vm449, 1, 0
  %v514 = vsel %vm450, 1, 0
  %v515 = vsel %vm451, 1, 0
  %v516 = vsel %vm452, 1, 0
  %v517 = vsel %vm453, 1, 0
  %v518 = vsel %vm454, 1, 0
  %v519 = vsel %vm455, 1, 0
  %v520 = vsel %vm456, 1, 0
  %v521 = vsel %vm457, 1, 0
  %v522 = vsel %vm458, 1, 0
  %v523 = vsel %vm459, 1, 0
  %v524 = vsel %vm460, 1, 0
  %v525 = vsel %vm461, 1, 0
  %v526 = vsel %vm462, 1, 0
  %v527 = vsel %vm463, 1, 0
  %v528 = vsel %vm464, 1, 0
  %v529 = vsel %vm465, 1, 0
  %v530 = vsel %vm466, 1, 0
  %v531 = vsel %vm467, 1, 0
  %v532 = vsel %vm468, 1, 0
  %v533 = vsel %vm469, 1, 0
  %v534 = vsel %vm470, 1, 0
  %v535 = vsel %vm471, 1, 0
  %v536 = vsel %vm472, 1, 0
  %v537 = vsel %vm473, 1, 0
  %v538 = vsel %vm474, 1, 0
  %v539 = vsel %vm475, 1, 0
  %v540 = vsel %vm476, 1, 0
  %v541 = vsel %vm477, 1, 0
  %v542 = vsel %vm478, 1, 0
  %v543 = vsel %vm479, 1, 0
  %v544 = vsel %vm480, 1, 0
  %v545 = vsel %vm481, 1, 0
  %v546 = vsel %vm482, 1, 0
  %v547 = vsel %vm483, 1, 0
  %v548 = vsel %vm484, 1, 0
  %v549 = vsel %vm485, 1, 0
  %v550 = vsel %vm486, 1, 0
  %v551 = vsel %vm487, 1, 0
  %v552 = vsel %vm488, 1, 0
  %v553 = vsel %vm489, 1, 0
  %v554 = vsel %vm490, 1, 0
  %v555 = vsel %vm491, 1, 0
  %v556 = vsel %vm492, 1, 0
  %v557 = vsel %vm493, 1, 0
  %v558 = vsel %vm494, 1, 0
  %v559 = vsel %vm495, 1, 0
  %v560 = vsel %vm496, 1, 0
  %v561 = vsel %vm497, 1, 0
  %v562 = vsel %vm498, 1, 0
  %v563 = vsel %vm499, 1, 0
  %v564 = vsel %vm500, 1, 0
  %v565 = vsel %vm501, 1, 0
  %v566 = vsel %vm502, 1, 0
  %v567 = vsel %vm503, 1, 0
  %v568 = vsel %vm504, 1, 0
  %v569 = vsel %vm505, 1, 0
  %v570 = vsel %vm506, 1, 0
  %v571 = vsel %vm507, 1, 0
  %v572 = vsel %vm508, 1, 0
  %v573 = vsel %vm509, 1, 0
  %v574 = vsel %vm510, 1, 0
  %v575 = vsel %vm511, 1, 0
  %v576 = vsel %vm512, 1, 0
  %v577 = vcvt.s32.f32 %v513
  %v578 = vcvt.s32.f32 %v514
  %v579 = vcvt.s32.f32 %v515
  %v580 = vcvt.s32.f32 %v516
  %v581 = vcvt.s32.f32 %v517
  %v582 = vcvt.s32.f32 %v518
  %v583 = vcvt.s32.f32 %v519
  %v584 = vcvt.s32.f32 %v520
  %v585 = vcvt.s32.f32 %v521
  %v586 = vcvt.s32.f32 %v522
  %v587 = vcvt.s32.f32 %v523
  %v588 = vcvt.s32.f32 %v524
  %v589 = vcvt.s32.f32 %v525
  %v590 = vcvt.s32.f32 %v526
  %v591 = vcvt.s32.f32 %v527
  %v592 = vcvt.s32.f32 %v528
  %v593 = vcvt.s32.f32 %v529
  %v594 = vcvt.s32.f32 %v530
  %v595 = vcvt.s32.f32 %v531
  %v596 = vcvt.s32.f32 %v532
  %v597 = vcvt.s32.f32 %v533
  %v598 = vcvt.s32.f32 %v534
  %v599 = vcvt.s32.f32 %v535
  %v600 = vcvt.s32.f32 %v536
  %v601 = vcvt.s32.f32 %v537
  %v602 = vcvt.s32.f32 %v538
  %v603 = vcvt.s32.f32 %v539
  %v604 = vcvt.s32.f32 %v540
  %v605 = vcvt.s32.f32 %v541
  %v606 = vcvt.s32.f32 %v542
  %v607 = vcvt.s32.f32 %v543
  %v608 = vcvt.s32.f32 %v544
  %v609 = vcvt.s32.f32 %v545
  %v610 = vcvt.s32.f32 %v546
  %v611 = vcvt.s32.f32 %v547
  %v612 = vcvt.s32.f32 %v548
  %v613 = vcvt.s32.f32 %v549
  %v614 = vcvt.s32.f32 %v550
  %v615 = vcvt.s32.f32 %v551
  %v616 = vcvt.s32.f32 %v552
  %v617 = vcvt.s32.f32 %v553
  %v618 = vcvt.s32.f32 %v554
  %v619 = vcvt.s32.f32 %v555
  %v620 = vcvt.s32.f32 %v556
  %v621 = vcvt.s32.f32 %v557
  %v622 = vcvt.s32.f32 %v558
  %v623 = vcvt.s32.f32 %v559
  %v624 = vcvt.s32.f32 %v560
  %v625 = vcvt.s32.f32 %v561
  %v626 = vcvt.s32.f32 %v562
  %v627 = vcvt.s32.f32 %v563
  %v628 = vcvt.s32.f32 %v564
  %v629 = vcvt.s32.f32 %v565
  %v630 = vcvt.s32.f32 %v566
  %v631 = vcvt.s32.f32 %v567
  %v632 = vcvt.s32.f32 %v568
  %v633 = vcvt.s32.f32 %v569
  %v634 = vcvt.s32.f32 %v570
  %v635 = vcvt.s32.f32 %v571
  %v636 = vcvt.s32.f32 %v572
  %v637 = vcvt.s32.f32 %v573
  %v638 = vcvt.s32.f32 %v574
  %v639 = vcvt.s32.f32 %v575
  %v640 = vcvt.s32.f32 %v576
  %v641 = vpack.c.bf16 %v578, %v577
  %v642 = vpack.c.bf16 %v580, %v579
  %v643 = vpack.c.bf16 %v582, %v581
  %v644 = vpack.c.bf16 %v584, %v583
  %v645 = vpack.c.bf16 %v586, %v585
  %v646 = vpack.c.bf16 %v588, %v587
  %v647 = vpack.c.bf16 %v590, %v589
  %v648 = vpack.c.bf16 %v592, %v591
  %v649 = vpack.c.bf16 %v594, %v593
  %v650 = vpack.c.bf16 %v596, %v595
  %v651 = vpack.c.bf16 %v598, %v597
  %v652 = vpack.c.bf16 %v600, %v599
  %v653 = vpack.c.bf16 %v602, %v601
  %v654 = vpack.c.bf16 %v604, %v603
  %v655 = vpack.c.bf16 %v606, %v605
  %v656 = vpack.c.bf16 %v608, %v607
  %v657 = vpack.c.bf16 %v610, %v609
  %v658 = vpack.c.bf16 %v612, %v611
  %v659 = vpack.c.bf16 %v614, %v613
  %v660 = vpack.c.bf16 %v616, %v615
  %v661 = vpack.c.bf16 %v618, %v617
  %v662 = vpack.c.bf16 %v620, %v619
  %v663 = vpack.c.bf16 %v622, %v621
  %v664 = vpack.c.bf16 %v624, %v623
  %v665 = vpack.c.bf16 %v626, %v625
  %v666 = vpack.c.bf16 %v628, %v627
  %v667 = vpack.c.bf16 %v630, %v629
  %v668 = vpack.c.bf16 %v632, %v631
  %v669 = vpack.c.bf16 %v634, %v633
  %v670 = vpack.c.bf16 %v636, %v635
  %v671 = vpack.c.bf16 %v638, %v637
  %v672 = vpack.c.bf16 %v640, %v639
  %v673 = vld [vmem:[%s7] sm:$0xff]
  %v674 = vld [vmem:[%s7 + $0x8] sm:$0xff]
  %v675 = vld [vmem:[%s7 + $0x10] sm:$0xff]
  %v676 = vld [vmem:[%s7 + $0x18] sm:$0xff]
  %v677 = vld [vmem:[%s7 + $0x20] sm:$0xff]
  %v678 = vld [vmem:[%s7 + $0x28] sm:$0xff]
  %v679 = vld [vmem:[%s7 + $0x30] sm:$0xff]
  %v680 = vld [vmem:[%s7 + $0x38] sm:$0xff]
  %v681 = vld [vmem:[%s7 + $0x40] sm:$0xff]
  %v682 = vld [vmem:[%s7 + $0x48] sm:$0xff]
  %v683 = vld [vmem:[%s7 + $0x50] sm:$0xff]
  %v684 = vld [vmem:[%s7 + $0x58] sm:$0xff]
  %v685 = vld [vmem:[%s7 + $0x60] sm:$0xff]
  %v686 = vld [vmem:[%s7 + $0x68] sm:$0xff]
  %v687 = vld [vmem:[%s7 + $0x70] sm:$0xff]
  %v688 = vld [vmem:[%s7 + $0x78] sm:$0xff]
  %v689 = vld [vmem:[%s7 + $0x80] sm:$0xff]
  %v690 = vld [vmem:[%s7 + $0x88] sm:$0xff]
  %v691 = vld [vmem:[%s7 + $0x90] sm:$0xff]
  %v692 = vld [vmem:[%s7 + $0x98] sm:$0xff]
  %v693 = vld [vmem:[%s7 + $0xa0] sm:$0xff]
  %v694 = vld [vmem:[%s7 + $0xa8] sm:$0xff]
  %v695 = vld [vmem:[%s7 + $0xb0] sm:$0xff]
  %v696 = vld [vmem:[%s7 + $0xb8] sm:$0xff]
  %v697 = vld [vmem:[%s7 + $0xc0] sm:$0xff]
  %v698 = vld [vmem:[%s7 + $0xc8] sm:$0xff]
  %v699 = vld [vmem:[%s7 + $0xd0] sm:$0xff]
  %v700 = vld [vmem:[%s7 + $0xd8] sm:$0xff]
  %v701 = vld [vmem:[%s7 + $0xe0] sm:$0xff]
  %v702 = vld [vmem:[%s7 + $0xe8] sm:$0xff]
  %v703 = vld [vmem:[%s7 + $0xf0] sm:$0xff]
  %v704 = vld [vmem:[%s7 + $0xf8] sm:$0xff]
  %v705 = vld [vmem:[%s7 + $0x100] sm:$0xff]
  %v706 = vld [vmem:[%s7 + $0x108] sm:$0xff]
  %v707 = vld [vmem:[%s7 + $0x110] sm:$0xff]
  %v708 = vld [vmem:[%s7 + $0x118] sm:$0xff]
  %v709 = vld [vmem:[%s7 + $0x120] sm:$0xff]
  %v710 = vld [vmem:[%s7 + $0x128] sm:$0xff]
  %v711 = vld [vmem:[%s7 + $0x130] sm:$0xff]
  %v712 = vld [vmem:[%s7 + $0x138] sm:$0xff]
  %v713 = vld [vmem:[%s7 + $0x140] sm:$0xff]
  %v714 = vld [vmem:[%s7 + $0x148] sm:$0xff]
  %v715 = vld [vmem:[%s7 + $0x150] sm:$0xff]
  %v716 = vld [vmem:[%s7 + $0x158] sm:$0xff]
  %v717 = vld [vmem:[%s7 + $0x160] sm:$0xff]
  %v718 = vld [vmem:[%s7 + $0x168] sm:$0xff]
  %v719 = vld [vmem:[%s7 + $0x170] sm:$0xff]
  %v720 = vld [vmem:[%s7 + $0x178] sm:$0xff]
  %v721 = vld [vmem:[%s7 + $0x180] sm:$0xff]
  %v722 = vld [vmem:[%s7 + $0x188] sm:$0xff]
  %v723 = vld [vmem:[%s7 + $0x190] sm:$0xff]
  %v724 = vld [vmem:[%s7 + $0x198] sm:$0xff]
  %v725 = vld [vmem:[%s7 + $0x1a0] sm:$0xff]
  %v726 = vld [vmem:[%s7 + $0x1a8] sm:$0xff]
  %v727 = vld [vmem:[%s7 + $0x1b0] sm:$0xff]
  %v728 = vld [vmem:[%s7 + $0x1b8] sm:$0xff]
  %v729 = vld [vmem:[%s7 + $0x1c0] sm:$0xff]
  %v730 = vld [vmem:[%s7 + $0x1c8] sm:$0xff]
  %v731 = vld [vmem:[%s7 + $0x1d0] sm:$0xff]
  %v732 = vld [vmem:[%s7 + $0x1d8] sm:$0xff]
  %v733 = vld [vmem:[%s7 + $0x1e0] sm:$0xff]
  %v734 = vld [vmem:[%s7 + $0x1e8] sm:$0xff]
  %v735 = vld [vmem:[%s7 + $0x1f0] sm:$0xff]
  %v736 = vld [vmem:[%s7 + $0x1f8] sm:$0xff]
  %737 = vset.pattern.permute.xlu0 0
  %738 = vperm.xlu0 %737, %v673
  %v739 = vpop.permute.xlu0 %738
  %740 = vset.pattern.permute.xlu0 0
  %741 = vperm.xlu0 %740, %v674
  %v742 = vpop.permute.xlu0 %741
  %743 = vset.pattern.permute.xlu0 0
  %744 = vperm.xlu0 %743, %v675
  %v745 = vpop.permute.xlu0 %744
  %746 = vset.pattern.permute.xlu0 0
  %747 = vperm.xlu0 %746, %v676
  %v748 = vpop.permute.xlu0 %747
  %749 = vset.pattern.permute.xlu0 0
  %750 = vperm.xlu0 %749, %v677
  %v751 = vpop.permute.xlu0 %750
  %752 = vset.pattern.permute.xlu0 0
  %753 = vperm.xlu0 %752, %v678
  %v754 = vpop.permute.xlu0 %753
  %755 = vset.pattern.permute.xlu0 0
  %756 = vperm.xlu0 %755, %v679
  %v757 = vpop.permute.xlu0 %756
  %758 = vset.pattern.permute.xlu0 0
  %759 = vperm.xlu0 %758, %v680
  %v760 = vpop.permute.xlu0 %759
  %761 = vset.pattern.permute.xlu0 0
  %762 = vperm.xlu0 %761, %v681
  %v763 = vpop.permute.xlu0 %762
  %764 = vset.pattern.permute.xlu0 0
  %765 = vperm.xlu0 %764, %v682
  %v766 = vpop.permute.xlu0 %765
  %767 = vset.pattern.permute.xlu0 0
  %768 = vperm.xlu0 %767, %v683
  %v769 = vpop.permute.xlu0 %768
  %770 = vset.pattern.permute.xlu0 0
  %771 = vperm.xlu0 %770, %v684
  %v772 = vpop.permute.xlu0 %771
  %773 = vset.pattern.permute.xlu0 0
  %774 = vperm.xlu0 %773, %v685
  %v775 = vpop.permute.xlu0 %774
  %776 = vset.pattern.permute.xlu0 0
  %777 = vperm.xlu0 %776, %v686
  %v778 = vpop.permute.xlu0 %777
  %779 = vset.pattern.permute.xlu0 0
  %780 = vperm.xlu0 %779, %v687
  %v781 = vpop.permute.xlu0 %780
  %782 = vset.pattern.permute.xlu0 0
  %783 = vperm.xlu0 %782, %v688
  %v784 = vpop.permute.xlu0 %783
  %785 = vset.pattern.permute.xlu0 0
  %786 = vperm.xlu0 %785, %v689
  %v787 = vpop.permute.xlu0 %786
  %788 = vset.pattern.permute.xlu0 0
  %789 = vperm.xlu0 %788, %v690
  %v790 = vpop.permute.xlu0 %789
  %791 = vset.pattern.permute.xlu0 0
  %792 = vperm.xlu0 %791, %v691
  %v793 = vpop.permute.xlu0 %792
  %794 = vset.pattern.permute.xlu0 0
  %795 = vperm.xlu0 %794, %v692
  %v796 = vpop.permute.xlu0 %795
  %797 = vset.pattern.permute.xlu0 0
  %798 = vperm.xlu0 %797, %v693
  %v799 = vpop.permute.xlu0 %798
  %800 = vset.pattern.permute.xlu0 0
  %801 = vperm.xlu0 %800, %v694
  %v802 = vpop.permute.xlu0 %801
  %803 = vset.pattern.permute.xlu0 0
  %804 = vperm.xlu0 %803, %v695
  %v805 = vpop.permute.xlu0 %804
  %806 = vset.pattern.permute.xlu0 0
  %807 = vperm.xlu0 %806, %v696
  %v808 = vpop.permute.xlu0 %807
  %809 = vset.pattern.permute.xlu0 0
  %810 = vperm.xlu0 %809, %v697
  %v811 = vpop.permute.xlu0 %810
  %812 = vset.pattern.permute.xlu0 0
  %813 = vperm.xlu0 %812, %v698
  %v814 = vpop.permute.xlu0 %813
  %815 = vset.pattern.permute.xlu0 0
  %816 = vperm.xlu0 %815, %v699
  %v817 = vpop.permute.xlu0 %816
  %818 = vset.pattern.permute.xlu0 0
  %819 = vperm.xlu0 %818, %v700
  %v820 = vpop.permute.xlu0 %819
  %821 = vset.pattern.permute.xlu0 0
  %822 = vperm.xlu0 %821, %v701
  %v823 = vpop.permute.xlu0 %822
  %824 = vset.pattern.permute.xlu0 0
  %825 = vperm.xlu0 %824, %v702
  %v826 = vpop.permute.xlu0 %825
  %827 = vset.pattern.permute.xlu0 0
  %828 = vperm.xlu0 %827, %v703
  %v829 = vpop.permute.xlu0 %828
  %830 = vset.pattern.permute.xlu0 0
  %831 = vperm.xlu0 %830, %v704
  %v832 = vpop.permute.xlu0 %831
  %833 = vset.pattern.permute.xlu0 0
  %834 = vperm.xlu0 %833, %v705
  %v835 = vpop.permute.xlu0 %834
  %836 = vset.pattern.permute.xlu0 0
  %837 = vperm.xlu0 %836, %v706
  %v838 = vpop.permute.xlu0 %837
  %839 = vset.pattern.permute.xlu0 0
  %840 = vperm.xlu0 %839, %v707
  %v841 = vpop.permute.xlu0 %840
  %842 = vset.pattern.permute.xlu0 0
  %843 = vperm.xlu0 %842, %v708
  %v844 = vpop.permute.xlu0 %843
  %845 = vset.pattern.permute.xlu0 0
  %846 = vperm.xlu0 %845, %v709
  %v847 = vpop.permute.xlu0 %846
  %848 = vset.pattern.permute.xlu0 0
  %849 = vperm.xlu0 %848, %v710
  %v850 = vpop.permute.xlu0 %849
  %851 = vset.pattern.permute.xlu0 0
  %852 = vperm.xlu0 %851, %v711
  %v853 = vpop.permute.xlu0 %852
  %854 = vset.pattern.permute.xlu0 0
  %855 = vperm.xlu0 %854, %v712
  %v856 = vpop.permute.xlu0 %855
  %857 = vset.pattern.permute.xlu0 0
  %858 = vperm.xlu0 %857, %v713
  %v859 = vpop.permute.xlu0 %858
  %860 = vset.pattern.permute.xlu0 0
  %861 = vperm.xlu0 %860, %v714
  %v862 = vpop.permute.xlu0 %861
  %863 = vset.pattern.permute.xlu0 0
  %864 = vperm.xlu0 %863, %v715
  %v865 = vpop.permute.xlu0 %864
  %866 = vset.pattern.permute.xlu0 0
  %867 = vperm.xlu0 %866, %v716
  %v868 = vpop.permute.xlu0 %867
  %869 = vset.pattern.permute.xlu0 0
  %870 = vperm.xlu0 %869, %v717
  %v871 = vpop.permute.xlu0 %870
  %872 = vset.pattern.permute.xlu0 0
  %873 = vperm.xlu0 %872, %v718
  %v874 = vpop.permute.xlu0 %873
  %875 = vset.pattern.permute.xlu0 0
  %876 = vperm.xlu0 %875, %v719
  %v877 = vpop.permute.xlu0 %876
  %878 = vset.pattern.permute.xlu0 0
  %879 = vperm.xlu0 %878, %v720
  %v880 = vpop.permute.xlu0 %879
  %881 = vset.pattern.permute.xlu0 0
  %882 = vperm.xlu0 %881, %v721
  %v883 = vpop.permute.xlu0 %882
  %884 = vset.pattern.permute.xlu0 0
  %885 = vperm.xlu0 %884, %v722
  %v886 = vpop.permute.xlu0 %885
  %887 = vset.pattern.permute.xlu0 0
  %888 = vperm.xlu0 %887, %v723
  %v889 = vpop.permute.xlu0 %888
  %890 = vset.pattern.permute.xlu0 0
  %891 = vperm.xlu0 %890, %v724
  %v892 = vpop.permute.xlu0 %891
  %893 = vset.pattern.permute.xlu0 0
  %894 = vperm.xlu0 %893, %v725
  %v895 = vpop.permute.xlu0 %894
  %896 = vset.pattern.permute.xlu0 0
  %897 = vperm.xlu0 %896, %v726
  %v898 = vpop.permute.xlu0 %897
  %899 = vset.pattern.permute.xlu0 0
  %900 = vperm.xlu0 %899, %v727
  %v901 = vpop.permute.xlu0 %900
  %902 = vset.pattern.permute.xlu0 0
  %903 = vperm.xlu0 %902, %v728
  %v904 = vpop.permute.xlu0 %903
  %905 = vset.pattern.permute.xlu0 0
  %906 = vperm.xlu0 %905, %v729
  %v907 = vpop.permute.xlu0 %906
  %908 = vset.pattern.permute.xlu0 0
  %909 = vperm.xlu0 %908, %v730
  %v910 = vpop.permute.xlu0 %909
  %911 = vset.pattern.permute.xlu0 0
  %912 = vperm.xlu0 %911, %v731
  %v913 = vpop.permute.xlu0 %912
  %914 = vset.pattern.permute.xlu0 0
  %915 = vperm.xlu0 %914, %v732
  %v916 = vpop.permute.xlu0 %915
  %917 = vset.pattern.permute.xlu0 0
  %918 = vperm.xlu0 %917, %v733
  %v919 = vpop.permute.xlu0 %918
  %920 = vset.pattern.permute.xlu0 0
  %921 = vperm.xlu0 %920, %v734
  %v922 = vpop.permute.xlu0 %921
  %923 = vset.pattern.permute.xlu0 0
  %924 = vperm.xlu0 %923, %v735
  %v925 = vpop.permute.xlu0 %924
  %926 = vset.pattern.permute.xlu0 0
  %927 = vperm.xlu0 %926, %v736
  %v928 = vpop.permute.xlu0 %927
  %vm929 = vcmp.eq.s32.totalorder %v192, %v739
  %vm930 = vcmp.eq.s32.totalorder %v192, %v742
  %vm931 = vcmp.eq.s32.totalorder %v192, %v745
  %vm932 = vcmp.eq.s32.totalorder %v192, %v748
  %vm933 = vcmp.eq.s32.totalorder %v192, %v751
  %vm934 = vcmp.eq.s32.totalorder %v192, %v754
  %vm935 = vcmp.eq.s32.totalorder %v192, %v757
  %vm936 = vcmp.eq.s32.totalorder %v192, %v760
  %vm937 = vcmp.eq.s32.totalorder %v192, %v763
  %vm938 = vcmp.eq.s32.totalorder %v192, %v766
  %vm939 = vcmp.eq.s32.totalorder %v192, %v769
  %vm940 = vcmp.eq.s32.totalorder %v192, %v772
  %vm941 = vcmp.eq.s32.totalorder %v192, %v775
  %vm942 = vcmp.eq.s32.totalorder %v192, %v778
  %vm943 = vcmp.eq.s32.totalorder %v192, %v781
  %vm944 = vcmp.eq.s32.totalorder %v192, %v784
  %vm945 = vcmp.eq.s32.totalorder %v192, %v787
  %vm946 = vcmp.eq.s32.totalorder %v192, %v790
  %vm947 = vcmp.eq.s32.totalorder %v192, %v793
  %vm948 = vcmp.eq.s32.totalorder %v192, %v796
  %vm949 = vcmp.eq.s32.totalorder %v192, %v799
  %vm950 = vcmp.eq.s32.totalorder %v192, %v802
  %vm951 = vcmp.eq.s32.totalorder %v192, %v805
  %vm952 = vcmp.eq.s32.totalorder %v192, %v808
  %vm953 = vcmp.eq.s32.totalorder %v192, %v811
  %vm954 = vcmp.eq.s32.totalorder %v192, %v814
  %vm955 = vcmp.eq.s32.totalorder %v192, %v817
  %vm956 = vcmp.eq.s32.totalorder %v192, %v820
  %vm957 = vcmp.eq.s32.totalorder %v192, %v823
  %vm958 = vcmp.eq.s32.totalorder %v192, %v826
  %vm959 = vcmp.eq.s32.totalorder %v192, %v829
  %vm960 = vcmp.eq.s32.totalorder %v192, %v832
  %vm961 = vcmp.eq.s32.totalorder %v192, %v835
  %vm962 = vcmp.eq.s32.totalorder %v192, %v838
  %vm963 = vcmp.eq.s32.totalorder %v192, %v841
  %vm964 = vcmp.eq.s32.totalorder %v192, %v844
  %vm965 = vcmp.eq.s32.totalorder %v192, %v847
  %vm966 = vcmp.eq.s32.totalorder %v192, %v850
  %vm967 = vcmp.eq.s32.totalorder %v192, %v853
  %vm968 = vcmp.eq.s32.totalorder %v192, %v856
  %vm969 = vcmp.eq.s32.totalorder %v192, %v859
  %vm970 = vcmp.eq.s32.totalorder %v192, %v862
  %vm971 = vcmp.eq.s32.totalorder %v192, %v865
  %vm972 = vcmp.eq.s32.totalorder %v192, %v868
  %vm973 = vcmp.eq.s32.totalorder %v192, %v871
  %vm974 = vcmp.eq.s32.totalorder %v192, %v874
  %vm975 = vcmp.eq.s32.totalorder %v192, %v877
  %vm976 = vcmp.eq.s32.totalorder %v192, %v880
  %vm977 = vcmp.eq.s32.totalorder %v192, %v883
  %vm978 = vcmp.eq.s32.totalorder %v192, %v886
  %vm979 = vcmp.eq.s32.totalorder %v192, %v889
  %vm980 = vcmp.eq.s32.totalorder %v192, %v892
  %vm981 = vcmp.eq.s32.totalorder %v192, %v895
  %vm982 = vcmp.eq.s32.totalorder %v192, %v898
  %vm983 = vcmp.eq.s32.totalorder %v192, %v901
  %vm984 = vcmp.eq.s32.totalorder %v192, %v904
  %vm985 = vcmp.eq.s32.totalorder %v192, %v907
  %vm986 = vcmp.eq.s32.totalorder %v192, %v910
  %vm987 = vcmp.eq.s32.totalorder %v192, %v913
  %vm988 = vcmp.eq.s32.totalorder %v192, %v916
  %vm989 = vcmp.eq.s32.totalorder %v192, %v919
  %vm990 = vcmp.eq.s32.totalorder %v192, %v922
  %vm991 = vcmp.eq.s32.totalorder %v192, %v925
  %vm992 = vcmp.eq.s32.totalorder %v192, %v928
  %v993 = vsel %vm929, 1, 0
  %v994 = vsel %vm930, 1, 0
  %v995 = vsel %vm931, 1, 0
  %v996 = vsel %vm932, 1, 0
  %v997 = vsel %vm933, 1, 0
  %v998 = vsel %vm934, 1, 0
  %v999 = vsel %vm935, 1, 0
  %v1000 = vsel %vm936, 1, 0
  %v1001 = vsel %vm937, 1, 0
  %v1002 = vsel %vm938, 1, 0
  %v1003 = vsel %vm939, 1, 0
  %v1004 = vsel %vm940, 1, 0
  %v1005 = vsel %vm941, 1, 0
  %v1006 = vsel %vm942, 1, 0
  %v1007 = vsel %vm943, 1, 0
  %v1008 = vsel %vm944, 1, 0
  %v1009 = vsel %vm945, 1, 0
  %v1010 = vsel %vm946, 1, 0
  %v1011 = vsel %vm947, 1, 0
  %v1012 = vsel %vm948, 1, 0
  %v1013 = vsel %vm949, 1, 0
  %v1014 = vsel %vm950, 1, 0
  %v1015 = vsel %vm951, 1, 0
  %v1016 = vsel %vm952, 1, 0
  %v1017 = vsel %vm953, 1, 0
  %v1018 = vsel %vm954, 1, 0
  %v1019 = vsel %vm955, 1, 0
  %v1020 = vsel %vm956, 1, 0
  %v1021 = vsel %vm957, 1, 0
  %v1022 = vsel %vm958, 1, 0
  %v1023 = vsel %vm959, 1, 0
  %v1024 = vsel %vm960, 1, 0
  %v1025 = vsel %vm961, 1, 0
  %v1026 = vsel %vm962, 1, 0
  %v1027 = vsel %vm963, 1, 0
  %v1028 = vsel %vm964, 1, 0
  %v1029 = vsel %vm965, 1, 0
  %v1030 = vsel %vm966, 1, 0
  %v1031 = vsel %vm967, 1, 0
  %v1032 = vsel %vm968, 1, 0
  %v1033 = vsel %vm969, 1, 0
  %v1034 = vsel %vm970, 1, 0
  %v1035 = vsel %vm971, 1, 0
  %v1036 = vsel %vm972, 1, 0
  %v1037 = vsel %vm973, 1, 0
  %v1038 = vsel %vm974, 1, 0
  %v1039 = vsel %vm975, 1, 0
  %v1040 = vsel %vm976, 1, 0
  %v1041 = vsel %vm977, 1, 0
  %v1042 = vsel %vm978, 1, 0
  %v1043 = vsel %vm979, 1, 0
  %v1044 = vsel %vm980, 1, 0
  %v1045 = vsel %vm981, 1, 0
  %v1046 = vsel %vm982, 1, 0
  %v1047 = vsel %vm983, 1, 0
  %v1048 = vsel %vm984, 1, 0
  %v1049 = vsel %vm985, 1, 0
  %v1050 = vsel %vm986, 1, 0
  %v1051 = vsel %vm987, 1, 0
  %v1052 = vsel %vm988, 1, 0
  %v1053 = vsel %vm989, 1, 0
  %v1054 = vsel %vm990, 1, 0
  %v1055 = vsel %vm991, 1, 0
  %v1056 = vsel %vm992, 1, 0
  %v1057 = vcvt.s32.f32 %v993
  %v1058 = vcvt.s32.f32 %v994
  %v1059 = vcvt.s32.f32 %v995
  %v1060 = vcvt.s32.f32 %v996
  %v1061 = vcvt.s32.f32 %v997
  %v1062 = vcvt.s32.f32 %v998
  %v1063 = vcvt.s32.f32 %v999
  %v1064 = vcvt.s32.f32 %v1000
  %v1065 = vcvt.s32.f32 %v1001
  %v1066 = vcvt.s32.f32 %v1002
  %v1067 = vcvt.s32.f32 %v1003
  %v1068 = vcvt.s32.f32 %v1004
  %v1069 = vcvt.s32.f32 %v1005
  %v1070 = vcvt.s32.f32 %v1006
  %v1071 = vcvt.s32.f32 %v1007
  %v1072 = vcvt.s32.f32 %v1008
  %v1073 = vcvt.s32.f32 %v1009
  %v1074 = vcvt.s32.f32 %v1010
  %v1075 = vcvt.s32.f32 %v1011
  %v1076 = vcvt.s32.f32 %v1012
  %v1077 = vcvt.s32.f32 %v1013
  %v1078 = vcvt.s32.f32 %v1014
  %v1079 = vcvt.s32.f32 %v1015
  %v1080 = vcvt.s32.f32 %v1016
  %v1081 = vcvt.s32.f32 %v1017
  %v1082 = vcvt.s32.f32 %v1018
  %v1083 = vcvt.s32.f32 %v1019
  %v1084 = vcvt.s32.f32 %v1020
  %v1085 = vcvt.s32.f32 %v1021
  %v1086 = vcvt.s32.f32 %v1022
  %v1087 = vcvt.s32.f32 %v1023
  %v1088 = vcvt.s32.f32 %v1024
  %v1089 = vcvt.s32.f32 %v1025
  %v1090 = vcvt.s32.f32 %v1026
  %v1091 = vcvt.s32.f32 %v1027
  %v1092 = vcvt.s32.f32 %v1028
  %v1093 = vcvt.s32.f32 %v1029
  %v1094 = vcvt.s32.f32 %v1030
  %v1095 = vcvt.s32.f32 %v1031
  %v1096 = vcvt.s32.f32 %v1032
  %v1097 = vcvt.s32.f32 %v1033
  %v1098 = vcvt.s32.f32 %v1034
  %v1099 = vcvt.s32.f32 %v1035
  %v1100 = vcvt.s32.f32 %v1036
  %v1101 = vcvt.s32.f32 %v1037
  %v1102 = vcvt.s32.f32 %v1038
  %v1103 = vcvt.s32.f32 %v1039
  %v1104 = vcvt.s32.f32 %v1040
  %v1105 = vcvt.s32.f32 %v1041
  %v1106 = vcvt.s32.f32 %v1042
  %v1107 = vcvt.s32.f32 %v1043
  %v1108 = vcvt.s32.f32 %v1044
  %v1109 = vcvt.s32.f32 %v1045
  %v1110 = vcvt.s32.f32 %v1046
  %v1111 = vcvt.s32.f32 %v1047
  %v1112 = vcvt.s32.f32 %v1048
  %v1113 = vcvt.s32.f32 %v1049
  %v1114 = vcvt.s32.f32 %v1050
  %v1115 = vcvt.s32.f32 %v1051
  %v1116 = vcvt.s32.f32 %v1052
  %v1117 = vcvt.s32.f32 %v1053
  %v1118 = vcvt.s32.f32 %v1054
  %v1119 = vcvt.s32.f32 %v1055
  %v1120 = vcvt.s32.f32 %v1056
  %v1121 = vpack.c.bf16 %v1058, %v1057
  %v1122 = vpack.c.bf16 %v1060, %v1059
  %v1123 = vpack.c.bf16 %v1062, %v1061
  %v1124 = vpack.c.bf16 %v1064, %v1063
  %v1125 = vpack.c.bf16 %v1066, %v1065
  %v1126 = vpack.c.bf16 %v1068, %v1067
  %v1127 = vpack.c.bf16 %v1070, %v1069
  %v1128 = vpack.c.bf16 %v1072, %v1071
  %v1129 = vpack.c.bf16 %v1074, %v1073
  %v1130 = vpack.c.bf16 %v1076, %v1075
  %v1131 = vpack.c.bf16 %v1078, %v1077
  %v1132 = vpack.c.bf16 %v1080, %v1079
  %v1133 = vpack.c.bf16 %v1082, %v1081
  %v1134 = vpack.c.bf16 %v1084, %v1083
  %v1135 = vpack.c.bf16 %v1086, %v1085
  %v1136 = vpack.c.bf16 %v1088, %v1087
  %v1137 = vpack.c.bf16 %v1090, %v1089
  %v1138 = vpack.c.bf16 %v1092, %v1091
  %v1139 = vpack.c.bf16 %v1094, %v1093
  %v1140 = vpack.c.bf16 %v1096, %v1095
  %v1141 = vpack.c.bf16 %v1098, %v1097
  %v1142 = vpack.c.bf16 %v1100, %v1099
  %v1143 = vpack.c.bf16 %v1102, %v1101
  %v1144 = vpack.c.bf16 %v1104, %v1103
  %v1145 = vpack.c.bf16 %v1106, %v1105
  %v1146 = vpack.c.bf16 %v1108, %v1107
  %v1147 = vpack.c.bf16 %v1110, %v1109
  %v1148 = vpack.c.bf16 %v1112, %v1111
  %v1149 = vpack.c.bf16 %v1114, %v1113
  %v1150 = vpack.c.bf16 %v1116, %v1115
  %v1151 = vpack.c.bf16 %v1118, %v1117
  %v1152 = vpack.c.bf16 %v1120, %v1119
  %v1153 = vunpack.c.l.bf16 %v1121
  %v1154 = vunpack.c.h.bf16 %v1121
  %v1155 = vunpack.c.l.bf16 %v1122
  %v1156 = vunpack.c.h.bf16 %v1122
  %v1157 = vunpack.c.l.bf16 %v1123
  %v1158 = vunpack.c.h.bf16 %v1123
  %v1159 = vunpack.c.l.bf16 %v1124
  %v1160 = vunpack.c.h.bf16 %v1124
  %v1161 = vunpack.c.l.bf16 %v1125
  %v1162 = vunpack.c.h.bf16 %v1125
  %v1163 = vunpack.c.l.bf16 %v1126
  %v1164 = vunpack.c.h.bf16 %v1126
  %v1165 = vunpack.c.l.bf16 %v1127
  %v1166 = vunpack.c.h.bf16 %v1127
  %v1167 = vunpack.c.l.bf16 %v1128
  %v1168 = vunpack.c.h.bf16 %v1128
  %v1169 = vunpack.c.l.bf16 %v1129
  %v1170 = vunpack.c.h.bf16 %v1129
  %v1171 = vunpack.c.l.bf16 %v1130
  %v1172 = vunpack.c.h.bf16 %v1130
  %v1173 = vunpack.c.l.bf16 %v1131
  %v1174 = vunpack.c.h.bf16 %v1131
  %v1175 = vunpack.c.l.bf16 %v1132
  %v1176 = vunpack.c.h.bf16 %v1132
  %v1177 = vunpack.c.l.bf16 %v1133
  %v1178 = vunpack.c.h.bf16 %v1133
  %v1179 = vunpack.c.l.bf16 %v1134
  %v1180 = vunpack.c.h.bf16 %v1134
  %v1181 = vunpack.c.l.bf16 %v1135
  %v1182 = vunpack.c.h.bf16 %v1135
  %v1183 = vunpack.c.l.bf16 %v1136
  %v1184 = vunpack.c.h.bf16 %v1136
  %v1185 = vunpack.c.l.bf16 %v1137
  %v1186 = vunpack.c.h.bf16 %v1137
  %v1187 = vunpack.c.l.bf16 %v1138
  %v1188 = vunpack.c.h.bf16 %v1138
  %v1189 = vunpack.c.l.bf16 %v1139
  %v1190 = vunpack.c.h.bf16 %v1139
  %v1191 = vunpack.c.l.bf16 %v1140
  %v1192 = vunpack.c.h.bf16 %v1140
  %v1193 = vunpack.c.l.bf16 %v1141
  %v1194 = vunpack.c.h.bf16 %v1141
  %v1195 = vunpack.c.l.bf16 %v1142
  %v1196 = vunpack.c.h.bf16 %v1142
  %v1197 = vunpack.c.l.bf16 %v1143
  %v1198 = vunpack.c.h.bf16 %v1143
  %v1199 = vunpack.c.l.bf16 %v1144
  %v1200 = vunpack.c.h.bf16 %v1144
  %v1201 = vunpack.c.l.bf16 %v1145
  %v1202 = vunpack.c.h.bf16 %v1145
  %v1203 = vunpack.c.l.bf16 %v1146
  %v1204 = vunpack.c.h.bf16 %v1146
  %v1205 = vunpack.c.l.bf16 %v1147
  %v1206 = vunpack.c.h.bf16 %v1147
  %v1207 = vunpack.c.l.bf16 %v1148
  %v1208 = vunpack.c.h.bf16 %v1148
  %v1209 = vunpack.c.l.bf16 %v1149
  %v1210 = vunpack.c.h.bf16 %v1149
  %v1211 = vunpack.c.l.bf16 %v1150
  %v1212 = vunpack.c.h.bf16 %v1150
  %v1213 = vunpack.c.l.bf16 %v1151
  %v1214 = vunpack.c.h.bf16 %v1151
  %v1215 = vunpack.c.l.bf16 %v1152
  %v1216 = vunpack.c.h.bf16 %v1152
  %1217 = vxpose.xlu0.b32.start [1/16] %v1153, 128
  %1218 = vxpose.xlu0.b32.cont [2/16] %v1154, 128
  %1219 = vxpose.xlu0.b32.cont [3/16] %v1155, 128
  %1220 = vxpose.xlu0.b32.cont [4/16] %v1156, 128
  %1221 = vxpose.xlu0.b32.cont [5/16] %v1157, 128
  %1222 = vxpose.xlu0.b32.cont [6/16] %v1158, 128
  %1223 = vxpose.xlu0.b32.cont [7/16] %v1159, 128
  %1224 = vxpose.xlu0.b32.cont [8/16] %v1160, 128
  %1225 = vxpose.xlu0.b32.cont [9/16] %v1161, 128
  %1226 = vxpose.xlu0.b32.cont [10/16] %v1162, 128
  %1227 = vxpose.xlu0.b32.cont [11/16] %v1163, 128
  %1228 = vxpose.xlu0.b32.cont [12/16] %v1164, 128
  %1229 = vxpose.xlu0.b32.cont [13/16] %v1165, 128
  %1230 = vxpose.xlu0.b32.cont [14/16] %v1166, 128
  %1231 = vxpose.xlu0.b32.cont [15/16] %v1167, 128
  %1232 = vxpose.xlu0.b32.end [16/16] %v1168, 128
  %v1233 = vpop.trf.xlu0
  %v1234 = vpop.trf.xlu0
  %v1235 = vpop.trf.xlu0
  %v1236 = vpop.trf.xlu0
  %v1237 = vpop.trf.xlu0
  %v1238 = vpop.trf.xlu0
  %v1239 = vpop.trf.xlu0
  %v1240 = vpop.trf.xlu0
  %v1241 = vpop.trf.xlu0
  %v1242 = vpop.trf.xlu0
  %v1243 = vpop.trf.xlu0
  %v1244 = vpop.trf.xlu0
  %v1245 = vpop.trf.xlu0
  %v1246 = vpop.trf.xlu0
  %v1247 = vpop.trf.xlu0
  %v1248 = vpop.trf.xlu0
  %1249 = vxpose.xlu0.b32.start [1/16] %v1169, 128
  %1250 = vxpose.xlu0.b32.cont [2/16] %v1170, 128
  %1251 = vxpose.xlu0.b32.cont [3/16] %v1171, 128
  %1252 = vxpose.xlu0.b32.cont [4/16] %v1172, 128
  %1253 = vxpose.xlu0.b32.cont [5/16] %v1173, 128
  %1254 = vxpose.xlu0.b32.cont [6/16] %v1174, 128
  %1255 = vxpose.xlu0.b32.cont [7/16] %v1175, 128
  %1256 = vxpose.xlu0.b32.cont [8/16] %v1176, 128
  %1257 = vxpose.xlu0.b32.cont [9/16] %v1177, 128
  %1258 = vxpose.xlu0.b32.cont [10/16] %v1178, 128
  %1259 = vxpose.xlu0.b32.cont [11/16] %v1179, 128
  %1260 = vxpose.xlu0.b32.cont [12/16] %v1180, 128
  %1261 = vxpose.xlu0.b32.cont [13/16] %v1181, 128
  %1262 = vxpose.xlu0.b32.cont [14/16] %v1182, 128
  %1263 = vxpose.xlu0.b32.cont [15/16] %v1183, 128
  %1264 = vxpose.xlu0.b32.end [16/16] %v1184, 128
  %v1265 = vpop.trf.xlu0
  %v1266 = vpop.trf.xlu0
  %v1267 = vpop.trf.xlu0
  %v1268 = vpop.trf.xlu0
  %v1269 = vpop.trf.xlu0
  %v1270 = vpop.trf.xlu0
  %v1271 = vpop.trf.xlu0
  %v1272 = vpop.trf.xlu0
  %v1273 = vpop.trf.xlu0
  %v1274 = vpop.trf.xlu0
  %v1275 = vpop.trf.xlu0
  %v1276 = vpop.trf.xlu0
  %v1277 = vpop.trf.xlu0
  %v1278 = vpop.trf.xlu0
  %v1279 = vpop.trf.xlu0
  %v1280 = vpop.trf.xlu0
  %1281 = vxpose.xlu0.b32.start [1/16] %v1185, 128
  %1282 = vxpose.xlu0.b32.cont [2/16] %v1186, 128
  %1283 = vxpose.xlu0.b32.cont [3/16] %v1187, 128
  %1284 = vxpose.xlu0.b32.cont [4/16] %v1188, 128
  %1285 = vxpose.xlu0.b32.cont [5/16] %v1189, 128
  %1286 = vxpose.xlu0.b32.cont [6/16] %v1190, 128
  %1287 = vxpose.xlu0.b32.cont [7/16] %v1191, 128
  %1288 = vxpose.xlu0.b32.cont [8/16] %v1192, 128
  %1289 = vxpose.xlu0.b32.cont [9/16] %v1193, 128
  %1290 = vxpose.xlu0.b32.cont [10/16] %v1194, 128
  %1291 = vxpose.xlu0.b32.cont [11/16] %v1195, 128
  %1292 = vxpose.xlu0.b32.cont [12/16] %v1196, 128
  %1293 = vxpose.xlu0.b32.cont [13/16] %v1197, 128
  %1294 = vxpose.xlu0.b32.cont [14/16] %v1198, 128
  %1295 = vxpose.xlu0.b32.cont [15/16] %v1199, 128
  %1296 = vxpose.xlu0.b32.end [16/16] %v1200, 128
  %v1297 = vpop.trf.xlu0
  %v1298 = vpop.trf.xlu0
  %v1299 = vpop.trf.xlu0
  %v1300 = vpop.trf.xlu0
  %v1301 = vpop.trf.xlu0
  %v1302 = vpop.trf.xlu0
  %v1303 = vpop.trf.xlu0
  %v1304 = vpop.trf.xlu0
  %v1305 = vpop.trf.xlu0
  %v1306 = vpop.trf.xlu0
  %v1307 = vpop.trf.xlu0
  %v1308 = vpop.trf.xlu0
  %v1309 = vpop.trf.xlu0
  %v1310 = vpop.trf.xlu0
  %v1311 = vpop.trf.xlu0
  %v1312 = vpop.trf.xlu0
  %1313 = vxpose.xlu0.b32.start [1/16] %v1201, 128
  %1314 = vxpose.xlu0.b32.cont [2/16] %v1202, 128
  %1315 = vxpose.xlu0.b32.cont [3/16] %v1203, 128
  %1316 = vxpose.xlu0.b32.cont [4/16] %v1204, 128
  %1317 = vxpose.xlu0.b32.cont [5/16] %v1205, 128
  %1318 = vxpose.xlu0.b32.cont [6/16] %v1206, 128
  %1319 = vxpose.xlu0.b32.cont [7/16] %v1207, 128
  %1320 = vxpose.xlu0.b32.cont [8/16] %v1208, 128
  %1321 = vxpose.xlu0.b32.cont [9/16] %v1209, 128
  %1322 = vxpose.xlu0.b32.cont [10/16] %v1210, 128
  %1323 = vxpose.xlu0.b32.cont [11/16] %v1211, 128
  %1324 = vxpose.xlu0.b32.cont [12/16] %v1212, 128
  %1325 = vxpose.xlu0.b32.cont [13/16] %v1213, 128
  %1326 = vxpose.xlu0.b32.cont [14/16] %v1214, 128
  %1327 = vxpose.xlu0.b32.cont [15/16] %v1215, 128
  %1328 = vxpose.xlu0.b32.end [16/16] %v1216, 128
  %v1329 = vpop.trf.xlu0
  %v1330 = vpop.trf.xlu0
  %v1331 = vpop.trf.xlu0
  %v1332 = vpop.trf.xlu0
  %v1333 = vpop.trf.xlu0
  %v1334 = vpop.trf.xlu0
  %v1335 = vpop.trf.xlu0
  %v1336 = vpop.trf.xlu0
  %v1337 = vpop.trf.xlu0
  %v1338 = vpop.trf.xlu0
  %v1339 = vpop.trf.xlu0
  %v1340 = vpop.trf.xlu0
  %v1341 = vpop.trf.xlu0
  %v1342 = vpop.trf.xlu0
  %v1343 = vpop.trf.xlu0
  %v1344 = vpop.trf.xlu0
  %v1345 = vpack.c.bf16 %v1234, %v1233
  %v1346 = vpack.c.bf16 %v1266, %v1265
  %v1347 = vpack.c.bf16 %v1298, %v1297
  %v1348 = vpack.c.bf16 %v1330, %v1329
  %v1349 = vpack.c.bf16 %v1236, %v1235
  %v1350 = vpack.c.bf16 %v1268, %v1267
  %v1351 = vpack.c.bf16 %v1300, %v1299
  %v1352 = vpack.c.bf16 %v1332, %v1331
  %v1353 = vpack.c.bf16 %v1238, %v1237
  %v1354 = vpack.c.bf16 %v1270, %v1269
  %v1355 = vpack.c.bf16 %v1302, %v1301
  %v1356 = vpack.c.bf16 %v1334, %v1333
  %v1357 = vpack.c.bf16 %v1240, %v1239
  %v1358 = vpack.c.bf16 %v1272, %v1271
  %v1359 = vpack.c.bf16 %v1304, %v1303
  %v1360 = vpack.c.bf16 %v1336, %v1335
  %v1361 = vpack.c.bf16 %v1242, %v1241
  %v1362 = vpack.c.bf16 %v1274, %v1273
  %v1363 = vpack.c.bf16 %v1306, %v1305
  %v1364 = vpack.c.bf16 %v1338, %v1337
  %v1365 = vpack.c.bf16 %v1244, %v1243
  %v1366 = vpack.c.bf16 %v1276, %v1275
  %v1367 = vpack.c.bf16 %v1308, %v1307
  %v1368 = vpack.c.bf16 %v1340, %v1339
  %v1369 = vpack.c.bf16 %v1246, %v1245
  %v1370 = vpack.c.bf16 %v1278, %v1277
  %v1371 = vpack.c.bf16 %v1310, %v1309
  %v1372 = vpack.c.bf16 %v1342, %v1341
  %v1373 = vpack.c.bf16 %v1248, %v1247
  %v1374 = vpack.c.bf16 %v1280, %v1279
  %v1375 = vpack.c.bf16 %v1312, %v1311
  %v1376 = vpack.c.bf16 %v1344, %v1343
  %v1377 = vld [vmem:[%s1] sm:$0xff]
  %v1378 = vld [vmem:[%s1 + $0x8] sm:$0xff]
  %v1379 = vld [vmem:[%s1 + $0x10] sm:$0xff]
  %v1380 = vld [vmem:[%s1 + $0x18] sm:$0xff]
  %v1381 = vld [vmem:[%s1 + $0x20] sm:$0xff]
  %v1382 = vld [vmem:[%s1 + $0x28] sm:$0xff]
  %v1383 = vld [vmem:[%s1 + $0x30] sm:$0xff]
  %v1384 = vld [vmem:[%s1 + $0x38] sm:$0xff]
  %v1385 = vld [vmem:[%s1 + $0x40] sm:$0xff]
  %v1386 = vld [vmem:[%s1 + $0x48] sm:$0xff]
  %v1387 = vld [vmem:[%s1 + $0x50] sm:$0xff]
  %v1388 = vld [vmem:[%s1 + $0x58] sm:$0xff]
  %v1389 = vld [vmem:[%s1 + $0x60] sm:$0xff]
  %v1390 = vld [vmem:[%s1 + $0x68] sm:$0xff]
  %v1391 = vld [vmem:[%s1 + $0x70] sm:$0xff]
  %v1392 = vld [vmem:[%s1 + $0x78] sm:$0xff]
  %v1393 = vld [vmem:[%s9] sm:$0x3]
  %v1394 = vpack.c.bf16 %v1378, %v1377
  %v1395 = vpack.c.bf16 %v1380, %v1379
  %v1396 = vpack.c.bf16 %v1382, %v1381
  %v1397 = vpack.c.bf16 %v1384, %v1383
  %v1398 = vpack.c.bf16 %v1386, %v1385
  %v1399 = vpack.c.bf16 %v1388, %v1387
  %v1400 = vpack.c.bf16 %v1390, %v1389
  %v1401 = vpack.c.bf16 %v1392, %v1391
  %v1402 = vld [vmem:[%s11] sm:$0x1]
  %v1404 = vlaneseq
  %v1405 = vshrl.u32 %v1404, 7
  %v1406 = vsub.s32 0, %v1405
  %v1407 = vrot.slane %v1402, %v1406
  %vm1409 = vcmask 31744
  %v1411 = vsel %vm1409, %v1394, 0
  %v1414 = vsel %vm1409, %v1395, 0
  %v1417 = vsel %vm1409, %v1396, 0
  %v1420 = vsel %vm1409, %v1397, 0
  %v1423 = vsel %vm1409, %v1398, 0
  %v1426 = vsel %vm1409, %v1399, 0
  %v1429 = vsel %vm1409, %v1400, 0
  %v1432 = vsel %vm1409, %v1401, 0
  %vm1434 = vcmask 1041408
  %v1436 = vsel %vm1434, %v1393, 0
  %1438 = vmatprep.subr.bf16.mxu0 0
  %1439 = vmatpush1.bf16.msra.mxu0 0
  %1440 = vmatprep.subr.bf16.mxu0 0
  %1441 = vmatpush1.bf16.msra.mxu0 0
  %1442 = vmatprep.subr.bf16.mxu0 0
  %1443 = vmatpush1.bf16.msra.mxu0 0
  %1444 = vmatprep.subr.bf16.mxu0 0
  %1445 = vmatpush1.bf16.msra.mxu0 0
  %1446 = vmatprep.subr.bf16.mxu0 0
  %1447 = vmatpush1.bf16.msra.mxu0 0
  %1448 = vmatprep.subr.bf16.mxu0 0
  %1449 = vmatpush1.bf16.msra.mxu0 0
  %1450 = vmatprep.subr.bf16.mxu0 0
  %1451 = vmatpush1.bf16.msra.mxu0 0
  %1452 = vmatprep.subr.bf16.mxu0 0
  %1453 = vmatpush1.bf16.msra.mxu0 %v1436
  %1454 = vmatprep.subr.bf16.mxu0 0
  %1455 = vmatpush2.bf16.msra.mxu0 0
  %1456 = vmatprep.subr.bf16.mxu0 0
  %1457 = vmatpush2.bf16.msra.mxu0 0
  %1458 = vmatprep.subr.bf16.mxu0 0
  %1459 = vmatpush2.bf16.msra.mxu0 0
  %1460 = vmatprep.subr.bf16.mxu0 0
  %1461 = vmatpush2.bf16.msra.mxu0 0
  %1462 = vmatprep.subr.bf16.mxu0 0
  %1463 = vmatpush2.bf16.msra.mxu0 0
  %1464 = vmatprep.subr.bf16.mxu0 0
  %1465 = vmatpush2.bf16.msra.mxu0 0
  %1466 = vmatprep.subr.bf16.mxu0 0
  %1467 = vmatpush2.bf16.msra.mxu0 0
  %1468 = vmatprep.subr.bf16.mxu0 0
  %1469 = vmatpush2.bf16.msra.mxu0 0
  %1470 = vmatprep.mubr.bf16.mxu0 0
  %1471 = vmatmul.mubr.bf16.gmra.mxu0 %v1411
  %v1472 = vpop.f32.mrf.mxu0
  %v1473 = vadd.f32 %v1407, %v1472
  %v1474 = vpop.f32.mrf.mxu0
  %v1475 = vpop.f32.mrf.mxu0
  %v1476 = vadd.f32 %v1407, %v1475
  %v1477 = vpop.f32.mrf.mxu0
  %1478 = vmatprep.mubr.bf16.mxu0 0
  %1479 = vmatmul.mubr.bf16.gmra.mxu0 %v1414
  %v1480 = vpop.f32.mrf.mxu0
  %v1481 = vadd.f32 %v1407, %v1480
  %v1482 = vpop.f32.mrf.mxu0
  %v1483 = vpop.f32.mrf.mxu0
  %v1484 = vadd.f32 %v1407, %v1483
  %v1485 = vpop.f32.mrf.mxu0
  %1486 = vmatprep.mubr.bf16.mxu0 0
  %1487 = vmatmul.mubr.bf16.gmra.mxu0 %v1417
  %v1488 = vpop.f32.mrf.mxu0
  %v1489 = vadd.f32 %v1407, %v1488
  %v1490 = vpop.f32.mrf.mxu0
  %v1491 = vpop.f32.mrf.mxu0
  %v1492 = vadd.f32 %v1407, %v1491
  %v1493 = vpop.f32.mrf.mxu0
  %1494 = vmatprep.mubr.bf16.mxu0 0
  %1495 = vmatmul.mubr.bf16.gmra.mxu0 %v1420
  %v1496 = vpop.f32.mrf.mxu0
  %v1497 = vadd.f32 %v1407, %v1496
  %v1498 = vpop.f32.mrf.mxu0
  %v1499 = vpop.f32.mrf.mxu0
  %v1500 = vadd.f32 %v1407, %v1499
  %v1501 = vpop.f32.mrf.mxu0
  %1502 = vmatprep.mubr.bf16.mxu0 0
  %1503 = vmatmul.mubr.bf16.gmra.mxu0 %v1423
  %v1504 = vpop.f32.mrf.mxu0
  %v1505 = vadd.f32 %v1407, %v1504
  %v1506 = vpop.f32.mrf.mxu0
  %v1507 = vpop.f32.mrf.mxu0
  %v1508 = vadd.f32 %v1407, %v1507
  %v1509 = vpop.f32.mrf.mxu0
  %1510 = vmatprep.mubr.bf16.mxu0 0
  %1511 = vmatmul.mubr.bf16.gmra.mxu0 %v1426
  %v1512 = vpop.f32.mrf.mxu0
  %v1513 = vadd.f32 %v1407, %v1512
  %v1514 = vpop.f32.mrf.mxu0
  %v1515 = vpop.f32.mrf.mxu0
  %v1516 = vadd.f32 %v1407, %v1515
  %v1517 = vpop.f32.mrf.mxu0
  %1518 = vmatprep.mubr.bf16.mxu0 0
  %1519 = vmatmul.mubr.bf16.gmra.mxu0 %v1429
  %v1520 = vpop.f32.mrf.mxu0
  %v1521 = vadd.f32 %v1407, %v1520
  %v1522 = vpop.f32.mrf.mxu0
  %v1523 = vpop.f32.mrf.mxu0
  %v1524 = vadd.f32 %v1407, %v1523
  %v1525 = vpop.f32.mrf.mxu0
  %1526 = vmatprep.mubr.bf16.mxu0 0
  %1527 = vmatmul.mubr.bf16.gmra.mxu0 %v1432
  %v1528 = vpop.f32.mrf.mxu0
  %v1529 = vadd.f32 %v1407, %v1528
  %v1530 = vpop.f32.mrf.mxu0
  %v1531 = vpop.f32.mrf.mxu0
  %v1532 = vadd.f32 %v1407, %v1531
  %v1533 = vpop.f32.mrf.mxu0
  %1534 = vdwg.mxu0
  %v1535 = vmax.f32 %v1473, 0.0
  %v1536 = vmax.f32 %v1476, 0.0
  %v1537 = vmax.f32 %v1481, 0.0
  %v1538 = vmax.f32 %v1484, 0.0
  %v1539 = vmax.f32 %v1489, 0.0
  %v1540 = vmax.f32 %v1492, 0.0
  %v1541 = vmax.f32 %v1497, 0.0
  %v1542 = vmax.f32 %v1500, 0.0
  %v1543 = vmax.f32 %v1505, 0.0
  %v1544 = vmax.f32 %v1508, 0.0
  %v1545 = vmax.f32 %v1513, 0.0
  %v1546 = vmax.f32 %v1516, 0.0
  %v1547 = vmax.f32 %v1521, 0.0
  %v1548 = vmax.f32 %v1524, 0.0
  %v1549 = vmax.f32 %v1529, 0.0
  %v1550 = vmax.f32 %v1532, 0.0
  %v1551 = vld [vmem:[%s13] sm:$0xf]
  %v1552 = vld [vmem:[%s13 + $0x4] sm:$0xf]
  %v1553 = vld [vmem:[%s13 + $0x8] sm:$0xf]
  %v1554 = vld [vmem:[%s13 + $0xc] sm:$0xf]
  %v1555 = vpack.c.bf16 %v1536, %v1535
  %v1556 = vpack.c.bf16 %v1538, %v1537
  %v1557 = vpack.c.bf16 %v1540, %v1539
  %v1558 = vpack.c.bf16 %v1542, %v1541
  %v1559 = vpack.c.bf16 %v1544, %v1543
  %v1560 = vpack.c.bf16 %v1546, %v1545
  %v1561 = vpack.c.bf16 %v1548, %v1547
  %v1562 = vpack.c.bf16 %v1550, %v1549
  %v1563 = vld [vmem:[%s15] sm:$0x1]
  %v1565 = vlaneseq
  %v1566 = vshrl.u32 %v1565, 7
  %v1567 = vsub.s32 0, %v1566
  %v1568 = vrot.slane %v1563, %v1567
  %v1574 = vunpack.c.l.b16 %v1551
  %v1575 = vunpack.c.l.b16 %v1552
  %v1576 = vunpack.c.l.b16 %v1553
  %v1577 = vunpack.c.l.b16 %v1554
  %v1578 = vpack.c.b16 %v1575, %v1574
  %v1579 = vpack.c.b16 %v1577, %v1576
  %vm1582 = vcmask 261120
  %v1584 = vsel %vm1582, %v1555, 0
  %v1587 = vsel %vm1582, %v1556, 0
  %v1590 = vsel %vm1582, %v1557, 0
  %v1593 = vsel %vm1582, %v1558, 0
  %v1596 = vsel %vm1582, %v1559, 0
  %v1599 = vsel %vm1582, %v1560, 0
  %v1602 = vsel %vm1582, %v1561, 0
  %v1605 = vsel %vm1582, %v1562, 0
  %1607 = vmatprep.subr.bf16.mxu0 0
  %1608 = vmatpush1.bf16.msra.mxu0 0
  %1609 = vmatprep.subr.bf16.mxu0 0
  %1610 = vmatpush1.bf16.msra.mxu0 0
  %1611 = vmatprep.subr.bf16.mxu0 0
  %1612 = vmatpush1.bf16.msra.mxu0 0
  %1613 = vmatprep.subr.bf16.mxu0 0
  %1614 = vmatpush1.bf16.msra.mxu0 0
  %1615 = vmatprep.subr.bf16.mxu0 0
  %1616 = vmatpush1.bf16.msra.mxu0 0
  %1617 = vmatprep.subr.bf16.mxu0 0
  %1618 = vmatpush1.bf16.msra.mxu0 0
  %1619 = vmatprep.subr.bf16.mxu0 0
  %1620 = vmatpush1.bf16.msra.mxu0 %v1579
  %1621 = vmatprep.subr.bf16.mxu0 0
  %1622 = vmatpush1.bf16.msra.mxu0 %v1578
  %1623 = vmatprep.subr.bf16.mxu0 0
  %1624 = vmatpush2.bf16.msra.mxu0 0
  %1625 = vmatprep.subr.bf16.mxu0 0
  %1626 = vmatpush2.bf16.msra.mxu0 0
  %1627 = vmatprep.subr.bf16.mxu0 0
  %1628 = vmatpush2.bf16.msra.mxu0 0
  %1629 = vmatprep.subr.bf16.mxu0 0
  %1630 = vmatpush2.bf16.msra.mxu0 0
  %1631 = vmatprep.subr.bf16.mxu0 0
  %1632 = vmatpush2.bf16.msra.mxu0 0
  %1633 = vmatprep.subr.bf16.mxu0 0
  %1634 = vmatpush2.bf16.msra.mxu0 0
  %1635 = vmatprep.subr.bf16.mxu0 0
  %1636 = vmatpush2.bf16.msra.mxu0 0
  %1637 = vmatprep.subr.bf16.mxu0 0
  %1638 = vmatpush2.bf16.msra.mxu0 0
  %1639 = vmatprep.mubr.bf16.mxu0 0
  %1640 = vmatmul.mubr.bf16.gmra.mxu0 %v1584
  %v1641 = vpop.f32.mrf.mxu0
  %v1642 = vadd.f32 %v1568, %v1641
  %v1643 = vpop.f32.mrf.mxu0
  %v1644 = vpop.f32.mrf.mxu0
  %v1645 = vadd.f32 %v1568, %v1644
  %v1646 = vpop.f32.mrf.mxu0
  %1647 = vmatprep.mubr.bf16.mxu0 0
  %1648 = vmatmul.mubr.bf16.gmra.mxu0 %v1587
  %v1649 = vpop.f32.mrf.mxu0
  %v1650 = vadd.f32 %v1568, %v1649
  %v1651 = vpop.f32.mrf.mxu0
  %v1652 = vpop.f32.mrf.mxu0
  %v1653 = vadd.f32 %v1568, %v1652
  %v1654 = vpop.f32.mrf.mxu0
  %1655 = vmatprep.mubr.bf16.mxu0 0
  %1656 = vmatmul.mubr.bf16.gmra.mxu0 %v1590
  %v1657 = vpop.f32.mrf.mxu0
  %v1658 = vadd.f32 %v1568, %v1657
  %v1659 = vpop.f32.mrf.mxu0
  %v1660 = vpop.f32.mrf.mxu0
  %v1661 = vadd.f32 %v1568, %v1660
  %v1662 = vpop.f32.mrf.mxu0
  %1663 = vmatprep.mubr.bf16.mxu0 0
  %1664 = vmatmul.mubr.bf16.gmra.mxu0 %v1593
  %v1665 = vpop.f32.mrf.mxu0
  %v1666 = vadd.f32 %v1568, %v1665
  %v1667 = vpop.f32.mrf.mxu0
  %v1668 = vpop.f32.mrf.mxu0
  %v1669 = vadd.f32 %v1568, %v1668
  %v1670 = vpop.f32.mrf.mxu0
  %1671 = vmatprep.mubr.bf16.mxu0 0
  %1672 = vmatmul.mubr.bf16.gmra.mxu0 %v1596
  %v1673 = vpop.f32.mrf.mxu0
  %v1674 = vadd.f32 %v1568, %v1673
  %v1675 = vpop.f32.mrf.mxu0
  %v1676 = vpop.f32.mrf.mxu0
  %v1677 = vadd.f32 %v1568, %v1676
  %v1678 = vpop.f32.mrf.mxu0
  %1679 = vmatprep.mubr.bf16.mxu0 0
  %1680 = vmatmul.mubr.bf16.gmra.mxu0 %v1599
  %v1681 = vpop.f32.mrf.mxu0
  %v1682 = vadd.f32 %v1568, %v1681
  %v1683 = vpop.f32.mrf.mxu0
  %v1684 = vpop.f32.mrf.mxu0
  %v1685 = vadd.f32 %v1568, %v1684
  %v1686 = vpop.f32.mrf.mxu0
  %1687 = vmatprep.mubr.bf16.mxu0 0
  %1688 = vmatmul.mubr.bf16.gmra.mxu0 %v1602
  %v1689 = vpop.f32.mrf.mxu0
  %v1690 = vadd.f32 %v1568, %v1689
  %v1691 = vpop.f32.mrf.mxu0
  %v1692 = vpop.f32.mrf.mxu0
  %v1693 = vadd.f32 %v1568, %v1692
  %v1694 = vpop.f32.mrf.mxu0
  %1695 = vmatprep.mubr.bf16.mxu0 0
  %1696 = vmatmul.mubr.bf16.gmra.mxu0 %v1605
  %v1697 = vpop.f32.mrf.mxu0
  %v1698 = vadd.f32 %v1568, %v1697
  %v1699 = vpop.f32.mrf.mxu0
  %v1700 = vpop.f32.mrf.mxu0
  %v1701 = vadd.f32 %v1568, %v1700
  %v1702 = vpop.f32.mrf.mxu0
  %1703 = vdwg.mxu0
  %v1704 = vmax.f32 %v1642, 0.0
  %v1705 = vmax.f32 %v1645, 0.0
  %v1706 = vmax.f32 %v1650, 0.0
  %v1707 = vmax.f32 %v1653, 0.0
  %v1708 = vmax.f32 %v1658, 0.0
  %v1709 = vmax.f32 %v1661, 0.0
  %v1710 = vmax.f32 %v1666, 0.0
  %v1711 = vmax.f32 %v1669, 0.0
  %v1712 = vmax.f32 %v1674, 0.0
  %v1713 = vmax.f32 %v1677, 0.0
  %v1714 = vmax.f32 %v1682, 0.0
  %v1715 = vmax.f32 %v1685, 0.0
  %v1716 = vmax.f32 %v1690, 0.0
  %v1717 = vmax.f32 %v1693, 0.0
  %v1718 = vmax.f32 %v1698, 0.0
  %v1719 = vmax.f32 %v1701, 0.0
  %v1720 = vld [vmem:[%s17] sm:$0xf]
  %v1721 = vld [vmem:[%s17 + $0x4] sm:$0xf]
  %v1722 = vld [vmem:[%s17 + $0x8] sm:$0xf]
  %v1723 = vld [vmem:[%s17 + $0xc] sm:$0xf]
  %v1724 = vpack.c.bf16 %v1705, %v1704
  %v1725 = vpack.c.bf16 %v1707, %v1706
  %v1726 = vpack.c.bf16 %v1709, %v1708
  %v1727 = vpack.c.bf16 %v1711, %v1710
  %v1728 = vpack.c.bf16 %v1713, %v1712
  %v1729 = vpack.c.bf16 %v1715, %v1714
  %v1730 = vpack.c.bf16 %v1717, %v1716
  %v1731 = vpack.c.bf16 %v1719, %v1718
  %v1732 = vld [vmem:[%s19] sm:$0x1]
  %v1734 = vlaneseq
  %v1735 = vshrl.u32 %v1734, 7
  %v1736 = vsub.s32 0, %v1735
  %v1737 = vrot.slane %v1732, %v1736
  %v1743 = vunpack.c.l.b16 %v1720
  %v1744 = vunpack.c.l.b16 %v1721
  %v1745 = vunpack.c.l.b16 %v1722
  %v1746 = vunpack.c.l.b16 %v1723
  %v1747 = vpack.c.b16 %v1744, %v1743
  %v1748 = vpack.c.b16 %v1746, %v1745
  %v1752 = vsel %vm1582, %v1724, 0
  %v1755 = vsel %vm1582, %v1725, 0
  %v1758 = vsel %vm1582, %v1726, 0
  %v1761 = vsel %vm1582, %v1727, 0
  %v1764 = vsel %vm1582, %v1728, 0
  %v1767 = vsel %vm1582, %v1729, 0
  %v1770 = vsel %vm1582, %v1730, 0
  %v1773 = vsel %vm1582, %v1731, 0
  %1775 = vmatprep.subr.bf16.mxu0 0
  %1776 = vmatpush1.bf16.msra.mxu0 0
  %1777 = vmatprep.subr.bf16.mxu0 0
  %1778 = vmatpush1.bf16.msra.mxu0 0
  %1779 = vmatprep.subr.bf16.mxu0 0
  %1780 = vmatpush1.bf16.msra.mxu0 0
  %1781 = vmatprep.subr.bf16.mxu0 0
  %1782 = vmatpush1.bf16.msra.mxu0 0
  %1783 = vmatprep.subr.bf16.mxu0 0
  %1784 = vmatpush1.bf16.msra.mxu0 0
  %1785 = vmatprep.subr.bf16.mxu0 0
  %1786 = vmatpush1.bf16.msra.mxu0 0
  %1787 = vmatprep.subr.bf16.mxu0 0
  %1788 = vmatpush1.bf16.msra.mxu0 %v1748
  %1789 = vmatprep.subr.bf16.mxu0 0
  %1790 = vmatpush1.bf16.msra.mxu0 %v1747
  %1791 = vmatprep.subr.bf16.mxu0 0
  %1792 = vmatpush2.bf16.msra.mxu0 0
  %1793 = vmatprep.subr.bf16.mxu0 0
  %1794 = vmatpush2.bf16.msra.mxu0 0
  %1795 = vmatprep.subr.bf16.mxu0 0
  %1796 = vmatpush2.bf16.msra.mxu0 0
  %1797 = vmatprep.subr.bf16.mxu0 0
  %1798 = vmatpush2.bf16.msra.mxu0 0
  %1799 = vmatprep.subr.bf16.mxu0 0
  %1800 = vmatpush2.bf16.msra.mxu0 0
  %1801 = vmatprep.subr.bf16.mxu0 0
  %1802 = vmatpush2.bf16.msra.mxu0 0
  %1803 = vmatprep.subr.bf16.mxu0 0
  %1804 = vmatpush2.bf16.msra.mxu0 0
  %1805 = vmatprep.subr.bf16.mxu0 0
  %1806 = vmatpush2.bf16.msra.mxu0 0
  %1807 = vmatprep.mubr.bf16.mxu0 0
  %1808 = vmatmul.mubr.bf16.gmra.mxu0 %v1752
  %v1809 = vpop.f32.mrf.mxu0
  %v1810 = vadd.f32 %v1737, %v1809
  %v1811 = vpop.f32.mrf.mxu0
  %v1812 = vpop.f32.mrf.mxu0
  %v1813 = vadd.f32 %v1737, %v1812
  %v1814 = vpop.f32.mrf.mxu0
  %1815 = vmatprep.mubr.bf16.mxu0 0
  %1816 = vmatmul.mubr.bf16.gmra.mxu0 %v1755
  %v1817 = vpop.f32.mrf.mxu0
  %v1818 = vadd.f32 %v1737, %v1817
  %v1819 = vpop.f32.mrf.mxu0
  %v1820 = vpop.f32.mrf.mxu0
  %v1821 = vadd.f32 %v1737, %v1820
  %v1822 = vpop.f32.mrf.mxu0
  %1823 = vmatprep.mubr.bf16.mxu0 0
  %1824 = vmatmul.mubr.bf16.gmra.mxu0 %v1758
  %v1825 = vpop.f32.mrf.mxu0
  %v1826 = vadd.f32 %v1737, %v1825
  %v1827 = vpop.f32.mrf.mxu0
  %v1828 = vpop.f32.mrf.mxu0
  %v1829 = vadd.f32 %v1737, %v1828
  %v1830 = vpop.f32.mrf.mxu0
  %1831 = vmatprep.mubr.bf16.mxu0 0
  %1832 = vmatmul.mubr.bf16.gmra.mxu0 %v1761
  %v1833 = vpop.f32.mrf.mxu0
  %v1834 = vadd.f32 %v1737, %v1833
  %v1835 = vpop.f32.mrf.mxu0
  %v1836 = vpop.f32.mrf.mxu0
  %v1837 = vadd.f32 %v1737, %v1836
  %v1838 = vpop.f32.mrf.mxu0
  %1839 = vmatprep.mubr.bf16.mxu0 0
  %1840 = vmatmul.mubr.bf16.gmra.mxu0 %v1764
  %v1841 = vpop.f32.mrf.mxu0
  %v1842 = vadd.f32 %v1737, %v1841
  %v1843 = vpop.f32.mrf.mxu0
  %v1844 = vpop.f32.mrf.mxu0
  %v1845 = vadd.f32 %v1737, %v1844
  %v1846 = vpop.f32.mrf.mxu0
  %1847 = vmatprep.mubr.bf16.mxu0 0
  %1848 = vmatmul.mubr.bf16.gmra.mxu0 %v1767
  %v1849 = vpop.f32.mrf.mxu0
  %v1850 = vadd.f32 %v1737, %v1849
  %v1851 = vpop.f32.mrf.mxu0
  %v1852 = vpop.f32.mrf.mxu0
  %v1853 = vadd.f32 %v1737, %v1852
  %v1854 = vpop.f32.mrf.mxu0
  %1855 = vmatprep.mubr.bf16.mxu0 0
  %1856 = vmatmul.mubr.bf16.gmra.mxu0 %v1770
  %v1857 = vpop.f32.mrf.mxu0
  %v1858 = vadd.f32 %v1737, %v1857
  %v1859 = vpop.f32.mrf.mxu0
  %v1860 = vpop.f32.mrf.mxu0
  %v1861 = vadd.f32 %v1737, %v1860
  %v1862 = vpop.f32.mrf.mxu0
  %1863 = vmatprep.mubr.bf16.mxu0 0
  %1864 = vmatmul.mubr.bf16.gmra.mxu0 %v1773
  %v1865 = vpop.f32.mrf.mxu0
  %v1866 = vadd.f32 %v1737, %v1865
  %v1867 = vpop.f32.mrf.mxu0
  %v1868 = vpop.f32.mrf.mxu0
  %v1869 = vadd.f32 %v1737, %v1868
  %v1870 = vpop.f32.mrf.mxu0
  %1871 = vdwg.mxu0
  %v1872 = vld [vmem:[%s3] sm:$0xff]
  %v1873 = vld [vmem:[%s3 + $0x8] sm:$0xff]
  %v1874 = vld [vmem:[%s3 + $0x10] sm:$0xff]
  %v1875 = vld [vmem:[%s3 + $0x18] sm:$0xff]
  %v1876 = vld [vmem:[%s3 + $0x20] sm:$0xff]
  %v1877 = vld [vmem:[%s3 + $0x28] sm:$0xff]
  %v1878 = vld [vmem:[%s3 + $0x30] sm:$0xff]
  %v1879 = vld [vmem:[%s3 + $0x38] sm:$0xff]
  %v1880 = vld [vmem:[%s3 + $0x40] sm:$0xff]
  %v1881 = vld [vmem:[%s3 + $0x48] sm:$0xff]
  %v1882 = vld [vmem:[%s3 + $0x50] sm:$0xff]
  %v1883 = vld [vmem:[%s3 + $0x58] sm:$0xff]
  %v1884 = vld [vmem:[%s3 + $0x60] sm:$0xff]
  %v1885 = vld [vmem:[%s3 + $0x68] sm:$0xff]
  %v1886 = vld [vmem:[%s3 + $0x70] sm:$0xff]
  %v1887 = vld [vmem:[%s3 + $0x78] sm:$0xff]
  %v1888 = vld [vmem:[%s3 + $0x80] sm:$0xff]
  %v1889 = vld [vmem:[%s3 + $0x88] sm:$0xff]
  %v1890 = vld [vmem:[%s3 + $0x90] sm:$0xff]
  %v1891 = vld [vmem:[%s3 + $0x98] sm:$0xff]
  %v1892 = vld [vmem:[%s3 + $0xa0] sm:$0xff]
  %v1893 = vld [vmem:[%s3 + $0xa8] sm:$0xff]
  %v1894 = vld [vmem:[%s3 + $0xb0] sm:$0xff]
  %v1895 = vld [vmem:[%s3 + $0xb8] sm:$0xff]
  %v1896 = vld [vmem:[%s3 + $0xc0] sm:$0xff]
  %v1897 = vld [vmem:[%s3 + $0xc8] sm:$0xff]
  %v1898 = vld [vmem:[%s3 + $0xd0] sm:$0xff]
  %v1899 = vld [vmem:[%s3 + $0xd8] sm:$0xff]
  %v1900 = vld [vmem:[%s3 + $0xe0] sm:$0xff]
  %v1901 = vld [vmem:[%s3 + $0xe8] sm:$0xff]
  %v1902 = vld [vmem:[%s3 + $0xf0] sm:$0xff]
  %v1903 = vld [vmem:[%s3 + $0xf8] sm:$0xff]
  %v1904 = vld [vmem:[%s3 + $0x100] sm:$0xff]
  %v1905 = vld [vmem:[%s3 + $0x108] sm:$0xff]
  %v1906 = vld [vmem:[%s3 + $0x110] sm:$0xff]
  %v1907 = vld [vmem:[%s3 + $0x118] sm:$0xff]
  %v1908 = vld [vmem:[%s3 + $0x120] sm:$0xff]
  %v1909 = vld [vmem:[%s3 + $0x128] sm:$0xff]
  %v1910 = vld [vmem:[%s3 + $0x130] sm:$0xff]
  %v1911 = vld [vmem:[%s3 + $0x138] sm:$0xff]
  %v1912 = vld [vmem:[%s3 + $0x140] sm:$0xff]
  %v1913 = vld [vmem:[%s3 + $0x148] sm:$0xff]
  %v1914 = vld [vmem:[%s3 + $0x150] sm:$0xff]
  %v1915 = vld [vmem:[%s3 + $0x158] sm:$0xff]
  %v1916 = vld [vmem:[%s3 + $0x160] sm:$0xff]
  %v1917 = vld [vmem:[%s3 + $0x168] sm:$0xff]
  %v1918 = vld [vmem:[%s3 + $0x170] sm:$0xff]
  %v1919 = vld [vmem:[%s3 + $0x178] sm:$0xff]
  %v1920 = vld [vmem:[%s3 + $0x180] sm:$0xff]
  %v1921 = vld [vmem:[%s3 + $0x188] sm:$0xff]
  %v1922 = vld [vmem:[%s3 + $0x190] sm:$0xff]
  %v1923 = vld [vmem:[%s3 + $0x198] sm:$0xff]
  %v1924 = vld [vmem:[%s3 + $0x1a0] sm:$0xff]
  %v1925 = vld [vmem:[%s3 + $0x1a8] sm:$0xff]
  %v1926 = vld [vmem:[%s3 + $0x1b0] sm:$0xff]
  %v1927 = vld [vmem:[%s3 + $0x1b8] sm:$0xff]
  %v1928 = vld [vmem:[%s3 + $0x1c0] sm:$0xff]
  %v1929 = vld [vmem:[%s3 + $0x1c8] sm:$0xff]
  %v1930 = vld [vmem:[%s3 + $0x1d0] sm:$0xff]
  %v1931 = vld [vmem:[%s3 + $0x1d8] sm:$0xff]
  %v1932 = vld [vmem:[%s3 + $0x1e0] sm:$0xff]
  %v1933 = vld [vmem:[%s3 + $0x1e8] sm:$0xff]
  %v1934 = vld [vmem:[%s3 + $0x1f0] sm:$0xff]
  %v1935 = vld [vmem:[%s3 + $0x1f8] sm:$0xff]
  %v1936 = vld [vmem:[%s21] sm:$0x3]
  %v1937 = vpack.c.bf16 %v1873, %v1872
  %v1938 = vpack.c.bf16 %v1875, %v1874
  %v1939 = vpack.c.bf16 %v1877, %v1876
  %v1940 = vpack.c.bf16 %v1879, %v1878
  %v1941 = vpack.c.bf16 %v1881, %v1880
  %v1942 = vpack.c.bf16 %v1883, %v1882
  %v1943 = vpack.c.bf16 %v1885, %v1884
  %v1944 = vpack.c.bf16 %v1887, %v1886
  %v1945 = vpack.c.bf16 %v1889, %v1888
  %v1946 = vpack.c.bf16 %v1891, %v1890
  %v1947 = vpack.c.bf16 %v1893, %v1892
  %v1948 = vpack.c.bf16 %v1895, %v1894
  %v1949 = vpack.c.bf16 %v1897, %v1896
  %v1950 = vpack.c.bf16 %v1899, %v1898
  %v1951 = vpack.c.bf16 %v1901, %v1900
  %v1952 = vpack.c.bf16 %v1903, %v1902
  %v1953 = vpack.c.bf16 %v1905, %v1904
  %v1954 = vpack.c.bf16 %v1907, %v1906
  %v1955 = vpack.c.bf16 %v1909, %v1908
  %v1956 = vpack.c.bf16 %v1911, %v1910
  %v1957 = vpack.c.bf16 %v1913, %v1912
  %v1958 = vpack.c.bf16 %v1915, %v1914
  %v1959 = vpack.c.bf16 %v1917, %v1916
  %v1960 = vpack.c.bf16 %v1919, %v1918
  %v1961 = vpack.c.bf16 %v1921, %v1920
  %v1962 = vpack.c.bf16 %v1923, %v1922
  %v1963 = vpack.c.bf16 %v1925, %v1924
  %v1964 = vpack.c.bf16 %v1927, %v1926
  %v1965 = vpack.c.bf16 %v1929, %v1928
  %v1966 = vpack.c.bf16 %v1931, %v1930
  %v1967 = vpack.c.bf16 %v1933, %v1932
  %v1968 = vpack.c.bf16 %v1935, %v1934
  %v1969 = vld [vmem:[%s23] sm:$0x1]
  %v1971 = vlaneseq
  %v1972 = vshrl.u32 %v1971, 7
  %v1973 = vsub.s32 0, %v1972
  %v1974 = vrot.slane %v1969, %v1973
  %v1977 = vsel %vm1409, %v1937, 0
  %v1980 = vsel %vm1409, %v1938, 0
  %v1983 = vsel %vm1409, %v1939, 0
  %v1986 = vsel %vm1409, %v1940, 0
  %v1989 = vsel %vm1409, %v1941, 0
  %v1992 = vsel %vm1409, %v1942, 0
  %v1995 = vsel %vm1409, %v1943, 0
  %v1998 = vsel %vm1409, %v1944, 0
  %v2001 = vsel %vm1409, %v1945, 0
  %v2004 = vsel %vm1409, %v1946, 0
  %v2007 = vsel %vm1409, %v1947, 0
  %v2010 = vsel %vm1409, %v1948, 0
  %v2013 = vsel %vm1409, %v1949, 0
  %v2016 = vsel %vm1409, %v1950, 0
  %v2019 = vsel %vm1409, %v1951, 0
  %v2022 = vsel %vm1409, %v1952, 0
  %v2025 = vsel %vm1409, %v1953, 0
  %v2028 = vsel %vm1409, %v1954, 0
  %v2031 = vsel %vm1409, %v1955, 0
  %v2034 = vsel %vm1409, %v1956, 0
  %v2037 = vsel %vm1409, %v1957, 0
  %v2040 = vsel %vm1409, %v1958, 0
  %v2043 = vsel %vm1409, %v1959, 0
  %v2046 = vsel %vm1409, %v1960, 0
  %v2049 = vsel %vm1409, %v1961, 0
  %v2052 = vsel %vm1409, %v1962, 0
  %v2055 = vsel %vm1409, %v1963, 0
  %v2058 = vsel %vm1409, %v1964, 0
  %v2061 = vsel %vm1409, %v1965, 0
  %v2064 = vsel %vm1409, %v1966, 0
  %v2067 = vsel %vm1409, %v1967, 0
  %v2070 = vsel %vm1409, %v1968, 0
  %v2073 = vsel %vm1434, %v1936, 0
  %2075 = vmatprep.subr.bf16.mxu0 0
  %2076 = vmatpush1.bf16.msra.mxu0 0
  %2077 = vmatprep.subr.bf16.mxu0 0
  %2078 = vmatpush1.bf16.msra.mxu0 0
  %2079 = vmatprep.subr.bf16.mxu0 0
  %2080 = vmatpush1.bf16.msra.mxu0 0
  %2081 = vmatprep.subr.bf16.mxu0 0
  %2082 = vmatpush1.bf16.msra.mxu0 0
  %2083 = vmatprep.subr.bf16.mxu0 0
  %2084 = vmatpush1.bf16.msra.mxu0 0
  %2085 = vmatprep.subr.bf16.mxu0 0
  %2086 = vmatpush1.bf16.msra.mxu0 0
  %2087 = vmatprep.subr.bf16.mxu0 0
  %2088 = vmatpush1.bf16.msra.mxu0 0
  %2089 = vmatprep.subr.bf16.mxu0 0
  %2090 = vmatpush1.bf16.msra.mxu0 %v2073
  %2091 = vmatprep.subr.bf16.mxu0 0
  %2092 = vmatpush2.bf16.msra.mxu0 0
  %2093 = vmatprep.subr.bf16.mxu0 0
  %2094 = vmatpush2.bf16.msra.mxu0 0
  %2095 = vmatprep.subr.bf16.mxu0 0
  %2096 = vmatpush2.bf16.msra.mxu0 0
  %2097 = vmatprep.subr.bf16.mxu0 0
  %2098 = vmatpush2.bf16.msra.mxu0 0
  %2099 = vmatprep.subr.bf16.mxu0 0
  %2100 = vmatpush2.bf16.msra.mxu0 0
  %2101 = vmatprep.subr.bf16.mxu0 0
  %2102 = vmatpush2.bf16.msra.mxu0 0
  %2103 = vmatprep.subr.bf16.mxu0 0
  %2104 = vmatpush2.bf16.msra.mxu0 0
  %2105 = vmatprep.subr.bf16.mxu0 0
  %2106 = vmatpush2.bf16.msra.mxu0 0
  %2107 = vmatprep.mubr.bf16.mxu0 0
  %2108 = vmatmul.mubr.bf16.gmra.mxu0 %v1977
  %v2109 = vpop.f32.mrf.mxu0
  %v2110 = vadd.f32 %v1974, %v2109
  %v2111 = vpop.f32.mrf.mxu0
  %v2112 = vpop.f32.mrf.mxu0
  %v2113 = vadd.f32 %v1974, %v2112
  %v2114 = vpop.f32.mrf.mxu0
  %2115 = vmatprep.mubr.bf16.mxu0 0
  %2116 = vmatmul.mubr.bf16.gmra.mxu0 %v1980
  %v2117 = vpop.f32.mrf.mxu0
  %v2118 = vadd.f32 %v1974, %v2117
  %v2119 = vpop.f32.mrf.mxu0
  %v2120 = vpop.f32.mrf.mxu0
  %v2121 = vadd.f32 %v1974, %v2120
  %v2122 = vpop.f32.mrf.mxu0
  %2123 = vmatprep.mubr.bf16.mxu0 0
  %2124 = vmatmul.mubr.bf16.gmra.mxu0 %v1983
  %v2125 = vpop.f32.mrf.mxu0
  %v2126 = vadd.f32 %v1974, %v2125
  %v2127 = vpop.f32.mrf.mxu0
  %v2128 = vpop.f32.mrf.mxu0
  %v2129 = vadd.f32 %v1974, %v2128
  %v2130 = vpop.f32.mrf.mxu0
  %2131 = vmatprep.mubr.bf16.mxu0 0
  %2132 = vmatmul.mubr.bf16.gmra.mxu0 %v1986
  %v2133 = vpop.f32.mrf.mxu0
  %v2134 = vadd.f32 %v1974, %v2133
  %v2135 = vpop.f32.mrf.mxu0
  %v2136 = vpop.f32.mrf.mxu0
  %v2137 = vadd.f32 %v1974, %v2136
  %v2138 = vpop.f32.mrf.mxu0
  %2139 = vmatprep.mubr.bf16.mxu0 0
  %2140 = vmatmul.mubr.bf16.gmra.mxu0 %v1989
  %v2141 = vpop.f32.mrf.mxu0
  %v2142 = vadd.f32 %v1974, %v2141
  %v2143 = vpop.f32.mrf.mxu0
  %v2144 = vpop.f32.mrf.mxu0
  %v2145 = vadd.f32 %v1974, %v2144
  %v2146 = vpop.f32.mrf.mxu0
  %2147 = vmatprep.mubr.bf16.mxu0 0
  %2148 = vmatmul.mubr.bf16.gmra.mxu0 %v1992
  %v2149 = vpop.f32.mrf.mxu0
  %v2150 = vadd.f32 %v1974, %v2149
  %v2151 = vpop.f32.mrf.mxu0
  %v2152 = vpop.f32.mrf.mxu0
  %v2153 = vadd.f32 %v1974, %v2152
  %v2154 = vpop.f32.mrf.mxu0
  %2155 = vmatprep.mubr.bf16.mxu0 0
  %2156 = vmatmul.mubr.bf16.gmra.mxu0 %v1995
  %v2157 = vpop.f32.mrf.mxu0
  %v2158 = vadd.f32 %v1974, %v2157
  %v2159 = vpop.f32.mrf.mxu0
  %v2160 = vpop.f32.mrf.mxu0
  %v2161 = vadd.f32 %v1974, %v2160
  %v2162 = vpop.f32.mrf.mxu0
  %2163 = vmatprep.mubr.bf16.mxu0 0
  %2164 = vmatmul.mubr.bf16.gmra.mxu0 %v1998
  %v2165 = vpop.f32.mrf.mxu0
  %v2166 = vadd.f32 %v1974, %v2165
  %v2167 = vpop.f32.mrf.mxu0
  %v2168 = vpop.f32.mrf.mxu0
  %v2169 = vadd.f32 %v1974, %v2168
  %v2170 = vpop.f32.mrf.mxu0
  %2171 = vmatprep.mubr.bf16.mxu0 0
  %2172 = vmatmul.mubr.bf16.gmra.mxu0 %v2001
  %v2173 = vpop.f32.mrf.mxu0
  %v2174 = vadd.f32 %v1974, %v2173
  %v2175 = vpop.f32.mrf.mxu0
  %v2176 = vpop.f32.mrf.mxu0
  %v2177 = vadd.f32 %v1974, %v2176
  %v2178 = vpop.f32.mrf.mxu0
  %2179 = vmatprep.mubr.bf16.mxu0 0
  %2180 = vmatmul.mubr.bf16.gmra.mxu0 %v2004
  %v2181 = vpop.f32.mrf.mxu0
  %v2182 = vadd.f32 %v1974, %v2181
  %v2183 = vpop.f32.mrf.mxu0
  %v2184 = vpop.f32.mrf.mxu0
  %v2185 = vadd.f32 %v1974, %v2184
  %v2186 = vpop.f32.mrf.mxu0
  %2187 = vmatprep.mubr.bf16.mxu0 0
  %2188 = vmatmul.mubr.bf16.gmra.mxu0 %v2007
  %v2189 = vpop.f32.mrf.mxu0
  %v2190 = vadd.f32 %v1974, %v2189
  %v2191 = vpop.f32.mrf.mxu0
  %v2192 = vpop.f32.mrf.mxu0
  %v2193 = vadd.f32 %v1974, %v2192
  %v2194 = vpop.f32.mrf.mxu0
  %2195 = vmatprep.mubr.bf16.mxu0 0
  %2196 = vmatmul.mubr.bf16.gmra.mxu0 %v2010
  %v2197 = vpop.f32.mrf.mxu0
  %v2198 = vadd.f32 %v1974, %v2197
  %v2199 = vpop.f32.mrf.mxu0
  %v2200 = vpop.f32.mrf.mxu0
  %v2201 = vadd.f32 %v1974, %v2200
  %v2202 = vpop.f32.mrf.mxu0
  %2203 = vmatprep.mubr.bf16.mxu0 0
  %2204 = vmatmul.mubr.bf16.gmra.mxu0 %v2013
  %v2205 = vpop.f32.mrf.mxu0
  %v2206 = vadd.f32 %v1974, %v2205
  %v2207 = vpop.f32.mrf.mxu0
  %v2208 = vpop.f32.mrf.mxu0
  %v2209 = vadd.f32 %v1974, %v2208
  %v2210 = vpop.f32.mrf.mxu0
  %2211 = vmatprep.mubr.bf16.mxu0 0
  %2212 = vmatmul.mubr.bf16.gmra.mxu0 %v2016
  %v2213 = vpop.f32.mrf.mxu0
  %v2214 = vadd.f32 %v1974, %v2213
  %v2215 = vpop.f32.mrf.mxu0
  %v2216 = vpop.f32.mrf.mxu0
  %v2217 = vadd.f32 %v1974, %v2216
  %v2218 = vpop.f32.mrf.mxu0
  %2219 = vmatprep.mubr.bf16.mxu0 0
  %2220 = vmatmul.mubr.bf16.gmra.mxu0 %v2019
  %v2221 = vpop.f32.mrf.mxu0
  %v2222 = vadd.f32 %v1974, %v2221
  %v2223 = vpop.f32.mrf.mxu0
  %v2224 = vpop.f32.mrf.mxu0
  %v2225 = vadd.f32 %v1974, %v2224
  %v2226 = vpop.f32.mrf.mxu0
  %2227 = vmatprep.mubr.bf16.mxu0 0
  %2228 = vmatmul.mubr.bf16.gmra.mxu0 %v2022
  %v2229 = vpop.f32.mrf.mxu0
  %v2230 = vadd.f32 %v1974, %v2229
  %v2231 = vpop.f32.mrf.mxu0
  %v2232 = vpop.f32.mrf.mxu0
  %v2233 = vadd.f32 %v1974, %v2232
  %v2234 = vpop.f32.mrf.mxu0
  %2235 = vmatprep.mubr.bf16.mxu0 0
  %2236 = vmatmul.mubr.bf16.gmra.mxu0 %v2025
  %v2237 = vpop.f32.mrf.mxu0
  %v2238 = vadd.f32 %v1974, %v2237
  %v2239 = vpop.f32.mrf.mxu0
  %v2240 = vpop.f32.mrf.mxu0
  %v2241 = vadd.f32 %v1974, %v2240
  %v2242 = vpop.f32.mrf.mxu0
  %2243 = vmatprep.mubr.bf16.mxu0 0
  %2244 = vmatmul.mubr.bf16.gmra.mxu0 %v2028
  %v2245 = vpop.f32.mrf.mxu0
  %v2246 = vadd.f32 %v1974, %v2245
  %v2247 = vpop.f32.mrf.mxu0
  %v2248 = vpop.f32.mrf.mxu0
  %v2249 = vadd.f32 %v1974, %v2248
  %v2250 = vpop.f32.mrf.mxu0
  %2251 = vmatprep.mubr.bf16.mxu0 0
  %2252 = vmatmul.mubr.bf16.gmra.mxu0 %v2031
  %v2253 = vpop.f32.mrf.mxu0
  %v2254 = vadd.f32 %v1974, %v2253
  %v2255 = vpop.f32.mrf.mxu0
  %v2256 = vpop.f32.mrf.mxu0
  %v2257 = vadd.f32 %v1974, %v2256
  %v2258 = vpop.f32.mrf.mxu0
  %2259 = vmatprep.mubr.bf16.mxu0 0
  %2260 = vmatmul.mubr.bf16.gmra.mxu0 %v2034
  %v2261 = vpop.f32.mrf.mxu0
  %v2262 = vadd.f32 %v1974, %v2261
  %v2263 = vpop.f32.mrf.mxu0
  %v2264 = vpop.f32.mrf.mxu0
  %v2265 = vadd.f32 %v1974, %v2264
  %v2266 = vpop.f32.mrf.mxu0
  %2267 = vmatprep.mubr.bf16.mxu0 0
  %2268 = vmatmul.mubr.bf16.gmra.mxu0 %v2037
  %v2269 = vpop.f32.mrf.mxu0
  %v2270 = vadd.f32 %v1974, %v2269
  %v2271 = vpop.f32.mrf.mxu0
  %v2272 = vpop.f32.mrf.mxu0
  %v2273 = vadd.f32 %v1974, %v2272
  %v2274 = vpop.f32.mrf.mxu0
  %2275 = vmatprep.mubr.bf16.mxu0 0
  %2276 = vmatmul.mubr.bf16.gmra.mxu0 %v2040
  %v2277 = vpop.f32.mrf.mxu0
  %v2278 = vadd.f32 %v1974, %v2277
  %v2279 = vpop.f32.mrf.mxu0
  %v2280 = vpop.f32.mrf.mxu0
  %v2281 = vadd.f32 %v1974, %v2280
  %v2282 = vpop.f32.mrf.mxu0
  %2283 = vmatprep.mubr.bf16.mxu0 0
  %2284 = vmatmul.mubr.bf16.gmra.mxu0 %v2043
  %v2285 = vpop.f32.mrf.mxu0
  %v2286 = vadd.f32 %v1974, %v2285
  %v2287 = vpop.f32.mrf.mxu0
  %v2288 = vpop.f32.mrf.mxu0
  %v2289 = vadd.f32 %v1974, %v2288
  %v2290 = vpop.f32.mrf.mxu0
  %2291 = vmatprep.mubr.bf16.mxu0 0
  %2292 = vmatmul.mubr.bf16.gmra.mxu0 %v2046
  %v2293 = vpop.f32.mrf.mxu0
  %v2294 = vadd.f32 %v1974, %v2293
  %v2295 = vpop.f32.mrf.mxu0
  %v2296 = vpop.f32.mrf.mxu0
  %v2297 = vadd.f32 %v1974, %v2296
  %v2298 = vpop.f32.mrf.mxu0
  %2299 = vmatprep.mubr.bf16.mxu0 0
  %2300 = vmatmul.mubr.bf16.gmra.mxu0 %v2049
  %v2301 = vpop.f32.mrf.mxu0
  %v2302 = vadd.f32 %v1974, %v2301
  %v2303 = vpop.f32.mrf.mxu0
  %v2304 = vpop.f32.mrf.mxu0
  %v2305 = vadd.f32 %v1974, %v2304
  %v2306 = vpop.f32.mrf.mxu0
  %2307 = vmatprep.mubr.bf16.mxu0 0
  %2308 = vmatmul.mubr.bf16.gmra.mxu0 %v2052
  %v2309 = vpop.f32.mrf.mxu0
  %v2310 = vadd.f32 %v1974, %v2309
  %v2311 = vpop.f32.mrf.mxu0
  %v2312 = vpop.f32.mrf.mxu0
  %v2313 = vadd.f32 %v1974, %v2312
  %v2314 = vpop.f32.mrf.mxu0
  %2315 = vmatprep.mubr.bf16.mxu0 0
  %2316 = vmatmul.mubr.bf16.gmra.mxu0 %v2055
  %v2317 = vpop.f32.mrf.mxu0
  %v2318 = vadd.f32 %v1974, %v2317
  %v2319 = vpop.f32.mrf.mxu0
  %v2320 = vpop.f32.mrf.mxu0
  %v2321 = vadd.f32 %v1974, %v2320
  %v2322 = vpop.f32.mrf.mxu0
  %2323 = vmatprep.mubr.bf16.mxu0 0
  %2324 = vmatmul.mubr.bf16.gmra.mxu0 %v2058
  %v2325 = vpop.f32.mrf.mxu0
  %v2326 = vadd.f32 %v1974, %v2325
  %v2327 = vpop.f32.mrf.mxu0
  %v2328 = vpop.f32.mrf.mxu0
  %v2329 = vadd.f32 %v1974, %v2328
  %v2330 = vpop.f32.mrf.mxu0
  %2331 = vmatprep.mubr.bf16.mxu0 0
  %2332 = vmatmul.mubr.bf16.gmra.mxu0 %v2061
  %v2333 = vpop.f32.mrf.mxu0
  %v2334 = vadd.f32 %v1974, %v2333
  %v2335 = vpop.f32.mrf.mxu0
  %v2336 = vpop.f32.mrf.mxu0
  %v2337 = vadd.f32 %v1974, %v2336
  %v2338 = vpop.f32.mrf.mxu0
  %2339 = vmatprep.mubr.bf16.mxu0 0
  %2340 = vmatmul.mubr.bf16.gmra.mxu0 %v2064
  %v2341 = vpop.f32.mrf.mxu0
  %v2342 = vadd.f32 %v1974, %v2341
  %v2343 = vpop.f32.mrf.mxu0
  %v2344 = vpop.f32.mrf.mxu0
  %v2345 = vadd.f32 %v1974, %v2344
  %v2346 = vpop.f32.mrf.mxu0
  %2347 = vmatprep.mubr.bf16.mxu0 0
  %2348 = vmatmul.mubr.bf16.gmra.mxu0 %v2067
  %v2349 = vpop.f32.mrf.mxu0
  %v2350 = vadd.f32 %v1974, %v2349
  %v2351 = vpop.f32.mrf.mxu0
  %v2352 = vpop.f32.mrf.mxu0
  %v2353 = vadd.f32 %v1974, %v2352
  %v2354 = vpop.f32.mrf.mxu0
  %2355 = vmatprep.mubr.bf16.mxu0 0
  %2356 = vmatmul.mubr.bf16.gmra.mxu0 %v2070
  %v2357 = vpop.f32.mrf.mxu0
  %v2358 = vadd.f32 %v1974, %v2357
  %v2359 = vpop.f32.mrf.mxu0
  %v2360 = vpop.f32.mrf.mxu0
  %v2361 = vadd.f32 %v1974, %v2360
  %v2362 = vpop.f32.mrf.mxu0
  %2363 = vdwg.mxu0
  %v2364 = vmax.f32 %v2110, 0.0
  %v2365 = vmax.f32 %v2113, 0.0
  %v2366 = vmax.f32 %v2118, 0.0
  %v2367 = vmax.f32 %v2121, 0.0
  %v2368 = vmax.f32 %v2126, 0.0
  %v2369 = vmax.f32 %v2129, 0.0
  %v2370 = vmax.f32 %v2134, 0.0
  %v2371 = vmax.f32 %v2137, 0.0
  %v2372 = vmax.f32 %v2142, 0.0
  %v2373 = vmax.f32 %v2145, 0.0
  %v2374 = vmax.f32 %v2150, 0.0
  %v2375 = vmax.f32 %v2153, 0.0
  %v2376 = vmax.f32 %v2158, 0.0
  %v2377 = vmax.f32 %v2161, 0.0
  %v2378 = vmax.f32 %v2166, 0.0
  %v2379 = vmax.f32 %v2169, 0.0
  %v2380 = vmax.f32 %v2174, 0.0
  %v2381 = vmax.f32 %v2177, 0.0
  %v2382 = vmax.f32 %v2182, 0.0
  %v2383 = vmax.f32 %v2185, 0.0
  %v2384 = vmax.f32 %v2190, 0.0
  %v2385 = vmax.f32 %v2193, 0.0
  %v2386 = vmax.f32 %v2198, 0.0
  %v2387 = vmax.f32 %v2201, 0.0
  %v2388 = vmax.f32 %v2206, 0.0
  %v2389 = vmax.f32 %v2209, 0.0
  %v2390 = vmax.f32 %v2214, 0.0
  %v2391 = vmax.f32 %v2217, 0.0
  %v2392 = vmax.f32 %v2222, 0.0
  %v2393 = vmax.f32 %v2225, 0.0
  %v2394 = vmax.f32 %v2230, 0.0
  %v2395 = vmax.f32 %v2233, 0.0
  %v2396 = vmax.f32 %v2238, 0.0
  %v2397 = vmax.f32 %v2241, 0.0
  %v2398 = vmax.f32 %v2246, 0.0
  %v2399 = vmax.f32 %v2249, 0.0
  %v2400 = vmax.f32 %v2254, 0.0
  %v2401 = vmax.f32 %v2257, 0.0
  %v2402 = vmax.f32 %v2262, 0.0
  %v2403 = vmax.f32 %v2265, 0.0
  %v2404 = vmax.f32 %v2270, 0.0
  %v2405 = vmax.f32 %v2273, 0.0
  %v2406 = vmax.f32 %v2278, 0.0
  %v2407 = vmax.f32 %v2281, 0.0
  %v2408 = vmax.f32 %v2286, 0.0
  %v2409 = vmax.f32 %v2289, 0.0
  %v2410 = vmax.f32 %v2294, 0.0
  %v2411 = vmax.f32 %v2297, 0.0
  %v2412 = vmax.f32 %v2302, 0.0
  %v2413 = vmax.f32 %v2305, 0.0
  %v2414 = vmax.f32 %v2310, 0.0
  %v2415 = vmax.f32 %v2313, 0.0
  %v2416 = vmax.f32 %v2318, 0.0
  %v2417 = vmax.f32 %v2321, 0.0
  %v2418 = vmax.f32 %v2326, 0.0
  %v2419 = vmax.f32 %v2329, 0.0
  %v2420 = vmax.f32 %v2334, 0.0
  %v2421 = vmax.f32 %v2337, 0.0
  %v2422 = vmax.f32 %v2342, 0.0
  %v2423 = vmax.f32 %v2345, 0.0
  %v2424 = vmax.f32 %v2350, 0.0
  %v2425 = vmax.f32 %v2353, 0.0
  %v2426 = vmax.f32 %v2358, 0.0
  %v2427 = vmax.f32 %v2361, 0.0
  %v2428 = vld [vmem:[%s25] sm:$0xf]
  %v2429 = vld [vmem:[%s25 + $0x4] sm:$0xf]
  %v2430 = vld [vmem:[%s25 + $0x8] sm:$0xf]
  %v2431 = vld [vmem:[%s25 + $0xc] sm:$0xf]
  %v2432 = vpack.c.bf16 %v2365, %v2364
  %v2433 = vpack.c.bf16 %v2367, %v2366
  %v2434 = vpack.c.bf16 %v2369, %v2368
  %v2435 = vpack.c.bf16 %v2371, %v2370
  %v2436 = vpack.c.bf16 %v2373, %v2372
  %v2437 = vpack.c.bf16 %v2375, %v2374
  %v2438 = vpack.c.bf16 %v2377, %v2376
  %v2439 = vpack.c.bf16 %v2379, %v2378
  %v2440 = vpack.c.bf16 %v2381, %v2380
  %v2441 = vpack.c.bf16 %v2383, %v2382
  %v2442 = vpack.c.bf16 %v2385, %v2384
  %v2443 = vpack.c.bf16 %v2387, %v2386
  %v2444 = vpack.c.bf16 %v2389, %v2388
  %v2445 = vpack.c.bf16 %v2391, %v2390
  %v2446 = vpack.c.bf16 %v2393, %v2392
  %v2447 = vpack.c.bf16 %v2395, %v2394
  %v2448 = vpack.c.bf16 %v2397, %v2396
  %v2449 = vpack.c.bf16 %v2399, %v2398
  %v2450 = vpack.c.bf16 %v2401, %v2400
  %v2451 = vpack.c.bf16 %v2403, %v2402
  %v2452 = vpack.c.bf16 %v2405, %v2404
  %v2453 = vpack.c.bf16 %v2407, %v2406
  %v2454 = vpack.c.bf16 %v2409, %v2408
  %v2455 = vpack.c.bf16 %v2411, %v2410
  %v2456 = vpack.c.bf16 %v2413, %v2412
  %v2457 = vpack.c.bf16 %v2415, %v2414
  %v2458 = vpack.c.bf16 %v2417, %v2416
  %v2459 = vpack.c.bf16 %v2419, %v2418
  %v2460 = vpack.c.bf16 %v2421, %v2420
  %v2461 = vpack.c.bf16 %v2423, %v2422
  %v2462 = vpack.c.bf16 %v2425, %v2424
  %v2463 = vpack.c.bf16 %v2427, %v2426
  %v2464 = vld [vmem:[%s27] sm:$0x1]
  %v2466 = vlaneseq
  %v2467 = vshrl.u32 %v2466, 7
  %v2468 = vsub.s32 0, %v2467
  %v2469 = vrot.slane %v2464, %v2468
  %v2475 = vunpack.c.l.b16 %v2428
  %v2476 = vunpack.c.l.b16 %v2429
  %v2477 = vunpack.c.l.b16 %v2430
  %v2478 = vunpack.c.l.b16 %v2431
  %v2479 = vpack.c.b16 %v2476, %v2475
  %v2480 = vpack.c.b16 %v2478, %v2477
  %v2484 = vsel %vm1582, %v2432, 0
  %v2487 = vsel %vm1582, %v2433, 0
  %v2490 = vsel %vm1582, %v2434, 0
  %v2493 = vsel %vm1582, %v2435, 0
  %v2496 = vsel %vm1582, %v2436, 0
  %v2499 = vsel %vm1582, %v2437, 0
  %v2502 = vsel %vm1582, %v2438, 0
  %v2505 = vsel %vm1582, %v2439, 0
  %v2508 = vsel %vm1582, %v2440, 0
  %v2511 = vsel %vm1582, %v2441, 0
  %v2514 = vsel %vm1582, %v2442, 0
  %v2517 = vsel %vm1582, %v2443, 0
  %v2520 = vsel %vm1582, %v2444, 0
  %v2523 = vsel %vm1582, %v2445, 0
  %v2526 = vsel %vm1582, %v2446, 0
  %v2529 = vsel %vm1582, %v2447, 0
  %v2532 = vsel %vm1582, %v2448, 0
  %v2535 = vsel %vm1582, %v2449, 0
  %v2538 = vsel %vm1582, %v2450, 0
  %v2541 = vsel %vm1582, %v2451, 0
  %v2544 = vsel %vm1582, %v2452, 0
  %v2547 = vsel %vm1582, %v2453, 0
  %v2550 = vsel %vm1582, %v2454, 0
  %v2553 = vsel %vm1582, %v2455, 0
  %v2556 = vsel %vm1582, %v2456, 0
  %v2559 = vsel %vm1582, %v2457, 0
  %v2562 = vsel %vm1582, %v2458, 0
  %v2565 = vsel %vm1582, %v2459, 0
  %v2568 = vsel %vm1582, %v2460, 0
  %v2571 = vsel %vm1582, %v2461, 0
  %v2574 = vsel %vm1582, %v2462, 0
  %v2577 = vsel %vm1582, %v2463, 0
  %2579 = vmatprep.subr.bf16.mxu0 0
  %2580 = vmatpush1.bf16.msra.mxu0 0
  %2581 = vmatprep.subr.bf16.mxu0 0
  %2582 = vmatpush1.bf16.msra.mxu0 0
  %2583 = vmatprep.subr.bf16.mxu0 0
  %2584 = vmatpush1.bf16.msra.mxu0 0
  %2585 = vmatprep.subr.bf16.mxu0 0
  %2586 = vmatpush1.bf16.msra.mxu0 0
  %2587 = vmatprep.subr.bf16.mxu0 0
  %2588 = vmatpush1.bf16.msra.mxu0 0
  %2589 = vmatprep.subr.bf16.mxu0 0
  %2590 = vmatpush1.bf16.msra.mxu0 0
  %2591 = vmatprep.subr.bf16.mxu0 0
  %2592 = vmatpush1.bf16.msra.mxu0 %v2480
  %2593 = vmatprep.subr.bf16.mxu0 0
  %2594 = vmatpush1.bf16.msra.mxu0 %v2479
  %2595 = vmatprep.subr.bf16.mxu0 0
  %2596 = vmatpush2.bf16.msra.mxu0 0
  %2597 = vmatprep.subr.bf16.mxu0 0
  %2598 = vmatpush2.bf16.msra.mxu0 0
  %2599 = vmatprep.subr.bf16.mxu0 0
  %2600 = vmatpush2.bf16.msra.mxu0 0
  %2601 = vmatprep.subr.bf16.mxu0 0
  %2602 = vmatpush2.bf16.msra.mxu0 0
  %2603 = vmatprep.subr.bf16.mxu0 0
  %2604 = vmatpush2.bf16.msra.mxu0 0
  %2605 = vmatprep.subr.bf16.mxu0 0
  %2606 = vmatpush2.bf16.msra.mxu0 0
  %2607 = vmatprep.subr.bf16.mxu0 0
  %2608 = vmatpush2.bf16.msra.mxu0 0
  %2609 = vmatprep.subr.bf16.mxu0 0
  %2610 = vmatpush2.bf16.msra.mxu0 0
  %2611 = vmatprep.mubr.bf16.mxu0 0
  %2612 = vmatmul.mubr.bf16.gmra.mxu0 %v2484
  %v2613 = vpop.f32.mrf.mxu0
  %v2614 = vadd.f32 %v2469, %v2613
  %v2615 = vpop.f32.mrf.mxu0
  %v2616 = vpop.f32.mrf.mxu0
  %v2617 = vadd.f32 %v2469, %v2616
  %v2618 = vpop.f32.mrf.mxu0
  %2619 = vmatprep.mubr.bf16.mxu0 0
  %2620 = vmatmul.mubr.bf16.gmra.mxu0 %v2487
  %v2621 = vpop.f32.mrf.mxu0
  %v2622 = vadd.f32 %v2469, %v2621
  %v2623 = vpop.f32.mrf.mxu0
  %v2624 = vpop.f32.mrf.mxu0
  %v2625 = vadd.f32 %v2469, %v2624
  %v2626 = vpop.f32.mrf.mxu0
  %2627 = vmatprep.mubr.bf16.mxu0 0
  %2628 = vmatmul.mubr.bf16.gmra.mxu0 %v2490
  %v2629 = vpop.f32.mrf.mxu0
  %v2630 = vadd.f32 %v2469, %v2629
  %v2631 = vpop.f32.mrf.mxu0
  %v2632 = vpop.f32.mrf.mxu0
  %v2633 = vadd.f32 %v2469, %v2632
  %v2634 = vpop.f32.mrf.mxu0
  %2635 = vmatprep.mubr.bf16.mxu0 0
  %2636 = vmatmul.mubr.bf16.gmra.mxu0 %v2493
  %v2637 = vpop.f32.mrf.mxu0
  %v2638 = vadd.f32 %v2469, %v2637
  %v2639 = vpop.f32.mrf.mxu0
  %v2640 = vpop.f32.mrf.mxu0
  %v2641 = vadd.f32 %v2469, %v2640
  %v2642 = vpop.f32.mrf.mxu0
  %2643 = vmatprep.mubr.bf16.mxu0 0
  %2644 = vmatmul.mubr.bf16.gmra.mxu0 %v2496
  %v2645 = vpop.f32.mrf.mxu0
  %v2646 = vadd.f32 %v2469, %v2645
  %v2647 = vpop.f32.mrf.mxu0
  %v2648 = vpop.f32.mrf.mxu0
  %v2649 = vadd.f32 %v2469, %v2648
  %v2650 = vpop.f32.mrf.mxu0
  %2651 = vmatprep.mubr.bf16.mxu0 0
  %2652 = vmatmul.mubr.bf16.gmra.mxu0 %v2499
  %v2653 = vpop.f32.mrf.mxu0
  %v2654 = vadd.f32 %v2469, %v2653
  %v2655 = vpop.f32.mrf.mxu0
  %v2656 = vpop.f32.mrf.mxu0
  %v2657 = vadd.f32 %v2469, %v2656
  %v2658 = vpop.f32.mrf.mxu0
  %2659 = vmatprep.mubr.bf16.mxu0 0
  %2660 = vmatmul.mubr.bf16.gmra.mxu0 %v2502
  %v2661 = vpop.f32.mrf.mxu0
  %v2662 = vadd.f32 %v2469, %v2661
  %v2663 = vpop.f32.mrf.mxu0
  %v2664 = vpop.f32.mrf.mxu0
  %v2665 = vadd.f32 %v2469, %v2664
  %v2666 = vpop.f32.mrf.mxu0
  %2667 = vmatprep.mubr.bf16.mxu0 0
  %2668 = vmatmul.mubr.bf16.gmra.mxu0 %v2505
  %v2669 = vpop.f32.mrf.mxu0
  %v2670 = vadd.f32 %v2469, %v2669
  %v2671 = vpop.f32.mrf.mxu0
  %v2672 = vpop.f32.mrf.mxu0
  %v2673 = vadd.f32 %v2469, %v2672
  %v2674 = vpop.f32.mrf.mxu0
  %2675 = vmatprep.mubr.bf16.mxu0 0
  %2676 = vmatmul.mubr.bf16.gmra.mxu0 %v2508
  %v2677 = vpop.f32.mrf.mxu0
  %v2678 = vadd.f32 %v2469, %v2677
  %v2679 = vpop.f32.mrf.mxu0
  %v2680 = vpop.f32.mrf.mxu0
  %v2681 = vadd.f32 %v2469, %v2680
  %v2682 = vpop.f32.mrf.mxu0
  %2683 = vmatprep.mubr.bf16.mxu0 0
  %2684 = vmatmul.mubr.bf16.gmra.mxu0 %v2511
  %v2685 = vpop.f32.mrf.mxu0
  %v2686 = vadd.f32 %v2469, %v2685
  %v2687 = vpop.f32.mrf.mxu0
  %v2688 = vpop.f32.mrf.mxu0
  %v2689 = vadd.f32 %v2469, %v2688
  %v2690 = vpop.f32.mrf.mxu0
  %2691 = vmatprep.mubr.bf16.mxu0 0
  %2692 = vmatmul.mubr.bf16.gmra.mxu0 %v2514
  %v2693 = vpop.f32.mrf.mxu0
  %v2694 = vadd.f32 %v2469, %v2693
  %v2695 = vpop.f32.mrf.mxu0
  %v2696 = vpop.f32.mrf.mxu0
  %v2697 = vadd.f32 %v2469, %v2696
  %v2698 = vpop.f32.mrf.mxu0
  %2699 = vmatprep.mubr.bf16.mxu0 0
  %2700 = vmatmul.mubr.bf16.gmra.mxu0 %v2517
  %v2701 = vpop.f32.mrf.mxu0
  %v2702 = vadd.f32 %v2469, %v2701
  %v2703 = vpop.f32.mrf.mxu0
  %v2704 = vpop.f32.mrf.mxu0
  %v2705 = vadd.f32 %v2469, %v2704
  %v2706 = vpop.f32.mrf.mxu0
  %2707 = vmatprep.mubr.bf16.mxu0 0
  %2708 = vmatmul.mubr.bf16.gmra.mxu0 %v2520
  %v2709 = vpop.f32.mrf.mxu0
  %v2710 = vadd.f32 %v2469, %v2709
  %v2711 = vpop.f32.mrf.mxu0
  %v2712 = vpop.f32.mrf.mxu0
  %v2713 = vadd.f32 %v2469, %v2712
  %v2714 = vpop.f32.mrf.mxu0
  %2715 = vmatprep.mubr.bf16.mxu0 0
  %2716 = vmatmul.mubr.bf16.gmra.mxu0 %v2523
  %v2717 = vpop.f32.mrf.mxu0
  %v2718 = vadd.f32 %v2469, %v2717
  %v2719 = vpop.f32.mrf.mxu0
  %v2720 = vpop.f32.mrf.mxu0
  %v2721 = vadd.f32 %v2469, %v2720
  %v2722 = vpop.f32.mrf.mxu0
  %2723 = vmatprep.mubr.bf16.mxu0 0
  %2724 = vmatmul.mubr.bf16.gmra.mxu0 %v2526
  %v2725 = vpop.f32.mrf.mxu0
  %v2726 = vadd.f32 %v2469, %v2725
  %v2727 = vpop.f32.mrf.mxu0
  %v2728 = vpop.f32.mrf.mxu0
  %v2729 = vadd.f32 %v2469, %v2728
  %v2730 = vpop.f32.mrf.mxu0
  %2731 = vmatprep.mubr.bf16.mxu0 0
  %2732 = vmatmul.mubr.bf16.gmra.mxu0 %v2529
  %v2733 = vpop.f32.mrf.mxu0
  %v2734 = vadd.f32 %v2469, %v2733
  %v2735 = vpop.f32.mrf.mxu0
  %v2736 = vpop.f32.mrf.mxu0
  %v2737 = vadd.f32 %v2469, %v2736
  %v2738 = vpop.f32.mrf.mxu0
  %2739 = vmatprep.mubr.bf16.mxu0 0
  %2740 = vmatmul.mubr.bf16.gmra.mxu0 %v2532
  %v2741 = vpop.f32.mrf.mxu0
  %v2742 = vadd.f32 %v2469, %v2741
  %v2743 = vpop.f32.mrf.mxu0
  %v2744 = vpop.f32.mrf.mxu0
  %v2745 = vadd.f32 %v2469, %v2744
  %v2746 = vpop.f32.mrf.mxu0
  %2747 = vmatprep.mubr.bf16.mxu0 0
  %2748 = vmatmul.mubr.bf16.gmra.mxu0 %v2535
  %v2749 = vpop.f32.mrf.mxu0
  %v2750 = vadd.f32 %v2469, %v2749
  %v2751 = vpop.f32.mrf.mxu0
  %v2752 = vpop.f32.mrf.mxu0
  %v2753 = vadd.f32 %v2469, %v2752
  %v2754 = vpop.f32.mrf.mxu0
  %2755 = vmatprep.mubr.bf16.mxu0 0
  %2756 = vmatmul.mubr.bf16.gmra.mxu0 %v2538
  %v2757 = vpop.f32.mrf.mxu0
  %v2758 = vadd.f32 %v2469, %v2757
  %v2759 = vpop.f32.mrf.mxu0
  %v2760 = vpop.f32.mrf.mxu0
  %v2761 = vadd.f32 %v2469, %v2760
  %v2762 = vpop.f32.mrf.mxu0
  %2763 = vmatprep.mubr.bf16.mxu0 0
  %2764 = vmatmul.mubr.bf16.gmra.mxu0 %v2541
  %v2765 = vpop.f32.mrf.mxu0
  %v2766 = vadd.f32 %v2469, %v2765
  %v2767 = vpop.f32.mrf.mxu0
  %v2768 = vpop.f32.mrf.mxu0
  %v2769 = vadd.f32 %v2469, %v2768
  %v2770 = vpop.f32.mrf.mxu0
  %2771 = vmatprep.mubr.bf16.mxu0 0
  %2772 = vmatmul.mubr.bf16.gmra.mxu0 %v2544
  %v2773 = vpop.f32.mrf.mxu0
  %v2774 = vadd.f32 %v2469, %v2773
  %v2775 = vpop.f32.mrf.mxu0
  %v2776 = vpop.f32.mrf.mxu0
  %v2777 = vadd.f32 %v2469, %v2776
  %v2778 = vpop.f32.mrf.mxu0
  %2779 = vmatprep.mubr.bf16.mxu0 0
  %2780 = vmatmul.mubr.bf16.gmra.mxu0 %v2547
  %v2781 = vpop.f32.mrf.mxu0
  %v2782 = vadd.f32 %v2469, %v2781
  %v2783 = vpop.f32.mrf.mxu0
  %v2784 = vpop.f32.mrf.mxu0
  %v2785 = vadd.f32 %v2469, %v2784
  %v2786 = vpop.f32.mrf.mxu0
  %2787 = vmatprep.mubr.bf16.mxu0 0
  %2788 = vmatmul.mubr.bf16.gmra.mxu0 %v2550
  %v2789 = vpop.f32.mrf.mxu0
  %v2790 = vadd.f32 %v2469, %v2789
  %v2791 = vpop.f32.mrf.mxu0
  %v2792 = vpop.f32.mrf.mxu0
  %v2793 = vadd.f32 %v2469, %v2792
  %v2794 = vpop.f32.mrf.mxu0
  %2795 = vmatprep.mubr.bf16.mxu0 0
  %2796 = vmatmul.mubr.bf16.gmra.mxu0 %v2553
  %v2797 = vpop.f32.mrf.mxu0
  %v2798 = vadd.f32 %v2469, %v2797
  %v2799 = vpop.f32.mrf.mxu0
  %v2800 = vpop.f32.mrf.mxu0
  %v2801 = vadd.f32 %v2469, %v2800
  %v2802 = vpop.f32.mrf.mxu0
  %2803 = vmatprep.mubr.bf16.mxu0 0
  %2804 = vmatmul.mubr.bf16.gmra.mxu0 %v2556
  %v2805 = vpop.f32.mrf.mxu0
  %v2806 = vadd.f32 %v2469, %v2805
  %v2807 = vpop.f32.mrf.mxu0
  %v2808 = vpop.f32.mrf.mxu0
  %v2809 = vadd.f32 %v2469, %v2808
  %v2810 = vpop.f32.mrf.mxu0
  %2811 = vmatprep.mubr.bf16.mxu0 0
  %2812 = vmatmul.mubr.bf16.gmra.mxu0 %v2559
  %v2813 = vpop.f32.mrf.mxu0
  %v2814 = vadd.f32 %v2469, %v2813
  %v2815 = vpop.f32.mrf.mxu0
  %v2816 = vpop.f32.mrf.mxu0
  %v2817 = vadd.f32 %v2469, %v2816
  %v2818 = vpop.f32.mrf.mxu0
  %2819 = vmatprep.mubr.bf16.mxu0 0
  %2820 = vmatmul.mubr.bf16.gmra.mxu0 %v2562
  %v2821 = vpop.f32.mrf.mxu0
  %v2822 = vadd.f32 %v2469, %v2821
  %v2823 = vpop.f32.mrf.mxu0
  %v2824 = vpop.f32.mrf.mxu0
  %v2825 = vadd.f32 %v2469, %v2824
  %v2826 = vpop.f32.mrf.mxu0
  %2827 = vmatprep.mubr.bf16.mxu0 0
  %2828 = vmatmul.mubr.bf16.gmra.mxu0 %v2565
  %v2829 = vpop.f32.mrf.mxu0
  %v2830 = vadd.f32 %v2469, %v2829
  %v2831 = vpop.f32.mrf.mxu0
  %v2832 = vpop.f32.mrf.mxu0
  %v2833 = vadd.f32 %v2469, %v2832
  %v2834 = vpop.f32.mrf.mxu0
  %2835 = vmatprep.mubr.bf16.mxu0 0
  %2836 = vmatmul.mubr.bf16.gmra.mxu0 %v2568
  %v2837 = vpop.f32.mrf.mxu0
  %v2838 = vadd.f32 %v2469, %v2837
  %v2839 = vpop.f32.mrf.mxu0
  %v2840 = vpop.f32.mrf.mxu0
  %v2841 = vadd.f32 %v2469, %v2840
  %v2842 = vpop.f32.mrf.mxu0
  %2843 = vmatprep.mubr.bf16.mxu0 0
  %2844 = vmatmul.mubr.bf16.gmra.mxu0 %v2571
  %v2845 = vpop.f32.mrf.mxu0
  %v2846 = vadd.f32 %v2469, %v2845
  %v2847 = vpop.f32.mrf.mxu0
  %v2848 = vpop.f32.mrf.mxu0
  %v2849 = vadd.f32 %v2469, %v2848
  %v2850 = vpop.f32.mrf.mxu0
  %2851 = vmatprep.mubr.bf16.mxu0 0
  %2852 = vmatmul.mubr.bf16.gmra.mxu0 %v2574
  %v2853 = vpop.f32.mrf.mxu0
  %v2854 = vadd.f32 %v2469, %v2853
  %v2855 = vpop.f32.mrf.mxu0
  %v2856 = vpop.f32.mrf.mxu0
  %v2857 = vadd.f32 %v2469, %v2856
  %v2858 = vpop.f32.mrf.mxu0
  %2859 = vmatprep.mubr.bf16.mxu0 0
  %2860 = vmatmul.mubr.bf16.gmra.mxu0 %v2577
  %v2861 = vpop.f32.mrf.mxu0
  %v2862 = vadd.f32 %v2469, %v2861
  %v2863 = vpop.f32.mrf.mxu0
  %v2864 = vpop.f32.mrf.mxu0
  %v2865 = vadd.f32 %v2469, %v2864
  %v2866 = vpop.f32.mrf.mxu0
  %2867 = vdwg.mxu0
  %v2868 = vmax.f32 %v2614, 0.0
  %v2869 = vmax.f32 %v2617, 0.0
  %v2870 = vmax.f32 %v2622, 0.0
  %v2871 = vmax.f32 %v2625, 0.0
  %v2872 = vmax.f32 %v2630, 0.0
  %v2873 = vmax.f32 %v2633, 0.0
  %v2874 = vmax.f32 %v2638, 0.0
  %v2875 = vmax.f32 %v2641, 0.0
  %v2876 = vmax.f32 %v2646, 0.0
  %v2877 = vmax.f32 %v2649, 0.0
  %v2878 = vmax.f32 %v2654, 0.0
  %v2879 = vmax.f32 %v2657, 0.0
  %v2880 = vmax.f32 %v2662, 0.0
  %v2881 = vmax.f32 %v2665, 0.0
  %v2882 = vmax.f32 %v2670, 0.0
  %v2883 = vmax.f32 %v2673, 0.0
  %v2884 = vmax.f32 %v2678, 0.0
  %v2885 = vmax.f32 %v2681, 0.0
  %v2886 = vmax.f32 %v2686, 0.0
  %v2887 = vmax.f32 %v2689, 0.0
  %v2888 = vmax.f32 %v2694, 0.0
  %v2889 = vmax.f32 %v2697, 0.0
  %v2890 = vmax.f32 %v2702, 0.0
  %v2891 = vmax.f32 %v2705, 0.0
  %v2892 = vmax.f32 %v2710, 0.0
  %v2893 = vmax.f32 %v2713, 0.0
  %v2894 = vmax.f32 %v2718, 0.0
  %v2895 = vmax.f32 %v2721, 0.0
  %v2896 = vmax.f32 %v2726, 0.0
  %v2897 = vmax.f32 %v2729, 0.0
  %v2898 = vmax.f32 %v2734, 0.0
  %v2899 = vmax.f32 %v2737, 0.0
  %v2900 = vmax.f32 %v2742, 0.0
  %v2901 = vmax.f32 %v2745, 0.0
  %v2902 = vmax.f32 %v2750, 0.0
  %v2903 = vmax.f32 %v2753, 0.0
  %v2904 = vmax.f32 %v2758, 0.0
  %v2905 = vmax.f32 %v2761, 0.0
  %v2906 = vmax.f32 %v2766, 0.0
  %v2907 = vmax.f32 %v2769, 0.0
  %v2908 = vmax.f32 %v2774, 0.0
  %v2909 = vmax.f32 %v2777, 0.0
  %v2910 = vmax.f32 %v2782, 0.0
  %v2911 = vmax.f32 %v2785, 0.0
  %v2912 = vmax.f32 %v2790, 0.0
  %v2913 = vmax.f32 %v2793, 0.0
  %v2914 = vmax.f32 %v2798, 0.0
  %v2915 = vmax.f32 %v2801, 0.0
  %v2916 = vmax.f32 %v2806, 0.0
  %v2917 = vmax.f32 %v2809, 0.0
  %v2918 = vmax.f32 %v2814, 0.0
  %v2919 = vmax.f32 %v2817, 0.0
  %v2920 = vmax.f32 %v2822, 0.0
  %v2921 = vmax.f32 %v2825, 0.0
  %v2922 = vmax.f32 %v2830, 0.0
  %v2923 = vmax.f32 %v2833, 0.0
  %v2924 = vmax.f32 %v2838, 0.0
  %v2925 = vmax.f32 %v2841, 0.0
  %v2926 = vmax.f32 %v2846, 0.0
  %v2927 = vmax.f32 %v2849, 0.0
  %v2928 = vmax.f32 %v2854, 0.0
  %v2929 = vmax.f32 %v2857, 0.0
  %v2930 = vmax.f32 %v2862, 0.0
  %v2931 = vmax.f32 %v2865, 0.0
  %v2932 = vld [vmem:[%s29] sm:$0xf]
  %v2933 = vld [vmem:[%s29 + $0x4] sm:$0xf]
  %v2934 = vld [vmem:[%s29 + $0x8] sm:$0xf]
  %v2935 = vld [vmem:[%s29 + $0xc] sm:$0xf]
  %v2936 = vpack.c.bf16 %v2869, %v2868
  %v2937 = vpack.c.bf16 %v2871, %v2870
  %v2938 = vpack.c.bf16 %v2873, %v2872
  %v2939 = vpack.c.bf16 %v2875, %v2874
  %v2940 = vpack.c.bf16 %v2877, %v2876
  %v2941 = vpack.c.bf16 %v2879, %v2878
  %v2942 = vpack.c.bf16 %v2881, %v2880
  %v2943 = vpack.c.bf16 %v2883, %v2882
  %v2944 = vpack.c.bf16 %v2885, %v2884
  %v2945 = vpack.c.bf16 %v2887, %v2886
  %v2946 = vpack.c.bf16 %v2889, %v2888
  %v2947 = vpack.c.bf16 %v2891, %v2890
  %v2948 = vpack.c.bf16 %v2893, %v2892
  %v2949 = vpack.c.bf16 %v2895, %v2894
  %v2950 = vpack.c.bf16 %v2897, %v2896
  %v2951 = vpack.c.bf16 %v2899, %v2898
  %v2952 = vpack.c.bf16 %v2901, %v2900
  %v2953 = vpack.c.bf16 %v2903, %v2902
  %v2954 = vpack.c.bf16 %v2905, %v2904
  %v2955 = vpack.c.bf16 %v2907, %v2906
  %v2956 = vpack.c.bf16 %v2909, %v2908
  %v2957 = vpack.c.bf16 %v2911, %v2910
  %v2958 = vpack.c.bf16 %v2913, %v2912
  %v2959 = vpack.c.bf16 %v2915, %v2914
  %v2960 = vpack.c.bf16 %v2917, %v2916
  %v2961 = vpack.c.bf16 %v2919, %v2918
  %v2962 = vpack.c.bf16 %v2921, %v2920
  %v2963 = vpack.c.bf16 %v2923, %v2922
  %v2964 = vpack.c.bf16 %v2925, %v2924
  %v2965 = vpack.c.bf16 %v2927, %v2926
  %v2966 = vpack.c.bf16 %v2929, %v2928
  %v2967 = vpack.c.bf16 %v2931, %v2930
  %v2968 = vld [vmem:[%s31] sm:$0x1]
  %v2970 = vlaneseq
  %v2971 = vshrl.u32 %v2970, 7
  %v2972 = vsub.s32 0, %v2971
  %v2973 = vrot.slane %v2968, %v2972
  %v2979 = vunpack.c.l.b16 %v2932
  %v2980 = vunpack.c.l.b16 %v2933
  %v2981 = vunpack.c.l.b16 %v2934
  %v2982 = vunpack.c.l.b16 %v2935
  %v2983 = vpack.c.b16 %v2980, %v2979
  %v2984 = vpack.c.b16 %v2982, %v2981
  %v2988 = vsel %vm1582, %v2936, 0
  %v2991 = vsel %vm1582, %v2937, 0
  %v2994 = vsel %vm1582, %v2938, 0
  %v2997 = vsel %vm1582, %v2939, 0
  %v3000 = vsel %vm1582, %v2940, 0
  %v3003 = vsel %vm1582, %v2941, 0
  %v3006 = vsel %vm1582, %v2942, 0
  %v3009 = vsel %vm1582, %v2943, 0
  %v3012 = vsel %vm1582, %v2944, 0
  %v3015 = vsel %vm1582, %v2945, 0
  %v3018 = vsel %vm1582, %v2946, 0
  %v3021 = vsel %vm1582, %v2947, 0
  %v3024 = vsel %vm1582, %v2948, 0
  %v3027 = vsel %vm1582, %v2949, 0
  %v3030 = vsel %vm1582, %v2950, 0
  %v3033 = vsel %vm1582, %v2951, 0
  %v3036 = vsel %vm1582, %v2952, 0
  %v3039 = vsel %vm1582, %v2953, 0
  %v3042 = vsel %vm1582, %v2954, 0
  %v3045 = vsel %vm1582, %v2955, 0
  %v3048 = vsel %vm1582, %v2956, 0
  %v3051 = vsel %vm1582, %v2957, 0
  %v3054 = vsel %vm1582, %v2958, 0
  %v3057 = vsel %vm1582, %v2959, 0
  %v3060 = vsel %vm1582, %v2960, 0
  %v3063 = vsel %vm1582, %v2961, 0
  %v3066 = vsel %vm1582, %v2962, 0
  %v3069 = vsel %vm1582, %v2963, 0
  %v3072 = vsel %vm1582, %v2964, 0
  %v3075 = vsel %vm1582, %v2965, 0
  %v3078 = vsel %vm1582, %v2966, 0
  %v3081 = vsel %vm1582, %v2967, 0
  %3083 = vmatprep.subr.bf16.mxu0 0
  %3084 = vmatpush1.bf16.msra.mxu0 0
  %3085 = vmatprep.subr.bf16.mxu0 0
  %3086 = vmatpush1.bf16.msra.mxu0 0
  %3087 = vmatprep.subr.bf16.mxu0 0
  %3088 = vmatpush1.bf16.msra.mxu0 0
  %3089 = vmatprep.subr.bf16.mxu0 0
  %3090 = vmatpush1.bf16.msra.mxu0 0
  %3091 = vmatprep.subr.bf16.mxu0 0
  %3092 = vmatpush1.bf16.msra.mxu0 0
  %3093 = vmatprep.subr.bf16.mxu0 0
  %3094 = vmatpush1.bf16.msra.mxu0 0
  %3095 = vmatprep.subr.bf16.mxu0 0
  %3096 = vmatpush1.bf16.msra.mxu0 %v2984
  %3097 = vmatprep.subr.bf16.mxu0 0
  %3098 = vmatpush1.bf16.msra.mxu0 %v2983
  %3099 = vmatprep.subr.bf16.mxu0 0
  %3100 = vmatpush2.bf16.msra.mxu0 0
  %3101 = vmatprep.subr.bf16.mxu0 0
  %3102 = vmatpush2.bf16.msra.mxu0 0
  %3103 = vmatprep.subr.bf16.mxu0 0
  %3104 = vmatpush2.bf16.msra.mxu0 0
  %3105 = vmatprep.subr.bf16.mxu0 0
  %3106 = vmatpush2.bf16.msra.mxu0 0
  %3107 = vmatprep.subr.bf16.mxu0 0
  %3108 = vmatpush2.bf16.msra.mxu0 0
  %3109 = vmatprep.subr.bf16.mxu0 0
  %3110 = vmatpush2.bf16.msra.mxu0 0
  %3111 = vmatprep.subr.bf16.mxu0 0
  %3112 = vmatpush2.bf16.msra.mxu0 0
  %3113 = vmatprep.subr.bf16.mxu0 0
  %3114 = vmatpush2.bf16.msra.mxu0 0
  %3115 = vmatprep.mubr.bf16.mxu0 0
  %3116 = vmatmul.mubr.bf16.gmra.mxu0 %v2988
  %v3117 = vpop.f32.mrf.mxu0
  %v3118 = vadd.f32 %v2973, %v3117
  %v3119 = vpop.f32.mrf.mxu0
  %v3120 = vpop.f32.mrf.mxu0
  %v3121 = vadd.f32 %v2973, %v3120
  %v3122 = vpop.f32.mrf.mxu0
  %3123 = vmatprep.mubr.bf16.mxu0 0
  %3124 = vmatmul.mubr.bf16.gmra.mxu0 %v2991
  %v3125 = vpop.f32.mrf.mxu0
  %v3126 = vadd.f32 %v2973, %v3125
  %v3127 = vpop.f32.mrf.mxu0
  %v3128 = vpop.f32.mrf.mxu0
  %v3129 = vadd.f32 %v2973, %v3128
  %v3130 = vpop.f32.mrf.mxu0
  %3131 = vmatprep.mubr.bf16.mxu0 0
  %3132 = vmatmul.mubr.bf16.gmra.mxu0 %v2994
  %v3133 = vpop.f32.mrf.mxu0
  %v3134 = vadd.f32 %v2973, %v3133
  %v3135 = vpop.f32.mrf.mxu0
  %v3136 = vpop.f32.mrf.mxu0
  %v3137 = vadd.f32 %v2973, %v3136
  %v3138 = vpop.f32.mrf.mxu0
  %3139 = vmatprep.mubr.bf16.mxu0 0
  %3140 = vmatmul.mubr.bf16.gmra.mxu0 %v2997
  %v3141 = vpop.f32.mrf.mxu0
  %v3142 = vadd.f32 %v2973, %v3141
  %v3143 = vpop.f32.mrf.mxu0
  %v3144 = vpop.f32.mrf.mxu0
  %v3145 = vadd.f32 %v2973, %v3144
  %v3146 = vpop.f32.mrf.mxu0
  %3147 = vmatprep.mubr.bf16.mxu0 0
  %3148 = vmatmul.mubr.bf16.gmra.mxu0 %v3000
  %v3149 = vpop.f32.mrf.mxu0
  %v3150 = vadd.f32 %v2973, %v3149
  %v3151 = vpop.f32.mrf.mxu0
  %v3152 = vpop.f32.mrf.mxu0
  %v3153 = vadd.f32 %v2973, %v3152
  %v3154 = vpop.f32.mrf.mxu0
  %3155 = vmatprep.mubr.bf16.mxu0 0
  %3156 = vmatmul.mubr.bf16.gmra.mxu0 %v3003
  %v3157 = vpop.f32.mrf.mxu0
  %v3158 = vadd.f32 %v2973, %v3157
  %v3159 = vpop.f32.mrf.mxu0
  %v3160 = vpop.f32.mrf.mxu0
  %v3161 = vadd.f32 %v2973, %v3160
  %v3162 = vpop.f32.mrf.mxu0
  %3163 = vmatprep.mubr.bf16.mxu0 0
  %3164 = vmatmul.mubr.bf16.gmra.mxu0 %v3006
  %v3165 = vpop.f32.mrf.mxu0
  %v3166 = vadd.f32 %v2973, %v3165
  %v3167 = vpop.f32.mrf.mxu0
  %v3168 = vpop.f32.mrf.mxu0
  %v3169 = vadd.f32 %v2973, %v3168
  %v3170 = vpop.f32.mrf.mxu0
  %3171 = vmatprep.mubr.bf16.mxu0 0
  %3172 = vmatmul.mubr.bf16.gmra.mxu0 %v3009
  %v3173 = vpop.f32.mrf.mxu0
  %v3174 = vadd.f32 %v2973, %v3173
  %v3175 = vpop.f32.mrf.mxu0
  %v3176 = vpop.f32.mrf.mxu0
  %v3177 = vadd.f32 %v2973, %v3176
  %v3178 = vpop.f32.mrf.mxu0
  %3179 = vmatprep.mubr.bf16.mxu0 0
  %3180 = vmatmul.mubr.bf16.gmra.mxu0 %v3012
  %v3181 = vpop.f32.mrf.mxu0
  %v3182 = vadd.f32 %v2973, %v3181
  %v3183 = vpop.f32.mrf.mxu0
  %v3184 = vpop.f32.mrf.mxu0
  %v3185 = vadd.f32 %v2973, %v3184
  %v3186 = vpop.f32.mrf.mxu0
  %3187 = vmatprep.mubr.bf16.mxu0 0
  %3188 = vmatmul.mubr.bf16.gmra.mxu0 %v3015
  %v3189 = vpop.f32.mrf.mxu0
  %v3190 = vadd.f32 %v2973, %v3189
  %v3191 = vpop.f32.mrf.mxu0
  %v3192 = vpop.f32.mrf.mxu0
  %v3193 = vadd.f32 %v2973, %v3192
  %v3194 = vpop.f32.mrf.mxu0
  %3195 = vmatprep.mubr.bf16.mxu0 0
  %3196 = vmatmul.mubr.bf16.gmra.mxu0 %v3018
  %v3197 = vpop.f32.mrf.mxu0
  %v3198 = vadd.f32 %v2973, %v3197
  %v3199 = vpop.f32.mrf.mxu0
  %v3200 = vpop.f32.mrf.mxu0
  %v3201 = vadd.f32 %v2973, %v3200
  %v3202 = vpop.f32.mrf.mxu0
  %3203 = vmatprep.mubr.bf16.mxu0 0
  %3204 = vmatmul.mubr.bf16.gmra.mxu0 %v3021
  %v3205 = vpop.f32.mrf.mxu0
  %v3206 = vadd.f32 %v2973, %v3205
  %v3207 = vpop.f32.mrf.mxu0
  %v3208 = vpop.f32.mrf.mxu0
  %v3209 = vadd.f32 %v2973, %v3208
  %v3210 = vpop.f32.mrf.mxu0
  %3211 = vmatprep.mubr.bf16.mxu0 0
  %3212 = vmatmul.mubr.bf16.gmra.mxu0 %v3024
  %v3213 = vpop.f32.mrf.mxu0
  %v3214 = vadd.f32 %v2973, %v3213
  %v3215 = vpop.f32.mrf.mxu0
  %v3216 = vpop.f32.mrf.mxu0
  %v3217 = vadd.f32 %v2973, %v3216
  %v3218 = vpop.f32.mrf.mxu0
  %3219 = vmatprep.mubr.bf16.mxu0 0
  %3220 = vmatmul.mubr.bf16.gmra.mxu0 %v3027
  %v3221 = vpop.f32.mrf.mxu0
  %v3222 = vadd.f32 %v2973, %v3221
  %v3223 = vpop.f32.mrf.mxu0
  %v3224 = vpop.f32.mrf.mxu0
  %v3225 = vadd.f32 %v2973, %v3224
  %v3226 = vpop.f32.mrf.mxu0
  %3227 = vmatprep.mubr.bf16.mxu0 0
  %3228 = vmatmul.mubr.bf16.gmra.mxu0 %v3030
  %v3229 = vpop.f32.mrf.mxu0
  %v3230 = vadd.f32 %v2973, %v3229
  %v3231 = vpop.f32.mrf.mxu0
  %v3232 = vpop.f32.mrf.mxu0
  %v3233 = vadd.f32 %v2973, %v3232
  %v3234 = vpop.f32.mrf.mxu0
  %3235 = vmatprep.mubr.bf16.mxu0 0
  %3236 = vmatmul.mubr.bf16.gmra.mxu0 %v3033
  %v3237 = vpop.f32.mrf.mxu0
  %v3238 = vadd.f32 %v2973, %v3237
  %v3239 = vpop.f32.mrf.mxu0
  %v3240 = vpop.f32.mrf.mxu0
  %v3241 = vadd.f32 %v2973, %v3240
  %v3242 = vpop.f32.mrf.mxu0
  %3243 = vmatprep.mubr.bf16.mxu0 0
  %3244 = vmatmul.mubr.bf16.gmra.mxu0 %v3036
  %v3245 = vpop.f32.mrf.mxu0
  %v3246 = vadd.f32 %v2973, %v3245
  %v3247 = vpop.f32.mrf.mxu0
  %v3248 = vpop.f32.mrf.mxu0
  %v3249 = vadd.f32 %v2973, %v3248
  %v3250 = vpop.f32.mrf.mxu0
  %3251 = vmatprep.mubr.bf16.mxu0 0
  %3252 = vmatmul.mubr.bf16.gmra.mxu0 %v3039
  %v3253 = vpop.f32.mrf.mxu0
  %v3254 = vadd.f32 %v2973, %v3253
  %v3255 = vpop.f32.mrf.mxu0
  %v3256 = vpop.f32.mrf.mxu0
  %v3257 = vadd.f32 %v2973, %v3256
  %v3258 = vpop.f32.mrf.mxu0
  %3259 = vmatprep.mubr.bf16.mxu0 0
  %3260 = vmatmul.mubr.bf16.gmra.mxu0 %v3042
  %v3261 = vpop.f32.mrf.mxu0
  %v3262 = vadd.f32 %v2973, %v3261
  %v3263 = vpop.f32.mrf.mxu0
  %v3264 = vpop.f32.mrf.mxu0
  %v3265 = vadd.f32 %v2973, %v3264
  %v3266 = vpop.f32.mrf.mxu0
  %3267 = vmatprep.mubr.bf16.mxu0 0
  %3268 = vmatmul.mubr.bf16.gmra.mxu0 %v3045
  %v3269 = vpop.f32.mrf.mxu0
  %v3270 = vadd.f32 %v2973, %v3269
  %v3271 = vpop.f32.mrf.mxu0
  %v3272 = vpop.f32.mrf.mxu0
  %v3273 = vadd.f32 %v2973, %v3272
  %v3274 = vpop.f32.mrf.mxu0
  %3275 = vmatprep.mubr.bf16.mxu0 0
  %3276 = vmatmul.mubr.bf16.gmra.mxu0 %v3048
  %v3277 = vpop.f32.mrf.mxu0
  %v3278 = vadd.f32 %v2973, %v3277
  %v3279 = vpop.f32.mrf.mxu0
  %v3280 = vpop.f32.mrf.mxu0
  %v3281 = vadd.f32 %v2973, %v3280
  %v3282 = vpop.f32.mrf.mxu0
  %3283 = vmatprep.mubr.bf16.mxu0 0
  %3284 = vmatmul.mubr.bf16.gmra.mxu0 %v3051
  %v3285 = vpop.f32.mrf.mxu0
  %v3286 = vadd.f32 %v2973, %v3285
  %v3287 = vpop.f32.mrf.mxu0
  %v3288 = vpop.f32.mrf.mxu0
  %v3289 = vadd.f32 %v2973, %v3288
  %v3290 = vpop.f32.mrf.mxu0
  %3291 = vmatprep.mubr.bf16.mxu0 0
  %3292 = vmatmul.mubr.bf16.gmra.mxu0 %v3054
  %v3293 = vpop.f32.mrf.mxu0
  %v3294 = vadd.f32 %v2973, %v3293
  %v3295 = vpop.f32.mrf.mxu0
  %v3296 = vpop.f32.mrf.mxu0
  %v3297 = vadd.f32 %v2973, %v3296
  %v3298 = vpop.f32.mrf.mxu0
  %3299 = vmatprep.mubr.bf16.mxu0 0
  %3300 = vmatmul.mubr.bf16.gmra.mxu0 %v3057
  %v3301 = vpop.f32.mrf.mxu0
  %v3302 = vadd.f32 %v2973, %v3301
  %v3303 = vpop.f32.mrf.mxu0
  %v3304 = vpop.f32.mrf.mxu0
  %v3305 = vadd.f32 %v2973, %v3304
  %v3306 = vpop.f32.mrf.mxu0
  %3307 = vmatprep.mubr.bf16.mxu0 0
  %3308 = vmatmul.mubr.bf16.gmra.mxu0 %v3060
  %v3309 = vpop.f32.mrf.mxu0
  %v3310 = vadd.f32 %v2973, %v3309
  %v3311 = vpop.f32.mrf.mxu0
  %v3312 = vpop.f32.mrf.mxu0
  %v3313 = vadd.f32 %v2973, %v3312
  %v3314 = vpop.f32.mrf.mxu0
  %3315 = vmatprep.mubr.bf16.mxu0 0
  %3316 = vmatmul.mubr.bf16.gmra.mxu0 %v3063
  %v3317 = vpop.f32.mrf.mxu0
  %v3318 = vadd.f32 %v2973, %v3317
  %v3319 = vpop.f32.mrf.mxu0
  %v3320 = vpop.f32.mrf.mxu0
  %v3321 = vadd.f32 %v2973, %v3320
  %v3322 = vpop.f32.mrf.mxu0
  %3323 = vmatprep.mubr.bf16.mxu0 0
  %3324 = vmatmul.mubr.bf16.gmra.mxu0 %v3066
  %v3325 = vpop.f32.mrf.mxu0
  %v3326 = vadd.f32 %v2973, %v3325
  %v3327 = vpop.f32.mrf.mxu0
  %v3328 = vpop.f32.mrf.mxu0
  %v3329 = vadd.f32 %v2973, %v3328
  %v3330 = vpop.f32.mrf.mxu0
  %3331 = vmatprep.mubr.bf16.mxu0 0
  %3332 = vmatmul.mubr.bf16.gmra.mxu0 %v3069
  %v3333 = vpop.f32.mrf.mxu0
  %v3334 = vadd.f32 %v2973, %v3333
  %v3335 = vpop.f32.mrf.mxu0
  %v3336 = vpop.f32.mrf.mxu0
  %v3337 = vadd.f32 %v2973, %v3336
  %v3338 = vpop.f32.mrf.mxu0
  %3339 = vmatprep.mubr.bf16.mxu0 0
  %3340 = vmatmul.mubr.bf16.gmra.mxu0 %v3072
  %v3341 = vpop.f32.mrf.mxu0
  %v3342 = vadd.f32 %v2973, %v3341
  %v3343 = vpop.f32.mrf.mxu0
  %v3344 = vpop.f32.mrf.mxu0
  %v3345 = vadd.f32 %v2973, %v3344
  %v3346 = vpop.f32.mrf.mxu0
  %3347 = vmatprep.mubr.bf16.mxu0 0
  %3348 = vmatmul.mubr.bf16.gmra.mxu0 %v3075
  %v3349 = vpop.f32.mrf.mxu0
  %v3350 = vadd.f32 %v2973, %v3349
  %v3351 = vpop.f32.mrf.mxu0
  %v3352 = vpop.f32.mrf.mxu0
  %v3353 = vadd.f32 %v2973, %v3352
  %v3354 = vpop.f32.mrf.mxu0
  %3355 = vmatprep.mubr.bf16.mxu0 0
  %3356 = vmatmul.mubr.bf16.gmra.mxu0 %v3078
  %v3357 = vpop.f32.mrf.mxu0
  %v3358 = vadd.f32 %v2973, %v3357
  %v3359 = vpop.f32.mrf.mxu0
  %v3360 = vpop.f32.mrf.mxu0
  %v3361 = vadd.f32 %v2973, %v3360
  %v3362 = vpop.f32.mrf.mxu0
  %3363 = vmatprep.mubr.bf16.mxu0 0
  %3364 = vmatmul.mubr.bf16.gmra.mxu0 %v3081
  %v3365 = vpop.f32.mrf.mxu0
  %v3366 = vadd.f32 %v2973, %v3365
  %v3367 = vpop.f32.mrf.mxu0
  %v3368 = vpop.f32.mrf.mxu0
  %v3369 = vadd.f32 %v2973, %v3368
  %v3370 = vpop.f32.mrf.mxu0
  %3371 = vdwg.mxu0
  %v3372 = vld [vmem:[%s33 + $0x10] sm:$0xf]
  %v3373 = vld [vmem:[%s33 + $0x14] sm:$0xf]
  %v3374 = vld [vmem:[%s33 + $0x18] sm:$0xf]
  %v3375 = vld [vmem:[%s33 + $0x1c] sm:$0xf]
  %v3376 = vpack.c.bf16 %v1813, %v1810
  %v3377 = vpack.c.bf16 %v1821, %v1818
  %v3378 = vpack.c.bf16 %v1829, %v1826
  %v3379 = vpack.c.bf16 %v1837, %v1834
  %v3380 = vpack.c.bf16 %v1845, %v1842
  %v3381 = vpack.c.bf16 %v1853, %v1850
  %v3382 = vpack.c.bf16 %v1861, %v1858
  %v3383 = vpack.c.bf16 %v1869, %v1866
  %v3388 = vunpack.c.l.b16 %v3372
  %v3389 = vunpack.c.l.b16 %v3373
  %v3390 = vunpack.c.l.b16 %v3374
  %v3391 = vunpack.c.l.b16 %v3375
  %v3392 = vpack.c.b16 %v3389, %v3388
  %v3393 = vpack.c.b16 %v3391, %v3390
  %v3397 = vsel %vm1582, %v3376, 0
  %v3400 = vsel %vm1582, %v3377, 0
  %v3403 = vsel %vm1582, %v3378, 0
  %v3406 = vsel %vm1582, %v3379, 0
  %v3409 = vsel %vm1582, %v3380, 0
  %v3412 = vsel %vm1582, %v3381, 0
  %v3415 = vsel %vm1582, %v3382, 0
  %v3418 = vsel %vm1582, %v3383, 0
  %3420 = vmatprep.subr.bf16.mxu0 0
  %3421 = vmatpush1.bf16.msra.mxu0 0
  %3422 = vmatprep.subr.bf16.mxu0 0
  %3423 = vmatpush1.bf16.msra.mxu0 0
  %3424 = vmatprep.subr.bf16.mxu0 0
  %3425 = vmatpush1.bf16.msra.mxu0 0
  %3426 = vmatprep.subr.bf16.mxu0 0
  %3427 = vmatpush1.bf16.msra.mxu0 0
  %3428 = vmatprep.subr.bf16.mxu0 0
  %3429 = vmatpush1.bf16.msra.mxu0 0
  %3430 = vmatprep.subr.bf16.mxu0 0
  %3431 = vmatpush1.bf16.msra.mxu0 0
  %3432 = vmatprep.subr.bf16.mxu0 0
  %3433 = vmatpush1.bf16.msra.mxu0 %v3393
  %3434 = vmatprep.subr.bf16.mxu0 0
  %3435 = vmatpush1.bf16.msra.mxu0 %v3392
  %3436 = vmatprep.subr.bf16.mxu0 0
  %3437 = vmatpush2.bf16.msra.mxu0 0
  %3438 = vmatprep.subr.bf16.mxu0 0
  %3439 = vmatpush2.bf16.msra.mxu0 0
  %3440 = vmatprep.subr.bf16.mxu0 0
  %3441 = vmatpush2.bf16.msra.mxu0 0
  %3442 = vmatprep.subr.bf16.mxu0 0
  %3443 = vmatpush2.bf16.msra.mxu0 0
  %3444 = vmatprep.subr.bf16.mxu0 0
  %3445 = vmatpush2.bf16.msra.mxu0 0
  %3446 = vmatprep.subr.bf16.mxu0 0
  %3447 = vmatpush2.bf16.msra.mxu0 0
  %3448 = vmatprep.subr.bf16.mxu0 0
  %3449 = vmatpush2.bf16.msra.mxu0 0
  %3450 = vmatprep.subr.bf16.mxu0 0
  %3451 = vmatpush2.bf16.msra.mxu0 0
  %3452 = vmatprep.mubr.bf16.mxu0 0
  %3453 = vmatmul.mubr.bf16.gmra.mxu0 %v3397
  %v3454 = vpop.f32.mrf.mxu0
  %v3455 = vadd.f32 0.0, %v3454
  %v3456 = vpop.f32.mrf.mxu0
  %v3457 = vpop.f32.mrf.mxu0
  %v3458 = vadd.f32 0.0, %v3457
  %v3459 = vpop.f32.mrf.mxu0
  %3460 = vmatprep.mubr.bf16.mxu0 0
  %3461 = vmatmul.mubr.bf16.gmra.mxu0 %v3400
  %v3462 = vpop.f32.mrf.mxu0
  %v3463 = vadd.f32 0.0, %v3462
  %v3464 = vpop.f32.mrf.mxu0
  %v3465 = vpop.f32.mrf.mxu0
  %v3466 = vadd.f32 0.0, %v3465
  %v3467 = vpop.f32.mrf.mxu0
  %3468 = vmatprep.mubr.bf16.mxu0 0
  %3469 = vmatmul.mubr.bf16.gmra.mxu0 %v3403
  %v3470 = vpop.f32.mrf.mxu0
  %v3471 = vadd.f32 0.0, %v3470
  %v3472 = vpop.f32.mrf.mxu0
  %v3473 = vpop.f32.mrf.mxu0
  %v3474 = vadd.f32 0.0, %v3473
  %v3475 = vpop.f32.mrf.mxu0
  %3476 = vmatprep.mubr.bf16.mxu0 0
  %3477 = vmatmul.mubr.bf16.gmra.mxu0 %v3406
  %v3478 = vpop.f32.mrf.mxu0
  %v3479 = vadd.f32 0.0, %v3478
  %v3480 = vpop.f32.mrf.mxu0
  %v3481 = vpop.f32.mrf.mxu0
  %v3482 = vadd.f32 0.0, %v3481
  %v3483 = vpop.f32.mrf.mxu0
  %3484 = vmatprep.mubr.bf16.mxu0 0
  %3485 = vmatmul.mubr.bf16.gmra.mxu0 %v3409
  %v3486 = vpop.f32.mrf.mxu0
  %v3487 = vadd.f32 0.0, %v3486
  %v3488 = vpop.f32.mrf.mxu0
  %v3489 = vpop.f32.mrf.mxu0
  %v3490 = vadd.f32 0.0, %v3489
  %v3491 = vpop.f32.mrf.mxu0
  %3492 = vmatprep.mubr.bf16.mxu0 0
  %3493 = vmatmul.mubr.bf16.gmra.mxu0 %v3412
  %v3494 = vpop.f32.mrf.mxu0
  %v3495 = vadd.f32 0.0, %v3494
  %v3496 = vpop.f32.mrf.mxu0
  %v3497 = vpop.f32.mrf.mxu0
  %v3498 = vadd.f32 0.0, %v3497
  %v3499 = vpop.f32.mrf.mxu0
  %3500 = vmatprep.mubr.bf16.mxu0 0
  %3501 = vmatmul.mubr.bf16.gmra.mxu0 %v3415
  %v3502 = vpop.f32.mrf.mxu0
  %v3503 = vadd.f32 0.0, %v3502
  %v3504 = vpop.f32.mrf.mxu0
  %v3505 = vpop.f32.mrf.mxu0
  %v3506 = vadd.f32 0.0, %v3505
  %v3507 = vpop.f32.mrf.mxu0
  %3508 = vmatprep.mubr.bf16.mxu0 0
  %3509 = vmatmul.mubr.bf16.gmra.mxu0 %v3418
  %v3510 = vpop.f32.mrf.mxu0
  %v3511 = vadd.f32 0.0, %v3510
  %v3512 = vpop.f32.mrf.mxu0
  %v3513 = vpop.f32.mrf.mxu0
  %v3514 = vadd.f32 0.0, %v3513
  %v3515 = vpop.f32.mrf.mxu0
  %3516 = vdwg.mxu0
  %v3517 = vld [vmem:[%s33 + $0x20] sm:$0xf]
  %v3518 = vld [vmem:[%s33 + $0x24] sm:$0xf]
  %v3519 = vld [vmem:[%s33 + $0x28] sm:$0xf]
  %v3520 = vld [vmem:[%s33 + $0x2c] sm:$0xf]
  %v3525 = vunpack.c.l.b16 %v3517
  %v3526 = vunpack.c.l.b16 %v3518
  %v3527 = vunpack.c.l.b16 %v3519
  %v3528 = vunpack.c.l.b16 %v3520
  %v3529 = vpack.c.b16 %v3526, %v3525
  %v3530 = vpack.c.b16 %v3528, %v3527
  %3533 = vmatprep.subr.bf16.mxu0 0
  %3534 = vmatpush1.bf16.msra.mxu0 0
  %3535 = vmatprep.subr.bf16.mxu0 0
  %3536 = vmatpush1.bf16.msra.mxu0 0
  %3537 = vmatprep.subr.bf16.mxu0 0
  %3538 = vmatpush1.bf16.msra.mxu0 0
  %3539 = vmatprep.subr.bf16.mxu0 0
  %3540 = vmatpush1.bf16.msra.mxu0 0
  %3541 = vmatprep.subr.bf16.mxu0 0
  %3542 = vmatpush1.bf16.msra.mxu0 0
  %3543 = vmatprep.subr.bf16.mxu0 0
  %3544 = vmatpush1.bf16.msra.mxu0 0
  %3545 = vmatprep.subr.bf16.mxu0 0
  %3546 = vmatpush1.bf16.msra.mxu0 %v3530
  %3547 = vmatprep.subr.bf16.mxu0 0
  %3548 = vmatpush1.bf16.msra.mxu0 %v3529
  %3549 = vmatprep.subr.bf16.mxu0 0
  %3550 = vmatpush2.bf16.msra.mxu0 0
  %3551 = vmatprep.subr.bf16.mxu0 0
  %3552 = vmatpush2.bf16.msra.mxu0 0
  %3553 = vmatprep.subr.bf16.mxu0 0
  %3554 = vmatpush2.bf16.msra.mxu0 0
  %3555 = vmatprep.subr.bf16.mxu0 0
  %3556 = vmatpush2.bf16.msra.mxu0 0
  %3557 = vmatprep.subr.bf16.mxu0 0
  %3558 = vmatpush2.bf16.msra.mxu0 0
  %3559 = vmatprep.subr.bf16.mxu0 0
  %3560 = vmatpush2.bf16.msra.mxu0 0
  %3561 = vmatprep.subr.bf16.mxu0 0
  %3562 = vmatpush2.bf16.msra.mxu0 0
  %3563 = vmatprep.subr.bf16.mxu0 0
  %3564 = vmatpush2.bf16.msra.mxu0 0
  %3565 = vmatprep.mubr.bf16.mxu0 0
  %3566 = vmatmul.mubr.bf16.gmra.mxu0 %v3397
  %v3567 = vpop.f32.mrf.mxu0
  %v3568 = vadd.f32 0.0, %v3567
  %v3569 = vpop.f32.mrf.mxu0
  %v3570 = vpop.f32.mrf.mxu0
  %v3571 = vadd.f32 0.0, %v3570
  %v3572 = vpop.f32.mrf.mxu0
  %3573 = vmatprep.mubr.bf16.mxu0 0
  %3574 = vmatmul.mubr.bf16.gmra.mxu0 %v3400
  %v3575 = vpop.f32.mrf.mxu0
  %v3576 = vadd.f32 0.0, %v3575
  %v3577 = vpop.f32.mrf.mxu0
  %v3578 = vpop.f32.mrf.mxu0
  %v3579 = vadd.f32 0.0, %v3578
  %v3580 = vpop.f32.mrf.mxu0
  %3581 = vmatprep.mubr.bf16.mxu0 0
  %3582 = vmatmul.mubr.bf16.gmra.mxu0 %v3403
  %v3583 = vpop.f32.mrf.mxu0
  %v3584 = vadd.f32 0.0, %v3583
  %v3585 = vpop.f32.mrf.mxu0
  %v3586 = vpop.f32.mrf.mxu0
  %v3587 = vadd.f32 0.0, %v3586
  %v3588 = vpop.f32.mrf.mxu0
  %3589 = vmatprep.mubr.bf16.mxu0 0
  %3590 = vmatmul.mubr.bf16.gmra.mxu0 %v3406
  %v3591 = vpop.f32.mrf.mxu0
  %v3592 = vadd.f32 0.0, %v3591
  %v3593 = vpop.f32.mrf.mxu0
  %v3594 = vpop.f32.mrf.mxu0
  %v3595 = vadd.f32 0.0, %v3594
  %v3596 = vpop.f32.mrf.mxu0
  %3597 = vmatprep.mubr.bf16.mxu0 0
  %3598 = vmatmul.mubr.bf16.gmra.mxu0 %v3409
  %v3599 = vpop.f32.mrf.mxu0
  %v3600 = vadd.f32 0.0, %v3599
  %v3601 = vpop.f32.mrf.mxu0
  %v3602 = vpop.f32.mrf.mxu0
  %v3603 = vadd.f32 0.0, %v3602
  %v3604 = vpop.f32.mrf.mxu0
  %3605 = vmatprep.mubr.bf16.mxu0 0
  %3606 = vmatmul.mubr.bf16.gmra.mxu0 %v3412
  %v3607 = vpop.f32.mrf.mxu0
  %v3608 = vadd.f32 0.0, %v3607
  %v3609 = vpop.f32.mrf.mxu0
  %v3610 = vpop.f32.mrf.mxu0
  %v3611 = vadd.f32 0.0, %v3610
  %v3612 = vpop.f32.mrf.mxu0
  %3613 = vmatprep.mubr.bf16.mxu0 0
  %3614 = vmatmul.mubr.bf16.gmra.mxu0 %v3415
  %v3615 = vpop.f32.mrf.mxu0
  %v3616 = vadd.f32 0.0, %v3615
  %v3617 = vpop.f32.mrf.mxu0
  %v3618 = vpop.f32.mrf.mxu0
  %v3619 = vadd.f32 0.0, %v3618
  %v3620 = vpop.f32.mrf.mxu0
  %3621 = vmatprep.mubr.bf16.mxu0 0
  %3622 = vmatmul.mubr.bf16.gmra.mxu0 %v3418
  %v3623 = vpop.f32.mrf.mxu0
  %v3624 = vadd.f32 0.0, %v3623
  %v3625 = vpop.f32.mrf.mxu0
  %v3626 = vpop.f32.mrf.mxu0
  %v3627 = vadd.f32 0.0, %v3626
  %v3628 = vpop.f32.mrf.mxu0
  %3629 = vdwg.mxu0
  %v3630 = vpack.c.bf16 %v3458, %v3455
  %v3631 = vpack.c.bf16 %v3466, %v3463
  %v3632 = vpack.c.bf16 %v3474, %v3471
  %v3633 = vpack.c.bf16 %v3482, %v3479
  %v3634 = vpack.c.bf16 %v3490, %v3487
  %v3635 = vpack.c.bf16 %v3498, %v3495
  %v3636 = vpack.c.bf16 %v3506, %v3503
  %v3637 = vpack.c.bf16 %v3514, %v3511
  %v3638 = vpack.c.bf16 %v3571, %v3568
  %v3639 = vpack.c.bf16 %v3579, %v3576
  %v3640 = vpack.c.bf16 %v3587, %v3584
  %v3641 = vpack.c.bf16 %v3595, %v3592
  %v3642 = vpack.c.bf16 %v3603, %v3600
  %v3643 = vpack.c.bf16 %v3611, %v3608
  %v3644 = vpack.c.bf16 %v3619, %v3616
  %v3645 = vpack.c.bf16 %v3627, %v3624
  %v3646 = vld [vmem:[%s33] sm:$0xf]
  %v3647 = vld [vmem:[%s33 + $0x4] sm:$0xf]
  %v3648 = vld [vmem:[%s33 + $0x8] sm:$0xf]
  %v3649 = vld [vmem:[%s33 + $0xc] sm:$0xf]
  %v3650 = vpack.c.bf16 %v3121, %v3118
  %v3651 = vpack.c.bf16 %v3129, %v3126
  %v3652 = vpack.c.bf16 %v3137, %v3134
  %v3653 = vpack.c.bf16 %v3145, %v3142
  %v3654 = vpack.c.bf16 %v3153, %v3150
  %v3655 = vpack.c.bf16 %v3161, %v3158
  %v3656 = vpack.c.bf16 %v3169, %v3166
  %v3657 = vpack.c.bf16 %v3177, %v3174
  %v3658 = vpack.c.bf16 %v3185, %v3182
  %v3659 = vpack.c.bf16 %v3193, %v3190
  %v3660 = vpack.c.bf16 %v3201, %v3198
  %v3661 = vpack.c.bf16 %v3209, %v3206
  %v3662 = vpack.c.bf16 %v3217, %v3214
  %v3663 = vpack.c.bf16 %v3225, %v3222
  %v3664 = vpack.c.bf16 %v3233, %v3230
  %v3665 = vpack.c.bf16 %v3241, %v3238
  %v3666 = vpack.c.bf16 %v3249, %v3246
  %v3667 = vpack.c.bf16 %v3257, %v3254
  %v3668 = vpack.c.bf16 %v3265, %v3262
  %v3669 = vpack.c.bf16 %v3273, %v3270
  %v3670 = vpack.c.bf16 %v3281, %v3278
  %v3671 = vpack.c.bf16 %v3289, %v3286
  %v3672 = vpack.c.bf16 %v3297, %v3294
  %v3673 = vpack.c.bf16 %v3305, %v3302
  %v3674 = vpack.c.bf16 %v3313, %v3310
  %v3675 = vpack.c.bf16 %v3321, %v3318
  %v3676 = vpack.c.bf16 %v3329, %v3326
  %v3677 = vpack.c.bf16 %v3337, %v3334
  %v3678 = vpack.c.bf16 %v3345, %v3342
  %v3679 = vpack.c.bf16 %v3353, %v3350
  %v3680 = vpack.c.bf16 %v3361, %v3358
  %v3681 = vpack.c.bf16 %v3369, %v3366
  %3682 = vmatprep.subr.bf16.mxu0 0
  %3683 = vmatpush1.bf16.msra.mxu0 %v3637
  %3684 = vmatprep.subr.bf16.mxu0 0
  %3685 = vmatpush1.bf16.msra.mxu0 %v3636
  %3686 = vmatprep.subr.bf16.mxu0 0
  %3687 = vmatpush1.bf16.msra.mxu0 %v3635
  %3688 = vmatprep.subr.bf16.mxu0 0
  %3689 = vmatpush1.bf16.msra.mxu0 %v3634
  %3690 = vmatprep.subr.bf16.mxu0 0
  %3691 = vmatpush1.bf16.msra.mxu0 %v3633
  %3692 = vmatprep.subr.bf16.mxu0 0
  %3693 = vmatpush1.bf16.msra.mxu0 %v3632
  %3694 = vmatprep.subr.bf16.mxu0 0
  %3695 = vmatpush1.bf16.msra.mxu0 %v3631
  %3696 = vmatprep.subr.bf16.mxu0 0
  %3697 = vmatpush1.bf16.msra.mxu0 %v3630
  %3698 = vmatprep.subr.bf16.mxu0 0
  %3699 = vmatpush2.bf16.msra.mxu0 %v3645
  %3700 = vmatprep.subr.bf16.mxu0 0
  %3701 = vmatpush2.bf16.msra.mxu0 %v3644
  %3702 = vmatprep.subr.bf16.mxu0 0
  %3703 = vmatpush2.bf16.msra.mxu0 %v3643
  %3704 = vmatprep.subr.bf16.mxu0 0
  %3705 = vmatpush2.bf16.msra.mxu0 %v3642
  %3706 = vmatprep.subr.bf16.mxu0 0
  %3707 = vmatpush2.bf16.msra.mxu0 %v3641
  %3708 = vmatprep.subr.bf16.mxu0 0
  %3709 = vmatpush2.bf16.msra.mxu0 %v3640
  %3710 = vmatprep.subr.bf16.mxu0 0
  %3711 = vmatpush2.bf16.msra.mxu0 %v3639
  %3712 = vmatprep.subr.bf16.mxu0 0
  %3713 = vmatpush2.bf16.msra.mxu0 %v3638
  %3714 = vmatprep.mubr.bf16.mxu0 %v1121
  %3715 = vmatmul.mubr.bf16.gmra.mxu0 %v641
  %v3716 = vpop.f32.mrf.mxu0
  %v3717 = vadd.f32 0.0, %v3716
  %v3718 = vpop.f32.mrf.mxu0
  %v3719 = vpop.f32.mrf.mxu0
  %v3720 = vadd.f32 0.0, %v3719
  %v3721 = vpop.f32.mrf.mxu0
  %3722 = vmatprep.mubr.bf16.mxu0 %v1122
  %3723 = vmatmul.mubr.bf16.gmra.mxu0 %v642
  %v3724 = vpop.f32.mrf.mxu0
  %v3725 = vadd.f32 0.0, %v3724
  %v3726 = vpop.f32.mrf.mxu0
  %v3727 = vpop.f32.mrf.mxu0
  %v3728 = vadd.f32 0.0, %v3727
  %v3729 = vpop.f32.mrf.mxu0
  %3730 = vmatprep.mubr.bf16.mxu0 %v1123
  %3731 = vmatmul.mubr.bf16.gmra.mxu0 %v643
  %v3732 = vpop.f32.mrf.mxu0
  %v3733 = vadd.f32 0.0, %v3732
  %v3734 = vpop.f32.mrf.mxu0
  %v3735 = vpop.f32.mrf.mxu0
  %v3736 = vadd.f32 0.0, %v3735
  %v3737 = vpop.f32.mrf.mxu0
  %3738 = vmatprep.mubr.bf16.mxu0 %v1124
  %3739 = vmatmul.mubr.bf16.gmra.mxu0 %v644
  %v3740 = vpop.f32.mrf.mxu0
  %v3741 = vadd.f32 0.0, %v3740
  %v3742 = vpop.f32.mrf.mxu0
  %v3743 = vpop.f32.mrf.mxu0
  %v3744 = vadd.f32 0.0, %v3743
  %v3745 = vpop.f32.mrf.mxu0
  %3746 = vmatprep.mubr.bf16.mxu0 %v1125
  %3747 = vmatmul.mubr.bf16.gmra.mxu0 %v645
  %v3748 = vpop.f32.mrf.mxu0
  %v3749 = vadd.f32 0.0, %v3748
  %v3750 = vpop.f32.mrf.mxu0
  %v3751 = vpop.f32.mrf.mxu0
  %v3752 = vadd.f32 0.0, %v3751
  %v3753 = vpop.f32.mrf.mxu0
  %3754 = vmatprep.mubr.bf16.mxu0 %v1126
  %3755 = vmatmul.mubr.bf16.gmra.mxu0 %v646
  %v3756 = vpop.f32.mrf.mxu0
  %v3757 = vadd.f32 0.0, %v3756
  %v3758 = vpop.f32.mrf.mxu0
  %v3759 = vpop.f32.mrf.mxu0
  %v3760 = vadd.f32 0.0, %v3759
  %v3761 = vpop.f32.mrf.mxu0
  %3762 = vmatprep.mubr.bf16.mxu0 %v1127
  %3763 = vmatmul.mubr.bf16.gmra.mxu0 %v647
  %v3764 = vpop.f32.mrf.mxu0
  %v3765 = vadd.f32 0.0, %v3764
  %v3766 = vpop.f32.mrf.mxu0
  %v3767 = vpop.f32.mrf.mxu0
  %v3768 = vadd.f32 0.0, %v3767
  %v3769 = vpop.f32.mrf.mxu0
  %3770 = vmatprep.mubr.bf16.mxu0 %v1128
  %3771 = vmatmul.mubr.bf16.gmra.mxu0 %v648
  %v3772 = vpop.f32.mrf.mxu0
  %v3773 = vadd.f32 0.0, %v3772
  %v3774 = vpop.f32.mrf.mxu0
  %v3775 = vpop.f32.mrf.mxu0
  %v3776 = vadd.f32 0.0, %v3775
  %v3777 = vpop.f32.mrf.mxu0
  %3778 = vmatprep.mubr.bf16.mxu0 %v1129
  %3779 = vmatmul.mubr.bf16.gmra.mxu0 %v649
  %v3780 = vpop.f32.mrf.mxu0
  %v3781 = vadd.f32 0.0, %v3780
  %v3782 = vpop.f32.mrf.mxu0
  %v3783 = vpop.f32.mrf.mxu0
  %v3784 = vadd.f32 0.0, %v3783
  %v3785 = vpop.f32.mrf.mxu0
  %3786 = vmatprep.mubr.bf16.mxu0 %v1130
  %3787 = vmatmul.mubr.bf16.gmra.mxu0 %v650
  %v3788 = vpop.f32.mrf.mxu0
  %v3789 = vadd.f32 0.0, %v3788
  %v3790 = vpop.f32.mrf.mxu0
  %v3791 = vpop.f32.mrf.mxu0
  %v3792 = vadd.f32 0.0, %v3791
  %v3793 = vpop.f32.mrf.mxu0
  %3794 = vmatprep.mubr.bf16.mxu0 %v1131
  %3795 = vmatmul.mubr.bf16.gmra.mxu0 %v651
  %v3796 = vpop.f32.mrf.mxu0
  %v3797 = vadd.f32 0.0, %v3796
  %v3798 = vpop.f32.mrf.mxu0
  %v3799 = vpop.f32.mrf.mxu0
  %v3800 = vadd.f32 0.0, %v3799
  %v3801 = vpop.f32.mrf.mxu0
  %3802 = vmatprep.mubr.bf16.mxu0 %v1132
  %3803 = vmatmul.mubr.bf16.gmra.mxu0 %v652
  %v3804 = vpop.f32.mrf.mxu0
  %v3805 = vadd.f32 0.0, %v3804
  %v3806 = vpop.f32.mrf.mxu0
  %v3807 = vpop.f32.mrf.mxu0
  %v3808 = vadd.f32 0.0, %v3807
  %v3809 = vpop.f32.mrf.mxu0
  %3810 = vmatprep.mubr.bf16.mxu0 %v1133
  %3811 = vmatmul.mubr.bf16.gmra.mxu0 %v653
  %v3812 = vpop.f32.mrf.mxu0
  %v3813 = vadd.f32 0.0, %v3812
  %v3814 = vpop.f32.mrf.mxu0
  %v3815 = vpop.f32.mrf.mxu0
  %v3816 = vadd.f32 0.0, %v3815
  %v3817 = vpop.f32.mrf.mxu0
  %3818 = vmatprep.mubr.bf16.mxu0 %v1134
  %3819 = vmatmul.mubr.bf16.gmra.mxu0 %v654
  %v3820 = vpop.f32.mrf.mxu0
  %v3821 = vadd.f32 0.0, %v3820
  %v3822 = vpop.f32.mrf.mxu0
  %v3823 = vpop.f32.mrf.mxu0
  %v3824 = vadd.f32 0.0, %v3823
  %v3825 = vpop.f32.mrf.mxu0
  %3826 = vmatprep.mubr.bf16.mxu0 %v1135
  %3827 = vmatmul.mubr.bf16.gmra.mxu0 %v655
  %v3828 = vpop.f32.mrf.mxu0
  %v3829 = vadd.f32 0.0, %v3828
  %v3830 = vpop.f32.mrf.mxu0
  %v3831 = vpop.f32.mrf.mxu0
  %v3832 = vadd.f32 0.0, %v3831
  %v3833 = vpop.f32.mrf.mxu0
  %3834 = vmatprep.mubr.bf16.mxu0 %v1136
  %3835 = vmatmul.mubr.bf16.gmra.mxu0 %v656
  %v3836 = vpop.f32.mrf.mxu0
  %v3837 = vadd.f32 0.0, %v3836
  %v3838 = vpop.f32.mrf.mxu0
  %v3839 = vpop.f32.mrf.mxu0
  %v3840 = vadd.f32 0.0, %v3839
  %v3841 = vpop.f32.mrf.mxu0
  %3842 = vmatprep.mubr.bf16.mxu0 %v1137
  %3843 = vmatmul.mubr.bf16.gmra.mxu0 %v657
  %v3844 = vpop.f32.mrf.mxu0
  %v3845 = vadd.f32 0.0, %v3844
  %v3846 = vpop.f32.mrf.mxu0
  %v3847 = vpop.f32.mrf.mxu0
  %v3848 = vadd.f32 0.0, %v3847
  %v3849 = vpop.f32.mrf.mxu0
  %3850 = vmatprep.mubr.bf16.mxu0 %v1138
  %3851 = vmatmul.mubr.bf16.gmra.mxu0 %v658
  %v3852 = vpop.f32.mrf.mxu0
  %v3853 = vadd.f32 0.0, %v3852
  %v3854 = vpop.f32.mrf.mxu0
  %v3855 = vpop.f32.mrf.mxu0
  %v3856 = vadd.f32 0.0, %v3855
  %v3857 = vpop.f32.mrf.mxu0
  %3858 = vmatprep.mubr.bf16.mxu0 %v1139
  %3859 = vmatmul.mubr.bf16.gmra.mxu0 %v659
  %v3860 = vpop.f32.mrf.mxu0
  %v3861 = vadd.f32 0.0, %v3860
  %v3862 = vpop.f32.mrf.mxu0
  %v3863 = vpop.f32.mrf.mxu0
  %v3864 = vadd.f32 0.0, %v3863
  %v3865 = vpop.f32.mrf.mxu0
  %3866 = vmatprep.mubr.bf16.mxu0 %v1140
  %3867 = vmatmul.mubr.bf16.gmra.mxu0 %v660
  %v3868 = vpop.f32.mrf.mxu0
  %v3869 = vadd.f32 0.0, %v3868
  %v3870 = vpop.f32.mrf.mxu0
  %v3871 = vpop.f32.mrf.mxu0
  %v3872 = vadd.f32 0.0, %v3871
  %v3873 = vpop.f32.mrf.mxu0
  %3874 = vmatprep.mubr.bf16.mxu0 %v1141
  %3875 = vmatmul.mubr.bf16.gmra.mxu0 %v661
  %v3876 = vpop.f32.mrf.mxu0
  %v3877 = vadd.f32 0.0, %v3876
  %v3878 = vpop.f32.mrf.mxu0
  %v3879 = vpop.f32.mrf.mxu0
  %v3880 = vadd.f32 0.0, %v3879
  %v3881 = vpop.f32.mrf.mxu0
  %3882 = vmatprep.mubr.bf16.mxu0 %v1142
  %3883 = vmatmul.mubr.bf16.gmra.mxu0 %v662
  %v3884 = vpop.f32.mrf.mxu0
  %v3885 = vadd.f32 0.0, %v3884
  %v3886 = vpop.f32.mrf.mxu0
  %v3887 = vpop.f32.mrf.mxu0
  %v3888 = vadd.f32 0.0, %v3887
  %v3889 = vpop.f32.mrf.mxu0
  %3890 = vmatprep.mubr.bf16.mxu0 %v1143
  %3891 = vmatmul.mubr.bf16.gmra.mxu0 %v663
  %v3892 = vpop.f32.mrf.mxu0
  %v3893 = vadd.f32 0.0, %v3892
  %v3894 = vpop.f32.mrf.mxu0
  %v3895 = vpop.f32.mrf.mxu0
  %v3896 = vadd.f32 0.0, %v3895
  %v3897 = vpop.f32.mrf.mxu0
  %3898 = vmatprep.mubr.bf16.mxu0 %v1144
  %3899 = vmatmul.mubr.bf16.gmra.mxu0 %v664
  %v3900 = vpop.f32.mrf.mxu0
  %v3901 = vadd.f32 0.0, %v3900
  %v3902 = vpop.f32.mrf.mxu0
  %v3903 = vpop.f32.mrf.mxu0
  %v3904 = vadd.f32 0.0, %v3903
  %v3905 = vpop.f32.mrf.mxu0
  %3906 = vmatprep.mubr.bf16.mxu0 %v1145
  %3907 = vmatmul.mubr.bf16.gmra.mxu0 %v665
  %v3908 = vpop.f32.mrf.mxu0
  %v3909 = vadd.f32 0.0, %v3908
  %v3910 = vpop.f32.mrf.mxu0
  %v3911 = vpop.f32.mrf.mxu0
  %v3912 = vadd.f32 0.0, %v3911
  %v3913 = vpop.f32.mrf.mxu0
  %3914 = vmatprep.mubr.bf16.mxu0 %v1146
  %3915 = vmatmul.mubr.bf16.gmra.mxu0 %v666
  %v3916 = vpop.f32.mrf.mxu0
  %v3917 = vadd.f32 0.0, %v3916
  %v3918 = vpop.f32.mrf.mxu0
  %v3919 = vpop.f32.mrf.mxu0
  %v3920 = vadd.f32 0.0, %v3919
  %v3921 = vpop.f32.mrf.mxu0
  %3922 = vmatprep.mubr.bf16.mxu0 %v1147
  %3923 = vmatmul.mubr.bf16.gmra.mxu0 %v667
  %v3924 = vpop.f32.mrf.mxu0
  %v3925 = vadd.f32 0.0, %v3924
  %v3926 = vpop.f32.mrf.mxu0
  %v3927 = vpop.f32.mrf.mxu0
  %v3928 = vadd.f32 0.0, %v3927
  %v3929 = vpop.f32.mrf.mxu0
  %3930 = vmatprep.mubr.bf16.mxu0 %v1148
  %3931 = vmatmul.mubr.bf16.gmra.mxu0 %v668
  %v3932 = vpop.f32.mrf.mxu0
  %v3933 = vadd.f32 0.0, %v3932
  %v3934 = vpop.f32.mrf.mxu0
  %v3935 = vpop.f32.mrf.mxu0
  %v3936 = vadd.f32 0.0, %v3935
  %v3937 = vpop.f32.mrf.mxu0
  %3938 = vmatprep.mubr.bf16.mxu0 %v1149
  %3939 = vmatmul.mubr.bf16.gmra.mxu0 %v669
  %v3940 = vpop.f32.mrf.mxu0
  %v3941 = vadd.f32 0.0, %v3940
  %v3942 = vpop.f32.mrf.mxu0
  %v3943 = vpop.f32.mrf.mxu0
  %v3944 = vadd.f32 0.0, %v3943
  %v3945 = vpop.f32.mrf.mxu0
  %3946 = vmatprep.mubr.bf16.mxu0 %v1150
  %3947 = vmatmul.mubr.bf16.gmra.mxu0 %v670
  %v3948 = vpop.f32.mrf.mxu0
  %v3949 = vadd.f32 0.0, %v3948
  %v3950 = vpop.f32.mrf.mxu0
  %v3951 = vpop.f32.mrf.mxu0
  %v3952 = vadd.f32 0.0, %v3951
  %v3953 = vpop.f32.mrf.mxu0
  %3954 = vmatprep.mubr.bf16.mxu0 %v1151
  %3955 = vmatmul.mubr.bf16.gmra.mxu0 %v671
  %v3956 = vpop.f32.mrf.mxu0
  %v3957 = vadd.f32 0.0, %v3956
  %v3958 = vpop.f32.mrf.mxu0
  %v3959 = vpop.f32.mrf.mxu0
  %v3960 = vadd.f32 0.0, %v3959
  %v3961 = vpop.f32.mrf.mxu0
  %3962 = vmatprep.mubr.bf16.mxu0 %v1152
  %3963 = vmatmul.mubr.bf16.gmra.mxu0 %v672
  %v3964 = vpop.f32.mrf.mxu0
  %v3965 = vadd.f32 0.0, %v3964
  %v3966 = vpop.f32.mrf.mxu0
  %v3967 = vpop.f32.mrf.mxu0
  %v3968 = vadd.f32 0.0, %v3967
  %v3969 = vpop.f32.mrf.mxu0
  %3970 = vdwg.mxu0
  %v3975 = vunpack.c.l.b16 %v3646
  %v3976 = vunpack.c.l.b16 %v3647
  %v3977 = vunpack.c.l.b16 %v3648
  %v3978 = vunpack.c.l.b16 %v3649
  %v3979 = vpack.c.b16 %v3976, %v3975
  %v3980 = vpack.c.b16 %v3978, %v3977
  %v3984 = vsel %vm1582, %v3650, 0
  %v3987 = vsel %vm1582, %v3651, 0
  %v3990 = vsel %vm1582, %v3652, 0
  %v3993 = vsel %vm1582, %v3653, 0
  %v3996 = vsel %vm1582, %v3654, 0
  %v3999 = vsel %vm1582, %v3655, 0
  %v4002 = vsel %vm1582, %v3656, 0
  %v4005 = vsel %vm1582, %v3657, 0
  %v4008 = vsel %vm1582, %v3658, 0
  %v4011 = vsel %vm1582, %v3659, 0
  %v4014 = vsel %vm1582, %v3660, 0
  %v4017 = vsel %vm1582, %v3661, 0
  %v4020 = vsel %vm1582, %v3662, 0
  %v4023 = vsel %vm1582, %v3663, 0
  %v4026 = vsel %vm1582, %v3664, 0
  %v4029 = vsel %vm1582, %v3665, 0
  %v4032 = vsel %vm1582, %v3666, 0
  %v4035 = vsel %vm1582, %v3667, 0
  %v4038 = vsel %vm1582, %v3668, 0
  %v4041 = vsel %vm1582, %v3669, 0
  %v4044 = vsel %vm1582, %v3670, 0
  %v4047 = vsel %vm1582, %v3671, 0
  %v4050 = vsel %vm1582, %v3672, 0
  %v4053 = vsel %vm1582, %v3673, 0
  %v4056 = vsel %vm1582, %v3674, 0
  %v4059 = vsel %vm1582, %v3675, 0
  %v4062 = vsel %vm1582, %v3676, 0
  %v4065 = vsel %vm1582, %v3677, 0
  %v4068 = vsel %vm1582, %v3678, 0
  %v4071 = vsel %vm1582, %v3679, 0
  %v4074 = vsel %vm1582, %v3680, 0
  %v4077 = vsel %vm1582, %v3681, 0
  %4079 = vmatprep.subr.bf16.mxu0 0
  %4080 = vmatpush1.bf16.msra.mxu0 0
  %4081 = vmatprep.subr.bf16.mxu0 0
  %4082 = vmatpush1.bf16.msra.mxu0 0
  %4083 = vmatprep.subr.bf16.mxu0 0
  %4084 = vmatpush1.bf16.msra.mxu0 0
  %4085 = vmatprep.subr.bf16.mxu0 0
  %4086 = vmatpush1.bf16.msra.mxu0 0
  %4087 = vmatprep.subr.bf16.mxu0 0
  %4088 = vmatpush1.bf16.msra.mxu0 0
  %4089 = vmatprep.subr.bf16.mxu0 0
  %4090 = vmatpush1.bf16.msra.mxu0 0
  %4091 = vmatprep.subr.bf16.mxu0 0
  %4092 = vmatpush1.bf16.msra.mxu0 %v3980
  %4093 = vmatprep.subr.bf16.mxu0 0
  %4094 = vmatpush1.bf16.msra.mxu0 %v3979
  %4095 = vmatprep.subr.bf16.mxu0 0
  %4096 = vmatpush2.bf16.msra.mxu0 0
  %4097 = vmatprep.subr.bf16.mxu0 0
  %4098 = vmatpush2.bf16.msra.mxu0 0
  %4099 = vmatprep.subr.bf16.mxu0 0
  %4100 = vmatpush2.bf16.msra.mxu0 0
  %4101 = vmatprep.subr.bf16.mxu0 0
  %4102 = vmatpush2.bf16.msra.mxu0 0
  %4103 = vmatprep.subr.bf16.mxu0 0
  %4104 = vmatpush2.bf16.msra.mxu0 0
  %4105 = vmatprep.subr.bf16.mxu0 0
  %4106 = vmatpush2.bf16.msra.mxu0 0
  %4107 = vmatprep.subr.bf16.mxu0 0
  %4108 = vmatpush2.bf16.msra.mxu0 0
  %4109 = vmatprep.subr.bf16.mxu0 0
  %4110 = vmatpush2.bf16.msra.mxu0 0
  %4111 = vmatprep.mubr.bf16.mxu0 0
  %4112 = vmatmul.mubr.bf16.gmra.mxu0 %v3984
  %v4113 = vpop.f32.mrf.mxu0
  %v4114 = vadd.f32 %v3717, %v4113
  %v4115 = vpop.f32.mrf.mxu0
  %v4116 = vpop.f32.mrf.mxu0
  %v4117 = vadd.f32 %v3720, %v4116
  %v4118 = vpop.f32.mrf.mxu0
  %4119 = vmatprep.mubr.bf16.mxu0 0
  %4120 = vmatmul.mubr.bf16.gmra.mxu0 %v3987
  %v4121 = vpop.f32.mrf.mxu0
  %v4122 = vadd.f32 %v3725, %v4121
  %v4123 = vpop.f32.mrf.mxu0
  %v4124 = vpop.f32.mrf.mxu0
  %v4125 = vadd.f32 %v3728, %v4124
  %v4126 = vpop.f32.mrf.mxu0
  %4127 = vmatprep.mubr.bf16.mxu0 0
  %4128 = vmatmul.mubr.bf16.gmra.mxu0 %v3990
  %v4129 = vpop.f32.mrf.mxu0
  %v4130 = vadd.f32 %v3733, %v4129
  %v4131 = vpop.f32.mrf.mxu0
  %v4132 = vpop.f32.mrf.mxu0
  %v4133 = vadd.f32 %v3736, %v4132
  %v4134 = vpop.f32.mrf.mxu0
  %4135 = vmatprep.mubr.bf16.mxu0 0
  %4136 = vmatmul.mubr.bf16.gmra.mxu0 %v3993
  %v4137 = vpop.f32.mrf.mxu0
  %v4138 = vadd.f32 %v3741, %v4137
  %v4139 = vpop.f32.mrf.mxu0
  %v4140 = vpop.f32.mrf.mxu0
  %v4141 = vadd.f32 %v3744, %v4140
  %v4142 = vpop.f32.mrf.mxu0
  %4143 = vmatprep.mubr.bf16.mxu0 0
  %4144 = vmatmul.mubr.bf16.gmra.mxu0 %v3996
  %v4145 = vpop.f32.mrf.mxu0
  %v4146 = vadd.f32 %v3749, %v4145
  %v4147 = vpop.f32.mrf.mxu0
  %v4148 = vpop.f32.mrf.mxu0
  %v4149 = vadd.f32 %v3752, %v4148
  %v4150 = vpop.f32.mrf.mxu0
  %4151 = vmatprep.mubr.bf16.mxu0 0
  %4152 = vmatmul.mubr.bf16.gmra.mxu0 %v3999
  %v4153 = vpop.f32.mrf.mxu0
  %v4154 = vadd.f32 %v3757, %v4153
  %v4155 = vpop.f32.mrf.mxu0
  %v4156 = vpop.f32.mrf.mxu0
  %v4157 = vadd.f32 %v3760, %v4156
  %v4158 = vpop.f32.mrf.mxu0
  %4159 = vmatprep.mubr.bf16.mxu0 0
  %4160 = vmatmul.mubr.bf16.gmra.mxu0 %v4002
  %v4161 = vpop.f32.mrf.mxu0
  %v4162 = vadd.f32 %v3765, %v4161
  %v4163 = vpop.f32.mrf.mxu0
  %v4164 = vpop.f32.mrf.mxu0
  %v4165 = vadd.f32 %v3768, %v4164
  %v4166 = vpop.f32.mrf.mxu0
  %4167 = vmatprep.mubr.bf16.mxu0 0
  %4168 = vmatmul.mubr.bf16.gmra.mxu0 %v4005
  %v4169 = vpop.f32.mrf.mxu0
  %v4170 = vadd.f32 %v3773, %v4169
  %v4171 = vpop.f32.mrf.mxu0
  %v4172 = vpop.f32.mrf.mxu0
  %v4173 = vadd.f32 %v3776, %v4172
  %v4174 = vpop.f32.mrf.mxu0
  %4175 = vmatprep.mubr.bf16.mxu0 0
  %4176 = vmatmul.mubr.bf16.gmra.mxu0 %v4008
  %v4177 = vpop.f32.mrf.mxu0
  %v4178 = vadd.f32 %v3781, %v4177
  %v4179 = vpop.f32.mrf.mxu0
  %v4180 = vpop.f32.mrf.mxu0
  %v4181 = vadd.f32 %v3784, %v4180
  %v4182 = vpop.f32.mrf.mxu0
  %4183 = vmatprep.mubr.bf16.mxu0 0
  %4184 = vmatmul.mubr.bf16.gmra.mxu0 %v4011
  %v4185 = vpop.f32.mrf.mxu0
  %v4186 = vadd.f32 %v3789, %v4185
  %v4187 = vpop.f32.mrf.mxu0
  %v4188 = vpop.f32.mrf.mxu0
  %v4189 = vadd.f32 %v3792, %v4188
  %v4190 = vpop.f32.mrf.mxu0
  %4191 = vmatprep.mubr.bf16.mxu0 0
  %4192 = vmatmul.mubr.bf16.gmra.mxu0 %v4014
  %v4193 = vpop.f32.mrf.mxu0
  %v4194 = vadd.f32 %v3797, %v4193
  %v4195 = vpop.f32.mrf.mxu0
  %v4196 = vpop.f32.mrf.mxu0
  %v4197 = vadd.f32 %v3800, %v4196
  %v4198 = vpop.f32.mrf.mxu0
  %4199 = vmatprep.mubr.bf16.mxu0 0
  %4200 = vmatmul.mubr.bf16.gmra.mxu0 %v4017
  %v4201 = vpop.f32.mrf.mxu0
  %v4202 = vadd.f32 %v3805, %v4201
  %v4203 = vpop.f32.mrf.mxu0
  %v4204 = vpop.f32.mrf.mxu0
  %v4205 = vadd.f32 %v3808, %v4204
  %v4206 = vpop.f32.mrf.mxu0
  %4207 = vmatprep.mubr.bf16.mxu0 0
  %4208 = vmatmul.mubr.bf16.gmra.mxu0 %v4020
  %v4209 = vpop.f32.mrf.mxu0
  %v4210 = vadd.f32 %v3813, %v4209
  %v4211 = vpop.f32.mrf.mxu0
  %v4212 = vpop.f32.mrf.mxu0
  %v4213 = vadd.f32 %v3816, %v4212
  %v4214 = vpop.f32.mrf.mxu0
  %4215 = vmatprep.mubr.bf16.mxu0 0
  %4216 = vmatmul.mubr.bf16.gmra.mxu0 %v4023
  %v4217 = vpop.f32.mrf.mxu0
  %v4218 = vadd.f32 %v3821, %v4217
  %v4219 = vpop.f32.mrf.mxu0
  %v4220 = vpop.f32.mrf.mxu0
  %v4221 = vadd.f32 %v3824, %v4220
  %v4222 = vpop.f32.mrf.mxu0
  %4223 = vmatprep.mubr.bf16.mxu0 0
  %4224 = vmatmul.mubr.bf16.gmra.mxu0 %v4026
  %v4225 = vpop.f32.mrf.mxu0
  %v4226 = vadd.f32 %v3829, %v4225
  %v4227 = vpop.f32.mrf.mxu0
  %v4228 = vpop.f32.mrf.mxu0
  %v4229 = vadd.f32 %v3832, %v4228
  %v4230 = vpop.f32.mrf.mxu0
  %4231 = vmatprep.mubr.bf16.mxu0 0
  %4232 = vmatmul.mubr.bf16.gmra.mxu0 %v4029
  %v4233 = vpop.f32.mrf.mxu0
  %v4234 = vadd.f32 %v3837, %v4233
  %v4235 = vpop.f32.mrf.mxu0
  %v4236 = vpop.f32.mrf.mxu0
  %v4237 = vadd.f32 %v3840, %v4236
  %v4238 = vpop.f32.mrf.mxu0
  %4239 = vmatprep.mubr.bf16.mxu0 0
  %4240 = vmatmul.mubr.bf16.gmra.mxu0 %v4032
  %v4241 = vpop.f32.mrf.mxu0
  %v4242 = vadd.f32 %v3845, %v4241
  %v4243 = vpop.f32.mrf.mxu0
  %v4244 = vpop.f32.mrf.mxu0
  %v4245 = vadd.f32 %v3848, %v4244
  %v4246 = vpop.f32.mrf.mxu0
  %4247 = vmatprep.mubr.bf16.mxu0 0
  %4248 = vmatmul.mubr.bf16.gmra.mxu0 %v4035
  %v4249 = vpop.f32.mrf.mxu0
  %v4250 = vadd.f32 %v3853, %v4249
  %v4251 = vpop.f32.mrf.mxu0
  %v4252 = vpop.f32.mrf.mxu0
  %v4253 = vadd.f32 %v3856, %v4252
  %v4254 = vpop.f32.mrf.mxu0
  %4255 = vmatprep.mubr.bf16.mxu0 0
  %4256 = vmatmul.mubr.bf16.gmra.mxu0 %v4038
  %v4257 = vpop.f32.mrf.mxu0
  %v4258 = vadd.f32 %v3861, %v4257
  %v4259 = vpop.f32.mrf.mxu0
  %v4260 = vpop.f32.mrf.mxu0
  %v4261 = vadd.f32 %v3864, %v4260
  %v4262 = vpop.f32.mrf.mxu0
  %4263 = vmatprep.mubr.bf16.mxu0 0
  %4264 = vmatmul.mubr.bf16.gmra.mxu0 %v4041
  %v4265 = vpop.f32.mrf.mxu0
  %v4266 = vadd.f32 %v3869, %v4265
  %v4267 = vpop.f32.mrf.mxu0
  %v4268 = vpop.f32.mrf.mxu0
  %v4269 = vadd.f32 %v3872, %v4268
  %v4270 = vpop.f32.mrf.mxu0
  %4271 = vmatprep.mubr.bf16.mxu0 0
  %4272 = vmatmul.mubr.bf16.gmra.mxu0 %v4044
  %v4273 = vpop.f32.mrf.mxu0
  %v4274 = vadd.f32 %v3877, %v4273
  %v4275 = vpop.f32.mrf.mxu0
  %v4276 = vpop.f32.mrf.mxu0
  %v4277 = vadd.f32 %v3880, %v4276
  %v4278 = vpop.f32.mrf.mxu0
  %4279 = vmatprep.mubr.bf16.mxu0 0
  %4280 = vmatmul.mubr.bf16.gmra.mxu0 %v4047
  %v4281 = vpop.f32.mrf.mxu0
  %v4282 = vadd.f32 %v3885, %v4281
  %v4283 = vpop.f32.mrf.mxu0
  %v4284 = vpop.f32.mrf.mxu0
  %v4285 = vadd.f32 %v3888, %v4284
  %v4286 = vpop.f32.mrf.mxu0
  %4287 = vmatprep.mubr.bf16.mxu0 0
  %4288 = vmatmul.mubr.bf16.gmra.mxu0 %v4050
  %v4289 = vpop.f32.mrf.mxu0
  %v4290 = vadd.f32 %v3893, %v4289
  %v4291 = vpop.f32.mrf.mxu0
  %v4292 = vpop.f32.mrf.mxu0
  %v4293 = vadd.f32 %v3896, %v4292
  %v4294 = vpop.f32.mrf.mxu0
  %4295 = vmatprep.mubr.bf16.mxu0 0
  %4296 = vmatmul.mubr.bf16.gmra.mxu0 %v4053
  %v4297 = vpop.f32.mrf.mxu0
  %v4298 = vadd.f32 %v3901, %v4297
  %v4299 = vpop.f32.mrf.mxu0
  %v4300 = vpop.f32.mrf.mxu0
  %v4301 = vadd.f32 %v3904, %v4300
  %v4302 = vpop.f32.mrf.mxu0
  %4303 = vmatprep.mubr.bf16.mxu0 0
  %4304 = vmatmul.mubr.bf16.gmra.mxu0 %v4056
  %v4305 = vpop.f32.mrf.mxu0
  %v4306 = vadd.f32 %v3909, %v4305
  %v4307 = vpop.f32.mrf.mxu0
  %v4308 = vpop.f32.mrf.mxu0
  %v4309 = vadd.f32 %v3912, %v4308
  %v4310 = vpop.f32.mrf.mxu0
  %4311 = vmatprep.mubr.bf16.mxu0 0
  %4312 = vmatmul.mubr.bf16.gmra.mxu0 %v4059
  %v4313 = vpop.f32.mrf.mxu0
  %v4314 = vadd.f32 %v3917, %v4313
  %v4315 = vpop.f32.mrf.mxu0
  %v4316 = vpop.f32.mrf.mxu0
  %v4317 = vadd.f32 %v3920, %v4316
  %v4318 = vpop.f32.mrf.mxu0
  %4319 = vmatprep.mubr.bf16.mxu0 0
  %4320 = vmatmul.mubr.bf16.gmra.mxu0 %v4062
  %v4321 = vpop.f32.mrf.mxu0
  %v4322 = vadd.f32 %v3925, %v4321
  %v4323 = vpop.f32.mrf.mxu0
  %v4324 = vpop.f32.mrf.mxu0
  %v4325 = vadd.f32 %v3928, %v4324
  %v4326 = vpop.f32.mrf.mxu0
  %4327 = vmatprep.mubr.bf16.mxu0 0
  %4328 = vmatmul.mubr.bf16.gmra.mxu0 %v4065
  %v4329 = vpop.f32.mrf.mxu0
  %v4330 = vadd.f32 %v3933, %v4329
  %v4331 = vpop.f32.mrf.mxu0
  %v4332 = vpop.f32.mrf.mxu0
  %v4333 = vadd.f32 %v3936, %v4332
  %v4334 = vpop.f32.mrf.mxu0
  %4335 = vmatprep.mubr.bf16.mxu0 0
  %4336 = vmatmul.mubr.bf16.gmra.mxu0 %v4068
  %v4337 = vpop.f32.mrf.mxu0
  %v4338 = vadd.f32 %v3941, %v4337
  %v4339 = vpop.f32.mrf.mxu0
  %v4340 = vpop.f32.mrf.mxu0
  %v4341 = vadd.f32 %v3944, %v4340
  %v4342 = vpop.f32.mrf.mxu0
  %4343 = vmatprep.mubr.bf16.mxu0 0
  %4344 = vmatmul.mubr.bf16.gmra.mxu0 %v4071
  %v4345 = vpop.f32.mrf.mxu0
  %v4346 = vadd.f32 %v3949, %v4345
  %v4347 = vpop.f32.mrf.mxu0
  %v4348 = vpop.f32.mrf.mxu0
  %v4349 = vadd.f32 %v3952, %v4348
  %v4350 = vpop.f32.mrf.mxu0
  %4351 = vmatprep.mubr.bf16.mxu0 0
  %4352 = vmatmul.mubr.bf16.gmra.mxu0 %v4074
  %v4353 = vpop.f32.mrf.mxu0
  %v4354 = vadd.f32 %v3957, %v4353
  %v4355 = vpop.f32.mrf.mxu0
  %v4356 = vpop.f32.mrf.mxu0
  %v4357 = vadd.f32 %v3960, %v4356
  %v4358 = vpop.f32.mrf.mxu0
  %4359 = vmatprep.mubr.bf16.mxu0 0
  %4360 = vmatmul.mubr.bf16.gmra.mxu0 %v4077
  %v4361 = vpop.f32.mrf.mxu0
  %v4362 = vadd.f32 %v3965, %v4361
  %v4363 = vpop.f32.mrf.mxu0
  %v4364 = vpop.f32.mrf.mxu0
  %v4365 = vadd.f32 %v3968, %v4364
  %v4366 = vpop.f32.mrf.mxu0
  %4367 = vdwg.mxu0
  %v4368 = vld [vmem:[%s35] sm:$0x1]
  %v4370 = vlaneseq
  %v4371 = vshrl.u32 %v4370, 7
  %v4372 = vsub.s32 0, %v4371
  %v4373 = vrot.slane %v4368, %v4372
  %v4375 = vadd.f32 %v4114, %v4373
  %v4376 = vadd.f32 %v4117, %v4373
  %v4377 = vadd.f32 %v4122, %v4373
  %v4378 = vadd.f32 %v4125, %v4373
  %v4379 = vadd.f32 %v4130, %v4373
  %v4380 = vadd.f32 %v4133, %v4373
  %v4381 = vadd.f32 %v4138, %v4373
  %v4382 = vadd.f32 %v4141, %v4373
  %v4383 = vadd.f32 %v4146, %v4373
  %v4384 = vadd.f32 %v4149, %v4373
  %v4385 = vadd.f32 %v4154, %v4373
  %v4386 = vadd.f32 %v4157, %v4373
  %v4387 = vadd.f32 %v4162, %v4373
  %v4388 = vadd.f32 %v4165, %v4373
  %v4389 = vadd.f32 %v4170, %v4373
  %v4390 = vadd.f32 %v4173, %v4373
  %v4391 = vadd.f32 %v4178, %v4373
  %v4392 = vadd.f32 %v4181, %v4373
  %v4393 = vadd.f32 %v4186, %v4373
  %v4394 = vadd.f32 %v4189, %v4373
  %v4395 = vadd.f32 %v4194, %v4373
  %v4396 = vadd.f32 %v4197, %v4373
  %v4397 = vadd.f32 %v4202, %v4373
  %v4398 = vadd.f32 %v4205, %v4373
  %v4399 = vadd.f32 %v4210, %v4373
  %v4400 = vadd.f32 %v4213, %v4373
  %v4401 = vadd.f32 %v4218, %v4373
  %v4402 = vadd.f32 %v4221, %v4373
  %v4403 = vadd.f32 %v4226, %v4373
  %v4404 = vadd.f32 %v4229, %v4373
  %v4405 = vadd.f32 %v4234, %v4373
  %v4406 = vadd.f32 %v4237, %v4373
  %v4407 = vadd.f32 %v4242, %v4373
  %v4408 = vadd.f32 %v4245, %v4373
  %v4409 = vadd.f32 %v4250, %v4373
  %v4410 = vadd.f32 %v4253, %v4373
  %v4411 = vadd.f32 %v4258, %v4373
  %v4412 = vadd.f32 %v4261, %v4373
  %v4413 = vadd.f32 %v4266, %v4373
  %v4414 = vadd.f32 %v4269, %v4373
  %v4415 = vadd.f32 %v4274, %v4373
  %v4416 = vadd.f32 %v4277, %v4373
  %v4417 = vadd.f32 %v4282, %v4373
  %v4418 = vadd.f32 %v4285, %v4373
  %v4419 = vadd.f32 %v4290, %v4373
  %v4420 = vadd.f32 %v4293, %v4373
  %v4421 = vadd.f32 %v4298, %v4373
  %v4422 = vadd.f32 %v4301, %v4373
  %v4423 = vadd.f32 %v4306, %v4373
  %v4424 = vadd.f32 %v4309, %v4373
  %v4425 = vadd.f32 %v4314, %v4373
  %v4426 = vadd.f32 %v4317, %v4373
  %v4427 = vadd.f32 %v4322, %v4373
  %v4428 = vadd.f32 %v4325, %v4373
  %v4429 = vadd.f32 %v4330, %v4373
  %v4430 = vadd.f32 %v4333, %v4373
  %v4431 = vadd.f32 %v4338, %v4373
  %v4432 = vadd.f32 %v4341, %v4373
  %v4433 = vadd.f32 %v4346, %v4373
  %v4434 = vadd.f32 %v4349, %v4373
  %v4435 = vadd.f32 %v4354, %v4373
  %v4436 = vadd.f32 %v4357, %v4373
  %v4437 = vadd.f32 %v4362, %v4373
  %v4438 = vadd.f32 %v4365, %v4373
  %v4439 = vmax.f32 %v4375, 0.0
  %v4440 = vmax.f32 %v4376, 0.0
  %v4441 = vmax.f32 %v4377, 0.0
  %v4442 = vmax.f32 %v4378, 0.0
  %v4443 = vmax.f32 %v4379, 0.0
  %v4444 = vmax.f32 %v4380, 0.0
  %v4445 = vmax.f32 %v4381, 0.0
  %v4446 = vmax.f32 %v4382, 0.0
  %v4447 = vmax.f32 %v4383, 0.0
  %v4448 = vmax.f32 %v4384, 0.0
  %v4449 = vmax.f32 %v4385, 0.0
  %v4450 = vmax.f32 %v4386, 0.0
  %v4451 = vmax.f32 %v4387, 0.0
  %v4452 = vmax.f32 %v4388, 0.0
  %v4453 = vmax.f32 %v4389, 0.0
  %v4454 = vmax.f32 %v4390, 0.0
  %v4455 = vmax.f32 %v4391, 0.0
  %v4456 = vmax.f32 %v4392, 0.0
  %v4457 = vmax.f32 %v4393, 0.0
  %v4458 = vmax.f32 %v4394, 0.0
  %v4459 = vmax.f32 %v4395, 0.0
  %v4460 = vmax.f32 %v4396, 0.0
  %v4461 = vmax.f32 %v4397, 0.0
  %v4462 = vmax.f32 %v4398, 0.0
  %v4463 = vmax.f32 %v4399, 0.0
  %v4464 = vmax.f32 %v4400, 0.0
  %v4465 = vmax.f32 %v4401, 0.0
  %v4466 = vmax.f32 %v4402, 0.0
  %v4467 = vmax.f32 %v4403, 0.0
  %v4468 = vmax.f32 %v4404, 0.0
  %v4469 = vmax.f32 %v4405, 0.0
  %v4470 = vmax.f32 %v4406, 0.0
  %v4471 = vmax.f32 %v4407, 0.0
  %v4472 = vmax.f32 %v4408, 0.0
  %v4473 = vmax.f32 %v4409, 0.0
  %v4474 = vmax.f32 %v4410, 0.0
  %v4475 = vmax.f32 %v4411, 0.0
  %v4476 = vmax.f32 %v4412, 0.0
  %v4477 = vmax.f32 %v4413, 0.0
  %v4478 = vmax.f32 %v4414, 0.0
  %v4479 = vmax.f32 %v4415, 0.0
  %v4480 = vmax.f32 %v4416, 0.0
  %v4481 = vmax.f32 %v4417, 0.0
  %v4482 = vmax.f32 %v4418, 0.0
  %v4483 = vmax.f32 %v4419, 0.0
  %v4484 = vmax.f32 %v4420, 0.0
  %v4485 = vmax.f32 %v4421, 0.0
  %v4486 = vmax.f32 %v4422, 0.0
  %v4487 = vmax.f32 %v4423, 0.0
  %v4488 = vmax.f32 %v4424, 0.0
  %v4489 = vmax.f32 %v4425, 0.0
  %v4490 = vmax.f32 %v4426, 0.0
  %v4491 = vmax.f32 %v4427, 0.0
  %v4492 = vmax.f32 %v4428, 0.0
  %v4493 = vmax.f32 %v4429, 0.0
  %v4494 = vmax.f32 %v4430, 0.0
  %v4495 = vmax.f32 %v4431, 0.0
  %v4496 = vmax.f32 %v4432, 0.0
  %v4497 = vmax.f32 %v4433, 0.0
  %v4498 = vmax.f32 %v4434, 0.0
  %v4499 = vmax.f32 %v4435, 0.0
  %v4500 = vmax.f32 %v4436, 0.0
  %v4501 = vmax.f32 %v4437, 0.0
  %v4502 = vmax.f32 %v4438, 0.0
  %v4503 = vld [vmem:[%s37] sm:$0xf]
  %v4504 = vld [vmem:[%s37 + $0x4] sm:$0xf]
  %v4505 = vld [vmem:[%s37 + $0x8] sm:$0xf]
  %v4506 = vld [vmem:[%s37 + $0xc] sm:$0xf]
  %v4507 = vpack.c.bf16 %v4440, %v4439
  %v4508 = vpack.c.bf16 %v4442, %v4441
  %v4509 = vpack.c.bf16 %v4444, %v4443
  %v4510 = vpack.c.bf16 %v4446, %v4445
  %v4511 = vpack.c.bf16 %v4448, %v4447
  %v4512 = vpack.c.bf16 %v4450, %v4449
  %v4513 = vpack.c.bf16 %v4452, %v4451
  %v4514 = vpack.c.bf16 %v4454, %v4453
  %v4515 = vpack.c.bf16 %v4456, %v4455
  %v4516 = vpack.c.bf16 %v4458, %v4457
  %v4517 = vpack.c.bf16 %v4460, %v4459
  %v4518 = vpack.c.bf16 %v4462, %v4461
  %v4519 = vpack.c.bf16 %v4464, %v4463
  %v4520 = vpack.c.bf16 %v4466, %v4465
  %v4521 = vpack.c.bf16 %v4468, %v4467
  %v4522 = vpack.c.bf16 %v4470, %v4469
  %v4523 = vpack.c.bf16 %v4472, %v4471
  %v4524 = vpack.c.bf16 %v4474, %v4473
  %v4525 = vpack.c.bf16 %v4476, %v4475
  %v4526 = vpack.c.bf16 %v4478, %v4477
  %v4527 = vpack.c.bf16 %v4480, %v4479
  %v4528 = vpack.c.bf16 %v4482, %v4481
  %v4529 = vpack.c.bf16 %v4484, %v4483
  %v4530 = vpack.c.bf16 %v4486, %v4485
  %v4531 = vpack.c.bf16 %v4488, %v4487
  %v4532 = vpack.c.bf16 %v4490, %v4489
  %v4533 = vpack.c.bf16 %v4492, %v4491
  %v4534 = vpack.c.bf16 %v4494, %v4493
  %v4535 = vpack.c.bf16 %v4496, %v4495
  %v4536 = vpack.c.bf16 %v4498, %v4497
  %v4537 = vpack.c.bf16 %v4500, %v4499
  %v4538 = vpack.c.bf16 %v4502, %v4501
  %v4539 = vld [vmem:[%s39] sm:$0x1]
  %v4541 = vlaneseq
  %v4542 = vshrl.u32 %v4541, 7
  %v4543 = vsub.s32 0, %v4542
  %v4544 = vrot.slane %v4539, %v4543
  %v4550 = vunpack.c.l.b16 %v4503
  %v4551 = vunpack.c.l.b16 %v4504
  %v4552 = vunpack.c.l.b16 %v4505
  %v4553 = vunpack.c.l.b16 %v4506
  %v4554 = vpack.c.b16 %v4551, %v4550
  %v4555 = vpack.c.b16 %v4553, %v4552
  %v4559 = vsel %vm1582, %v4507, 0
  %v4562 = vsel %vm1582, %v4508, 0
  %v4565 = vsel %vm1582, %v4509, 0
  %v4568 = vsel %vm1582, %v4510, 0
  %v4571 = vsel %vm1582, %v4511, 0
  %v4574 = vsel %vm1582, %v4512, 0
  %v4577 = vsel %vm1582, %v4513, 0
  %v4580 = vsel %vm1582, %v4514, 0
  %v4583 = vsel %vm1582, %v4515, 0
  %v4586 = vsel %vm1582, %v4516, 0
  %v4589 = vsel %vm1582, %v4517, 0
  %v4592 = vsel %vm1582, %v4518, 0
  %v4595 = vsel %vm1582, %v4519, 0
  %v4598 = vsel %vm1582, %v4520, 0
  %v4601 = vsel %vm1582, %v4521, 0
  %v4604 = vsel %vm1582, %v4522, 0
  %v4607 = vsel %vm1582, %v4523, 0
  %v4610 = vsel %vm1582, %v4524, 0
  %v4613 = vsel %vm1582, %v4525, 0
  %v4616 = vsel %vm1582, %v4526, 0
  %v4619 = vsel %vm1582, %v4527, 0
  %v4622 = vsel %vm1582, %v4528, 0
  %v4625 = vsel %vm1582, %v4529, 0
  %v4628 = vsel %vm1582, %v4530, 0
  %v4631 = vsel %vm1582, %v4531, 0
  %v4634 = vsel %vm1582, %v4532, 0
  %v4637 = vsel %vm1582, %v4533, 0
  %v4640 = vsel %vm1582, %v4534, 0
  %v4643 = vsel %vm1582, %v4535, 0
  %v4646 = vsel %vm1582, %v4536, 0
  %v4649 = vsel %vm1582, %v4537, 0
  %v4652 = vsel %vm1582, %v4538, 0
  %4654 = vmatprep.subr.bf16.mxu0 0
  %4655 = vmatpush1.bf16.msra.mxu0 0
  %4656 = vmatprep.subr.bf16.mxu0 0
  %4657 = vmatpush1.bf16.msra.mxu0 0
  %4658 = vmatprep.subr.bf16.mxu0 0
  %4659 = vmatpush1.bf16.msra.mxu0 0
  %4660 = vmatprep.subr.bf16.mxu0 0
  %4661 = vmatpush1.bf16.msra.mxu0 0
  %4662 = vmatprep.subr.bf16.mxu0 0
  %4663 = vmatpush1.bf16.msra.mxu0 0
  %4664 = vmatprep.subr.bf16.mxu0 0
  %4665 = vmatpush1.bf16.msra.mxu0 0
  %4666 = vmatprep.subr.bf16.mxu0 0
  %4667 = vmatpush1.bf16.msra.mxu0 %v4555
  %4668 = vmatprep.subr.bf16.mxu0 0
  %4669 = vmatpush1.bf16.msra.mxu0 %v4554
  %4670 = vmatprep.subr.bf16.mxu0 0
  %4671 = vmatpush2.bf16.msra.mxu0 0
  %4672 = vmatprep.subr.bf16.mxu0 0
  %4673 = vmatpush2.bf16.msra.mxu0 0
  %4674 = vmatprep.subr.bf16.mxu0 0
  %4675 = vmatpush2.bf16.msra.mxu0 0
  %4676 = vmatprep.subr.bf16.mxu0 0
  %4677 = vmatpush2.bf16.msra.mxu0 0
  %4678 = vmatprep.subr.bf16.mxu0 0
  %4679 = vmatpush2.bf16.msra.mxu0 0
  %4680 = vmatprep.subr.bf16.mxu0 0
  %4681 = vmatpush2.bf16.msra.mxu0 0
  %4682 = vmatprep.subr.bf16.mxu0 0
  %4683 = vmatpush2.bf16.msra.mxu0 0
  %4684 = vmatprep.subr.bf16.mxu0 0
  %4685 = vmatpush2.bf16.msra.mxu0 0
  %4686 = vmatprep.mubr.bf16.mxu0 0
  %4687 = vmatmul.mubr.bf16.gmra.mxu0 %v4559
  %v4688 = vpop.f32.mrf.mxu0
  %v4689 = vadd.f32 %v4544, %v4688
  %v4690 = vpop.f32.mrf.mxu0
  %v4691 = vpop.f32.mrf.mxu0
  %v4692 = vadd.f32 %v4544, %v4691
  %v4693 = vpop.f32.mrf.mxu0
  %4694 = vmatprep.mubr.bf16.mxu0 0
  %4695 = vmatmul.mubr.bf16.gmra.mxu0 %v4562
  %v4696 = vpop.f32.mrf.mxu0
  %v4697 = vadd.f32 %v4544, %v4696
  %v4698 = vpop.f32.mrf.mxu0
  %v4699 = vpop.f32.mrf.mxu0
  %v4700 = vadd.f32 %v4544, %v4699
  %v4701 = vpop.f32.mrf.mxu0
  %4702 = vmatprep.mubr.bf16.mxu0 0
  %4703 = vmatmul.mubr.bf16.gmra.mxu0 %v4565
  %v4704 = vpop.f32.mrf.mxu0
  %v4705 = vadd.f32 %v4544, %v4704
  %v4706 = vpop.f32.mrf.mxu0
  %v4707 = vpop.f32.mrf.mxu0
  %v4708 = vadd.f32 %v4544, %v4707
  %v4709 = vpop.f32.mrf.mxu0
  %4710 = vmatprep.mubr.bf16.mxu0 0
  %4711 = vmatmul.mubr.bf16.gmra.mxu0 %v4568
  %v4712 = vpop.f32.mrf.mxu0
  %v4713 = vadd.f32 %v4544, %v4712
  %v4714 = vpop.f32.mrf.mxu0
  %v4715 = vpop.f32.mrf.mxu0
  %v4716 = vadd.f32 %v4544, %v4715
  %v4717 = vpop.f32.mrf.mxu0
  %4718 = vmatprep.mubr.bf16.mxu0 0
  %4719 = vmatmul.mubr.bf16.gmra.mxu0 %v4571
  %v4720 = vpop.f32.mrf.mxu0
  %v4721 = vadd.f32 %v4544, %v4720
  %v4722 = vpop.f32.mrf.mxu0
  %v4723 = vpop.f32.mrf.mxu0
  %v4724 = vadd.f32 %v4544, %v4723
  %v4725 = vpop.f32.mrf.mxu0
  %4726 = vmatprep.mubr.bf16.mxu0 0
  %4727 = vmatmul.mubr.bf16.gmra.mxu0 %v4574
  %v4728 = vpop.f32.mrf.mxu0
  %v4729 = vadd.f32 %v4544, %v4728
  %v4730 = vpop.f32.mrf.mxu0
  %v4731 = vpop.f32.mrf.mxu0
  %v4732 = vadd.f32 %v4544, %v4731
  %v4733 = vpop.f32.mrf.mxu0
  %4734 = vmatprep.mubr.bf16.mxu0 0
  %4735 = vmatmul.mubr.bf16.gmra.mxu0 %v4577
  %v4736 = vpop.f32.mrf.mxu0
  %v4737 = vadd.f32 %v4544, %v4736
  %v4738 = vpop.f32.mrf.mxu0
  %v4739 = vpop.f32.mrf.mxu0
  %v4740 = vadd.f32 %v4544, %v4739
  %v4741 = vpop.f32.mrf.mxu0
  %4742 = vmatprep.mubr.bf16.mxu0 0
  %4743 = vmatmul.mubr.bf16.gmra.mxu0 %v4580
  %v4744 = vpop.f32.mrf.mxu0
  %v4745 = vadd.f32 %v4544, %v4744
  %v4746 = vpop.f32.mrf.mxu0
  %v4747 = vpop.f32.mrf.mxu0
  %v4748 = vadd.f32 %v4544, %v4747
  %v4749 = vpop.f32.mrf.mxu0
  %4750 = vmatprep.mubr.bf16.mxu0 0
  %4751 = vmatmul.mubr.bf16.gmra.mxu0 %v4583
  %v4752 = vpop.f32.mrf.mxu0
  %v4753 = vadd.f32 %v4544, %v4752
  %v4754 = vpop.f32.mrf.mxu0
  %v4755 = vpop.f32.mrf.mxu0
  %v4756 = vadd.f32 %v4544, %v4755
  %v4757 = vpop.f32.mrf.mxu0
  %4758 = vmatprep.mubr.bf16.mxu0 0
  %4759 = vmatmul.mubr.bf16.gmra.mxu0 %v4586
  %v4760 = vpop.f32.mrf.mxu0
  %v4761 = vadd.f32 %v4544, %v4760
  %v4762 = vpop.f32.mrf.mxu0
  %v4763 = vpop.f32.mrf.mxu0
  %v4764 = vadd.f32 %v4544, %v4763
  %v4765 = vpop.f32.mrf.mxu0
  %4766 = vmatprep.mubr.bf16.mxu0 0
  %4767 = vmatmul.mubr.bf16.gmra.mxu0 %v4589
  %v4768 = vpop.f32.mrf.mxu0
  %v4769 = vadd.f32 %v4544, %v4768
  %v4770 = vpop.f32.mrf.mxu0
  %v4771 = vpop.f32.mrf.mxu0
  %v4772 = vadd.f32 %v4544, %v4771
  %v4773 = vpop.f32.mrf.mxu0
  %4774 = vmatprep.mubr.bf16.mxu0 0
  %4775 = vmatmul.mubr.bf16.gmra.mxu0 %v4592
  %v4776 = vpop.f32.mrf.mxu0
  %v4777 = vadd.f32 %v4544, %v4776
  %v4778 = vpop.f32.mrf.mxu0
  %v4779 = vpop.f32.mrf.mxu0
  %v4780 = vadd.f32 %v4544, %v4779
  %v4781 = vpop.f32.mrf.mxu0
  %4782 = vmatprep.mubr.bf16.mxu0 0
  %4783 = vmatmul.mubr.bf16.gmra.mxu0 %v4595
  %v4784 = vpop.f32.mrf.mxu0
  %v4785 = vadd.f32 %v4544, %v4784
  %v4786 = vpop.f32.mrf.mxu0
  %v4787 = vpop.f32.mrf.mxu0
  %v4788 = vadd.f32 %v4544, %v4787
  %v4789 = vpop.f32.mrf.mxu0
  %4790 = vmatprep.mubr.bf16.mxu0 0
  %4791 = vmatmul.mubr.bf16.gmra.mxu0 %v4598
  %v4792 = vpop.f32.mrf.mxu0
  %v4793 = vadd.f32 %v4544, %v4792
  %v4794 = vpop.f32.mrf.mxu0
  %v4795 = vpop.f32.mrf.mxu0
  %v4796 = vadd.f32 %v4544, %v4795
  %v4797 = vpop.f32.mrf.mxu0
  %4798 = vmatprep.mubr.bf16.mxu0 0
  %4799 = vmatmul.mubr.bf16.gmra.mxu0 %v4601
  %v4800 = vpop.f32.mrf.mxu0
  %v4801 = vadd.f32 %v4544, %v4800
  %v4802 = vpop.f32.mrf.mxu0
  %v4803 = vpop.f32.mrf.mxu0
  %v4804 = vadd.f32 %v4544, %v4803
  %v4805 = vpop.f32.mrf.mxu0
  %4806 = vmatprep.mubr.bf16.mxu0 0
  %4807 = vmatmul.mubr.bf16.gmra.mxu0 %v4604
  %v4808 = vpop.f32.mrf.mxu0
  %v4809 = vadd.f32 %v4544, %v4808
  %v4810 = vpop.f32.mrf.mxu0
  %v4811 = vpop.f32.mrf.mxu0
  %v4812 = vadd.f32 %v4544, %v4811
  %v4813 = vpop.f32.mrf.mxu0
  %4814 = vmatprep.mubr.bf16.mxu0 0
  %4815 = vmatmul.mubr.bf16.gmra.mxu0 %v4607
  %v4816 = vpop.f32.mrf.mxu0
  %v4817 = vadd.f32 %v4544, %v4816
  %v4818 = vpop.f32.mrf.mxu0
  %v4819 = vpop.f32.mrf.mxu0
  %v4820 = vadd.f32 %v4544, %v4819
  %v4821 = vpop.f32.mrf.mxu0
  %4822 = vmatprep.mubr.bf16.mxu0 0
  %4823 = vmatmul.mubr.bf16.gmra.mxu0 %v4610
  %v4824 = vpop.f32.mrf.mxu0
  %v4825 = vadd.f32 %v4544, %v4824
  %v4826 = vpop.f32.mrf.mxu0
  %v4827 = vpop.f32.mrf.mxu0
  %v4828 = vadd.f32 %v4544, %v4827
  %v4829 = vpop.f32.mrf.mxu0
  %4830 = vmatprep.mubr.bf16.mxu0 0
  %4831 = vmatmul.mubr.bf16.gmra.mxu0 %v4613
  %v4832 = vpop.f32.mrf.mxu0
  %v4833 = vadd.f32 %v4544, %v4832
  %v4834 = vpop.f32.mrf.mxu0
  %v4835 = vpop.f32.mrf.mxu0
  %v4836 = vadd.f32 %v4544, %v4835
  %v4837 = vpop.f32.mrf.mxu0
  %4838 = vmatprep.mubr.bf16.mxu0 0
  %4839 = vmatmul.mubr.bf16.gmra.mxu0 %v4616
  %v4840 = vpop.f32.mrf.mxu0
  %v4841 = vadd.f32 %v4544, %v4840
  %v4842 = vpop.f32.mrf.mxu0
  %v4843 = vpop.f32.mrf.mxu0
  %v4844 = vadd.f32 %v4544, %v4843
  %v4845 = vpop.f32.mrf.mxu0
  %4846 = vmatprep.mubr.bf16.mxu0 0
  %4847 = vmatmul.mubr.bf16.gmra.mxu0 %v4619
  %v4848 = vpop.f32.mrf.mxu0
  %v4849 = vadd.f32 %v4544, %v4848
  %v4850 = vpop.f32.mrf.mxu0
  %v4851 = vpop.f32.mrf.mxu0
  %v4852 = vadd.f32 %v4544, %v4851
  %v4853 = vpop.f32.mrf.mxu0
  %4854 = vmatprep.mubr.bf16.mxu0 0
  %4855 = vmatmul.mubr.bf16.gmra.mxu0 %v4622
  %v4856 = vpop.f32.mrf.mxu0
  %v4857 = vadd.f32 %v4544, %v4856
  %v4858 = vpop.f32.mrf.mxu0
  %v4859 = vpop.f32.mrf.mxu0
  %v4860 = vadd.f32 %v4544, %v4859
  %v4861 = vpop.f32.mrf.mxu0
  %4862 = vmatprep.mubr.bf16.mxu0 0
  %4863 = vmatmul.mubr.bf16.gmra.mxu0 %v4625
  %v4864 = vpop.f32.mrf.mxu0
  %v4865 = vadd.f32 %v4544, %v4864
  %v4866 = vpop.f32.mrf.mxu0
  %v4867 = vpop.f32.mrf.mxu0
  %v4868 = vadd.f32 %v4544, %v4867
  %v4869 = vpop.f32.mrf.mxu0
  %4870 = vmatprep.mubr.bf16.mxu0 0
  %4871 = vmatmul.mubr.bf16.gmra.mxu0 %v4628
  %v4872 = vpop.f32.mrf.mxu0
  %v4873 = vadd.f32 %v4544, %v4872
  %v4874 = vpop.f32.mrf.mxu0
  %v4875 = vpop.f32.mrf.mxu0
  %v4876 = vadd.f32 %v4544, %v4875
  %v4877 = vpop.f32.mrf.mxu0
  %4878 = vmatprep.mubr.bf16.mxu0 0
  %4879 = vmatmul.mubr.bf16.gmra.mxu0 %v4631
  %v4880 = vpop.f32.mrf.mxu0
  %v4881 = vadd.f32 %v4544, %v4880
  %v4882 = vpop.f32.mrf.mxu0
  %v4883 = vpop.f32.mrf.mxu0
  %v4884 = vadd.f32 %v4544, %v4883
  %v4885 = vpop.f32.mrf.mxu0
  %4886 = vmatprep.mubr.bf16.mxu0 0
  %4887 = vmatmul.mubr.bf16.gmra.mxu0 %v4634
  %v4888 = vpop.f32.mrf.mxu0
  %v4889 = vadd.f32 %v4544, %v4888
  %v4890 = vpop.f32.mrf.mxu0
  %v4891 = vpop.f32.mrf.mxu0
  %v4892 = vadd.f32 %v4544, %v4891
  %v4893 = vpop.f32.mrf.mxu0
  %4894 = vmatprep.mubr.bf16.mxu0 0
  %4895 = vmatmul.mubr.bf16.gmra.mxu0 %v4637
  %v4896 = vpop.f32.mrf.mxu0
  %v4897 = vadd.f32 %v4544, %v4896
  %v4898 = vpop.f32.mrf.mxu0
  %v4899 = vpop.f32.mrf.mxu0
  %v4900 = vadd.f32 %v4544, %v4899
  %v4901 = vpop.f32.mrf.mxu0
  %4902 = vmatprep.mubr.bf16.mxu0 0
  %4903 = vmatmul.mubr.bf16.gmra.mxu0 %v4640
  %v4904 = vpop.f32.mrf.mxu0
  %v4905 = vadd.f32 %v4544, %v4904
  %v4906 = vpop.f32.mrf.mxu0
  %v4907 = vpop.f32.mrf.mxu0
  %v4908 = vadd.f32 %v4544, %v4907
  %v4909 = vpop.f32.mrf.mxu0
  %4910 = vmatprep.mubr.bf16.mxu0 0
  %4911 = vmatmul.mubr.bf16.gmra.mxu0 %v4643
  %v4912 = vpop.f32.mrf.mxu0
  %v4913 = vadd.f32 %v4544, %v4912
  %v4914 = vpop.f32.mrf.mxu0
  %v4915 = vpop.f32.mrf.mxu0
  %v4916 = vadd.f32 %v4544, %v4915
  %v4917 = vpop.f32.mrf.mxu0
  %4918 = vmatprep.mubr.bf16.mxu0 0
  %4919 = vmatmul.mubr.bf16.gmra.mxu0 %v4646
  %v4920 = vpop.f32.mrf.mxu0
  %v4921 = vadd.f32 %v4544, %v4920
  %v4922 = vpop.f32.mrf.mxu0
  %v4923 = vpop.f32.mrf.mxu0
  %v4924 = vadd.f32 %v4544, %v4923
  %v4925 = vpop.f32.mrf.mxu0
  %4926 = vmatprep.mubr.bf16.mxu0 0
  %4927 = vmatmul.mubr.bf16.gmra.mxu0 %v4649
  %v4928 = vpop.f32.mrf.mxu0
  %v4929 = vadd.f32 %v4544, %v4928
  %v4930 = vpop.f32.mrf.mxu0
  %v4931 = vpop.f32.mrf.mxu0
  %v4932 = vadd.f32 %v4544, %v4931
  %v4933 = vpop.f32.mrf.mxu0
  %4934 = vmatprep.mubr.bf16.mxu0 0
  %4935 = vmatmul.mubr.bf16.gmra.mxu0 %v4652
  %v4936 = vpop.f32.mrf.mxu0
  %v4937 = vadd.f32 %v4544, %v4936
  %v4938 = vpop.f32.mrf.mxu0
  %v4939 = vpop.f32.mrf.mxu0
  %v4940 = vadd.f32 %v4544, %v4939
  %v4941 = vpop.f32.mrf.mxu0
  %4942 = vdwg.mxu0
  %v4943 = vmax.f32 %v4689, 0.0
  %v4944 = vmax.f32 %v4692, 0.0
  %v4945 = vmax.f32 %v4697, 0.0
  %v4946 = vmax.f32 %v4700, 0.0
  %v4947 = vmax.f32 %v4705, 0.0
  %v4948 = vmax.f32 %v4708, 0.0
  %v4949 = vmax.f32 %v4713, 0.0
  %v4950 = vmax.f32 %v4716, 0.0
  %v4951 = vmax.f32 %v4721, 0.0
  %v4952 = vmax.f32 %v4724, 0.0
  %v4953 = vmax.f32 %v4729, 0.0
  %v4954 = vmax.f32 %v4732, 0.0
  %v4955 = vmax.f32 %v4737, 0.0
  %v4956 = vmax.f32 %v4740, 0.0
  %v4957 = vmax.f32 %v4745, 0.0
  %v4958 = vmax.f32 %v4748, 0.0
  %v4959 = vmax.f32 %v4753, 0.0
  %v4960 = vmax.f32 %v4756, 0.0
  %v4961 = vmax.f32 %v4761, 0.0
  %v4962 = vmax.f32 %v4764, 0.0
  %v4963 = vmax.f32 %v4769, 0.0
  %v4964 = vmax.f32 %v4772, 0.0
  %v4965 = vmax.f32 %v4777, 0.0
  %v4966 = vmax.f32 %v4780, 0.0
  %v4967 = vmax.f32 %v4785, 0.0
  %v4968 = vmax.f32 %v4788, 0.0
  %v4969 = vmax.f32 %v4793, 0.0
  %v4970 = vmax.f32 %v4796, 0.0
  %v4971 = vmax.f32 %v4801, 0.0
  %v4972 = vmax.f32 %v4804, 0.0
  %v4973 = vmax.f32 %v4809, 0.0
  %v4974 = vmax.f32 %v4812, 0.0
  %v4975 = vmax.f32 %v4817, 0.0
  %v4976 = vmax.f32 %v4820, 0.0
  %v4977 = vmax.f32 %v4825, 0.0
  %v4978 = vmax.f32 %v4828, 0.0
  %v4979 = vmax.f32 %v4833, 0.0
  %v4980 = vmax.f32 %v4836, 0.0
  %v4981 = vmax.f32 %v4841, 0.0
  %v4982 = vmax.f32 %v4844, 0.0
  %v4983 = vmax.f32 %v4849, 0.0
  %v4984 = vmax.f32 %v4852, 0.0
  %v4985 = vmax.f32 %v4857, 0.0
  %v4986 = vmax.f32 %v4860, 0.0
  %v4987 = vmax.f32 %v4865, 0.0
  %v4988 = vmax.f32 %v4868, 0.0
  %v4989 = vmax.f32 %v4873, 0.0
  %v4990 = vmax.f32 %v4876, 0.0
  %v4991 = vmax.f32 %v4881, 0.0
  %v4992 = vmax.f32 %v4884, 0.0
  %v4993 = vmax.f32 %v4889, 0.0
  %v4994 = vmax.f32 %v4892, 0.0
  %v4995 = vmax.f32 %v4897, 0.0
  %v4996 = vmax.f32 %v4900, 0.0
  %v4997 = vmax.f32 %v4905, 0.0
  %v4998 = vmax.f32 %v4908, 0.0
  %v4999 = vmax.f32 %v4913, 0.0
  %v5000 = vmax.f32 %v4916, 0.0
  %v5001 = vmax.f32 %v4921, 0.0
  %v5002 = vmax.f32 %v4924, 0.0
  %v5003 = vmax.f32 %v4929, 0.0
  %v5004 = vmax.f32 %v4932, 0.0
  %v5005 = vmax.f32 %v4937, 0.0
  %v5006 = vmax.f32 %v4940, 0.0
  %v5007 = vld [vmem:[%s41] sm:$0xf]
  %v5008 = vld [vmem:[%s41 + $0x4] sm:$0xf]
  %v5009 = vld [vmem:[%s41 + $0x8] sm:$0xf]
  %v5010 = vld [vmem:[%s41 + $0xc] sm:$0xf]
  %v5011 = vpack.c.bf16 %v4944, %v4943
  %v5012 = vpack.c.bf16 %v4946, %v4945
  %v5013 = vpack.c.bf16 %v4948, %v4947
  %v5014 = vpack.c.bf16 %v4950, %v4949
  %v5015 = vpack.c.bf16 %v4952, %v4951
  %v5016 = vpack.c.bf16 %v4954, %v4953
  %v5017 = vpack.c.bf16 %v4956, %v4955
  %v5018 = vpack.c.bf16 %v4958, %v4957
  %v5019 = vpack.c.bf16 %v4960, %v4959
  %v5020 = vpack.c.bf16 %v4962, %v4961
  %v5021 = vpack.c.bf16 %v4964, %v4963
  %v5022 = vpack.c.bf16 %v4966, %v4965
  %v5023 = vpack.c.bf16 %v4968, %v4967
  %v5024 = vpack.c.bf16 %v4970, %v4969
  %v5025 = vpack.c.bf16 %v4972, %v4971
  %v5026 = vpack.c.bf16 %v4974, %v4973
  %v5027 = vpack.c.bf16 %v4976, %v4975
  %v5028 = vpack.c.bf16 %v4978, %v4977
  %v5029 = vpack.c.bf16 %v4980, %v4979
  %v5030 = vpack.c.bf16 %v4982, %v4981
  %v5031 = vpack.c.bf16 %v4984, %v4983
  %v5032 = vpack.c.bf16 %v4986, %v4985
  %v5033 = vpack.c.bf16 %v4988, %v4987
  %v5034 = vpack.c.bf16 %v4990, %v4989
  %v5035 = vpack.c.bf16 %v4992, %v4991
  %v5036 = vpack.c.bf16 %v4994, %v4993
  %v5037 = vpack.c.bf16 %v4996, %v4995
  %v5038 = vpack.c.bf16 %v4998, %v4997
  %v5039 = vpack.c.bf16 %v5000, %v4999
  %v5040 = vpack.c.bf16 %v5002, %v5001
  %v5041 = vpack.c.bf16 %v5004, %v5003
  %v5042 = vpack.c.bf16 %v5006, %v5005
  %v5043 = vld [vmem:[%s43] sm:$0x1]
  %v5045 = vlaneseq
  %v5046 = vshrl.u32 %v5045, 7
  %v5047 = vsub.s32 0, %v5046
  %v5048 = vrot.slane %v5043, %v5047
  %v5054 = vunpack.c.l.b16 %v5007
  %v5055 = vunpack.c.l.b16 %v5008
  %v5056 = vunpack.c.l.b16 %v5009
  %v5057 = vunpack.c.l.b16 %v5010
  %v5058 = vpack.c.b16 %v5055, %v5054
  %v5059 = vpack.c.b16 %v5057, %v5056
  %v5063 = vsel %vm1582, %v5011, 0
  %v5066 = vsel %vm1582, %v5012, 0
  %v5069 = vsel %vm1582, %v5013, 0
  %v5072 = vsel %vm1582, %v5014, 0
  %v5075 = vsel %vm1582, %v5015, 0
  %v5078 = vsel %vm1582, %v5016, 0
  %v5081 = vsel %vm1582, %v5017, 0
  %v5084 = vsel %vm1582, %v5018, 0
  %v5087 = vsel %vm1582, %v5019, 0
  %v5090 = vsel %vm1582, %v5020, 0
  %v5093 = vsel %vm1582, %v5021, 0
  %v5096 = vsel %vm1582, %v5022, 0
  %v5099 = vsel %vm1582, %v5023, 0
  %v5102 = vsel %vm1582, %v5024, 0
  %v5105 = vsel %vm1582, %v5025, 0
  %v5108 = vsel %vm1582, %v5026, 0
  %v5111 = vsel %vm1582, %v5027, 0
  %v5114 = vsel %vm1582, %v5028, 0
  %v5117 = vsel %vm1582, %v5029, 0
  %v5120 = vsel %vm1582, %v5030, 0
  %v5123 = vsel %vm1582, %v5031, 0
  %v5126 = vsel %vm1582, %v5032, 0
  %v5129 = vsel %vm1582, %v5033, 0
  %v5132 = vsel %vm1582, %v5034, 0
  %v5135 = vsel %vm1582, %v5035, 0
  %v5138 = vsel %vm1582, %v5036, 0
  %v5141 = vsel %vm1582, %v5037, 0
  %v5144 = vsel %vm1582, %v5038, 0
  %v5147 = vsel %vm1582, %v5039, 0
  %v5150 = vsel %vm1582, %v5040, 0
  %v5153 = vsel %vm1582, %v5041, 0
  %v5156 = vsel %vm1582, %v5042, 0
  %5158 = vmatprep.subr.bf16.mxu0 0
  %5159 = vmatpush1.bf16.msra.mxu0 0
  %5160 = vmatprep.subr.bf16.mxu0 0
  %5161 = vmatpush1.bf16.msra.mxu0 0
  %5162 = vmatprep.subr.bf16.mxu0 0
  %5163 = vmatpush1.bf16.msra.mxu0 0
  %5164 = vmatprep.subr.bf16.mxu0 0
  %5165 = vmatpush1.bf16.msra.mxu0 0
  %5166 = vmatprep.subr.bf16.mxu0 0
  %5167 = vmatpush1.bf16.msra.mxu0 0
  %5168 = vmatprep.subr.bf16.mxu0 0
  %5169 = vmatpush1.bf16.msra.mxu0 0
  %5170 = vmatprep.subr.bf16.mxu0 0
  %5171 = vmatpush1.bf16.msra.mxu0 %v5059
  %5172 = vmatprep.subr.bf16.mxu0 0
  %5173 = vmatpush1.bf16.msra.mxu0 %v5058
  %5174 = vmatprep.subr.bf16.mxu0 0
  %5175 = vmatpush2.bf16.msra.mxu0 0
  %5176 = vmatprep.subr.bf16.mxu0 0
  %5177 = vmatpush2.bf16.msra.mxu0 0
  %5178 = vmatprep.subr.bf16.mxu0 0
  %5179 = vmatpush2.bf16.msra.mxu0 0
  %5180 = vmatprep.subr.bf16.mxu0 0
  %5181 = vmatpush2.bf16.msra.mxu0 0
  %5182 = vmatprep.subr.bf16.mxu0 0
  %5183 = vmatpush2.bf16.msra.mxu0 0
  %5184 = vmatprep.subr.bf16.mxu0 0
  %5185 = vmatpush2.bf16.msra.mxu0 0
  %5186 = vmatprep.subr.bf16.mxu0 0
  %5187 = vmatpush2.bf16.msra.mxu0 0
  %5188 = vmatprep.subr.bf16.mxu0 0
  %5189 = vmatpush2.bf16.msra.mxu0 0
  %5190 = vmatprep.mubr.bf16.mxu0 0
  %5191 = vmatmul.mubr.bf16.gmra.mxu0 %v5063
  %v5192 = vpop.f32.mrf.mxu0
  %v5193 = vadd.f32 %v5048, %v5192
  %v5194 = vpop.f32.mrf.mxu0
  %v5195 = vpop.f32.mrf.mxu0
  %v5196 = vadd.f32 %v5048, %v5195
  %v5197 = vpop.f32.mrf.mxu0
  %5198 = vmatprep.mubr.bf16.mxu0 0
  %5199 = vmatmul.mubr.bf16.gmra.mxu0 %v5066
  %v5200 = vpop.f32.mrf.mxu0
  %v5201 = vadd.f32 %v5048, %v5200
  %v5202 = vpop.f32.mrf.mxu0
  %v5203 = vpop.f32.mrf.mxu0
  %v5204 = vadd.f32 %v5048, %v5203
  %v5205 = vpop.f32.mrf.mxu0
  %5206 = vmatprep.mubr.bf16.mxu0 0
  %5207 = vmatmul.mubr.bf16.gmra.mxu0 %v5069
  %v5208 = vpop.f32.mrf.mxu0
  %v5209 = vadd.f32 %v5048, %v5208
  %v5210 = vpop.f32.mrf.mxu0
  %v5211 = vpop.f32.mrf.mxu0
  %v5212 = vadd.f32 %v5048, %v5211
  %v5213 = vpop.f32.mrf.mxu0
  %5214 = vmatprep.mubr.bf16.mxu0 0
  %5215 = vmatmul.mubr.bf16.gmra.mxu0 %v5072
  %v5216 = vpop.f32.mrf.mxu0
  %v5217 = vadd.f32 %v5048, %v5216
  %v5218 = vpop.f32.mrf.mxu0
  %v5219 = vpop.f32.mrf.mxu0
  %v5220 = vadd.f32 %v5048, %v5219
  %v5221 = vpop.f32.mrf.mxu0
  %5222 = vmatprep.mubr.bf16.mxu0 0
  %5223 = vmatmul.mubr.bf16.gmra.mxu0 %v5075
  %v5224 = vpop.f32.mrf.mxu0
  %v5225 = vadd.f32 %v5048, %v5224
  %v5226 = vpop.f32.mrf.mxu0
  %v5227 = vpop.f32.mrf.mxu0
  %v5228 = vadd.f32 %v5048, %v5227
  %v5229 = vpop.f32.mrf.mxu0
  %5230 = vmatprep.mubr.bf16.mxu0 0
  %5231 = vmatmul.mubr.bf16.gmra.mxu0 %v5078
  %v5232 = vpop.f32.mrf.mxu0
  %v5233 = vadd.f32 %v5048, %v5232
  %v5234 = vpop.f32.mrf.mxu0
  %v5235 = vpop.f32.mrf.mxu0
  %v5236 = vadd.f32 %v5048, %v5235
  %v5237 = vpop.f32.mrf.mxu0
  %5238 = vmatprep.mubr.bf16.mxu0 0
  %5239 = vmatmul.mubr.bf16.gmra.mxu0 %v5081
  %v5240 = vpop.f32.mrf.mxu0
  %v5241 = vadd.f32 %v5048, %v5240
  %v5242 = vpop.f32.mrf.mxu0
  %v5243 = vpop.f32.mrf.mxu0
  %v5244 = vadd.f32 %v5048, %v5243
  %v5245 = vpop.f32.mrf.mxu0
  %5246 = vmatprep.mubr.bf16.mxu0 0
  %5247 = vmatmul.mubr.bf16.gmra.mxu0 %v5084
  %v5248 = vpop.f32.mrf.mxu0
  %v5249 = vadd.f32 %v5048, %v5248
  %v5250 = vpop.f32.mrf.mxu0
  %v5251 = vpop.f32.mrf.mxu0
  %v5252 = vadd.f32 %v5048, %v5251
  %v5253 = vpop.f32.mrf.mxu0
  %5254 = vmatprep.mubr.bf16.mxu0 0
  %5255 = vmatmul.mubr.bf16.gmra.mxu0 %v5087
  %v5256 = vpop.f32.mrf.mxu0
  %v5257 = vadd.f32 %v5048, %v5256
  %v5258 = vpop.f32.mrf.mxu0
  %v5259 = vpop.f32.mrf.mxu0
  %v5260 = vadd.f32 %v5048, %v5259
  %v5261 = vpop.f32.mrf.mxu0
  %5262 = vmatprep.mubr.bf16.mxu0 0
  %5263 = vmatmul.mubr.bf16.gmra.mxu0 %v5090
  %v5264 = vpop.f32.mrf.mxu0
  %v5265 = vadd.f32 %v5048, %v5264
  %v5266 = vpop.f32.mrf.mxu0
  %v5267 = vpop.f32.mrf.mxu0
  %v5268 = vadd.f32 %v5048, %v5267
  %v5269 = vpop.f32.mrf.mxu0
  %5270 = vmatprep.mubr.bf16.mxu0 0
  %5271 = vmatmul.mubr.bf16.gmra.mxu0 %v5093
  %v5272 = vpop.f32.mrf.mxu0
  %v5273 = vadd.f32 %v5048, %v5272
  %v5274 = vpop.f32.mrf.mxu0
  %v5275 = vpop.f32.mrf.mxu0
  %v5276 = vadd.f32 %v5048, %v5275
  %v5277 = vpop.f32.mrf.mxu0
  %5278 = vmatprep.mubr.bf16.mxu0 0
  %5279 = vmatmul.mubr.bf16.gmra.mxu0 %v5096
  %v5280 = vpop.f32.mrf.mxu0
  %v5281 = vadd.f32 %v5048, %v5280
  %v5282 = vpop.f32.mrf.mxu0
  %v5283 = vpop.f32.mrf.mxu0
  %v5284 = vadd.f32 %v5048, %v5283
  %v5285 = vpop.f32.mrf.mxu0
  %5286 = vmatprep.mubr.bf16.mxu0 0
  %5287 = vmatmul.mubr.bf16.gmra.mxu0 %v5099
  %v5288 = vpop.f32.mrf.mxu0
  %v5289 = vadd.f32 %v5048, %v5288
  %v5290 = vpop.f32.mrf.mxu0
  %v5291 = vpop.f32.mrf.mxu0
  %v5292 = vadd.f32 %v5048, %v5291
  %v5293 = vpop.f32.mrf.mxu0
  %5294 = vmatprep.mubr.bf16.mxu0 0
  %5295 = vmatmul.mubr.bf16.gmra.mxu0 %v5102
  %v5296 = vpop.f32.mrf.mxu0
  %v5297 = vadd.f32 %v5048, %v5296
  %v5298 = vpop.f32.mrf.mxu0
  %v5299 = vpop.f32.mrf.mxu0
  %v5300 = vadd.f32 %v5048, %v5299
  %v5301 = vpop.f32.mrf.mxu0
  %5302 = vmatprep.mubr.bf16.mxu0 0
  %5303 = vmatmul.mubr.bf16.gmra.mxu0 %v5105
  %v5304 = vpop.f32.mrf.mxu0
  %v5305 = vadd.f32 %v5048, %v5304
  %v5306 = vpop.f32.mrf.mxu0
  %v5307 = vpop.f32.mrf.mxu0
  %v5308 = vadd.f32 %v5048, %v5307
  %v5309 = vpop.f32.mrf.mxu0
  %5310 = vmatprep.mubr.bf16.mxu0 0
  %5311 = vmatmul.mubr.bf16.gmra.mxu0 %v5108
  %v5312 = vpop.f32.mrf.mxu0
  %v5313 = vadd.f32 %v5048, %v5312
  %v5314 = vpop.f32.mrf.mxu0
  %v5315 = vpop.f32.mrf.mxu0
  %v5316 = vadd.f32 %v5048, %v5315
  %v5317 = vpop.f32.mrf.mxu0
  %5318 = vmatprep.mubr.bf16.mxu0 0
  %5319 = vmatmul.mubr.bf16.gmra.mxu0 %v5111
  %v5320 = vpop.f32.mrf.mxu0
  %v5321 = vadd.f32 %v5048, %v5320
  %v5322 = vpop.f32.mrf.mxu0
  %v5323 = vpop.f32.mrf.mxu0
  %v5324 = vadd.f32 %v5048, %v5323
  %v5325 = vpop.f32.mrf.mxu0
  %5326 = vmatprep.mubr.bf16.mxu0 0
  %5327 = vmatmul.mubr.bf16.gmra.mxu0 %v5114
  %v5328 = vpop.f32.mrf.mxu0
  %v5329 = vadd.f32 %v5048, %v5328
  %v5330 = vpop.f32.mrf.mxu0
  %v5331 = vpop.f32.mrf.mxu0
  %v5332 = vadd.f32 %v5048, %v5331
  %v5333 = vpop.f32.mrf.mxu0
  %5334 = vmatprep.mubr.bf16.mxu0 0
  %5335 = vmatmul.mubr.bf16.gmra.mxu0 %v5117
  %v5336 = vpop.f32.mrf.mxu0
  %v5337 = vadd.f32 %v5048, %v5336
  %v5338 = vpop.f32.mrf.mxu0
  %v5339 = vpop.f32.mrf.mxu0
  %v5340 = vadd.f32 %v5048, %v5339
  %v5341 = vpop.f32.mrf.mxu0
  %5342 = vmatprep.mubr.bf16.mxu0 0
  %5343 = vmatmul.mubr.bf16.gmra.mxu0 %v5120
  %v5344 = vpop.f32.mrf.mxu0
  %v5345 = vadd.f32 %v5048, %v5344
  %v5346 = vpop.f32.mrf.mxu0
  %v5347 = vpop.f32.mrf.mxu0
  %v5348 = vadd.f32 %v5048, %v5347
  %v5349 = vpop.f32.mrf.mxu0
  %5350 = vmatprep.mubr.bf16.mxu0 0
  %5351 = vmatmul.mubr.bf16.gmra.mxu0 %v5123
  %v5352 = vpop.f32.mrf.mxu0
  %v5353 = vadd.f32 %v5048, %v5352
  %v5354 = vpop.f32.mrf.mxu0
  %v5355 = vpop.f32.mrf.mxu0
  %v5356 = vadd.f32 %v5048, %v5355
  %v5357 = vpop.f32.mrf.mxu0
  %5358 = vmatprep.mubr.bf16.mxu0 0
  %5359 = vmatmul.mubr.bf16.gmra.mxu0 %v5126
  %v5360 = vpop.f32.mrf.mxu0
  %v5361 = vadd.f32 %v5048, %v5360
  %v5362 = vpop.f32.mrf.mxu0
  %v5363 = vpop.f32.mrf.mxu0
  %v5364 = vadd.f32 %v5048, %v5363
  %v5365 = vpop.f32.mrf.mxu0
  %5366 = vmatprep.mubr.bf16.mxu0 0
  %5367 = vmatmul.mubr.bf16.gmra.mxu0 %v5129
  %v5368 = vpop.f32.mrf.mxu0
  %v5369 = vadd.f32 %v5048, %v5368
  %v5370 = vpop.f32.mrf.mxu0
  %v5371 = vpop.f32.mrf.mxu0
  %v5372 = vadd.f32 %v5048, %v5371
  %v5373 = vpop.f32.mrf.mxu0
  %5374 = vmatprep.mubr.bf16.mxu0 0
  %5375 = vmatmul.mubr.bf16.gmra.mxu0 %v5132
  %v5376 = vpop.f32.mrf.mxu0
  %v5377 = vadd.f32 %v5048, %v5376
  %v5378 = vpop.f32.mrf.mxu0
  %v5379 = vpop.f32.mrf.mxu0
  %v5380 = vadd.f32 %v5048, %v5379
  %v5381 = vpop.f32.mrf.mxu0
  %5382 = vmatprep.mubr.bf16.mxu0 0
  %5383 = vmatmul.mubr.bf16.gmra.mxu0 %v5135
  %v5384 = vpop.f32.mrf.mxu0
  %v5385 = vadd.f32 %v5048, %v5384
  %v5386 = vpop.f32.mrf.mxu0
  %v5387 = vpop.f32.mrf.mxu0
  %v5388 = vadd.f32 %v5048, %v5387
  %v5389 = vpop.f32.mrf.mxu0
  %5390 = vmatprep.mubr.bf16.mxu0 0
  %5391 = vmatmul.mubr.bf16.gmra.mxu0 %v5138
  %v5392 = vpop.f32.mrf.mxu0
  %v5393 = vadd.f32 %v5048, %v5392
  %v5394 = vpop.f32.mrf.mxu0
  %v5395 = vpop.f32.mrf.mxu0
  %v5396 = vadd.f32 %v5048, %v5395
  %v5397 = vpop.f32.mrf.mxu0
  %5398 = vmatprep.mubr.bf16.mxu0 0
  %5399 = vmatmul.mubr.bf16.gmra.mxu0 %v5141
  %v5400 = vpop.f32.mrf.mxu0
  %v5401 = vadd.f32 %v5048, %v5400
  %v5402 = vpop.f32.mrf.mxu0
  %v5403 = vpop.f32.mrf.mxu0
  %v5404 = vadd.f32 %v5048, %v5403
  %v5405 = vpop.f32.mrf.mxu0
  %5406 = vmatprep.mubr.bf16.mxu0 0
  %5407 = vmatmul.mubr.bf16.gmra.mxu0 %v5144
  %v5408 = vpop.f32.mrf.mxu0
  %v5409 = vadd.f32 %v5048, %v5408
  %v5410 = vpop.f32.mrf.mxu0
  %v5411 = vpop.f32.mrf.mxu0
  %v5412 = vadd.f32 %v5048, %v5411
  %v5413 = vpop.f32.mrf.mxu0
  %5414 = vmatprep.mubr.bf16.mxu0 0
  %5415 = vmatmul.mubr.bf16.gmra.mxu0 %v5147
  %v5416 = vpop.f32.mrf.mxu0
  %v5417 = vadd.f32 %v5048, %v5416
  %v5418 = vpop.f32.mrf.mxu0
  %v5419 = vpop.f32.mrf.mxu0
  %v5420 = vadd.f32 %v5048, %v5419
  %v5421 = vpop.f32.mrf.mxu0
  %5422 = vmatprep.mubr.bf16.mxu0 0
  %5423 = vmatmul.mubr.bf16.gmra.mxu0 %v5150
  %v5424 = vpop.f32.mrf.mxu0
  %v5425 = vadd.f32 %v5048, %v5424
  %v5426 = vpop.f32.mrf.mxu0
  %v5427 = vpop.f32.mrf.mxu0
  %v5428 = vadd.f32 %v5048, %v5427
  %v5429 = vpop.f32.mrf.mxu0
  %5430 = vmatprep.mubr.bf16.mxu0 0
  %5431 = vmatmul.mubr.bf16.gmra.mxu0 %v5153
  %v5432 = vpop.f32.mrf.mxu0
  %v5433 = vadd.f32 %v5048, %v5432
  %v5434 = vpop.f32.mrf.mxu0
  %v5435 = vpop.f32.mrf.mxu0
  %v5436 = vadd.f32 %v5048, %v5435
  %v5437 = vpop.f32.mrf.mxu0
  %5438 = vmatprep.mubr.bf16.mxu0 0
  %5439 = vmatmul.mubr.bf16.gmra.mxu0 %v5156
  %v5440 = vpop.f32.mrf.mxu0
  %v5441 = vadd.f32 %v5048, %v5440
  %v5442 = vpop.f32.mrf.mxu0
  %v5443 = vpop.f32.mrf.mxu0
  %v5444 = vadd.f32 %v5048, %v5443
  %v5445 = vpop.f32.mrf.mxu0
  %5446 = vdwg.mxu0
  %v5447 = vpack.c.bf16 %v5196, %v5193
  %v5448 = vpack.c.bf16 %v5204, %v5201
  %v5449 = vpack.c.bf16 %v5212, %v5209
  %v5450 = vpack.c.bf16 %v5220, %v5217
  %v5451 = vpack.c.bf16 %v5228, %v5225
  %v5452 = vpack.c.bf16 %v5236, %v5233
  %v5453 = vpack.c.bf16 %v5244, %v5241
  %v5454 = vpack.c.bf16 %v5252, %v5249
  %v5455 = vpack.c.bf16 %v5260, %v5257
  %v5456 = vpack.c.bf16 %v5268, %v5265
  %v5457 = vpack.c.bf16 %v5276, %v5273
  %v5458 = vpack.c.bf16 %v5284, %v5281
  %v5459 = vpack.c.bf16 %v5292, %v5289
  %v5460 = vpack.c.bf16 %v5300, %v5297
  %v5461 = vpack.c.bf16 %v5308, %v5305
  %v5462 = vpack.c.bf16 %v5316, %v5313
  %v5463 = vpack.c.bf16 %v5324, %v5321
  %v5464 = vpack.c.bf16 %v5332, %v5329
  %v5465 = vpack.c.bf16 %v5340, %v5337
  %v5466 = vpack.c.bf16 %v5348, %v5345
  %v5467 = vpack.c.bf16 %v5356, %v5353
  %v5468 = vpack.c.bf16 %v5364, %v5361
  %v5469 = vpack.c.bf16 %v5372, %v5369
  %v5470 = vpack.c.bf16 %v5380, %v5377
  %v5471 = vpack.c.bf16 %v5388, %v5385
  %v5472 = vpack.c.bf16 %v5396, %v5393
  %v5473 = vpack.c.bf16 %v5404, %v5401
  %v5474 = vpack.c.bf16 %v5412, %v5409
  %v5475 = vpack.c.bf16 %v5420, %v5417
  %v5476 = vpack.c.bf16 %v5428, %v5425
  %v5477 = vpack.c.bf16 %v5436, %v5433
  %v5478 = vpack.c.bf16 %v5444, %v5441
  %5479 = vmatprep.subr.bf16.mxu0 0
  %5480 = vmatpush1.bf16.msra.mxu0 %v5454
  %5481 = vmatprep.subr.bf16.mxu0 0
  %5482 = vmatpush1.bf16.msra.mxu0 %v5453
  %5483 = vmatprep.subr.bf16.mxu0 0
  %5484 = vmatpush1.bf16.msra.mxu0 %v5452
  %5485 = vmatprep.subr.bf16.mxu0 0
  %5486 = vmatpush1.bf16.msra.mxu0 %v5451
  %5487 = vmatprep.subr.bf16.mxu0 0
  %5488 = vmatpush1.bf16.msra.mxu0 %v5450
  %5489 = vmatprep.subr.bf16.mxu0 0
  %5490 = vmatpush1.bf16.msra.mxu0 %v5449
  %5491 = vmatprep.subr.bf16.mxu0 0
  %5492 = vmatpush1.bf16.msra.mxu0 %v5448
  %5493 = vmatprep.subr.bf16.mxu0 0
  %5494 = vmatpush1.bf16.msra.mxu0 %v5447
  %5495 = vmatprep.subr.bf16.mxu0 0
  %5496 = vmatpush2.bf16.msra.mxu0 %v5462
  %5497 = vmatprep.subr.bf16.mxu0 0
  %5498 = vmatpush2.bf16.msra.mxu0 %v5461
  %5499 = vmatprep.subr.bf16.mxu0 0
  %5500 = vmatpush2.bf16.msra.mxu0 %v5460
  %5501 = vmatprep.subr.bf16.mxu0 0
  %5502 = vmatpush2.bf16.msra.mxu0 %v5459
  %5503 = vmatprep.subr.bf16.mxu0 0
  %5504 = vmatpush2.bf16.msra.mxu0 %v5458
  %5505 = vmatprep.subr.bf16.mxu0 0
  %5506 = vmatpush2.bf16.msra.mxu0 %v5457
  %5507 = vmatprep.subr.bf16.mxu0 0
  %5508 = vmatpush2.bf16.msra.mxu0 %v5456
  %5509 = vmatprep.subr.bf16.mxu0 0
  %5510 = vmatpush2.bf16.msra.mxu0 %v5455
  %5511 = vmatprep.mubr.bf16.mxu0 %v1346
  %5512 = vmatmul.mubr.bf16.gmra.mxu0 %v1345
  %v5513 = vpop.f32.mrf.mxu0
  %v5514 = vadd.f32 0.0, %v5513
  %v5515 = vpop.f32.mrf.mxu0
  %v5516 = vpop.f32.mrf.mxu0
  %v5517 = vadd.f32 0.0, %v5516
  %v5518 = vpop.f32.mrf.mxu0
  %5519 = vmatprep.mubr.bf16.mxu0 %v1350
  %5520 = vmatmul.mubr.bf16.gmra.mxu0 %v1349
  %v5521 = vpop.f32.mrf.mxu0
  %v5522 = vadd.f32 0.0, %v5521
  %v5523 = vpop.f32.mrf.mxu0
  %v5524 = vpop.f32.mrf.mxu0
  %v5525 = vadd.f32 0.0, %v5524
  %v5526 = vpop.f32.mrf.mxu0
  %5527 = vmatprep.mubr.bf16.mxu0 %v1354
  %5528 = vmatmul.mubr.bf16.gmra.mxu0 %v1353
  %v5529 = vpop.f32.mrf.mxu0
  %v5530 = vadd.f32 0.0, %v5529
  %v5531 = vpop.f32.mrf.mxu0
  %v5532 = vpop.f32.mrf.mxu0
  %v5533 = vadd.f32 0.0, %v5532
  %v5534 = vpop.f32.mrf.mxu0
  %5535 = vmatprep.mubr.bf16.mxu0 %v1358
  %5536 = vmatmul.mubr.bf16.gmra.mxu0 %v1357
  %v5537 = vpop.f32.mrf.mxu0
  %v5538 = vadd.f32 0.0, %v5537
  %v5539 = vpop.f32.mrf.mxu0
  %v5540 = vpop.f32.mrf.mxu0
  %v5541 = vadd.f32 0.0, %v5540
  %v5542 = vpop.f32.mrf.mxu0
  %5543 = vmatprep.mubr.bf16.mxu0 %v1362
  %5544 = vmatmul.mubr.bf16.gmra.mxu0 %v1361
  %v5545 = vpop.f32.mrf.mxu0
  %v5546 = vadd.f32 0.0, %v5545
  %v5547 = vpop.f32.mrf.mxu0
  %v5548 = vpop.f32.mrf.mxu0
  %v5549 = vadd.f32 0.0, %v5548
  %v5550 = vpop.f32.mrf.mxu0
  %5551 = vmatprep.mubr.bf16.mxu0 %v1366
  %5552 = vmatmul.mubr.bf16.gmra.mxu0 %v1365
  %v5553 = vpop.f32.mrf.mxu0
  %v5554 = vadd.f32 0.0, %v5553
  %v5555 = vpop.f32.mrf.mxu0
  %v5556 = vpop.f32.mrf.mxu0
  %v5557 = vadd.f32 0.0, %v5556
  %v5558 = vpop.f32.mrf.mxu0
  %5559 = vmatprep.mubr.bf16.mxu0 %v1370
  %5560 = vmatmul.mubr.bf16.gmra.mxu0 %v1369
  %v5561 = vpop.f32.mrf.mxu0
  %v5562 = vadd.f32 0.0, %v5561
  %v5563 = vpop.f32.mrf.mxu0
  %v5564 = vpop.f32.mrf.mxu0
  %v5565 = vadd.f32 0.0, %v5564
  %v5566 = vpop.f32.mrf.mxu0
  %5567 = vmatprep.mubr.bf16.mxu0 %v1374
  %5568 = vmatmul.mubr.bf16.gmra.mxu0 %v1373
  %v5569 = vpop.f32.mrf.mxu0
  %v5570 = vadd.f32 0.0, %v5569
  %v5571 = vpop.f32.mrf.mxu0
  %v5572 = vpop.f32.mrf.mxu0
  %v5573 = vadd.f32 0.0, %v5572
  %v5574 = vpop.f32.mrf.mxu0
  %5575 = vdwg.mxu0
  %5576 = vmatprep.subr.bf16.mxu0 0
  %5577 = vmatpush1.bf16.msra.mxu0 %v5470
  %5578 = vmatprep.subr.bf16.mxu0 0
  %5579 = vmatpush1.bf16.msra.mxu0 %v5469
  %5580 = vmatprep.subr.bf16.mxu0 0
  %5581 = vmatpush1.bf16.msra.mxu0 %v5468
  %5582 = vmatprep.subr.bf16.mxu0 0
  %5583 = vmatpush1.bf16.msra.mxu0 %v5467
  %5584 = vmatprep.subr.bf16.mxu0 0
  %5585 = vmatpush1.bf16.msra.mxu0 %v5466
  %5586 = vmatprep.subr.bf16.mxu0 0
  %5587 = vmatpush1.bf16.msra.mxu0 %v5465
  %5588 = vmatprep.subr.bf16.mxu0 0
  %5589 = vmatpush1.bf16.msra.mxu0 %v5464
  %5590 = vmatprep.subr.bf16.mxu0 0
  %5591 = vmatpush1.bf16.msra.mxu0 %v5463
  %5592 = vmatprep.subr.bf16.mxu0 0
  %5593 = vmatpush2.bf16.msra.mxu0 %v5478
  %5594 = vmatprep.subr.bf16.mxu0 0
  %5595 = vmatpush2.bf16.msra.mxu0 %v5477
  %5596 = vmatprep.subr.bf16.mxu0 0
  %5597 = vmatpush2.bf16.msra.mxu0 %v5476
  %5598 = vmatprep.subr.bf16.mxu0 0
  %5599 = vmatpush2.bf16.msra.mxu0 %v5475
  %5600 = vmatprep.subr.bf16.mxu0 0
  %5601 = vmatpush2.bf16.msra.mxu0 %v5474
  %5602 = vmatprep.subr.bf16.mxu0 0
  %5603 = vmatpush2.bf16.msra.mxu0 %v5473
  %5604 = vmatprep.subr.bf16.mxu0 0
  %5605 = vmatpush2.bf16.msra.mxu0 %v5472
  %5606 = vmatprep.subr.bf16.mxu0 0
  %5607 = vmatpush2.bf16.msra.mxu0 %v5471
  %5608 = vmatprep.mubr.bf16.mxu0 %v1348
  %5609 = vmatmul.mubr.bf16.gmra.mxu0 %v1347
  %v5610 = vpop.f32.mrf.mxu0
  %v5611 = vadd.f32 %v5514, %v5610
  %v5612 = vpop.f32.mrf.mxu0
  %v5613 = vpop.f32.mrf.mxu0
  %v5614 = vadd.f32 %v5517, %v5613
  %v5615 = vpop.f32.mrf.mxu0
  %5616 = vmatprep.mubr.bf16.mxu0 %v1352
  %5617 = vmatmul.mubr.bf16.gmra.mxu0 %v1351
  %v5618 = vpop.f32.mrf.mxu0
  %v5619 = vadd.f32 %v5522, %v5618
  %v5620 = vpop.f32.mrf.mxu0
  %v5621 = vpop.f32.mrf.mxu0
  %v5622 = vadd.f32 %v5525, %v5621
  %v5623 = vpop.f32.mrf.mxu0
  %5624 = vmatprep.mubr.bf16.mxu0 %v1356
  %5625 = vmatmul.mubr.bf16.gmra.mxu0 %v1355
  %v5626 = vpop.f32.mrf.mxu0
  %v5627 = vadd.f32 %v5530, %v5626
  %v5628 = vpop.f32.mrf.mxu0
  %v5629 = vpop.f32.mrf.mxu0
  %v5630 = vadd.f32 %v5533, %v5629
  %v5631 = vpop.f32.mrf.mxu0
  %5632 = vmatprep.mubr.bf16.mxu0 %v1360
  %5633 = vmatmul.mubr.bf16.gmra.mxu0 %v1359
  %v5634 = vpop.f32.mrf.mxu0
  %v5635 = vadd.f32 %v5538, %v5634
  %v5636 = vpop.f32.mrf.mxu0
  %v5637 = vpop.f32.mrf.mxu0
  %v5638 = vadd.f32 %v5541, %v5637
  %v5639 = vpop.f32.mrf.mxu0
  %5640 = vmatprep.mubr.bf16.mxu0 %v1364
  %5641 = vmatmul.mubr.bf16.gmra.mxu0 %v1363
  %v5642 = vpop.f32.mrf.mxu0
  %v5643 = vadd.f32 %v5546, %v5642
  %v5644 = vpop.f32.mrf.mxu0
  %v5645 = vpop.f32.mrf.mxu0
  %v5646 = vadd.f32 %v5549, %v5645
  %v5647 = vpop.f32.mrf.mxu0
  %5648 = vmatprep.mubr.bf16.mxu0 %v1368
  %5649 = vmatmul.mubr.bf16.gmra.mxu0 %v1367
  %v5650 = vpop.f32.mrf.mxu0
  %v5651 = vadd.f32 %v5554, %v5650
  %v5652 = vpop.f32.mrf.mxu0
  %v5653 = vpop.f32.mrf.mxu0
  %v5654 = vadd.f32 %v5557, %v5653
  %v5655 = vpop.f32.mrf.mxu0
  %5656 = vmatprep.mubr.bf16.mxu0 %v1372
  %5657 = vmatmul.mubr.bf16.gmra.mxu0 %v1371
  %v5658 = vpop.f32.mrf.mxu0
  %v5659 = vadd.f32 %v5562, %v5658
  %v5660 = vpop.f32.mrf.mxu0
  %v5661 = vpop.f32.mrf.mxu0
  %v5662 = vadd.f32 %v5565, %v5661
  %v5663 = vpop.f32.mrf.mxu0
  %5664 = vmatprep.mubr.bf16.mxu0 %v1376
  %5665 = vmatmul.mubr.bf16.gmra.mxu0 %v1375
  %v5666 = vpop.f32.mrf.mxu0
  %v5667 = vadd.f32 %v5570, %v5666
  %v5668 = vpop.f32.mrf.mxu0
  %v5669 = vpop.f32.mrf.mxu0
  %v5670 = vadd.f32 %v5573, %v5669
  %v5671 = vpop.f32.mrf.mxu0
  %5672 = vdwg.mxu0
  %v5673 = vld [vmem:[%s45] sm:$0xf]
  %v5674 = vld [vmem:[%s45 + $0x4] sm:$0xf]
  %v5675 = vld [vmem:[%s45 + $0x8] sm:$0xf]
  %v5676 = vld [vmem:[%s45 + $0xc] sm:$0xf]
  %v5677 = vld [vmem:[%s45 + $0x10] sm:$0xf]
  %v5678 = vld [vmem:[%s45 + $0x14] sm:$0xf]
  %v5679 = vld [vmem:[%s45 + $0x18] sm:$0xf]
  %v5680 = vld [vmem:[%s45 + $0x1c] sm:$0xf]
  %v5681 = vpack.c.bf16 %v5614, %v5611
  %v5682 = vpack.c.bf16 %v5622, %v5619
  %v5683 = vpack.c.bf16 %v5630, %v5627
  %v5684 = vpack.c.bf16 %v5638, %v5635
  %v5685 = vpack.c.bf16 %v5646, %v5643
  %v5686 = vpack.c.bf16 %v5654, %v5651
  %v5687 = vpack.c.bf16 %v5662, %v5659
  %v5688 = vpack.c.bf16 %v5670, %v5667
  %v5693 = vunpack.c.l.b16 %v5677
  %v5694 = vunpack.c.l.b16 %v5678
  %v5695 = vunpack.c.l.b16 %v5679
  %v5696 = vunpack.c.l.b16 %v5680
  %v5697 = vpack.c.b16 %v5694, %v5693
  %v5698 = vpack.c.b16 %v5696, %v5695
  %v5702 = vsel %vm1582, %v5681, 0
  %v5705 = vsel %vm1582, %v5682, 0
  %v5708 = vsel %vm1582, %v5683, 0
  %v5711 = vsel %vm1582, %v5684, 0
  %v5714 = vsel %vm1582, %v5685, 0
  %v5717 = vsel %vm1582, %v5686, 0
  %v5720 = vsel %vm1582, %v5687, 0
  %v5723 = vsel %vm1582, %v5688, 0
  %5725 = vmatprep.subr.bf16.mxu0 0
  %5726 = vmatpush1.bf16.msra.mxu0 0
  %5727 = vmatprep.subr.bf16.mxu0 0
  %5728 = vmatpush1.bf16.msra.mxu0 0
  %5729 = vmatprep.subr.bf16.mxu0 0
  %5730 = vmatpush1.bf16.msra.mxu0 0
  %5731 = vmatprep.subr.bf16.mxu0 0
  %5732 = vmatpush1.bf16.msra.mxu0 0
  %5733 = vmatprep.subr.bf16.mxu0 0
  %5734 = vmatpush1.bf16.msra.mxu0 0
  %5735 = vmatprep.subr.bf16.mxu0 0
  %5736 = vmatpush1.bf16.msra.mxu0 0
  %5737 = vmatprep.subr.bf16.mxu0 0
  %5738 = vmatpush1.bf16.msra.mxu0 %v5698
  %5739 = vmatprep.subr.bf16.mxu0 0
  %5740 = vmatpush1.bf16.msra.mxu0 %v5697
  %5741 = vmatprep.subr.bf16.mxu0 0
  %5742 = vmatpush2.bf16.msra.mxu0 0
  %5743 = vmatprep.subr.bf16.mxu0 0
  %5744 = vmatpush2.bf16.msra.mxu0 0
  %5745 = vmatprep.subr.bf16.mxu0 0
  %5746 = vmatpush2.bf16.msra.mxu0 0
  %5747 = vmatprep.subr.bf16.mxu0 0
  %5748 = vmatpush2.bf16.msra.mxu0 0
  %5749 = vmatprep.subr.bf16.mxu0 0
  %5750 = vmatpush2.bf16.msra.mxu0 0
  %5751 = vmatprep.subr.bf16.mxu0 0
  %5752 = vmatpush2.bf16.msra.mxu0 0
  %5753 = vmatprep.subr.bf16.mxu0 0
  %5754 = vmatpush2.bf16.msra.mxu0 0
  %5755 = vmatprep.subr.bf16.mxu0 0
  %5756 = vmatpush2.bf16.msra.mxu0 0
  %5757 = vmatprep.mubr.bf16.mxu0 0
  %5758 = vmatmul.mubr.bf16.gmra.mxu0 %v5702
  %v5759 = vpop.f32.mrf.mxu0
  %v5760 = vadd.f32 0.0, %v5759
  %v5761 = vpop.f32.mrf.mxu0
  %v5762 = vpop.f32.mrf.mxu0
  %v5763 = vadd.f32 0.0, %v5762
  %v5764 = vpop.f32.mrf.mxu0
  %5765 = vmatprep.mubr.bf16.mxu0 0
  %5766 = vmatmul.mubr.bf16.gmra.mxu0 %v5705
  %v5767 = vpop.f32.mrf.mxu0
  %v5768 = vadd.f32 0.0, %v5767
  %v5769 = vpop.f32.mrf.mxu0
  %v5770 = vpop.f32.mrf.mxu0
  %v5771 = vadd.f32 0.0, %v5770
  %v5772 = vpop.f32.mrf.mxu0
  %5773 = vmatprep.mubr.bf16.mxu0 0
  %5774 = vmatmul.mubr.bf16.gmra.mxu0 %v5708
  %v5775 = vpop.f32.mrf.mxu0
  %v5776 = vadd.f32 0.0, %v5775
  %v5777 = vpop.f32.mrf.mxu0
  %v5778 = vpop.f32.mrf.mxu0
  %v5779 = vadd.f32 0.0, %v5778
  %v5780 = vpop.f32.mrf.mxu0
  %5781 = vmatprep.mubr.bf16.mxu0 0
  %5782 = vmatmul.mubr.bf16.gmra.mxu0 %v5711
  %v5783 = vpop.f32.mrf.mxu0
  %v5784 = vadd.f32 0.0, %v5783
  %v5785 = vpop.f32.mrf.mxu0
  %v5786 = vpop.f32.mrf.mxu0
  %v5787 = vadd.f32 0.0, %v5786
  %v5788 = vpop.f32.mrf.mxu0
  %5789 = vmatprep.mubr.bf16.mxu0 0
  %5790 = vmatmul.mubr.bf16.gmra.mxu0 %v5714
  %v5791 = vpop.f32.mrf.mxu0
  %v5792 = vadd.f32 0.0, %v5791
  %v5793 = vpop.f32.mrf.mxu0
  %v5794 = vpop.f32.mrf.mxu0
  %v5795 = vadd.f32 0.0, %v5794
  %v5796 = vpop.f32.mrf.mxu0
  %5797 = vmatprep.mubr.bf16.mxu0 0
  %5798 = vmatmul.mubr.bf16.gmra.mxu0 %v5717
  %v5799 = vpop.f32.mrf.mxu0
  %v5800 = vadd.f32 0.0, %v5799
  %v5801 = vpop.f32.mrf.mxu0
  %v5802 = vpop.f32.mrf.mxu0
  %v5803 = vadd.f32 0.0, %v5802
  %v5804 = vpop.f32.mrf.mxu0
  %5805 = vmatprep.mubr.bf16.mxu0 0
  %5806 = vmatmul.mubr.bf16.gmra.mxu0 %v5720
  %v5807 = vpop.f32.mrf.mxu0
  %v5808 = vadd.f32 0.0, %v5807
  %v5809 = vpop.f32.mrf.mxu0
  %v5810 = vpop.f32.mrf.mxu0
  %v5811 = vadd.f32 0.0, %v5810
  %v5812 = vpop.f32.mrf.mxu0
  %5813 = vmatprep.mubr.bf16.mxu0 0
  %5814 = vmatmul.mubr.bf16.gmra.mxu0 %v5723
  %v5815 = vpop.f32.mrf.mxu0
  %v5816 = vadd.f32 0.0, %v5815
  %v5817 = vpop.f32.mrf.mxu0
  %v5818 = vpop.f32.mrf.mxu0
  %v5819 = vadd.f32 0.0, %v5818
  %v5820 = vpop.f32.mrf.mxu0
  %5821 = vdwg.mxu0
  %v5826 = vunpack.c.l.b16 %v5673
  %v5827 = vunpack.c.l.b16 %v5674
  %v5828 = vunpack.c.l.b16 %v5675
  %v5829 = vunpack.c.l.b16 %v5676
  %v5830 = vpack.c.b16 %v5827, %v5826
  %v5831 = vpack.c.b16 %v5829, %v5828
  %5834 = vmatprep.subr.bf16.mxu0 0
  %5835 = vmatpush1.bf16.msra.mxu0 0
  %5836 = vmatprep.subr.bf16.mxu0 0
  %5837 = vmatpush1.bf16.msra.mxu0 0
  %5838 = vmatprep.subr.bf16.mxu0 0
  %5839 = vmatpush1.bf16.msra.mxu0 0
  %5840 = vmatprep.subr.bf16.mxu0 0
  %5841 = vmatpush1.bf16.msra.mxu0 0
  %5842 = vmatprep.subr.bf16.mxu0 0
  %5843 = vmatpush1.bf16.msra.mxu0 0
  %5844 = vmatprep.subr.bf16.mxu0 0
  %5845 = vmatpush1.bf16.msra.mxu0 0
  %5846 = vmatprep.subr.bf16.mxu0 0
  %5847 = vmatpush1.bf16.msra.mxu0 %v5831
  %5848 = vmatprep.subr.bf16.mxu0 0
  %5849 = vmatpush1.bf16.msra.mxu0 %v5830
  %5850 = vmatprep.subr.bf16.mxu0 0
  %5851 = vmatpush2.bf16.msra.mxu0 0
  %5852 = vmatprep.subr.bf16.mxu0 0
  %5853 = vmatpush2.bf16.msra.mxu0 0
  %5854 = vmatprep.subr.bf16.mxu0 0
  %5855 = vmatpush2.bf16.msra.mxu0 0
  %5856 = vmatprep.subr.bf16.mxu0 0
  %5857 = vmatpush2.bf16.msra.mxu0 0
  %5858 = vmatprep.subr.bf16.mxu0 0
  %5859 = vmatpush2.bf16.msra.mxu0 0
  %5860 = vmatprep.subr.bf16.mxu0 0
  %5861 = vmatpush2.bf16.msra.mxu0 0
  %5862 = vmatprep.subr.bf16.mxu0 0
  %5863 = vmatpush2.bf16.msra.mxu0 0
  %5864 = vmatprep.subr.bf16.mxu0 0
  %5865 = vmatpush2.bf16.msra.mxu0 0
  %5866 = vmatprep.mubr.bf16.mxu0 0
  %5867 = vmatmul.mubr.bf16.gmra.mxu0 %v3397
  %v5868 = vpop.f32.mrf.mxu0
  %v5869 = vadd.f32 %v5760, %v5868
  %v5870 = vpop.f32.mrf.mxu0
  %v5871 = vpop.f32.mrf.mxu0
  %v5872 = vadd.f32 %v5763, %v5871
  %v5873 = vpop.f32.mrf.mxu0
  %5874 = vmatprep.mubr.bf16.mxu0 0
  %5875 = vmatmul.mubr.bf16.gmra.mxu0 %v3400
  %v5876 = vpop.f32.mrf.mxu0
  %v5877 = vadd.f32 %v5768, %v5876
  %v5878 = vpop.f32.mrf.mxu0
  %v5879 = vpop.f32.mrf.mxu0
  %v5880 = vadd.f32 %v5771, %v5879
  %v5881 = vpop.f32.mrf.mxu0
  %5882 = vmatprep.mubr.bf16.mxu0 0
  %5883 = vmatmul.mubr.bf16.gmra.mxu0 %v3403
  %v5884 = vpop.f32.mrf.mxu0
  %v5885 = vadd.f32 %v5776, %v5884
  %v5886 = vpop.f32.mrf.mxu0
  %v5887 = vpop.f32.mrf.mxu0
  %v5888 = vadd.f32 %v5779, %v5887
  %v5889 = vpop.f32.mrf.mxu0
  %5890 = vmatprep.mubr.bf16.mxu0 0
  %5891 = vmatmul.mubr.bf16.gmra.mxu0 %v3406
  %v5892 = vpop.f32.mrf.mxu0
  %v5893 = vadd.f32 %v5784, %v5892
  %v5894 = vpop.f32.mrf.mxu0
  %v5895 = vpop.f32.mrf.mxu0
  %v5896 = vadd.f32 %v5787, %v5895
  %v5897 = vpop.f32.mrf.mxu0
  %5898 = vmatprep.mubr.bf16.mxu0 0
  %5899 = vmatmul.mubr.bf16.gmra.mxu0 %v3409
  %v5900 = vpop.f32.mrf.mxu0
  %v5901 = vadd.f32 %v5792, %v5900
  %v5902 = vpop.f32.mrf.mxu0
  %v5903 = vpop.f32.mrf.mxu0
  %v5904 = vadd.f32 %v5795, %v5903
  %v5905 = vpop.f32.mrf.mxu0
  %5906 = vmatprep.mubr.bf16.mxu0 0
  %5907 = vmatmul.mubr.bf16.gmra.mxu0 %v3412
  %v5908 = vpop.f32.mrf.mxu0
  %v5909 = vadd.f32 %v5800, %v5908
  %v5910 = vpop.f32.mrf.mxu0
  %v5911 = vpop.f32.mrf.mxu0
  %v5912 = vadd.f32 %v5803, %v5911
  %v5913 = vpop.f32.mrf.mxu0
  %5914 = vmatprep.mubr.bf16.mxu0 0
  %5915 = vmatmul.mubr.bf16.gmra.mxu0 %v3415
  %v5916 = vpop.f32.mrf.mxu0
  %v5917 = vadd.f32 %v5808, %v5916
  %v5918 = vpop.f32.mrf.mxu0
  %v5919 = vpop.f32.mrf.mxu0
  %v5920 = vadd.f32 %v5811, %v5919
  %v5921 = vpop.f32.mrf.mxu0
  %5922 = vmatprep.mubr.bf16.mxu0 0
  %5923 = vmatmul.mubr.bf16.gmra.mxu0 %v3418
  %v5924 = vpop.f32.mrf.mxu0
  %v5925 = vadd.f32 %v5816, %v5924
  %v5926 = vpop.f32.mrf.mxu0
  %v5927 = vpop.f32.mrf.mxu0
  %v5928 = vadd.f32 %v5819, %v5927
  %v5929 = vpop.f32.mrf.mxu0
  %5930 = vdwg.mxu0
  %v5931 = vld [vmem:[%s47] sm:$0x1]
  %v5933 = vlaneseq
  %v5934 = vshrl.u32 %v5933, 7
  %v5935 = vsub.s32 0, %v5934
  %v5936 = vrot.slane %v5931, %v5935
  %v5938 = vadd.f32 %v5869, %v5936
  %v5939 = vadd.f32 %v5872, %v5936
  %v5940 = vadd.f32 %v5877, %v5936
  %v5941 = vadd.f32 %v5880, %v5936
  %v5942 = vadd.f32 %v5885, %v5936
  %v5943 = vadd.f32 %v5888, %v5936
  %v5944 = vadd.f32 %v5893, %v5936
  %v5945 = vadd.f32 %v5896, %v5936
  %v5946 = vadd.f32 %v5901, %v5936
  %v5947 = vadd.f32 %v5904, %v5936
  %v5948 = vadd.f32 %v5909, %v5936
  %v5949 = vadd.f32 %v5912, %v5936
  %v5950 = vadd.f32 %v5917, %v5936
  %v5951 = vadd.f32 %v5920, %v5936
  %v5952 = vadd.f32 %v5925, %v5936
  %v5953 = vadd.f32 %v5928, %v5936
  %v5954 = vmax.f32 %v5938, 0.0
  %v5955 = vmax.f32 %v5939, 0.0
  %v5956 = vmax.f32 %v5940, 0.0
  %v5957 = vmax.f32 %v5941, 0.0
  %v5958 = vmax.f32 %v5942, 0.0
  %v5959 = vmax.f32 %v5943, 0.0
  %v5960 = vmax.f32 %v5944, 0.0
  %v5961 = vmax.f32 %v5945, 0.0
  %v5962 = vmax.f32 %v5946, 0.0
  %v5963 = vmax.f32 %v5947, 0.0
  %v5964 = vmax.f32 %v5948, 0.0
  %v5965 = vmax.f32 %v5949, 0.0
  %v5966 = vmax.f32 %v5950, 0.0
  %v5967 = vmax.f32 %v5951, 0.0
  %v5968 = vmax.f32 %v5952, 0.0
  %v5969 = vmax.f32 %v5953, 0.0
  %v5970 = vld [vmem:[%s49] sm:$0xf]
  %v5971 = vld [vmem:[%s49 + $0x4] sm:$0xf]
  %v5972 = vld [vmem:[%s49 + $0x8] sm:$0xf]
  %v5973 = vld [vmem:[%s49 + $0xc] sm:$0xf]
  %v5974 = vpack.c.bf16 %v5955, %v5954
  %v5975 = vpack.c.bf16 %v5957, %v5956
  %v5976 = vpack.c.bf16 %v5959, %v5958
  %v5977 = vpack.c.bf16 %v5961, %v5960
  %v5978 = vpack.c.bf16 %v5963, %v5962
  %v5979 = vpack.c.bf16 %v5965, %v5964
  %v5980 = vpack.c.bf16 %v5967, %v5966
  %v5981 = vpack.c.bf16 %v5969, %v5968
  %v5982 = vld [vmem:[%s51] sm:$0x1]
  %v5984 = vlaneseq
  %v5985 = vshrl.u32 %v5984, 7
  %v5986 = vsub.s32 0, %v5985
  %v5987 = vrot.slane %v5982, %v5986
  %v5993 = vunpack.c.l.b16 %v5970
  %v5994 = vunpack.c.l.b16 %v5971
  %v5995 = vunpack.c.l.b16 %v5972
  %v5996 = vunpack.c.l.b16 %v5973
  %v5997 = vpack.c.b16 %v5994, %v5993
  %v5998 = vpack.c.b16 %v5996, %v5995
  %v6002 = vsel %vm1582, %v5974, 0
  %v6005 = vsel %vm1582, %v5975, 0
  %v6008 = vsel %vm1582, %v5976, 0
  %v6011 = vsel %vm1582, %v5977, 0
  %v6014 = vsel %vm1582, %v5978, 0
  %v6017 = vsel %vm1582, %v5979, 0
  %v6020 = vsel %vm1582, %v5980, 0
  %v6023 = vsel %vm1582, %v5981, 0
  %6025 = vmatprep.subr.bf16.mxu0 0
  %6026 = vmatpush1.bf16.msra.mxu0 0
  %6027 = vmatprep.subr.bf16.mxu0 0
  %6028 = vmatpush1.bf16.msra.mxu0 0
  %6029 = vmatprep.subr.bf16.mxu0 0
  %6030 = vmatpush1.bf16.msra.mxu0 0
  %6031 = vmatprep.subr.bf16.mxu0 0
  %6032 = vmatpush1.bf16.msra.mxu0 0
  %6033 = vmatprep.subr.bf16.mxu0 0
  %6034 = vmatpush1.bf16.msra.mxu0 0
  %6035 = vmatprep.subr.bf16.mxu0 0
  %6036 = vmatpush1.bf16.msra.mxu0 0
  %6037 = vmatprep.subr.bf16.mxu0 0
  %6038 = vmatpush1.bf16.msra.mxu0 %v5998
  %6039 = vmatprep.subr.bf16.mxu0 0
  %6040 = vmatpush1.bf16.msra.mxu0 %v5997
  %6041 = vmatprep.subr.bf16.mxu0 0
  %6042 = vmatpush2.bf16.msra.mxu0 0
  %6043 = vmatprep.subr.bf16.mxu0 0
  %6044 = vmatpush2.bf16.msra.mxu0 0
  %6045 = vmatprep.subr.bf16.mxu0 0
  %6046 = vmatpush2.bf16.msra.mxu0 0
  %6047 = vmatprep.subr.bf16.mxu0 0
  %6048 = vmatpush2.bf16.msra.mxu0 0
  %6049 = vmatprep.subr.bf16.mxu0 0
  %6050 = vmatpush2.bf16.msra.mxu0 0
  %6051 = vmatprep.subr.bf16.mxu0 0
  %6052 = vmatpush2.bf16.msra.mxu0 0
  %6053 = vmatprep.subr.bf16.mxu0 0
  %6054 = vmatpush2.bf16.msra.mxu0 0
  %6055 = vmatprep.subr.bf16.mxu0 0
  %6056 = vmatpush2.bf16.msra.mxu0 0
  %6057 = vmatprep.mubr.bf16.mxu0 0
  %6058 = vmatmul.mubr.bf16.gmra.mxu0 %v6002
  %v6059 = vpop.f32.mrf.mxu0
  %v6060 = vadd.f32 %v5987, %v6059
  %v6061 = vpop.f32.mrf.mxu0
  %v6062 = vpop.f32.mrf.mxu0
  %v6063 = vadd.f32 %v5987, %v6062
  %v6064 = vpop.f32.mrf.mxu0
  %6065 = vmatprep.mubr.bf16.mxu0 0
  %6066 = vmatmul.mubr.bf16.gmra.mxu0 %v6005
  %v6067 = vpop.f32.mrf.mxu0
  %v6068 = vadd.f32 %v5987, %v6067
  %v6069 = vpop.f32.mrf.mxu0
  %v6070 = vpop.f32.mrf.mxu0
  %v6071 = vadd.f32 %v5987, %v6070
  %v6072 = vpop.f32.mrf.mxu0
  %6073 = vmatprep.mubr.bf16.mxu0 0
  %6074 = vmatmul.mubr.bf16.gmra.mxu0 %v6008
  %v6075 = vpop.f32.mrf.mxu0
  %v6076 = vadd.f32 %v5987, %v6075
  %v6077 = vpop.f32.mrf.mxu0
  %v6078 = vpop.f32.mrf.mxu0
  %v6079 = vadd.f32 %v5987, %v6078
  %v6080 = vpop.f32.mrf.mxu0
  %6081 = vmatprep.mubr.bf16.mxu0 0
  %6082 = vmatmul.mubr.bf16.gmra.mxu0 %v6011
  %v6083 = vpop.f32.mrf.mxu0
  %v6084 = vadd.f32 %v5987, %v6083
  %v6085 = vpop.f32.mrf.mxu0
  %v6086 = vpop.f32.mrf.mxu0
  %v6087 = vadd.f32 %v5987, %v6086
  %v6088 = vpop.f32.mrf.mxu0
  %6089 = vmatprep.mubr.bf16.mxu0 0
  %6090 = vmatmul.mubr.bf16.gmra.mxu0 %v6014
  %v6091 = vpop.f32.mrf.mxu0
  %v6092 = vadd.f32 %v5987, %v6091
  %v6093 = vpop.f32.mrf.mxu0
  %v6094 = vpop.f32.mrf.mxu0
  %v6095 = vadd.f32 %v5987, %v6094
  %v6096 = vpop.f32.mrf.mxu0
  %6097 = vmatprep.mubr.bf16.mxu0 0
  %6098 = vmatmul.mubr.bf16.gmra.mxu0 %v6017
  %v6099 = vpop.f32.mrf.mxu0
  %v6100 = vadd.f32 %v5987, %v6099
  %v6101 = vpop.f32.mrf.mxu0
  %v6102 = vpop.f32.mrf.mxu0
  %v6103 = vadd.f32 %v5987, %v6102
  %v6104 = vpop.f32.mrf.mxu0
  %6105 = vmatprep.mubr.bf16.mxu0 0
  %6106 = vmatmul.mubr.bf16.gmra.mxu0 %v6020
  %v6107 = vpop.f32.mrf.mxu0
  %v6108 = vadd.f32 %v5987, %v6107
  %v6109 = vpop.f32.mrf.mxu0
  %v6110 = vpop.f32.mrf.mxu0
  %v6111 = vadd.f32 %v5987, %v6110
  %v6112 = vpop.f32.mrf.mxu0
  %6113 = vmatprep.mubr.bf16.mxu0 0
  %6114 = vmatmul.mubr.bf16.gmra.mxu0 %v6023
  %v6115 = vpop.f32.mrf.mxu0
  %v6116 = vadd.f32 %v5987, %v6115
  %v6117 = vpop.f32.mrf.mxu0
  %v6118 = vpop.f32.mrf.mxu0
  %v6119 = vadd.f32 %v5987, %v6118
  %v6120 = vpop.f32.mrf.mxu0
  %6121 = vdwg.mxu0
  %v6122 = vmax.f32 %v6060, 0.0
  %v6123 = vmax.f32 %v6063, 0.0
  %v6124 = vmax.f32 %v6068, 0.0
  %v6125 = vmax.f32 %v6071, 0.0
  %v6126 = vmax.f32 %v6076, 0.0
  %v6127 = vmax.f32 %v6079, 0.0
  %v6128 = vmax.f32 %v6084, 0.0
  %v6129 = vmax.f32 %v6087, 0.0
  %v6130 = vmax.f32 %v6092, 0.0
  %v6131 = vmax.f32 %v6095, 0.0
  %v6132 = vmax.f32 %v6100, 0.0
  %v6133 = vmax.f32 %v6103, 0.0
  %v6134 = vmax.f32 %v6108, 0.0
  %v6135 = vmax.f32 %v6111, 0.0
  %v6136 = vmax.f32 %v6116, 0.0
  %v6137 = vmax.f32 %v6119, 0.0
  %v6138 = vld [vmem:[%s53] sm:$0xf]
  %v6139 = vld [vmem:[%s53 + $0x4] sm:$0xf]
  %v6140 = vld [vmem:[%s53 + $0x8] sm:$0xf]
  %v6141 = vld [vmem:[%s53 + $0xc] sm:$0xf]
  %v6142 = vpack.c.bf16 %v6123, %v6122
  %v6143 = vpack.c.bf16 %v6125, %v6124
  %v6144 = vpack.c.bf16 %v6127, %v6126
  %v6145 = vpack.c.bf16 %v6129, %v6128
  %v6146 = vpack.c.bf16 %v6131, %v6130
  %v6147 = vpack.c.bf16 %v6133, %v6132
  %v6148 = vpack.c.bf16 %v6135, %v6134
  %v6149 = vpack.c.bf16 %v6137, %v6136
  %v6150 = vld [vmem:[%s55] sm:$0x1]
  %v6152 = vlaneseq
  %v6153 = vshrl.u32 %v6152, 7
  %v6154 = vsub.s32 0, %v6153
  %v6155 = vrot.slane %v6150, %v6154
  %v6161 = vunpack.c.l.b16 %v6138
  %v6162 = vunpack.c.l.b16 %v6139
  %v6163 = vunpack.c.l.b16 %v6140
  %v6164 = vunpack.c.l.b16 %v6141
  %v6165 = vpack.c.b16 %v6162, %v6161
  %v6166 = vpack.c.b16 %v6164, %v6163
  %v6170 = vsel %vm1582, %v6142, 0
  %v6173 = vsel %vm1582, %v6143, 0
  %v6176 = vsel %vm1582, %v6144, 0
  %v6179 = vsel %vm1582, %v6145, 0
  %v6182 = vsel %vm1582, %v6146, 0
  %v6185 = vsel %vm1582, %v6147, 0
  %v6188 = vsel %vm1582, %v6148, 0
  %v6191 = vsel %vm1582, %v6149, 0
  %6193 = vmatprep.subr.bf16.mxu0 0
  %6194 = vmatpush1.bf16.msra.mxu0 0
  %6195 = vmatprep.subr.bf16.mxu0 0
  %6196 = vmatpush1.bf16.msra.mxu0 0
  %6197 = vmatprep.subr.bf16.mxu0 0
  %6198 = vmatpush1.bf16.msra.mxu0 0
  %6199 = vmatprep.subr.bf16.mxu0 0
  %6200 = vmatpush1.bf16.msra.mxu0 0
  %6201 = vmatprep.subr.bf16.mxu0 0
  %6202 = vmatpush1.bf16.msra.mxu0 0
  %6203 = vmatprep.subr.bf16.mxu0 0
  %6204 = vmatpush1.bf16.msra.mxu0 0
  %6205 = vmatprep.subr.bf16.mxu0 0
  %6206 = vmatpush1.bf16.msra.mxu0 %v6166
  %6207 = vmatprep.subr.bf16.mxu0 0
  %6208 = vmatpush1.bf16.msra.mxu0 %v6165
  %6209 = vmatprep.subr.bf16.mxu0 0
  %6210 = vmatpush2.bf16.msra.mxu0 0
  %6211 = vmatprep.subr.bf16.mxu0 0
  %6212 = vmatpush2.bf16.msra.mxu0 0
  %6213 = vmatprep.subr.bf16.mxu0 0
  %6214 = vmatpush2.bf16.msra.mxu0 0
  %6215 = vmatprep.subr.bf16.mxu0 0
  %6216 = vmatpush2.bf16.msra.mxu0 0
  %6217 = vmatprep.subr.bf16.mxu0 0
  %6218 = vmatpush2.bf16.msra.mxu0 0
  %6219 = vmatprep.subr.bf16.mxu0 0
  %6220 = vmatpush2.bf16.msra.mxu0 0
  %6221 = vmatprep.subr.bf16.mxu0 0
  %6222 = vmatpush2.bf16.msra.mxu0 0
  %6223 = vmatprep.subr.bf16.mxu0 0
  %6224 = vmatpush2.bf16.msra.mxu0 0
  %6225 = vmatprep.mubr.bf16.mxu0 0
  %6226 = vmatmul.mubr.bf16.gmra.mxu0 %v6170
  %v6227 = vpop.f32.mrf.mxu0
  %v6228 = vadd.f32 %v6155, %v6227
  %v6229 = vpop.f32.mrf.mxu0
  %v6230 = vpop.f32.mrf.mxu0
  %v6231 = vadd.f32 %v6155, %v6230
  %v6232 = vpop.f32.mrf.mxu0
  %6233 = vmatprep.mubr.bf16.mxu0 0
  %6234 = vmatmul.mubr.bf16.gmra.mxu0 %v6173
  %v6235 = vpop.f32.mrf.mxu0
  %v6236 = vadd.f32 %v6155, %v6235
  %v6237 = vpop.f32.mrf.mxu0
  %v6238 = vpop.f32.mrf.mxu0
  %v6239 = vadd.f32 %v6155, %v6238
  %v6240 = vpop.f32.mrf.mxu0
  %6241 = vmatprep.mubr.bf16.mxu0 0
  %6242 = vmatmul.mubr.bf16.gmra.mxu0 %v6176
  %v6243 = vpop.f32.mrf.mxu0
  %v6244 = vadd.f32 %v6155, %v6243
  %v6245 = vpop.f32.mrf.mxu0
  %v6246 = vpop.f32.mrf.mxu0
  %v6247 = vadd.f32 %v6155, %v6246
  %v6248 = vpop.f32.mrf.mxu0
  %6249 = vmatprep.mubr.bf16.mxu0 0
  %6250 = vmatmul.mubr.bf16.gmra.mxu0 %v6179
  %v6251 = vpop.f32.mrf.mxu0
  %v6252 = vadd.f32 %v6155, %v6251
  %v6253 = vpop.f32.mrf.mxu0
  %v6254 = vpop.f32.mrf.mxu0
  %v6255 = vadd.f32 %v6155, %v6254
  %v6256 = vpop.f32.mrf.mxu0
  %6257 = vmatprep.mubr.bf16.mxu0 0
  %6258 = vmatmul.mubr.bf16.gmra.mxu0 %v6182
  %v6259 = vpop.f32.mrf.mxu0
  %v6260 = vadd.f32 %v6155, %v6259
  %v6261 = vpop.f32.mrf.mxu0
  %v6262 = vpop.f32.mrf.mxu0
  %v6263 = vadd.f32 %v6155, %v6262
  %v6264 = vpop.f32.mrf.mxu0
  %6265 = vmatprep.mubr.bf16.mxu0 0
  %6266 = vmatmul.mubr.bf16.gmra.mxu0 %v6185
  %v6267 = vpop.f32.mrf.mxu0
  %v6268 = vadd.f32 %v6155, %v6267
  %v6269 = vpop.f32.mrf.mxu0
  %v6270 = vpop.f32.mrf.mxu0
  %v6271 = vadd.f32 %v6155, %v6270
  %v6272 = vpop.f32.mrf.mxu0
  %6273 = vmatprep.mubr.bf16.mxu0 0
  %6274 = vmatmul.mubr.bf16.gmra.mxu0 %v6188
  %v6275 = vpop.f32.mrf.mxu0
  %v6276 = vadd.f32 %v6155, %v6275
  %v6277 = vpop.f32.mrf.mxu0
  %v6278 = vpop.f32.mrf.mxu0
  %v6279 = vadd.f32 %v6155, %v6278
  %v6280 = vpop.f32.mrf.mxu0
  %6281 = vmatprep.mubr.bf16.mxu0 0
  %6282 = vmatmul.mubr.bf16.gmra.mxu0 %v6191
  %v6283 = vpop.f32.mrf.mxu0
  %v6284 = vadd.f32 %v6155, %v6283
  %v6285 = vpop.f32.mrf.mxu0
  %v6286 = vpop.f32.mrf.mxu0
  %v6287 = vadd.f32 %v6155, %v6286
  %v6288 = vpop.f32.mrf.mxu0
  %6289 = vdwg.mxu0
  %v6290 = vadd.f32 %v1810, %v6228
  %v6291 = vadd.f32 %v1813, %v6231
  %v6292 = vadd.f32 %v1818, %v6236
  %v6293 = vadd.f32 %v1821, %v6239
  %v6294 = vadd.f32 %v1826, %v6244
  %v6295 = vadd.f32 %v1829, %v6247
  %v6296 = vadd.f32 %v1834, %v6252
  %v6297 = vadd.f32 %v1837, %v6255
  %v6298 = vadd.f32 %v1842, %v6260
  %v6299 = vadd.f32 %v1845, %v6263
  %v6300 = vadd.f32 %v1850, %v6268
  %v6301 = vadd.f32 %v1853, %v6271
  %v6302 = vadd.f32 %v1858, %v6276
  %v6303 = vadd.f32 %v1861, %v6279
  %v6304 = vadd.f32 %v1866, %v6284
  %v6305 = vadd.f32 %v1869, %v6287
  %v6306 = vadd.f32 %v3118, %v5193
  %v6307 = vadd.f32 %v3121, %v5196
  %v6308 = vadd.f32 %v3126, %v5201
  %v6309 = vadd.f32 %v3129, %v5204
  %v6310 = vadd.f32 %v3134, %v5209
  %v6311 = vadd.f32 %v3137, %v5212
  %v6312 = vadd.f32 %v3142, %v5217
  %v6313 = vadd.f32 %v3145, %v5220
  %v6314 = vadd.f32 %v3150, %v5225
  %v6315 = vadd.f32 %v3153, %v5228
  %v6316 = vadd.f32 %v3158, %v5233
  %v6317 = vadd.f32 %v3161, %v5236
  %v6318 = vadd.f32 %v3166, %v5241
  %v6319 = vadd.f32 %v3169, %v5244
  %v6320 = vadd.f32 %v3174, %v5249
  %v6321 = vadd.f32 %v3177, %v5252
  %v6322 = vadd.f32 %v3182, %v5257
  %v6323 = vadd.f32 %v3185, %v5260
  %v6324 = vadd.f32 %v3190, %v5265
  %v6325 = vadd.f32 %v3193, %v5268
  %v6326 = vadd.f32 %v3198, %v5273
  %v6327 = vadd.f32 %v3201, %v5276
  %v6328 = vadd.f32 %v3206, %v5281
  %v6329 = vadd.f32 %v3209, %v5284
  %v6330 = vadd.f32 %v3214, %v5289
  %v6331 = vadd.f32 %v3217, %v5292
  %v6332 = vadd.f32 %v3222, %v5297
  %v6333 = vadd.f32 %v3225, %v5300
  %v6334 = vadd.f32 %v3230, %v5305
  %v6335 = vadd.f32 %v3233, %v5308
  %v6336 = vadd.f32 %v3238, %v5313
  %v6337 = vadd.f32 %v3241, %v5316
  %v6338 = vadd.f32 %v3246, %v5321
  %v6339 = vadd.f32 %v3249, %v5324
  %v6340 = vadd.f32 %v3254, %v5329
  %v6341 = vadd.f32 %v3257, %v5332
  %v6342 = vadd.f32 %v3262, %v5337
  %v6343 = vadd.f32 %v3265, %v5340
  %v6344 = vadd.f32 %v3270, %v5345
  %v6345 = vadd.f32 %v3273, %v5348
  %v6346 = vadd.f32 %v3278, %v5353
  %v6347 = vadd.f32 %v3281, %v5356
  %v6348 = vadd.f32 %v3286, %v5361
  %v6349 = vadd.f32 %v3289, %v5364
  %v6350 = vadd.f32 %v3294, %v5369
  %v6351 = vadd.f32 %v3297, %v5372
  %v6352 = vadd.f32 %v3302, %v5377
  %v6353 = vadd.f32 %v3305, %v5380
  %v6354 = vadd.f32 %v3310, %v5385
  %v6355 = vadd.f32 %v3313, %v5388
  %v6356 = vadd.f32 %v3318, %v5393
  %v6357 = vadd.f32 %v3321, %v5396
  %v6358 = vadd.f32 %v3326, %v5401
  %v6359 = vadd.f32 %v3329, %v5404
  %v6360 = vadd.f32 %v3334, %v5409
  %v6361 = vadd.f32 %v3337, %v5412
  %v6362 = vadd.f32 %v3342, %v5417
  %v6363 = vadd.f32 %v3345, %v5420
  %v6364 = vadd.f32 %v3350, %v5425
  %v6365 = vadd.f32 %v3353, %v5428
  %v6366 = vadd.f32 %v3358, %v5433
  %v6367 = vadd.f32 %v3361, %v5436
  %v6368 = vadd.f32 %v3366, %v5441
  %v6369 = vadd.f32 %v3369, %v5444
  %v6370 = vld [vmem:[%s57 + $0x10] sm:$0xf]
  %v6371 = vld [vmem:[%s57 + $0x14] sm:$0xf]
  %v6372 = vld [vmem:[%s57 + $0x18] sm:$0xf]
  %v6373 = vld [vmem:[%s57 + $0x1c] sm:$0xf]
  %v6374 = vpack.c.bf16 %v6291, %v6290
  %v6375 = vpack.c.bf16 %v6293, %v6292
  %v6376 = vpack.c.bf16 %v6295, %v6294
  %v6377 = vpack.c.bf16 %v6297, %v6296
  %v6378 = vpack.c.bf16 %v6299, %v6298
  %v6379 = vpack.c.bf16 %v6301, %v6300
  %v6380 = vpack.c.bf16 %v6303, %v6302
  %v6381 = vpack.c.bf16 %v6305, %v6304
  %v6386 = vunpack.c.l.b16 %v6370
  %v6387 = vunpack.c.l.b16 %v6371
  %v6388 = vunpack.c.l.b16 %v6372
  %v6389 = vunpack.c.l.b16 %v6373
  %v6390 = vpack.c.b16 %v6387, %v6386
  %v6391 = vpack.c.b16 %v6389, %v6388
  %v6395 = vsel %vm1582, %v6374, 0
  %v6398 = vsel %vm1582, %v6375, 0
  %v6401 = vsel %vm1582, %v6376, 0
  %v6404 = vsel %vm1582, %v6377, 0
  %v6407 = vsel %vm1582, %v6378, 0
  %v6410 = vsel %vm1582, %v6379, 0
  %v6413 = vsel %vm1582, %v6380, 0
  %v6416 = vsel %vm1582, %v6381, 0
  %6418 = vmatprep.subr.bf16.mxu0 0
  %6419 = vmatpush1.bf16.msra.mxu0 0
  %6420 = vmatprep.subr.bf16.mxu0 0
  %6421 = vmatpush1.bf16.msra.mxu0 0
  %6422 = vmatprep.subr.bf16.mxu0 0
  %6423 = vmatpush1.bf16.msra.mxu0 0
  %6424 = vmatprep.subr.bf16.mxu0 0
  %6425 = vmatpush1.bf16.msra.mxu0 0
  %6426 = vmatprep.subr.bf16.mxu0 0
  %6427 = vmatpush1.bf16.msra.mxu0 0
  %6428 = vmatprep.subr.bf16.mxu0 0
  %6429 = vmatpush1.bf16.msra.mxu0 0
  %6430 = vmatprep.subr.bf16.mxu0 0
  %6431 = vmatpush1.bf16.msra.mxu0 %v6391
  %6432 = vmatprep.subr.bf16.mxu0 0
  %6433 = vmatpush1.bf16.msra.mxu0 %v6390
  %6434 = vmatprep.subr.bf16.mxu0 0
  %6435 = vmatpush2.bf16.msra.mxu0 0
  %6436 = vmatprep.subr.bf16.mxu0 0
  %6437 = vmatpush2.bf16.msra.mxu0 0
  %6438 = vmatprep.subr.bf16.mxu0 0
  %6439 = vmatpush2.bf16.msra.mxu0 0
  %6440 = vmatprep.subr.bf16.mxu0 0
  %6441 = vmatpush2.bf16.msra.mxu0 0
  %6442 = vmatprep.subr.bf16.mxu0 0
  %6443 = vmatpush2.bf16.msra.mxu0 0
  %6444 = vmatprep.subr.bf16.mxu0 0
  %6445 = vmatpush2.bf16.msra.mxu0 0
  %6446 = vmatprep.subr.bf16.mxu0 0
  %6447 = vmatpush2.bf16.msra.mxu0 0
  %6448 = vmatprep.subr.bf16.mxu0 0
  %6449 = vmatpush2.bf16.msra.mxu0 0
  %6450 = vmatprep.mubr.bf16.mxu0 0
  %6451 = vmatmul.mubr.bf16.gmra.mxu0 %v6395
  %v6452 = vpop.f32.mrf.mxu0
  %v6453 = vadd.f32 0.0, %v6452
  %v6454 = vpop.f32.mrf.mxu0
  %v6455 = vpop.f32.mrf.mxu0
  %v6456 = vadd.f32 0.0, %v6455
  %v6457 = vpop.f32.mrf.mxu0
  %6458 = vmatprep.mubr.bf16.mxu0 0
  %6459 = vmatmul.mubr.bf16.gmra.mxu0 %v6398
  %v6460 = vpop.f32.mrf.mxu0
  %v6461 = vadd.f32 0.0, %v6460
  %v6462 = vpop.f32.mrf.mxu0
  %v6463 = vpop.f32.mrf.mxu0
  %v6464 = vadd.f32 0.0, %v6463
  %v6465 = vpop.f32.mrf.mxu0
  %6466 = vmatprep.mubr.bf16.mxu0 0
  %6467 = vmatmul.mubr.bf16.gmra.mxu0 %v6401
  %v6468 = vpop.f32.mrf.mxu0
  %v6469 = vadd.f32 0.0, %v6468
  %v6470 = vpop.f32.mrf.mxu0
  %v6471 = vpop.f32.mrf.mxu0
  %v6472 = vadd.f32 0.0, %v6471
  %v6473 = vpop.f32.mrf.mxu0
  %6474 = vmatprep.mubr.bf16.mxu0 0
  %6475 = vmatmul.mubr.bf16.gmra.mxu0 %v6404
  %v6476 = vpop.f32.mrf.mxu0
  %v6477 = vadd.f32 0.0, %v6476
  %v6478 = vpop.f32.mrf.mxu0
  %v6479 = vpop.f32.mrf.mxu0
  %v6480 = vadd.f32 0.0, %v6479
  %v6481 = vpop.f32.mrf.mxu0
  %6482 = vmatprep.mubr.bf16.mxu0 0
  %6483 = vmatmul.mubr.bf16.gmra.mxu0 %v6407
  %v6484 = vpop.f32.mrf.mxu0
  %v6485 = vadd.f32 0.0, %v6484
  %v6486 = vpop.f32.mrf.mxu0
  %v6487 = vpop.f32.mrf.mxu0
  %v6488 = vadd.f32 0.0, %v6487
  %v6489 = vpop.f32.mrf.mxu0
  %6490 = vmatprep.mubr.bf16.mxu0 0
  %6491 = vmatmul.mubr.bf16.gmra.mxu0 %v6410
  %v6492 = vpop.f32.mrf.mxu0
  %v6493 = vadd.f32 0.0, %v6492
  %v6494 = vpop.f32.mrf.mxu0
  %v6495 = vpop.f32.mrf.mxu0
  %v6496 = vadd.f32 0.0, %v6495
  %v6497 = vpop.f32.mrf.mxu0
  %6498 = vmatprep.mubr.bf16.mxu0 0
  %6499 = vmatmul.mubr.bf16.gmra.mxu0 %v6413
  %v6500 = vpop.f32.mrf.mxu0
  %v6501 = vadd.f32 0.0, %v6500
  %v6502 = vpop.f32.mrf.mxu0
  %v6503 = vpop.f32.mrf.mxu0
  %v6504 = vadd.f32 0.0, %v6503
  %v6505 = vpop.f32.mrf.mxu0
  %6506 = vmatprep.mubr.bf16.mxu0 0
  %6507 = vmatmul.mubr.bf16.gmra.mxu0 %v6416
  %v6508 = vpop.f32.mrf.mxu0
  %v6509 = vadd.f32 0.0, %v6508
  %v6510 = vpop.f32.mrf.mxu0
  %v6511 = vpop.f32.mrf.mxu0
  %v6512 = vadd.f32 0.0, %v6511
  %v6513 = vpop.f32.mrf.mxu0
  %6514 = vdwg.mxu0
  %v6515 = vld [vmem:[%s57 + $0x20] sm:$0xf]
  %v6516 = vld [vmem:[%s57 + $0x24] sm:$0xf]
  %v6517 = vld [vmem:[%s57 + $0x28] sm:$0xf]
  %v6518 = vld [vmem:[%s57 + $0x2c] sm:$0xf]
  %v6523 = vunpack.c.l.b16 %v6515
  %v6524 = vunpack.c.l.b16 %v6516
  %v6525 = vunpack.c.l.b16 %v6517
  %v6526 = vunpack.c.l.b16 %v6518
  %v6527 = vpack.c.b16 %v6524, %v6523
  %v6528 = vpack.c.b16 %v6526, %v6525
  %6531 = vmatprep.subr.bf16.mxu0 0
  %6532 = vmatpush1.bf16.msra.mxu0 0
  %6533 = vmatprep.subr.bf16.mxu0 0
  %6534 = vmatpush1.bf16.msra.mxu0 0
  %6535 = vmatprep.subr.bf16.mxu0 0
  %6536 = vmatpush1.bf16.msra.mxu0 0
  %6537 = vmatprep.subr.bf16.mxu0 0
  %6538 = vmatpush1.bf16.msra.mxu0 0
  %6539 = vmatprep.subr.bf16.mxu0 0
  %6540 = vmatpush1.bf16.msra.mxu0 0
  %6541 = vmatprep.subr.bf16.mxu0 0
  %6542 = vmatpush1.bf16.msra.mxu0 0
  %6543 = vmatprep.subr.bf16.mxu0 0
  %6544 = vmatpush1.bf16.msra.mxu0 %v6528
  %6545 = vmatprep.subr.bf16.mxu0 0
  %6546 = vmatpush1.bf16.msra.mxu0 %v6527
  %6547 = vmatprep.subr.bf16.mxu0 0
  %6548 = vmatpush2.bf16.msra.mxu0 0
  %6549 = vmatprep.subr.bf16.mxu0 0
  %6550 = vmatpush2.bf16.msra.mxu0 0
  %6551 = vmatprep.subr.bf16.mxu0 0
  %6552 = vmatpush2.bf16.msra.mxu0 0
  %6553 = vmatprep.subr.bf16.mxu0 0
  %6554 = vmatpush2.bf16.msra.mxu0 0
  %6555 = vmatprep.subr.bf16.mxu0 0
  %6556 = vmatpush2.bf16.msra.mxu0 0
  %6557 = vmatprep.subr.bf16.mxu0 0
  %6558 = vmatpush2.bf16.msra.mxu0 0
  %6559 = vmatprep.subr.bf16.mxu0 0
  %6560 = vmatpush2.bf16.msra.mxu0 0
  %6561 = vmatprep.subr.bf16.mxu0 0
  %6562 = vmatpush2.bf16.msra.mxu0 0
  %6563 = vmatprep.mubr.bf16.mxu0 0
  %6564 = vmatmul.mubr.bf16.gmra.mxu0 %v6395
  %v6565 = vpop.f32.mrf.mxu0
  %v6566 = vadd.f32 0.0, %v6565
  %v6567 = vpop.f32.mrf.mxu0
  %v6568 = vpop.f32.mrf.mxu0
  %v6569 = vadd.f32 0.0, %v6568
  %v6570 = vpop.f32.mrf.mxu0
  %6571 = vmatprep.mubr.bf16.mxu0 0
  %6572 = vmatmul.mubr.bf16.gmra.mxu0 %v6398
  %v6573 = vpop.f32.mrf.mxu0
  %v6574 = vadd.f32 0.0, %v6573
  %v6575 = vpop.f32.mrf.mxu0
  %v6576 = vpop.f32.mrf.mxu0
  %v6577 = vadd.f32 0.0, %v6576
  %v6578 = vpop.f32.mrf.mxu0
  %6579 = vmatprep.mubr.bf16.mxu0 0
  %6580 = vmatmul.mubr.bf16.gmra.mxu0 %v6401
  %v6581 = vpop.f32.mrf.mxu0
  %v6582 = vadd.f32 0.0, %v6581
  %v6583 = vpop.f32.mrf.mxu0
  %v6584 = vpop.f32.mrf.mxu0
  %v6585 = vadd.f32 0.0, %v6584
  %v6586 = vpop.f32.mrf.mxu0
  %6587 = vmatprep.mubr.bf16.mxu0 0
  %6588 = vmatmul.mubr.bf16.gmra.mxu0 %v6404
  %v6589 = vpop.f32.mrf.mxu0
  %v6590 = vadd.f32 0.0, %v6589
  %v6591 = vpop.f32.mrf.mxu0
  %v6592 = vpop.f32.mrf.mxu0
  %v6593 = vadd.f32 0.0, %v6592
  %v6594 = vpop.f32.mrf.mxu0
  %6595 = vmatprep.mubr.bf16.mxu0 0
  %6596 = vmatmul.mubr.bf16.gmra.mxu0 %v6407
  %v6597 = vpop.f32.mrf.mxu0
  %v6598 = vadd.f32 0.0, %v6597
  %v6599 = vpop.f32.mrf.mxu0
  %v6600 = vpop.f32.mrf.mxu0
  %v6601 = vadd.f32 0.0, %v6600
  %v6602 = vpop.f32.mrf.mxu0
  %6603 = vmatprep.mubr.bf16.mxu0 0
  %6604 = vmatmul.mubr.bf16.gmra.mxu0 %v6410
  %v6605 = vpop.f32.mrf.mxu0
  %v6606 = vadd.f32 0.0, %v6605
  %v6607 = vpop.f32.mrf.mxu0
  %v6608 = vpop.f32.mrf.mxu0
  %v6609 = vadd.f32 0.0, %v6608
  %v6610 = vpop.f32.mrf.mxu0
  %6611 = vmatprep.mubr.bf16.mxu0 0
  %6612 = vmatmul.mubr.bf16.gmra.mxu0 %v6413
  %v6613 = vpop.f32.mrf.mxu0
  %v6614 = vadd.f32 0.0, %v6613
  %v6615 = vpop.f32.mrf.mxu0
  %v6616 = vpop.f32.mrf.mxu0
  %v6617 = vadd.f32 0.0, %v6616
  %v6618 = vpop.f32.mrf.mxu0
  %6619 = vmatprep.mubr.bf16.mxu0 0
  %6620 = vmatmul.mubr.bf16.gmra.mxu0 %v6416
  %v6621 = vpop.f32.mrf.mxu0
  %v6622 = vadd.f32 0.0, %v6621
  %v6623 = vpop.f32.mrf.mxu0
  %v6624 = vpop.f32.mrf.mxu0
  %v6625 = vadd.f32 0.0, %v6624
  %v6626 = vpop.f32.mrf.mxu0
  %6627 = vdwg.mxu0
  %v6628 = vpack.c.bf16 %v6456, %v6453
  %v6629 = vpack.c.bf16 %v6464, %v6461
  %v6630 = vpack.c.bf16 %v6472, %v6469
  %v6631 = vpack.c.bf16 %v6480, %v6477
  %v6632 = vpack.c.bf16 %v6488, %v6485
  %v6633 = vpack.c.bf16 %v6496, %v6493
  %v6634 = vpack.c.bf16 %v6504, %v6501
  %v6635 = vpack.c.bf16 %v6512, %v6509
  %v6636 = vpack.c.bf16 %v6569, %v6566
  %v6637 = vpack.c.bf16 %v6577, %v6574
  %v6638 = vpack.c.bf16 %v6585, %v6582
  %v6639 = vpack.c.bf16 %v6593, %v6590
  %v6640 = vpack.c.bf16 %v6601, %v6598
  %v6641 = vpack.c.bf16 %v6609, %v6606
  %v6642 = vpack.c.bf16 %v6617, %v6614
  %v6643 = vpack.c.bf16 %v6625, %v6622
  %v6644 = vld [vmem:[%s57] sm:$0xf]
  %v6645 = vld [vmem:[%s57 + $0x4] sm:$0xf]
  %v6646 = vld [vmem:[%s57 + $0x8] sm:$0xf]
  %v6647 = vld [vmem:[%s57 + $0xc] sm:$0xf]
  %v6648 = vpack.c.bf16 %v6307, %v6306
  %v6649 = vpack.c.bf16 %v6309, %v6308
  %v6650 = vpack.c.bf16 %v6311, %v6310
  %v6651 = vpack.c.bf16 %v6313, %v6312
  %v6652 = vpack.c.bf16 %v6315, %v6314
  %v6653 = vpack.c.bf16 %v6317, %v6316
  %v6654 = vpack.c.bf16 %v6319, %v6318
  %v6655 = vpack.c.bf16 %v6321, %v6320
  %v6656 = vpack.c.bf16 %v6323, %v6322
  %v6657 = vpack.c.bf16 %v6325, %v6324
  %v6658 = vpack.c.bf16 %v6327, %v6326
  %v6659 = vpack.c.bf16 %v6329, %v6328
  %v6660 = vpack.c.bf16 %v6331, %v6330
  %v6661 = vpack.c.bf16 %v6333, %v6332
  %v6662 = vpack.c.bf16 %v6335, %v6334
  %v6663 = vpack.c.bf16 %v6337, %v6336
  %v6664 = vpack.c.bf16 %v6339, %v6338
  %v6665 = vpack.c.bf16 %v6341, %v6340
  %v6666 = vpack.c.bf16 %v6343, %v6342
  %v6667 = vpack.c.bf16 %v6345, %v6344
  %v6668 = vpack.c.bf16 %v6347, %v6346
  %v6669 = vpack.c.bf16 %v6349, %v6348
  %v6670 = vpack.c.bf16 %v6351, %v6350
  %v6671 = vpack.c.bf16 %v6353, %v6352
  %v6672 = vpack.c.bf16 %v6355, %v6354
  %v6673 = vpack.c.bf16 %v6357, %v6356
  %v6674 = vpack.c.bf16 %v6359, %v6358
  %v6675 = vpack.c.bf16 %v6361, %v6360
  %v6676 = vpack.c.bf16 %v6363, %v6362
  %v6677 = vpack.c.bf16 %v6365, %v6364
  %v6678 = vpack.c.bf16 %v6367, %v6366
  %v6679 = vpack.c.bf16 %v6369, %v6368
  %6680 = vmatprep.subr.bf16.mxu0 0
  %6681 = vmatpush1.bf16.msra.mxu0 %v6635
  %6682 = vmatprep.subr.bf16.mxu0 0
  %6683 = vmatpush1.bf16.msra.mxu0 %v6634
  %6684 = vmatprep.subr.bf16.mxu0 0
  %6685 = vmatpush1.bf16.msra.mxu0 %v6633
  %6686 = vmatprep.subr.bf16.mxu0 0
  %6687 = vmatpush1.bf16.msra.mxu0 %v6632
  %6688 = vmatprep.subr.bf16.mxu0 0
  %6689 = vmatpush1.bf16.msra.mxu0 %v6631
  %6690 = vmatprep.subr.bf16.mxu0 0
  %6691 = vmatpush1.bf16.msra.mxu0 %v6630
  %6692 = vmatprep.subr.bf16.mxu0 0
  %6693 = vmatpush1.bf16.msra.mxu0 %v6629
  %6694 = vmatprep.subr.bf16.mxu0 0
  %6695 = vmatpush1.bf16.msra.mxu0 %v6628
  %6696 = vmatprep.subr.bf16.mxu0 0
  %6697 = vmatpush2.bf16.msra.mxu0 %v6643
  %6698 = vmatprep.subr.bf16.mxu0 0
  %6699 = vmatpush2.bf16.msra.mxu0 %v6642
  %6700 = vmatprep.subr.bf16.mxu0 0
  %6701 = vmatpush2.bf16.msra.mxu0 %v6641
  %6702 = vmatprep.subr.bf16.mxu0 0
  %6703 = vmatpush2.bf16.msra.mxu0 %v6640
  %6704 = vmatprep.subr.bf16.mxu0 0
  %6705 = vmatpush2.bf16.msra.mxu0 %v6639
  %6706 = vmatprep.subr.bf16.mxu0 0
  %6707 = vmatpush2.bf16.msra.mxu0 %v6638
  %6708 = vmatprep.subr.bf16.mxu0 0
  %6709 = vmatpush2.bf16.msra.mxu0 %v6637
  %6710 = vmatprep.subr.bf16.mxu0 0
  %6711 = vmatpush2.bf16.msra.mxu0 %v6636
  %6712 = vmatprep.mubr.bf16.mxu0 %v1121
  %6713 = vmatmul.mubr.bf16.gmra.mxu0 %v641
  %v6714 = vpop.f32.mrf.mxu0
  %v6715 = vadd.f32 0.0, %v6714
  %v6716 = vpop.f32.mrf.mxu0
  %v6717 = vpop.f32.mrf.mxu0
  %v6718 = vadd.f32 0.0, %v6717
  %v6719 = vpop.f32.mrf.mxu0
  %6720 = vmatprep.mubr.bf16.mxu0 %v1122
  %6721 = vmatmul.mubr.bf16.gmra.mxu0 %v642
  %v6722 = vpop.f32.mrf.mxu0
  %v6723 = vadd.f32 0.0, %v6722
  %v6724 = vpop.f32.mrf.mxu0
  %v6725 = vpop.f32.mrf.mxu0
  %v6726 = vadd.f32 0.0, %v6725
  %v6727 = vpop.f32.mrf.mxu0
  %6728 = vmatprep.mubr.bf16.mxu0 %v1123
  %6729 = vmatmul.mubr.bf16.gmra.mxu0 %v643
  %v6730 = vpop.f32.mrf.mxu0
  %v6731 = vadd.f32 0.0, %v6730
  %v6732 = vpop.f32.mrf.mxu0
  %v6733 = vpop.f32.mrf.mxu0
  %v6734 = vadd.f32 0.0, %v6733
  %v6735 = vpop.f32.mrf.mxu0
  %6736 = vmatprep.mubr.bf16.mxu0 %v1124
  %6737 = vmatmul.mubr.bf16.gmra.mxu0 %v644
  %v6738 = vpop.f32.mrf.mxu0
  %v6739 = vadd.f32 0.0, %v6738
  %v6740 = vpop.f32.mrf.mxu0
  %v6741 = vpop.f32.mrf.mxu0
  %v6742 = vadd.f32 0.0, %v6741
  %v6743 = vpop.f32.mrf.mxu0
  %6744 = vmatprep.mubr.bf16.mxu0 %v1125
  %6745 = vmatmul.mubr.bf16.gmra.mxu0 %v645
  %v6746 = vpop.f32.mrf.mxu0
  %v6747 = vadd.f32 0.0, %v6746
  %v6748 = vpop.f32.mrf.mxu0
  %v6749 = vpop.f32.mrf.mxu0
  %v6750 = vadd.f32 0.0, %v6749
  %v6751 = vpop.f32.mrf.mxu0
  %6752 = vmatprep.mubr.bf16.mxu0 %v1126
  %6753 = vmatmul.mubr.bf16.gmra.mxu0 %v646
  %v6754 = vpop.f32.mrf.mxu0
  %v6755 = vadd.f32 0.0, %v6754
  %v6756 = vpop.f32.mrf.mxu0
  %v6757 = vpop.f32.mrf.mxu0
  %v6758 = vadd.f32 0.0, %v6757
  %v6759 = vpop.f32.mrf.mxu0
  %6760 = vmatprep.mubr.bf16.mxu0 %v1127
  %6761 = vmatmul.mubr.bf16.gmra.mxu0 %v647
  %v6762 = vpop.f32.mrf.mxu0
  %v6763 = vadd.f32 0.0, %v6762
  %v6764 = vpop.f32.mrf.mxu0
  %v6765 = vpop.f32.mrf.mxu0
  %v6766 = vadd.f32 0.0, %v6765
  %v6767 = vpop.f32.mrf.mxu0
  %6768 = vmatprep.mubr.bf16.mxu0 %v1128
  %6769 = vmatmul.mubr.bf16.gmra.mxu0 %v648
  %v6770 = vpop.f32.mrf.mxu0
  %v6771 = vadd.f32 0.0, %v6770
  %v6772 = vpop.f32.mrf.mxu0
  %v6773 = vpop.f32.mrf.mxu0
  %v6774 = vadd.f32 0.0, %v6773
  %v6775 = vpop.f32.mrf.mxu0
  %6776 = vmatprep.mubr.bf16.mxu0 %v1129
  %6777 = vmatmul.mubr.bf16.gmra.mxu0 %v649
  %v6778 = vpop.f32.mrf.mxu0
  %v6779 = vadd.f32 0.0, %v6778
  %v6780 = vpop.f32.mrf.mxu0
  %v6781 = vpop.f32.mrf.mxu0
  %v6782 = vadd.f32 0.0, %v6781
  %v6783 = vpop.f32.mrf.mxu0
  %6784 = vmatprep.mubr.bf16.mxu0 %v1130
  %6785 = vmatmul.mubr.bf16.gmra.mxu0 %v650
  %v6786 = vpop.f32.mrf.mxu0
  %v6787 = vadd.f32 0.0, %v6786
  %v6788 = vpop.f32.mrf.mxu0
  %v6789 = vpop.f32.mrf.mxu0
  %v6790 = vadd.f32 0.0, %v6789
  %v6791 = vpop.f32.mrf.mxu0
  %6792 = vmatprep.mubr.bf16.mxu0 %v1131
  %6793 = vmatmul.mubr.bf16.gmra.mxu0 %v651
  %v6794 = vpop.f32.mrf.mxu0
  %v6795 = vadd.f32 0.0, %v6794
  %v6796 = vpop.f32.mrf.mxu0
  %v6797 = vpop.f32.mrf.mxu0
  %v6798 = vadd.f32 0.0, %v6797
  %v6799 = vpop.f32.mrf.mxu0
  %6800 = vmatprep.mubr.bf16.mxu0 %v1132
  %6801 = vmatmul.mubr.bf16.gmra.mxu0 %v652
  %v6802 = vpop.f32.mrf.mxu0
  %v6803 = vadd.f32 0.0, %v6802
  %v6804 = vpop.f32.mrf.mxu0
  %v6805 = vpop.f32.mrf.mxu0
  %v6806 = vadd.f32 0.0, %v6805
  %v6807 = vpop.f32.mrf.mxu0
  %6808 = vmatprep.mubr.bf16.mxu0 %v1133
  %6809 = vmatmul.mubr.bf16.gmra.mxu0 %v653
  %v6810 = vpop.f32.mrf.mxu0
  %v6811 = vadd.f32 0.0, %v6810
  %v6812 = vpop.f32.mrf.mxu0
  %v6813 = vpop.f32.mrf.mxu0
  %v6814 = vadd.f32 0.0, %v6813
  %v6815 = vpop.f32.mrf.mxu0
  %6816 = vmatprep.mubr.bf16.mxu0 %v1134
  %6817 = vmatmul.mubr.bf16.gmra.mxu0 %v654
  %v6818 = vpop.f32.mrf.mxu0
  %v6819 = vadd.f32 0.0, %v6818
  %v6820 = vpop.f32.mrf.mxu0
  %v6821 = vpop.f32.mrf.mxu0
  %v6822 = vadd.f32 0.0, %v6821
  %v6823 = vpop.f32.mrf.mxu0
  %6824 = vmatprep.mubr.bf16.mxu0 %v1135
  %6825 = vmatmul.mubr.bf16.gmra.mxu0 %v655
  %v6826 = vpop.f32.mrf.mxu0
  %v6827 = vadd.f32 0.0, %v6826
  %v6828 = vpop.f32.mrf.mxu0
  %v6829 = vpop.f32.mrf.mxu0
  %v6830 = vadd.f32 0.0, %v6829
  %v6831 = vpop.f32.mrf.mxu0
  %6832 = vmatprep.mubr.bf16.mxu0 %v1136
  %6833 = vmatmul.mubr.bf16.gmra.mxu0 %v656
  %v6834 = vpop.f32.mrf.mxu0
  %v6835 = vadd.f32 0.0, %v6834
  %v6836 = vpop.f32.mrf.mxu0
  %v6837 = vpop.f32.mrf.mxu0
  %v6838 = vadd.f32 0.0, %v6837
  %v6839 = vpop.f32.mrf.mxu0
  %6840 = vmatprep.mubr.bf16.mxu0 %v1137
  %6841 = vmatmul.mubr.bf16.gmra.mxu0 %v657
  %v6842 = vpop.f32.mrf.mxu0
  %v6843 = vadd.f32 0.0, %v6842
  %v6844 = vpop.f32.mrf.mxu0
  %v6845 = vpop.f32.mrf.mxu0
  %v6846 = vadd.f32 0.0, %v6845
  %v6847 = vpop.f32.mrf.mxu0
  %6848 = vmatprep.mubr.bf16.mxu0 %v1138
  %6849 = vmatmul.mubr.bf16.gmra.mxu0 %v658
  %v6850 = vpop.f32.mrf.mxu0
  %v6851 = vadd.f32 0.0, %v6850
  %v6852 = vpop.f32.mrf.mxu0
  %v6853 = vpop.f32.mrf.mxu0
  %v6854 = vadd.f32 0.0, %v6853
  %v6855 = vpop.f32.mrf.mxu0
  %6856 = vmatprep.mubr.bf16.mxu0 %v1139
  %6857 = vmatmul.mubr.bf16.gmra.mxu0 %v659
  %v6858 = vpop.f32.mrf.mxu0
  %v6859 = vadd.f32 0.0, %v6858
  %v6860 = vpop.f32.mrf.mxu0
  %v6861 = vpop.f32.mrf.mxu0
  %v6862 = vadd.f32 0.0, %v6861
  %v6863 = vpop.f32.mrf.mxu0
  %6864 = vmatprep.mubr.bf16.mxu0 %v1140
  %6865 = vmatmul.mubr.bf16.gmra.mxu0 %v660
  %v6866 = vpop.f32.mrf.mxu0
  %v6867 = vadd.f32 0.0, %v6866
  %v6868 = vpop.f32.mrf.mxu0
  %v6869 = vpop.f32.mrf.mxu0
  %v6870 = vadd.f32 0.0, %v6869
  %v6871 = vpop.f32.mrf.mxu0
  %6872 = vmatprep.mubr.bf16.mxu0 %v1141
  %6873 = vmatmul.mubr.bf16.gmra.mxu0 %v661
  %v6874 = vpop.f32.mrf.mxu0
  %v6875 = vadd.f32 0.0, %v6874
  %v6876 = vpop.f32.mrf.mxu0
  %v6877 = vpop.f32.mrf.mxu0
  %v6878 = vadd.f32 0.0, %v6877
  %v6879 = vpop.f32.mrf.mxu0
  %6880 = vmatprep.mubr.bf16.mxu0 %v1142
  %6881 = vmatmul.mubr.bf16.gmra.mxu0 %v662
  %v6882 = vpop.f32.mrf.mxu0
  %v6883 = vadd.f32 0.0, %v6882
  %v6884 = vpop.f32.mrf.mxu0
  %v6885 = vpop.f32.mrf.mxu0
  %v6886 = vadd.f32 0.0, %v6885
  %v6887 = vpop.f32.mrf.mxu0
  %6888 = vmatprep.mubr.bf16.mxu0 %v1143
  %6889 = vmatmul.mubr.bf16.gmra.mxu0 %v663
  %v6890 = vpop.f32.mrf.mxu0
  %v6891 = vadd.f32 0.0, %v6890
  %v6892 = vpop.f32.mrf.mxu0
  %v6893 = vpop.f32.mrf.mxu0
  %v6894 = vadd.f32 0.0, %v6893
  %v6895 = vpop.f32.mrf.mxu0
  %6896 = vmatprep.mubr.bf16.mxu0 %v1144
  %6897 = vmatmul.mubr.bf16.gmra.mxu0 %v664
  %v6898 = vpop.f32.mrf.mxu0
  %v6899 = vadd.f32 0.0, %v6898
  %v6900 = vpop.f32.mrf.mxu0
  %v6901 = vpop.f32.mrf.mxu0
  %v6902 = vadd.f32 0.0, %v6901
  %v6903 = vpop.f32.mrf.mxu0
  %6904 = vmatprep.mubr.bf16.mxu0 %v1145
  %6905 = vmatmul.mubr.bf16.gmra.mxu0 %v665
  %v6906 = vpop.f32.mrf.mxu0
  %v6907 = vadd.f32 0.0, %v6906
  %v6908 = vpop.f32.mrf.mxu0
  %v6909 = vpop.f32.mrf.mxu0
  %v6910 = vadd.f32 0.0, %v6909
  %v6911 = vpop.f32.mrf.mxu0
  %6912 = vmatprep.mubr.bf16.mxu0 %v1146
  %6913 = vmatmul.mubr.bf16.gmra.mxu0 %v666
  %v6914 = vpop.f32.mrf.mxu0
  %v6915 = vadd.f32 0.0, %v6914
  %v6916 = vpop.f32.mrf.mxu0
  %v6917 = vpop.f32.mrf.mxu0
  %v6918 = vadd.f32 0.0, %v6917
  %v6919 = vpop.f32.mrf.mxu0
  %6920 = vmatprep.mubr.bf16.mxu0 %v1147
  %6921 = vmatmul.mubr.bf16.gmra.mxu0 %v667
  %v6922 = vpop.f32.mrf.mxu0
  %v6923 = vadd.f32 0.0, %v6922
  %v6924 = vpop.f32.mrf.mxu0
  %v6925 = vpop.f32.mrf.mxu0
  %v6926 = vadd.f32 0.0, %v6925
  %v6927 = vpop.f32.mrf.mxu0
  %6928 = vmatprep.mubr.bf16.mxu0 %v1148
  %6929 = vmatmul.mubr.bf16.gmra.mxu0 %v668
  %v6930 = vpop.f32.mrf.mxu0
  %v6931 = vadd.f32 0.0, %v6930
  %v6932 = vpop.f32.mrf.mxu0
  %v6933 = vpop.f32.mrf.mxu0
  %v6934 = vadd.f32 0.0, %v6933
  %v6935 = vpop.f32.mrf.mxu0
  %6936 = vmatprep.mubr.bf16.mxu0 %v1149
  %6937 = vmatmul.mubr.bf16.gmra.mxu0 %v669
  %v6938 = vpop.f32.mrf.mxu0
  %v6939 = vadd.f32 0.0, %v6938
  %v6940 = vpop.f32.mrf.mxu0
  %v6941 = vpop.f32.mrf.mxu0
  %v6942 = vadd.f32 0.0, %v6941
  %v6943 = vpop.f32.mrf.mxu0
  %6944 = vmatprep.mubr.bf16.mxu0 %v1150
  %6945 = vmatmul.mubr.bf16.gmra.mxu0 %v670
  %v6946 = vpop.f32.mrf.mxu0
  %v6947 = vadd.f32 0.0, %v6946
  %v6948 = vpop.f32.mrf.mxu0
  %v6949 = vpop.f32.mrf.mxu0
  %v6950 = vadd.f32 0.0, %v6949
  %v6951 = vpop.f32.mrf.mxu0
  %6952 = vmatprep.mubr.bf16.mxu0 %v1151
  %6953 = vmatmul.mubr.bf16.gmra.mxu0 %v671
  %v6954 = vpop.f32.mrf.mxu0
  %v6955 = vadd.f32 0.0, %v6954
  %v6956 = vpop.f32.mrf.mxu0
  %v6957 = vpop.f32.mrf.mxu0
  %v6958 = vadd.f32 0.0, %v6957
  %v6959 = vpop.f32.mrf.mxu0
  %6960 = vmatprep.mubr.bf16.mxu0 %v1152
  %6961 = vmatmul.mubr.bf16.gmra.mxu0 %v672
  %v6962 = vpop.f32.mrf.mxu0
  %v6963 = vadd.f32 0.0, %v6962
  %v6964 = vpop.f32.mrf.mxu0
  %v6965 = vpop.f32.mrf.mxu0
  %v6966 = vadd.f32 0.0, %v6965
  %v6967 = vpop.f32.mrf.mxu0
  %6968 = vdwg.mxu0
  %v6973 = vunpack.c.l.b16 %v6644
  %v6974 = vunpack.c.l.b16 %v6645
  %v6975 = vunpack.c.l.b16 %v6646
  %v6976 = vunpack.c.l.b16 %v6647
  %v6977 = vpack.c.b16 %v6974, %v6973
  %v6978 = vpack.c.b16 %v6976, %v6975
  %v6982 = vsel %vm1582, %v6648, 0
  %v6985 = vsel %vm1582, %v6649, 0
  %v6988 = vsel %vm1582, %v6650, 0
  %v6991 = vsel %vm1582, %v6651, 0
  %v6994 = vsel %vm1582, %v6652, 0
  %v6997 = vsel %vm1582, %v6653, 0
  %v7000 = vsel %vm1582, %v6654, 0
  %v7003 = vsel %vm1582, %v6655, 0
  %v7006 = vsel %vm1582, %v6656, 0
  %v7009 = vsel %vm1582, %v6657, 0
  %v7012 = vsel %vm1582, %v6658, 0
  %v7015 = vsel %vm1582, %v6659, 0
  %v7018 = vsel %vm1582, %v6660, 0
  %v7021 = vsel %vm1582, %v6661, 0
  %v7024 = vsel %vm1582, %v6662, 0
  %v7027 = vsel %vm1582, %v6663, 0
  %v7030 = vsel %vm1582, %v6664, 0
  %v7033 = vsel %vm1582, %v6665, 0
  %v7036 = vsel %vm1582, %v6666, 0
  %v7039 = vsel %vm1582, %v6667, 0
  %v7042 = vsel %vm1582, %v6668, 0
  %v7045 = vsel %vm1582, %v6669, 0
  %v7048 = vsel %vm1582, %v6670, 0
  %v7051 = vsel %vm1582, %v6671, 0
  %v7054 = vsel %vm1582, %v6672, 0
  %v7057 = vsel %vm1582, %v6673, 0
  %v7060 = vsel %vm1582, %v6674, 0
  %v7063 = vsel %vm1582, %v6675, 0
  %v7066 = vsel %vm1582, %v6676, 0
  %v7069 = vsel %vm1582, %v6677, 0
  %v7072 = vsel %vm1582, %v6678, 0
  %v7075 = vsel %vm1582, %v6679, 0
  %7077 = vmatprep.subr.bf16.mxu0 0
  %7078 = vmatpush1.bf16.msra.mxu0 0
  %7079 = vmatprep.subr.bf16.mxu0 0
  %7080 = vmatpush1.bf16.msra.mxu0 0
  %7081 = vmatprep.subr.bf16.mxu0 0
  %7082 = vmatpush1.bf16.msra.mxu0 0
  %7083 = vmatprep.subr.bf16.mxu0 0
  %7084 = vmatpush1.bf16.msra.mxu0 0
  %7085 = vmatprep.subr.bf16.mxu0 0
  %7086 = vmatpush1.bf16.msra.mxu0 0
  %7087 = vmatprep.subr.bf16.mxu0 0
  %7088 = vmatpush1.bf16.msra.mxu0 0
  %7089 = vmatprep.subr.bf16.mxu0 0
  %7090 = vmatpush1.bf16.msra.mxu0 %v6978
  %7091 = vmatprep.subr.bf16.mxu0 0
  %7092 = vmatpush1.bf16.msra.mxu0 %v6977
  %7093 = vmatprep.subr.bf16.mxu0 0
  %7094 = vmatpush2.bf16.msra.mxu0 0
  %7095 = vmatprep.subr.bf16.mxu0 0
  %7096 = vmatpush2.bf16.msra.mxu0 0
  %7097 = vmatprep.subr.bf16.mxu0 0
  %7098 = vmatpush2.bf16.msra.mxu0 0
  %7099 = vmatprep.subr.bf16.mxu0 0
  %7100 = vmatpush2.bf16.msra.mxu0 0
  %7101 = vmatprep.subr.bf16.mxu0 0
  %7102 = vmatpush2.bf16.msra.mxu0 0
  %7103 = vmatprep.subr.bf16.mxu0 0
  %7104 = vmatpush2.bf16.msra.mxu0 0
  %7105 = vmatprep.subr.bf16.mxu0 0
  %7106 = vmatpush2.bf16.msra.mxu0 0
  %7107 = vmatprep.subr.bf16.mxu0 0
  %7108 = vmatpush2.bf16.msra.mxu0 0
  %7109 = vmatprep.mubr.bf16.mxu0 0
  %7110 = vmatmul.mubr.bf16.gmra.mxu0 %v6982
  %v7111 = vpop.f32.mrf.mxu0
  %v7112 = vadd.f32 %v6715, %v7111
  %v7113 = vpop.f32.mrf.mxu0
  %v7114 = vpop.f32.mrf.mxu0
  %v7115 = vadd.f32 %v6718, %v7114
  %v7116 = vpop.f32.mrf.mxu0
  %7117 = vmatprep.mubr.bf16.mxu0 0
  %7118 = vmatmul.mubr.bf16.gmra.mxu0 %v6985
  %v7119 = vpop.f32.mrf.mxu0
  %v7120 = vadd.f32 %v6723, %v7119
  %v7121 = vpop.f32.mrf.mxu0
  %v7122 = vpop.f32.mrf.mxu0
  %v7123 = vadd.f32 %v6726, %v7122
  %v7124 = vpop.f32.mrf.mxu0
  %7125 = vmatprep.mubr.bf16.mxu0 0
  %7126 = vmatmul.mubr.bf16.gmra.mxu0 %v6988
  %v7127 = vpop.f32.mrf.mxu0
  %v7128 = vadd.f32 %v6731, %v7127
  %v7129 = vpop.f32.mrf.mxu0
  %v7130 = vpop.f32.mrf.mxu0
  %v7131 = vadd.f32 %v6734, %v7130
  %v7132 = vpop.f32.mrf.mxu0
  %7133 = vmatprep.mubr.bf16.mxu0 0
  %7134 = vmatmul.mubr.bf16.gmra.mxu0 %v6991
  %v7135 = vpop.f32.mrf.mxu0
  %v7136 = vadd.f32 %v6739, %v7135
  %v7137 = vpop.f32.mrf.mxu0
  %v7138 = vpop.f32.mrf.mxu0
  %v7139 = vadd.f32 %v6742, %v7138
  %v7140 = vpop.f32.mrf.mxu0
  %7141 = vmatprep.mubr.bf16.mxu0 0
  %7142 = vmatmul.mubr.bf16.gmra.mxu0 %v6994
  %v7143 = vpop.f32.mrf.mxu0
  %v7144 = vadd.f32 %v6747, %v7143
  %v7145 = vpop.f32.mrf.mxu0
  %v7146 = vpop.f32.mrf.mxu0
  %v7147 = vadd.f32 %v6750, %v7146
  %v7148 = vpop.f32.mrf.mxu0
  %7149 = vmatprep.mubr.bf16.mxu0 0
  %7150 = vmatmul.mubr.bf16.gmra.mxu0 %v6997
  %v7151 = vpop.f32.mrf.mxu0
  %v7152 = vadd.f32 %v6755, %v7151
  %v7153 = vpop.f32.mrf.mxu0
  %v7154 = vpop.f32.mrf.mxu0
  %v7155 = vadd.f32 %v6758, %v7154
  %v7156 = vpop.f32.mrf.mxu0
  %7157 = vmatprep.mubr.bf16.mxu0 0
  %7158 = vmatmul.mubr.bf16.gmra.mxu0 %v7000
  %v7159 = vpop.f32.mrf.mxu0
  %v7160 = vadd.f32 %v6763, %v7159
  %v7161 = vpop.f32.mrf.mxu0
  %v7162 = vpop.f32.mrf.mxu0
  %v7163 = vadd.f32 %v6766, %v7162
  %v7164 = vpop.f32.mrf.mxu0
  %7165 = vmatprep.mubr.bf16.mxu0 0
  %7166 = vmatmul.mubr.bf16.gmra.mxu0 %v7003
  %v7167 = vpop.f32.mrf.mxu0
  %v7168 = vadd.f32 %v6771, %v7167
  %v7169 = vpop.f32.mrf.mxu0
  %v7170 = vpop.f32.mrf.mxu0
  %v7171 = vadd.f32 %v6774, %v7170
  %v7172 = vpop.f32.mrf.mxu0
  %7173 = vmatprep.mubr.bf16.mxu0 0
  %7174 = vmatmul.mubr.bf16.gmra.mxu0 %v7006
  %v7175 = vpop.f32.mrf.mxu0
  %v7176 = vadd.f32 %v6779, %v7175
  %v7177 = vpop.f32.mrf.mxu0
  %v7178 = vpop.f32.mrf.mxu0
  %v7179 = vadd.f32 %v6782, %v7178
  %v7180 = vpop.f32.mrf.mxu0
  %7181 = vmatprep.mubr.bf16.mxu0 0
  %7182 = vmatmul.mubr.bf16.gmra.mxu0 %v7009
  %v7183 = vpop.f32.mrf.mxu0
  %v7184 = vadd.f32 %v6787, %v7183
  %v7185 = vpop.f32.mrf.mxu0
  %v7186 = vpop.f32.mrf.mxu0
  %v7187 = vadd.f32 %v6790, %v7186
  %v7188 = vpop.f32.mrf.mxu0
  %7189 = vmatprep.mubr.bf16.mxu0 0
  %7190 = vmatmul.mubr.bf16.gmra.mxu0 %v7012
  %v7191 = vpop.f32.mrf.mxu0
  %v7192 = vadd.f32 %v6795, %v7191
  %v7193 = vpop.f32.mrf.mxu0
  %v7194 = vpop.f32.mrf.mxu0
  %v7195 = vadd.f32 %v6798, %v7194
  %v7196 = vpop.f32.mrf.mxu0
  %7197 = vmatprep.mubr.bf16.mxu0 0
  %7198 = vmatmul.mubr.bf16.gmra.mxu0 %v7015
  %v7199 = vpop.f32.mrf.mxu0
  %v7200 = vadd.f32 %v6803, %v7199
  %v7201 = vpop.f32.mrf.mxu0
  %v7202 = vpop.f32.mrf.mxu0
  %v7203 = vadd.f32 %v6806, %v7202
  %v7204 = vpop.f32.mrf.mxu0
  %7205 = vmatprep.mubr.bf16.mxu0 0
  %7206 = vmatmul.mubr.bf16.gmra.mxu0 %v7018
  %v7207 = vpop.f32.mrf.mxu0
  %v7208 = vadd.f32 %v6811, %v7207
  %v7209 = vpop.f32.mrf.mxu0
  %v7210 = vpop.f32.mrf.mxu0
  %v7211 = vadd.f32 %v6814, %v7210
  %v7212 = vpop.f32.mrf.mxu0
  %7213 = vmatprep.mubr.bf16.mxu0 0
  %7214 = vmatmul.mubr.bf16.gmra.mxu0 %v7021
  %v7215 = vpop.f32.mrf.mxu0
  %v7216 = vadd.f32 %v6819, %v7215
  %v7217 = vpop.f32.mrf.mxu0
  %v7218 = vpop.f32.mrf.mxu0
  %v7219 = vadd.f32 %v6822, %v7218
  %v7220 = vpop.f32.mrf.mxu0
  %7221 = vmatprep.mubr.bf16.mxu0 0
  %7222 = vmatmul.mubr.bf16.gmra.mxu0 %v7024
  %v7223 = vpop.f32.mrf.mxu0
  %v7224 = vadd.f32 %v6827, %v7223
  %v7225 = vpop.f32.mrf.mxu0
  %v7226 = vpop.f32.mrf.mxu0
  %v7227 = vadd.f32 %v6830, %v7226
  %v7228 = vpop.f32.mrf.mxu0
  %7229 = vmatprep.mubr.bf16.mxu0 0
  %7230 = vmatmul.mubr.bf16.gmra.mxu0 %v7027
  %v7231 = vpop.f32.mrf.mxu0
  %v7232 = vadd.f32 %v6835, %v7231
  %v7233 = vpop.f32.mrf.mxu0
  %v7234 = vpop.f32.mrf.mxu0
  %v7235 = vadd.f32 %v6838, %v7234
  %v7236 = vpop.f32.mrf.mxu0
  %7237 = vmatprep.mubr.bf16.mxu0 0
  %7238 = vmatmul.mubr.bf16.gmra.mxu0 %v7030
  %v7239 = vpop.f32.mrf.mxu0
  %v7240 = vadd.f32 %v6843, %v7239
  %v7241 = vpop.f32.mrf.mxu0
  %v7242 = vpop.f32.mrf.mxu0
  %v7243 = vadd.f32 %v6846, %v7242
  %v7244 = vpop.f32.mrf.mxu0
  %7245 = vmatprep.mubr.bf16.mxu0 0
  %7246 = vmatmul.mubr.bf16.gmra.mxu0 %v7033
  %v7247 = vpop.f32.mrf.mxu0
  %v7248 = vadd.f32 %v6851, %v7247
  %v7249 = vpop.f32.mrf.mxu0
  %v7250 = vpop.f32.mrf.mxu0
  %v7251 = vadd.f32 %v6854, %v7250
  %v7252 = vpop.f32.mrf.mxu0
  %7253 = vmatprep.mubr.bf16.mxu0 0
  %7254 = vmatmul.mubr.bf16.gmra.mxu0 %v7036
  %v7255 = vpop.f32.mrf.mxu0
  %v7256 = vadd.f32 %v6859, %v7255
  %v7257 = vpop.f32.mrf.mxu0
  %v7258 = vpop.f32.mrf.mxu0
  %v7259 = vadd.f32 %v6862, %v7258
  %v7260 = vpop.f32.mrf.mxu0
  %7261 = vmatprep.mubr.bf16.mxu0 0
  %7262 = vmatmul.mubr.bf16.gmra.mxu0 %v7039
  %v7263 = vpop.f32.mrf.mxu0
  %v7264 = vadd.f32 %v6867, %v7263
  %v7265 = vpop.f32.mrf.mxu0
  %v7266 = vpop.f32.mrf.mxu0
  %v7267 = vadd.f32 %v6870, %v7266
  %v7268 = vpop.f32.mrf.mxu0
  %7269 = vmatprep.mubr.bf16.mxu0 0
  %7270 = vmatmul.mubr.bf16.gmra.mxu0 %v7042
  %v7271 = vpop.f32.mrf.mxu0
  %v7272 = vadd.f32 %v6875, %v7271
  %v7273 = vpop.f32.mrf.mxu0
  %v7274 = vpop.f32.mrf.mxu0
  %v7275 = vadd.f32 %v6878, %v7274
  %v7276 = vpop.f32.mrf.mxu0
  %7277 = vmatprep.mubr.bf16.mxu0 0
  %7278 = vmatmul.mubr.bf16.gmra.mxu0 %v7045
  %v7279 = vpop.f32.mrf.mxu0
  %v7280 = vadd.f32 %v6883, %v7279
  %v7281 = vpop.f32.mrf.mxu0
  %v7282 = vpop.f32.mrf.mxu0
  %v7283 = vadd.f32 %v6886, %v7282
  %v7284 = vpop.f32.mrf.mxu0
  %7285 = vmatprep.mubr.bf16.mxu0 0
  %7286 = vmatmul.mubr.bf16.gmra.mxu0 %v7048
  %v7287 = vpop.f32.mrf.mxu0
  %v7288 = vadd.f32 %v6891, %v7287
  %v7289 = vpop.f32.mrf.mxu0
  %v7290 = vpop.f32.mrf.mxu0
  %v7291 = vadd.f32 %v6894, %v7290
  %v7292 = vpop.f32.mrf.mxu0
  %7293 = vmatprep.mubr.bf16.mxu0 0
  %7294 = vmatmul.mubr.bf16.gmra.mxu0 %v7051
  %v7295 = vpop.f32.mrf.mxu0
  %v7296 = vadd.f32 %v6899, %v7295
  %v7297 = vpop.f32.mrf.mxu0
  %v7298 = vpop.f32.mrf.mxu0
  %v7299 = vadd.f32 %v6902, %v7298
  %v7300 = vpop.f32.mrf.mxu0
  %7301 = vmatprep.mubr.bf16.mxu0 0
  %7302 = vmatmul.mubr.bf16.gmra.mxu0 %v7054
  %v7303 = vpop.f32.mrf.mxu0
  %v7304 = vadd.f32 %v6907, %v7303
  %v7305 = vpop.f32.mrf.mxu0
  %v7306 = vpop.f32.mrf.mxu0
  %v7307 = vadd.f32 %v6910, %v7306
  %v7308 = vpop.f32.mrf.mxu0
  %7309 = vmatprep.mubr.bf16.mxu0 0
  %7310 = vmatmul.mubr.bf16.gmra.mxu0 %v7057
  %v7311 = vpop.f32.mrf.mxu0
  %v7312 = vadd.f32 %v6915, %v7311
  %v7313 = vpop.f32.mrf.mxu0
  %v7314 = vpop.f32.mrf.mxu0
  %v7315 = vadd.f32 %v6918, %v7314
  %v7316 = vpop.f32.mrf.mxu0
  %7317 = vmatprep.mubr.bf16.mxu0 0
  %7318 = vmatmul.mubr.bf16.gmra.mxu0 %v7060
  %v7319 = vpop.f32.mrf.mxu0
  %v7320 = vadd.f32 %v6923, %v7319
  %v7321 = vpop.f32.mrf.mxu0
  %v7322 = vpop.f32.mrf.mxu0
  %v7323 = vadd.f32 %v6926, %v7322
  %v7324 = vpop.f32.mrf.mxu0
  %7325 = vmatprep.mubr.bf16.mxu0 0
  %7326 = vmatmul.mubr.bf16.gmra.mxu0 %v7063
  %v7327 = vpop.f32.mrf.mxu0
  %v7328 = vadd.f32 %v6931, %v7327
  %v7329 = vpop.f32.mrf.mxu0
  %v7330 = vpop.f32.mrf.mxu0
  %v7331 = vadd.f32 %v6934, %v7330
  %v7332 = vpop.f32.mrf.mxu0
  %7333 = vmatprep.mubr.bf16.mxu0 0
  %7334 = vmatmul.mubr.bf16.gmra.mxu0 %v7066
  %v7335 = vpop.f32.mrf.mxu0
  %v7336 = vadd.f32 %v6939, %v7335
  %v7337 = vpop.f32.mrf.mxu0
  %v7338 = vpop.f32.mrf.mxu0
  %v7339 = vadd.f32 %v6942, %v7338
  %v7340 = vpop.f32.mrf.mxu0
  %7341 = vmatprep.mubr.bf16.mxu0 0
  %7342 = vmatmul.mubr.bf16.gmra.mxu0 %v7069
  %v7343 = vpop.f32.mrf.mxu0
  %v7344 = vadd.f32 %v6947, %v7343
  %v7345 = vpop.f32.mrf.mxu0
  %v7346 = vpop.f32.mrf.mxu0
  %v7347 = vadd.f32 %v6950, %v7346
  %v7348 = vpop.f32.mrf.mxu0
  %7349 = vmatprep.mubr.bf16.mxu0 0
  %7350 = vmatmul.mubr.bf16.gmra.mxu0 %v7072
  %v7351 = vpop.f32.mrf.mxu0
  %v7352 = vadd.f32 %v6955, %v7351
  %v7353 = vpop.f32.mrf.mxu0
  %v7354 = vpop.f32.mrf.mxu0
  %v7355 = vadd.f32 %v6958, %v7354
  %v7356 = vpop.f32.mrf.mxu0
  %7357 = vmatprep.mubr.bf16.mxu0 0
  %7358 = vmatmul.mubr.bf16.gmra.mxu0 %v7075
  %v7359 = vpop.f32.mrf.mxu0
  %v7360 = vadd.f32 %v6963, %v7359
  %v7361 = vpop.f32.mrf.mxu0
  %v7362 = vpop.f32.mrf.mxu0
  %v7363 = vadd.f32 %v6966, %v7362
  %v7364 = vpop.f32.mrf.mxu0
  %7365 = vdwg.mxu0
  %v7366 = vld [vmem:[%s59] sm:$0x1]
  %v7368 = vlaneseq
  %v7369 = vshrl.u32 %v7368, 7
  %v7370 = vsub.s32 0, %v7369
  %v7371 = vrot.slane %v7366, %v7370
  %v7373 = vadd.f32 %v7112, %v7371
  %v7374 = vadd.f32 %v7115, %v7371
  %v7375 = vadd.f32 %v7120, %v7371
  %v7376 = vadd.f32 %v7123, %v7371
  %v7377 = vadd.f32 %v7128, %v7371
  %v7378 = vadd.f32 %v7131, %v7371
  %v7379 = vadd.f32 %v7136, %v7371
  %v7380 = vadd.f32 %v7139, %v7371
  %v7381 = vadd.f32 %v7144, %v7371
  %v7382 = vadd.f32 %v7147, %v7371
  %v7383 = vadd.f32 %v7152, %v7371
  %v7384 = vadd.f32 %v7155, %v7371
  %v7385 = vadd.f32 %v7160, %v7371
  %v7386 = vadd.f32 %v7163, %v7371
  %v7387 = vadd.f32 %v7168, %v7371
  %v7388 = vadd.f32 %v7171, %v7371
  %v7389 = vadd.f32 %v7176, %v7371
  %v7390 = vadd.f32 %v7179, %v7371
  %v7391 = vadd.f32 %v7184, %v7371
  %v7392 = vadd.f32 %v7187, %v7371
  %v7393 = vadd.f32 %v7192, %v7371
  %v7394 = vadd.f32 %v7195, %v7371
  %v7395 = vadd.f32 %v7200, %v7371
  %v7396 = vadd.f32 %v7203, %v7371
  %v7397 = vadd.f32 %v7208, %v7371
  %v7398 = vadd.f32 %v7211, %v7371
  %v7399 = vadd.f32 %v7216, %v7371
  %v7400 = vadd.f32 %v7219, %v7371
  %v7401 = vadd.f32 %v7224, %v7371
  %v7402 = vadd.f32 %v7227, %v7371
  %v7403 = vadd.f32 %v7232, %v7371
  %v7404 = vadd.f32 %v7235, %v7371
  %v7405 = vadd.f32 %v7240, %v7371
  %v7406 = vadd.f32 %v7243, %v7371
  %v7407 = vadd.f32 %v7248, %v7371
  %v7408 = vadd.f32 %v7251, %v7371
  %v7409 = vadd.f32 %v7256, %v7371
  %v7410 = vadd.f32 %v7259, %v7371
  %v7411 = vadd.f32 %v7264, %v7371
  %v7412 = vadd.f32 %v7267, %v7371
  %v7413 = vadd.f32 %v7272, %v7371
  %v7414 = vadd.f32 %v7275, %v7371
  %v7415 = vadd.f32 %v7280, %v7371
  %v7416 = vadd.f32 %v7283, %v7371
  %v7417 = vadd.f32 %v7288, %v7371
  %v7418 = vadd.f32 %v7291, %v7371
  %v7419 = vadd.f32 %v7296, %v7371
  %v7420 = vadd.f32 %v7299, %v7371
  %v7421 = vadd.f32 %v7304, %v7371
  %v7422 = vadd.f32 %v7307, %v7371
  %v7423 = vadd.f32 %v7312, %v7371
  %v7424 = vadd.f32 %v7315, %v7371
  %v7425 = vadd.f32 %v7320, %v7371
  %v7426 = vadd.f32 %v7323, %v7371
  %v7427 = vadd.f32 %v7328, %v7371
  %v7428 = vadd.f32 %v7331, %v7371
  %v7429 = vadd.f32 %v7336, %v7371
  %v7430 = vadd.f32 %v7339, %v7371
  %v7431 = vadd.f32 %v7344, %v7371
  %v7432 = vadd.f32 %v7347, %v7371
  %v7433 = vadd.f32 %v7352, %v7371
  %v7434 = vadd.f32 %v7355, %v7371
  %v7435 = vadd.f32 %v7360, %v7371
  %v7436 = vadd.f32 %v7363, %v7371
  %v7437 = vmax.f32 %v7373, 0.0
  %v7438 = vmax.f32 %v7374, 0.0
  %v7439 = vmax.f32 %v7375, 0.0
  %v7440 = vmax.f32 %v7376, 0.0
  %v7441 = vmax.f32 %v7377, 0.0
  %v7442 = vmax.f32 %v7378, 0.0
  %v7443 = vmax.f32 %v7379, 0.0
  %v7444 = vmax.f32 %v7380, 0.0
  %v7445 = vmax.f32 %v7381, 0.0
  %v7446 = vmax.f32 %v7382, 0.0
  %v7447 = vmax.f32 %v7383, 0.0
  %v7448 = vmax.f32 %v7384, 0.0
  %v7449 = vmax.f32 %v7385, 0.0
  %v7450 = vmax.f32 %v7386, 0.0
  %v7451 = vmax.f32 %v7387, 0.0
  %v7452 = vmax.f32 %v7388, 0.0
  %v7453 = vmax.f32 %v7389, 0.0
  %v7454 = vmax.f32 %v7390, 0.0
  %v7455 = vmax.f32 %v7391, 0.0
  %v7456 = vmax.f32 %v7392, 0.0
  %v7457 = vmax.f32 %v7393, 0.0
  %v7458 = vmax.f32 %v7394, 0.0
  %v7459 = vmax.f32 %v7395, 0.0
  %v7460 = vmax.f32 %v7396, 0.0
  %v7461 = vmax.f32 %v7397, 0.0
  %v7462 = vmax.f32 %v7398, 0.0
  %v7463 = vmax.f32 %v7399, 0.0
  %v7464 = vmax.f32 %v7400, 0.0
  %v7465 = vmax.f32 %v7401, 0.0
  %v7466 = vmax.f32 %v7402, 0.0
  %v7467 = vmax.f32 %v7403, 0.0
  %v7468 = vmax.f32 %v7404, 0.0
  %v7469 = vmax.f32 %v7405, 0.0
  %v7470 = vmax.f32 %v7406, 0.0
  %v7471 = vmax.f32 %v7407, 0.0
  %v7472 = vmax.f32 %v7408, 0.0
  %v7473 = vmax.f32 %v7409, 0.0
  %v7474 = vmax.f32 %v7410, 0.0
  %v7475 = vmax.f32 %v7411, 0.0
  %v7476 = vmax.f32 %v7412, 0.0
  %v7477 = vmax.f32 %v7413, 0.0
  %v7478 = vmax.f32 %v7414, 0.0
  %v7479 = vmax.f32 %v7415, 0.0
  %v7480 = vmax.f32 %v7416, 0.0
  %v7481 = vmax.f32 %v7417, 0.0
  %v7482 = vmax.f32 %v7418, 0.0
  %v7483 = vmax.f32 %v7419, 0.0
  %v7484 = vmax.f32 %v7420, 0.0
  %v7485 = vmax.f32 %v7421, 0.0
  %v7486 = vmax.f32 %v7422, 0.0
  %v7487 = vmax.f32 %v7423, 0.0
  %v7488 = vmax.f32 %v7424, 0.0
  %v7489 = vmax.f32 %v7425, 0.0
  %v7490 = vmax.f32 %v7426, 0.0
  %v7491 = vmax.f32 %v7427, 0.0
  %v7492 = vmax.f32 %v7428, 0.0
  %v7493 = vmax.f32 %v7429, 0.0
  %v7494 = vmax.f32 %v7430, 0.0
  %v7495 = vmax.f32 %v7431, 0.0
  %v7496 = vmax.f32 %v7432, 0.0
  %v7497 = vmax.f32 %v7433, 0.0
  %v7498 = vmax.f32 %v7434, 0.0
  %v7499 = vmax.f32 %v7435, 0.0
  %v7500 = vmax.f32 %v7436, 0.0
  %v7501 = vld [vmem:[%s61] sm:$0xf]
  %v7502 = vld [vmem:[%s61 + $0x4] sm:$0xf]
  %v7503 = vld [vmem:[%s61 + $0x8] sm:$0xf]
  %v7504 = vld [vmem:[%s61 + $0xc] sm:$0xf]
  %v7505 = vpack.c.bf16 %v7438, %v7437
  %v7506 = vpack.c.bf16 %v7440, %v7439
  %v7507 = vpack.c.bf16 %v7442, %v7441
  %v7508 = vpack.c.bf16 %v7444, %v7443
  %v7509 = vpack.c.bf16 %v7446, %v7445
  %v7510 = vpack.c.bf16 %v7448, %v7447
  %v7511 = vpack.c.bf16 %v7450, %v7449
  %v7512 = vpack.c.bf16 %v7452, %v7451
  %v7513 = vpack.c.bf16 %v7454, %v7453
  %v7514 = vpack.c.bf16 %v7456, %v7455
  %v7515 = vpack.c.bf16 %v7458, %v7457
  %v7516 = vpack.c.bf16 %v7460, %v7459
  %v7517 = vpack.c.bf16 %v7462, %v7461
  %v7518 = vpack.c.bf16 %v7464, %v7463
  %v7519 = vpack.c.bf16 %v7466, %v7465
  %v7520 = vpack.c.bf16 %v7468, %v7467
  %v7521 = vpack.c.bf16 %v7470, %v7469
  %v7522 = vpack.c.bf16 %v7472, %v7471
  %v7523 = vpack.c.bf16 %v7474, %v7473
  %v7524 = vpack.c.bf16 %v7476, %v7475
  %v7525 = vpack.c.bf16 %v7478, %v7477
  %v7526 = vpack.c.bf16 %v7480, %v7479
  %v7527 = vpack.c.bf16 %v7482, %v7481
  %v7528 = vpack.c.bf16 %v7484, %v7483
  %v7529 = vpack.c.bf16 %v7486, %v7485
  %v7530 = vpack.c.bf16 %v7488, %v7487
  %v7531 = vpack.c.bf16 %v7490, %v7489
  %v7532 = vpack.c.bf16 %v7492, %v7491
  %v7533 = vpack.c.bf16 %v7494, %v7493
  %v7534 = vpack.c.bf16 %v7496, %v7495
  %v7535 = vpack.c.bf16 %v7498, %v7497
  %v7536 = vpack.c.bf16 %v7500, %v7499
  %v7537 = vld [vmem:[%s63] sm:$0x1]
  %v7539 = vlaneseq
  %v7540 = vshrl.u32 %v7539, 7
  %v7541 = vsub.s32 0, %v7540
  %v7542 = vrot.slane %v7537, %v7541
  %v7548 = vunpack.c.l.b16 %v7501
  %v7549 = vunpack.c.l.b16 %v7502
  %v7550 = vunpack.c.l.b16 %v7503
  %v7551 = vunpack.c.l.b16 %v7504
  %v7552 = vpack.c.b16 %v7549, %v7548
  %v7553 = vpack.c.b16 %v7551, %v7550
  %v7557 = vsel %vm1582, %v7505, 0
  %v7560 = vsel %vm1582, %v7506, 0
  %v7563 = vsel %vm1582, %v7507, 0
  %v7566 = vsel %vm1582, %v7508, 0
  %v7569 = vsel %vm1582, %v7509, 0
  %v7572 = vsel %vm1582, %v7510, 0
  %v7575 = vsel %vm1582, %v7511, 0
  %v7578 = vsel %vm1582, %v7512, 0
  %v7581 = vsel %vm1582, %v7513, 0
  %v7584 = vsel %vm1582, %v7514, 0
  %v7587 = vsel %vm1582, %v7515, 0
  %v7590 = vsel %vm1582, %v7516, 0
  %v7593 = vsel %vm1582, %v7517, 0
  %v7596 = vsel %vm1582, %v7518, 0
  %v7599 = vsel %vm1582, %v7519, 0
  %v7602 = vsel %vm1582, %v7520, 0
  %v7605 = vsel %vm1582, %v7521, 0
  %v7608 = vsel %vm1582, %v7522, 0
  %v7611 = vsel %vm1582, %v7523, 0
  %v7614 = vsel %vm1582, %v7524, 0
  %v7617 = vsel %vm1582, %v7525, 0
  %v7620 = vsel %vm1582, %v7526, 0
  %v7623 = vsel %vm1582, %v7527, 0
  %v7626 = vsel %vm1582, %v7528, 0
  %v7629 = vsel %vm1582, %v7529, 0
  %v7632 = vsel %vm1582, %v7530, 0
  %v7635 = vsel %vm1582, %v7531, 0
  %v7638 = vsel %vm1582, %v7532, 0
  %v7641 = vsel %vm1582, %v7533, 0
  %v7644 = vsel %vm1582, %v7534, 0
  %v7647 = vsel %vm1582, %v7535, 0
  %v7650 = vsel %vm1582, %v7536, 0
  %7652 = vmatprep.subr.bf16.mxu0 0
  %7653 = vmatpush1.bf16.msra.mxu0 0
  %7654 = vmatprep.subr.bf16.mxu0 0
  %7655 = vmatpush1.bf16.msra.mxu0 0
  %7656 = vmatprep.subr.bf16.mxu0 0
  %7657 = vmatpush1.bf16.msra.mxu0 0
  %7658 = vmatprep.subr.bf16.mxu0 0
  %7659 = vmatpush1.bf16.msra.mxu0 0
  %7660 = vmatprep.subr.bf16.mxu0 0
  %7661 = vmatpush1.bf16.msra.mxu0 0
  %7662 = vmatprep.subr.bf16.mxu0 0
  %7663 = vmatpush1.bf16.msra.mxu0 0
  %7664 = vmatprep.subr.bf16.mxu0 0
  %7665 = vmatpush1.bf16.msra.mxu0 %v7553
  %7666 = vmatprep.subr.bf16.mxu0 0
  %7667 = vmatpush1.bf16.msra.mxu0 %v7552
  %7668 = vmatprep.subr.bf16.mxu0 0
  %7669 = vmatpush2.bf16.msra.mxu0 0
  %7670 = vmatprep.subr.bf16.mxu0 0
  %7671 = vmatpush2.bf16.msra.mxu0 0
  %7672 = vmatprep.subr.bf16.mxu0 0
  %7673 = vmatpush2.bf16.msra.mxu0 0
  %7674 = vmatprep.subr.bf16.mxu0 0
  %7675 = vmatpush2.bf16.msra.mxu0 0
  %7676 = vmatprep.subr.bf16.mxu0 0
  %7677 = vmatpush2.bf16.msra.mxu0 0
  %7678 = vmatprep.subr.bf16.mxu0 0
  %7679 = vmatpush2.bf16.msra.mxu0 0
  %7680 = vmatprep.subr.bf16.mxu0 0
  %7681 = vmatpush2.bf16.msra.mxu0 0
  %7682 = vmatprep.subr.bf16.mxu0 0
  %7683 = vmatpush2.bf16.msra.mxu0 0
  %7684 = vmatprep.mubr.bf16.mxu0 0
  %7685 = vmatmul.mubr.bf16.gmra.mxu0 %v7557
  %v7686 = vpop.f32.mrf.mxu0
  %v7687 = vadd.f32 %v7542, %v7686
  %v7688 = vpop.f32.mrf.mxu0
  %v7689 = vpop.f32.mrf.mxu0
  %v7690 = vadd.f32 %v7542, %v7689
  %v7691 = vpop.f32.mrf.mxu0
  %7692 = vmatprep.mubr.bf16.mxu0 0
  %7693 = vmatmul.mubr.bf16.gmra.mxu0 %v7560
  %v7694 = vpop.f32.mrf.mxu0
  %v7695 = vadd.f32 %v7542, %v7694
  %v7696 = vpop.f32.mrf.mxu0
  %v7697 = vpop.f32.mrf.mxu0
  %v7698 = vadd.f32 %v7542, %v7697
  %v7699 = vpop.f32.mrf.mxu0
  %7700 = vmatprep.mubr.bf16.mxu0 0
  %7701 = vmatmul.mubr.bf16.gmra.mxu0 %v7563
  %v7702 = vpop.f32.mrf.mxu0
  %v7703 = vadd.f32 %v7542, %v7702
  %v7704 = vpop.f32.mrf.mxu0
  %v7705 = vpop.f32.mrf.mxu0
  %v7706 = vadd.f32 %v7542, %v7705
  %v7707 = vpop.f32.mrf.mxu0
  %7708 = vmatprep.mubr.bf16.mxu0 0
  %7709 = vmatmul.mubr.bf16.gmra.mxu0 %v7566
  %v7710 = vpop.f32.mrf.mxu0
  %v7711 = vadd.f32 %v7542, %v7710
  %v7712 = vpop.f32.mrf.mxu0
  %v7713 = vpop.f32.mrf.mxu0
  %v7714 = vadd.f32 %v7542, %v7713
  %v7715 = vpop.f32.mrf.mxu0
  %7716 = vmatprep.mubr.bf16.mxu0 0
  %7717 = vmatmul.mubr.bf16.gmra.mxu0 %v7569
  %v7718 = vpop.f32.mrf.mxu0
  %v7719 = vadd.f32 %v7542, %v7718
  %v7720 = vpop.f32.mrf.mxu0
  %v7721 = vpop.f32.mrf.mxu0
  %v7722 = vadd.f32 %v7542, %v7721
  %v7723 = vpop.f32.mrf.mxu0
  %7724 = vmatprep.mubr.bf16.mxu0 0
  %7725 = vmatmul.mubr.bf16.gmra.mxu0 %v7572
  %v7726 = vpop.f32.mrf.mxu0
  %v7727 = vadd.f32 %v7542, %v7726
  %v7728 = vpop.f32.mrf.mxu0
  %v7729 = vpop.f32.mrf.mxu0
  %v7730 = vadd.f32 %v7542, %v7729
  %v7731 = vpop.f32.mrf.mxu0
  %7732 = vmatprep.mubr.bf16.mxu0 0
  %7733 = vmatmul.mubr.bf16.gmra.mxu0 %v7575
  %v7734 = vpop.f32.mrf.mxu0
  %v7735 = vadd.f32 %v7542, %v7734
  %v7736 = vpop.f32.mrf.mxu0
  %v7737 = vpop.f32.mrf.mxu0
  %v7738 = vadd.f32 %v7542, %v7737
  %v7739 = vpop.f32.mrf.mxu0
  %7740 = vmatprep.mubr.bf16.mxu0 0
  %7741 = vmatmul.mubr.bf16.gmra.mxu0 %v7578
  %v7742 = vpop.f32.mrf.mxu0
  %v7743 = vadd.f32 %v7542, %v7742
  %v7744 = vpop.f32.mrf.mxu0
  %v7745 = vpop.f32.mrf.mxu0
  %v7746 = vadd.f32 %v7542, %v7745
  %v7747 = vpop.f32.mrf.mxu0
  %7748 = vmatprep.mubr.bf16.mxu0 0
  %7749 = vmatmul.mubr.bf16.gmra.mxu0 %v7581
  %v7750 = vpop.f32.mrf.mxu0
  %v7751 = vadd.f32 %v7542, %v7750
  %v7752 = vpop.f32.mrf.mxu0
  %v7753 = vpop.f32.mrf.mxu0
  %v7754 = vadd.f32 %v7542, %v7753
  %v7755 = vpop.f32.mrf.mxu0
  %7756 = vmatprep.mubr.bf16.mxu0 0
  %7757 = vmatmul.mubr.bf16.gmra.mxu0 %v7584
  %v7758 = vpop.f32.mrf.mxu0
  %v7759 = vadd.f32 %v7542, %v7758
  %v7760 = vpop.f32.mrf.mxu0
  %v7761 = vpop.f32.mrf.mxu0
  %v7762 = vadd.f32 %v7542, %v7761
  %v7763 = vpop.f32.mrf.mxu0
  %7764 = vmatprep.mubr.bf16.mxu0 0
  %7765 = vmatmul.mubr.bf16.gmra.mxu0 %v7587
  %v7766 = vpop.f32.mrf.mxu0
  %v7767 = vadd.f32 %v7542, %v7766
  %v7768 = vpop.f32.mrf.mxu0
  %v7769 = vpop.f32.mrf.mxu0
  %v7770 = vadd.f32 %v7542, %v7769
  %v7771 = vpop.f32.mrf.mxu0
  %7772 = vmatprep.mubr.bf16.mxu0 0
  %7773 = vmatmul.mubr.bf16.gmra.mxu0 %v7590
  %v7774 = vpop.f32.mrf.mxu0
  %v7775 = vadd.f32 %v7542, %v7774
  %v7776 = vpop.f32.mrf.mxu0
  %v7777 = vpop.f32.mrf.mxu0
  %v7778 = vadd.f32 %v7542, %v7777
  %v7779 = vpop.f32.mrf.mxu0
  %7780 = vmatprep.mubr.bf16.mxu0 0
  %7781 = vmatmul.mubr.bf16.gmra.mxu0 %v7593
  %v7782 = vpop.f32.mrf.mxu0
  %v7783 = vadd.f32 %v7542, %v7782
  %v7784 = vpop.f32.mrf.mxu0
  %v7785 = vpop.f32.mrf.mxu0
  %v7786 = vadd.f32 %v7542, %v7785
  %v7787 = vpop.f32.mrf.mxu0
  %7788 = vmatprep.mubr.bf16.mxu0 0
  %7789 = vmatmul.mubr.bf16.gmra.mxu0 %v7596
  %v7790 = vpop.f32.mrf.mxu0
  %v7791 = vadd.f32 %v7542, %v7790
  %v7792 = vpop.f32.mrf.mxu0
  %v7793 = vpop.f32.mrf.mxu0
  %v7794 = vadd.f32 %v7542, %v7793
  %v7795 = vpop.f32.mrf.mxu0
  %7796 = vmatprep.mubr.bf16.mxu0 0
  %7797 = vmatmul.mubr.bf16.gmra.mxu0 %v7599
  %v7798 = vpop.f32.mrf.mxu0
  %v7799 = vadd.f32 %v7542, %v7798
  %v7800 = vpop.f32.mrf.mxu0
  %v7801 = vpop.f32.mrf.mxu0
  %v7802 = vadd.f32 %v7542, %v7801
  %v7803 = vpop.f32.mrf.mxu0
  %7804 = vmatprep.mubr.bf16.mxu0 0
  %7805 = vmatmul.mubr.bf16.gmra.mxu0 %v7602
  %v7806 = vpop.f32.mrf.mxu0
  %v7807 = vadd.f32 %v7542, %v7806
  %v7808 = vpop.f32.mrf.mxu0
  %v7809 = vpop.f32.mrf.mxu0
  %v7810 = vadd.f32 %v7542, %v7809
  %v7811 = vpop.f32.mrf.mxu0
  %7812 = vmatprep.mubr.bf16.mxu0 0
  %7813 = vmatmul.mubr.bf16.gmra.mxu0 %v7605
  %v7814 = vpop.f32.mrf.mxu0
  %v7815 = vadd.f32 %v7542, %v7814
  %v7816 = vpop.f32.mrf.mxu0
  %v7817 = vpop.f32.mrf.mxu0
  %v7818 = vadd.f32 %v7542, %v7817
  %v7819 = vpop.f32.mrf.mxu0
  %7820 = vmatprep.mubr.bf16.mxu0 0
  %7821 = vmatmul.mubr.bf16.gmra.mxu0 %v7608
  %v7822 = vpop.f32.mrf.mxu0
  %v7823 = vadd.f32 %v7542, %v7822
  %v7824 = vpop.f32.mrf.mxu0
  %v7825 = vpop.f32.mrf.mxu0
  %v7826 = vadd.f32 %v7542, %v7825
  %v7827 = vpop.f32.mrf.mxu0
  %7828 = vmatprep.mubr.bf16.mxu0 0
  %7829 = vmatmul.mubr.bf16.gmra.mxu0 %v7611
  %v7830 = vpop.f32.mrf.mxu0
  %v7831 = vadd.f32 %v7542, %v7830
  %v7832 = vpop.f32.mrf.mxu0
  %v7833 = vpop.f32.mrf.mxu0
  %v7834 = vadd.f32 %v7542, %v7833
  %v7835 = vpop.f32.mrf.mxu0
  %7836 = vmatprep.mubr.bf16.mxu0 0
  %7837 = vmatmul.mubr.bf16.gmra.mxu0 %v7614
  %v7838 = vpop.f32.mrf.mxu0
  %v7839 = vadd.f32 %v7542, %v7838
  %v7840 = vpop.f32.mrf.mxu0
  %v7841 = vpop.f32.mrf.mxu0
  %v7842 = vadd.f32 %v7542, %v7841
  %v7843 = vpop.f32.mrf.mxu0
  %7844 = vmatprep.mubr.bf16.mxu0 0
  %7845 = vmatmul.mubr.bf16.gmra.mxu0 %v7617
  %v7846 = vpop.f32.mrf.mxu0
  %v7847 = vadd.f32 %v7542, %v7846
  %v7848 = vpop.f32.mrf.mxu0
  %v7849 = vpop.f32.mrf.mxu0
  %v7850 = vadd.f32 %v7542, %v7849
  %v7851 = vpop.f32.mrf.mxu0
  %7852 = vmatprep.mubr.bf16.mxu0 0
  %7853 = vmatmul.mubr.bf16.gmra.mxu0 %v7620
  %v7854 = vpop.f32.mrf.mxu0
  %v7855 = vadd.f32 %v7542, %v7854
  %v7856 = vpop.f32.mrf.mxu0
  %v7857 = vpop.f32.mrf.mxu0
  %v7858 = vadd.f32 %v7542, %v7857
  %v7859 = vpop.f32.mrf.mxu0
  %7860 = vmatprep.mubr.bf16.mxu0 0
  %7861 = vmatmul.mubr.bf16.gmra.mxu0 %v7623
  %v7862 = vpop.f32.mrf.mxu0
  %v7863 = vadd.f32 %v7542, %v7862
  %v7864 = vpop.f32.mrf.mxu0
  %v7865 = vpop.f32.mrf.mxu0
  %v7866 = vadd.f32 %v7542, %v7865
  %v7867 = vpop.f32.mrf.mxu0
  %7868 = vmatprep.mubr.bf16.mxu0 0
  %7869 = vmatmul.mubr.bf16.gmra.mxu0 %v7626
  %v7870 = vpop.f32.mrf.mxu0
  %v7871 = vadd.f32 %v7542, %v7870
  %v7872 = vpop.f32.mrf.mxu0
  %v7873 = vpop.f32.mrf.mxu0
  %v7874 = vadd.f32 %v7542, %v7873
  %v7875 = vpop.f32.mrf.mxu0
  %7876 = vmatprep.mubr.bf16.mxu0 0
  %7877 = vmatmul.mubr.bf16.gmra.mxu0 %v7629
  %v7878 = vpop.f32.mrf.mxu0
  %v7879 = vadd.f32 %v7542, %v7878
  %v7880 = vpop.f32.mrf.mxu0
  %v7881 = vpop.f32.mrf.mxu0
  %v7882 = vadd.f32 %v7542, %v7881
  %v7883 = vpop.f32.mrf.mxu0
  %7884 = vmatprep.mubr.bf16.mxu0 0
  %7885 = vmatmul.mubr.bf16.gmra.mxu0 %v7632
  %v7886 = vpop.f32.mrf.mxu0
  %v7887 = vadd.f32 %v7542, %v7886
  %v7888 = vpop.f32.mrf.mxu0
  %v7889 = vpop.f32.mrf.mxu0
  %v7890 = vadd.f32 %v7542, %v7889
  %v7891 = vpop.f32.mrf.mxu0
  %7892 = vmatprep.mubr.bf16.mxu0 0
  %7893 = vmatmul.mubr.bf16.gmra.mxu0 %v7635
  %v7894 = vpop.f32.mrf.mxu0
  %v7895 = vadd.f32 %v7542, %v7894
  %v7896 = vpop.f32.mrf.mxu0
  %v7897 = vpop.f32.mrf.mxu0
  %v7898 = vadd.f32 %v7542, %v7897
  %v7899 = vpop.f32.mrf.mxu0
  %7900 = vmatprep.mubr.bf16.mxu0 0
  %7901 = vmatmul.mubr.bf16.gmra.mxu0 %v7638
  %v7902 = vpop.f32.mrf.mxu0
  %v7903 = vadd.f32 %v7542, %v7902
  %v7904 = vpop.f32.mrf.mxu0
  %v7905 = vpop.f32.mrf.mxu0
  %v7906 = vadd.f32 %v7542, %v7905
  %v7907 = vpop.f32.mrf.mxu0
  %7908 = vmatprep.mubr.bf16.mxu0 0
  %7909 = vmatmul.mubr.bf16.gmra.mxu0 %v7641
  %v7910 = vpop.f32.mrf.mxu0
  %v7911 = vadd.f32 %v7542, %v7910
  %v7912 = vpop.f32.mrf.mxu0
  %v7913 = vpop.f32.mrf.mxu0
  %v7914 = vadd.f32 %v7542, %v7913
  %v7915 = vpop.f32.mrf.mxu0
  %7916 = vmatprep.mubr.bf16.mxu0 0
  %7917 = vmatmul.mubr.bf16.gmra.mxu0 %v7644
  %v7918 = vpop.f32.mrf.mxu0
  %v7919 = vadd.f32 %v7542, %v7918
  %v7920 = vpop.f32.mrf.mxu0
  %v7921 = vpop.f32.mrf.mxu0
  %v7922 = vadd.f32 %v7542, %v7921
  %v7923 = vpop.f32.mrf.mxu0
  %7924 = vmatprep.mubr.bf16.mxu0 0
  %7925 = vmatmul.mubr.bf16.gmra.mxu0 %v7647
  %v7926 = vpop.f32.mrf.mxu0
  %v7927 = vadd.f32 %v7542, %v7926
  %v7928 = vpop.f32.mrf.mxu0
  %v7929 = vpop.f32.mrf.mxu0
  %v7930 = vadd.f32 %v7542, %v7929
  %v7931 = vpop.f32.mrf.mxu0
  %7932 = vmatprep.mubr.bf16.mxu0 0
  %7933 = vmatmul.mubr.bf16.gmra.mxu0 %v7650
  %v7934 = vpop.f32.mrf.mxu0
  %v7935 = vadd.f32 %v7542, %v7934
  %v7936 = vpop.f32.mrf.mxu0
  %v7937 = vpop.f32.mrf.mxu0
  %v7938 = vadd.f32 %v7542, %v7937
  %v7939 = vpop.f32.mrf.mxu0
  %7940 = vdwg.mxu0
  %v7941 = vmax.f32 %v7687, 0.0
  %v7942 = vmax.f32 %v7690, 0.0
  %v7943 = vmax.f32 %v7695, 0.0
  %v7944 = vmax.f32 %v7698, 0.0
  %v7945 = vmax.f32 %v7703, 0.0
  %v7946 = vmax.f32 %v7706, 0.0
  %v7947 = vmax.f32 %v7711, 0.0
  %v7948 = vmax.f32 %v7714, 0.0
  %v7949 = vmax.f32 %v7719, 0.0
  %v7950 = vmax.f32 %v7722, 0.0
  %v7951 = vmax.f32 %v7727, 0.0
  %v7952 = vmax.f32 %v7730, 0.0
  %v7953 = vmax.f32 %v7735, 0.0
  %v7954 = vmax.f32 %v7738, 0.0
  %v7955 = vmax.f32 %v7743, 0.0
  %v7956 = vmax.f32 %v7746, 0.0
  %v7957 = vmax.f32 %v7751, 0.0
  %v7958 = vmax.f32 %v7754, 0.0
  %v7959 = vmax.f32 %v7759, 0.0
  %v7960 = vmax.f32 %v7762, 0.0
  %v7961 = vmax.f32 %v7767, 0.0
  %v7962 = vmax.f32 %v7770, 0.0
  %v7963 = vmax.f32 %v7775, 0.0
  %v7964 = vmax.f32 %v7778, 0.0
  %v7965 = vmax.f32 %v7783, 0.0
  %v7966 = vmax.f32 %v7786, 0.0
  %v7967 = vmax.f32 %v7791, 0.0
  %v7968 = vmax.f32 %v7794, 0.0
  %v7969 = vmax.f32 %v7799, 0.0
  %v7970 = vmax.f32 %v7802, 0.0
  %v7971 = vmax.f32 %v7807, 0.0
  %v7972 = vmax.f32 %v7810, 0.0
  %v7973 = vmax.f32 %v7815, 0.0
  %v7974 = vmax.f32 %v7818, 0.0
  %v7975 = vmax.f32 %v7823, 0.0
  %v7976 = vmax.f32 %v7826, 0.0
  %v7977 = vmax.f32 %v7831, 0.0
  %v7978 = vmax.f32 %v7834, 0.0
  %v7979 = vmax.f32 %v7839, 0.0
  %v7980 = vmax.f32 %v7842, 0.0
  %v7981 = vmax.f32 %v7847, 0.0
  %v7982 = vmax.f32 %v7850, 0.0
  %v7983 = vmax.f32 %v7855, 0.0
  %v7984 = vmax.f32 %v7858, 0.0
  %v7985 = vmax.f32 %v7863, 0.0
  %v7986 = vmax.f32 %v7866, 0.0
  %v7987 = vmax.f32 %v7871, 0.0
  %v7988 = vmax.f32 %v7874, 0.0
  %v7989 = vmax.f32 %v7879, 0.0
  %v7990 = vmax.f32 %v7882, 0.0
  %v7991 = vmax.f32 %v7887, 0.0
  %v7992 = vmax.f32 %v7890, 0.0
  %v7993 = vmax.f32 %v7895, 0.0
  %v7994 = vmax.f32 %v7898, 0.0
  %v7995 = vmax.f32 %v7903, 0.0
  %v7996 = vmax.f32 %v7906, 0.0
  %v7997 = vmax.f32 %v7911, 0.0
  %v7998 = vmax.f32 %v7914, 0.0
  %v7999 = vmax.f32 %v7919, 0.0
  %v8000 = vmax.f32 %v7922, 0.0
  %v8001 = vmax.f32 %v7927, 0.0
  %v8002 = vmax.f32 %v7930, 0.0
  %v8003 = vmax.f32 %v7935, 0.0
  %v8004 = vmax.f32 %v7938, 0.0
  %v8005 = vld [vmem:[%s65] sm:$0xf]
  %v8006 = vld [vmem:[%s65 + $0x4] sm:$0xf]
  %v8007 = vld [vmem:[%s65 + $0x8] sm:$0xf]
  %v8008 = vld [vmem:[%s65 + $0xc] sm:$0xf]
  %v8009 = vpack.c.bf16 %v7942, %v7941
  %v8010 = vpack.c.bf16 %v7944, %v7943
  %v8011 = vpack.c.bf16 %v7946, %v7945
  %v8012 = vpack.c.bf16 %v7948, %v7947
  %v8013 = vpack.c.bf16 %v7950, %v7949
  %v8014 = vpack.c.bf16 %v7952, %v7951
  %v8015 = vpack.c.bf16 %v7954, %v7953
  %v8016 = vpack.c.bf16 %v7956, %v7955
  %v8017 = vpack.c.bf16 %v7958, %v7957
  %v8018 = vpack.c.bf16 %v7960, %v7959
  %v8019 = vpack.c.bf16 %v7962, %v7961
  %v8020 = vpack.c.bf16 %v7964, %v7963
  %v8021 = vpack.c.bf16 %v7966, %v7965
  %v8022 = vpack.c.bf16 %v7968, %v7967
  %v8023 = vpack.c.bf16 %v7970, %v7969
  %v8024 = vpack.c.bf16 %v7972, %v7971
  %v8025 = vpack.c.bf16 %v7974, %v7973
  %v8026 = vpack.c.bf16 %v7976, %v7975
  %v8027 = vpack.c.bf16 %v7978, %v7977
  %v8028 = vpack.c.bf16 %v7980, %v7979
  %v8029 = vpack.c.bf16 %v7982, %v7981
  %v8030 = vpack.c.bf16 %v7984, %v7983
  %v8031 = vpack.c.bf16 %v7986, %v7985
  %v8032 = vpack.c.bf16 %v7988, %v7987
  %v8033 = vpack.c.bf16 %v7990, %v7989
  %v8034 = vpack.c.bf16 %v7992, %v7991
  %v8035 = vpack.c.bf16 %v7994, %v7993
  %v8036 = vpack.c.bf16 %v7996, %v7995
  %v8037 = vpack.c.bf16 %v7998, %v7997
  %v8038 = vpack.c.bf16 %v8000, %v7999
  %v8039 = vpack.c.bf16 %v8002, %v8001
  %v8040 = vpack.c.bf16 %v8004, %v8003
  %v8041 = vld [vmem:[%s67] sm:$0x1]
  %v8043 = vlaneseq
  %v8044 = vshrl.u32 %v8043, 7
  %v8045 = vsub.s32 0, %v8044
  %v8046 = vrot.slane %v8041, %v8045
  %v8052 = vunpack.c.l.b16 %v8005
  %v8053 = vunpack.c.l.b16 %v8006
  %v8054 = vunpack.c.l.b16 %v8007
  %v8055 = vunpack.c.l.b16 %v8008
  %v8056 = vpack.c.b16 %v8053, %v8052
  %v8057 = vpack.c.b16 %v8055, %v8054
  %v8061 = vsel %vm1582, %v8009, 0
  %v8064 = vsel %vm1582, %v8010, 0
  %v8067 = vsel %vm1582, %v8011, 0
  %v8070 = vsel %vm1582, %v8012, 0
  %v8073 = vsel %vm1582, %v8013, 0
  %v8076 = vsel %vm1582, %v8014, 0
  %v8079 = vsel %vm1582, %v8015, 0
  %v8082 = vsel %vm1582, %v8016, 0
  %v8085 = vsel %vm1582, %v8017, 0
  %v8088 = vsel %vm1582, %v8018, 0
  %v8091 = vsel %vm1582, %v8019, 0
  %v8094 = vsel %vm1582, %v8020, 0
  %v8097 = vsel %vm1582, %v8021, 0
  %v8100 = vsel %vm1582, %v8022, 0
  %v8103 = vsel %vm1582, %v8023, 0
  %v8106 = vsel %vm1582, %v8024, 0
  %v8109 = vsel %vm1582, %v8025, 0
  %v8112 = vsel %vm1582, %v8026, 0
  %v8115 = vsel %vm1582, %v8027, 0
  %v8118 = vsel %vm1582, %v8028, 0
  %v8121 = vsel %vm1582, %v8029, 0
  %v8124 = vsel %vm1582, %v8030, 0
  %v8127 = vsel %vm1582, %v8031, 0
  %v8130 = vsel %vm1582, %v8032, 0
  %v8133 = vsel %vm1582, %v8033, 0
  %v8136 = vsel %vm1582, %v8034, 0
  %v8139 = vsel %vm1582, %v8035, 0
  %v8142 = vsel %vm1582, %v8036, 0
  %v8145 = vsel %vm1582, %v8037, 0
  %v8148 = vsel %vm1582, %v8038, 0
  %v8151 = vsel %vm1582, %v8039, 0
  %v8154 = vsel %vm1582, %v8040, 0
  %8156 = vmatprep.subr.bf16.mxu0 0
  %8157 = vmatpush1.bf16.msra.mxu0 0
  %8158 = vmatprep.subr.bf16.mxu0 0
  %8159 = vmatpush1.bf16.msra.mxu0 0
  %8160 = vmatprep.subr.bf16.mxu0 0
  %8161 = vmatpush1.bf16.msra.mxu0 0
  %8162 = vmatprep.subr.bf16.mxu0 0
  %8163 = vmatpush1.bf16.msra.mxu0 0
  %8164 = vmatprep.subr.bf16.mxu0 0
  %8165 = vmatpush1.bf16.msra.mxu0 0
  %8166 = vmatprep.subr.bf16.mxu0 0
  %8167 = vmatpush1.bf16.msra.mxu0 0
  %8168 = vmatprep.subr.bf16.mxu0 0
  %8169 = vmatpush1.bf16.msra.mxu0 %v8057
  %8170 = vmatprep.subr.bf16.mxu0 0
  %8171 = vmatpush1.bf16.msra.mxu0 %v8056
  %8172 = vmatprep.subr.bf16.mxu0 0
  %8173 = vmatpush2.bf16.msra.mxu0 0
  %8174 = vmatprep.subr.bf16.mxu0 0
  %8175 = vmatpush2.bf16.msra.mxu0 0
  %8176 = vmatprep.subr.bf16.mxu0 0
  %8177 = vmatpush2.bf16.msra.mxu0 0
  %8178 = vmatprep.subr.bf16.mxu0 0
  %8179 = vmatpush2.bf16.msra.mxu0 0
  %8180 = vmatprep.subr.bf16.mxu0 0
  %8181 = vmatpush2.bf16.msra.mxu0 0
  %8182 = vmatprep.subr.bf16.mxu0 0
  %8183 = vmatpush2.bf16.msra.mxu0 0
  %8184 = vmatprep.subr.bf16.mxu0 0
  %8185 = vmatpush2.bf16.msra.mxu0 0
  %8186 = vmatprep.subr.bf16.mxu0 0
  %8187 = vmatpush2.bf16.msra.mxu0 0
  %8188 = vmatprep.mubr.bf16.mxu0 0
  %8189 = vmatmul.mubr.bf16.gmra.mxu0 %v8061
  %v8190 = vpop.f32.mrf.mxu0
  %v8191 = vadd.f32 %v8046, %v8190
  %v8192 = vpop.f32.mrf.mxu0
  %v8193 = vpop.f32.mrf.mxu0
  %v8194 = vadd.f32 %v8046, %v8193
  %v8195 = vpop.f32.mrf.mxu0
  %8196 = vmatprep.mubr.bf16.mxu0 0
  %8197 = vmatmul.mubr.bf16.gmra.mxu0 %v8064
  %v8198 = vpop.f32.mrf.mxu0
  %v8199 = vadd.f32 %v8046, %v8198
  %v8200 = vpop.f32.mrf.mxu0
  %v8201 = vpop.f32.mrf.mxu0
  %v8202 = vadd.f32 %v8046, %v8201
  %v8203 = vpop.f32.mrf.mxu0
  %8204 = vmatprep.mubr.bf16.mxu0 0
  %8205 = vmatmul.mubr.bf16.gmra.mxu0 %v8067
  %v8206 = vpop.f32.mrf.mxu0
  %v8207 = vadd.f32 %v8046, %v8206
  %v8208 = vpop.f32.mrf.mxu0
  %v8209 = vpop.f32.mrf.mxu0
  %v8210 = vadd.f32 %v8046, %v8209
  %v8211 = vpop.f32.mrf.mxu0
  %8212 = vmatprep.mubr.bf16.mxu0 0
  %8213 = vmatmul.mubr.bf16.gmra.mxu0 %v8070
  %v8214 = vpop.f32.mrf.mxu0
  %v8215 = vadd.f32 %v8046, %v8214
  %v8216 = vpop.f32.mrf.mxu0
  %v8217 = vpop.f32.mrf.mxu0
  %v8218 = vadd.f32 %v8046, %v8217
  %v8219 = vpop.f32.mrf.mxu0
  %8220 = vmatprep.mubr.bf16.mxu0 0
  %8221 = vmatmul.mubr.bf16.gmra.mxu0 %v8073
  %v8222 = vpop.f32.mrf.mxu0
  %v8223 = vadd.f32 %v8046, %v8222
  %v8224 = vpop.f32.mrf.mxu0
  %v8225 = vpop.f32.mrf.mxu0
  %v8226 = vadd.f32 %v8046, %v8225
  %v8227 = vpop.f32.mrf.mxu0
  %8228 = vmatprep.mubr.bf16.mxu0 0
  %8229 = vmatmul.mubr.bf16.gmra.mxu0 %v8076
  %v8230 = vpop.f32.mrf.mxu0
  %v8231 = vadd.f32 %v8046, %v8230
  %v8232 = vpop.f32.mrf.mxu0
  %v8233 = vpop.f32.mrf.mxu0
  %v8234 = vadd.f32 %v8046, %v8233
  %v8235 = vpop.f32.mrf.mxu0
  %8236 = vmatprep.mubr.bf16.mxu0 0
  %8237 = vmatmul.mubr.bf16.gmra.mxu0 %v8079
  %v8238 = vpop.f32.mrf.mxu0
  %v8239 = vadd.f32 %v8046, %v8238
  %v8240 = vpop.f32.mrf.mxu0
  %v8241 = vpop.f32.mrf.mxu0
  %v8242 = vadd.f32 %v8046, %v8241
  %v8243 = vpop.f32.mrf.mxu0
  %8244 = vmatprep.mubr.bf16.mxu0 0
  %8245 = vmatmul.mubr.bf16.gmra.mxu0 %v8082
  %v8246 = vpop.f32.mrf.mxu0
  %v8247 = vadd.f32 %v8046, %v8246
  %v8248 = vpop.f32.mrf.mxu0
  %v8249 = vpop.f32.mrf.mxu0
  %v8250 = vadd.f32 %v8046, %v8249
  %v8251 = vpop.f32.mrf.mxu0
  %8252 = vmatprep.mubr.bf16.mxu0 0
  %8253 = vmatmul.mubr.bf16.gmra.mxu0 %v8085
  %v8254 = vpop.f32.mrf.mxu0
  %v8255 = vadd.f32 %v8046, %v8254
  %v8256 = vpop.f32.mrf.mxu0
  %v8257 = vpop.f32.mrf.mxu0
  %v8258 = vadd.f32 %v8046, %v8257
  %v8259 = vpop.f32.mrf.mxu0
  %8260 = vmatprep.mubr.bf16.mxu0 0
  %8261 = vmatmul.mubr.bf16.gmra.mxu0 %v8088
  %v8262 = vpop.f32.mrf.mxu0
  %v8263 = vadd.f32 %v8046, %v8262
  %v8264 = vpop.f32.mrf.mxu0
  %v8265 = vpop.f32.mrf.mxu0
  %v8266 = vadd.f32 %v8046, %v8265
  %v8267 = vpop.f32.mrf.mxu0
  %8268 = vmatprep.mubr.bf16.mxu0 0
  %8269 = vmatmul.mubr.bf16.gmra.mxu0 %v8091
  %v8270 = vpop.f32.mrf.mxu0
  %v8271 = vadd.f32 %v8046, %v8270
  %v8272 = vpop.f32.mrf.mxu0
  %v8273 = vpop.f32.mrf.mxu0
  %v8274 = vadd.f32 %v8046, %v8273
  %v8275 = vpop.f32.mrf.mxu0
  %8276 = vmatprep.mubr.bf16.mxu0 0
  %8277 = vmatmul.mubr.bf16.gmra.mxu0 %v8094
  %v8278 = vpop.f32.mrf.mxu0
  %v8279 = vadd.f32 %v8046, %v8278
  %v8280 = vpop.f32.mrf.mxu0
  %v8281 = vpop.f32.mrf.mxu0
  %v8282 = vadd.f32 %v8046, %v8281
  %v8283 = vpop.f32.mrf.mxu0
  %8284 = vmatprep.mubr.bf16.mxu0 0
  %8285 = vmatmul.mubr.bf16.gmra.mxu0 %v8097
  %v8286 = vpop.f32.mrf.mxu0
  %v8287 = vadd.f32 %v8046, %v8286
  %v8288 = vpop.f32.mrf.mxu0
  %v8289 = vpop.f32.mrf.mxu0
  %v8290 = vadd.f32 %v8046, %v8289
  %v8291 = vpop.f32.mrf.mxu0
  %8292 = vmatprep.mubr.bf16.mxu0 0
  %8293 = vmatmul.mubr.bf16.gmra.mxu0 %v8100
  %v8294 = vpop.f32.mrf.mxu0
  %v8295 = vadd.f32 %v8046, %v8294
  %v8296 = vpop.f32.mrf.mxu0
  %v8297 = vpop.f32.mrf.mxu0
  %v8298 = vadd.f32 %v8046, %v8297
  %v8299 = vpop.f32.mrf.mxu0
  %8300 = vmatprep.mubr.bf16.mxu0 0
  %8301 = vmatmul.mubr.bf16.gmra.mxu0 %v8103
  %v8302 = vpop.f32.mrf.mxu0
  %v8303 = vadd.f32 %v8046, %v8302
  %v8304 = vpop.f32.mrf.mxu0
  %v8305 = vpop.f32.mrf.mxu0
  %v8306 = vadd.f32 %v8046, %v8305
  %v8307 = vpop.f32.mrf.mxu0
  %8308 = vmatprep.mubr.bf16.mxu0 0
  %8309 = vmatmul.mubr.bf16.gmra.mxu0 %v8106
  %v8310 = vpop.f32.mrf.mxu0
  %v8311 = vadd.f32 %v8046, %v8310
  %v8312 = vpop.f32.mrf.mxu0
  %v8313 = vpop.f32.mrf.mxu0
  %v8314 = vadd.f32 %v8046, %v8313
  %v8315 = vpop.f32.mrf.mxu0
  %8316 = vmatprep.mubr.bf16.mxu0 0
  %8317 = vmatmul.mubr.bf16.gmra.mxu0 %v8109
  %v8318 = vpop.f32.mrf.mxu0
  %v8319 = vadd.f32 %v8046, %v8318
  %v8320 = vpop.f32.mrf.mxu0
  %v8321 = vpop.f32.mrf.mxu0
  %v8322 = vadd.f32 %v8046, %v8321
  %v8323 = vpop.f32.mrf.mxu0
  %8324 = vmatprep.mubr.bf16.mxu0 0
  %8325 = vmatmul.mubr.bf16.gmra.mxu0 %v8112
  %v8326 = vpop.f32.mrf.mxu0
  %v8327 = vadd.f32 %v8046, %v8326
  %v8328 = vpop.f32.mrf.mxu0
  %v8329 = vpop.f32.mrf.mxu0
  %v8330 = vadd.f32 %v8046, %v8329
  %v8331 = vpop.f32.mrf.mxu0
  %8332 = vmatprep.mubr.bf16.mxu0 0
  %8333 = vmatmul.mubr.bf16.gmra.mxu0 %v8115
  %v8334 = vpop.f32.mrf.mxu0
  %v8335 = vadd.f32 %v8046, %v8334
  %v8336 = vpop.f32.mrf.mxu0
  %v8337 = vpop.f32.mrf.mxu0
  %v8338 = vadd.f32 %v8046, %v8337
  %v8339 = vpop.f32.mrf.mxu0
  %8340 = vmatprep.mubr.bf16.mxu0 0
  %8341 = vmatmul.mubr.bf16.gmra.mxu0 %v8118
  %v8342 = vpop.f32.mrf.mxu0
  %v8343 = vadd.f32 %v8046, %v8342
  %v8344 = vpop.f32.mrf.mxu0
  %v8345 = vpop.f32.mrf.mxu0
  %v8346 = vadd.f32 %v8046, %v8345
  %v8347 = vpop.f32.mrf.mxu0
  %8348 = vmatprep.mubr.bf16.mxu0 0
  %8349 = vmatmul.mubr.bf16.gmra.mxu0 %v8121
  %v8350 = vpop.f32.mrf.mxu0
  %v8351 = vadd.f32 %v8046, %v8350
  %v8352 = vpop.f32.mrf.mxu0
  %v8353 = vpop.f32.mrf.mxu0
  %v8354 = vadd.f32 %v8046, %v8353
  %v8355 = vpop.f32.mrf.mxu0
  %8356 = vmatprep.mubr.bf16.mxu0 0
  %8357 = vmatmul.mubr.bf16.gmra.mxu0 %v8124
  %v8358 = vpop.f32.mrf.mxu0
  %v8359 = vadd.f32 %v8046, %v8358
  %v8360 = vpop.f32.mrf.mxu0
  %v8361 = vpop.f32.mrf.mxu0
  %v8362 = vadd.f32 %v8046, %v8361
  %v8363 = vpop.f32.mrf.mxu0
  %8364 = vmatprep.mubr.bf16.mxu0 0
  %8365 = vmatmul.mubr.bf16.gmra.mxu0 %v8127
  %v8366 = vpop.f32.mrf.mxu0
  %v8367 = vadd.f32 %v8046, %v8366
  %v8368 = vpop.f32.mrf.mxu0
  %v8369 = vpop.f32.mrf.mxu0
  %v8370 = vadd.f32 %v8046, %v8369
  %v8371 = vpop.f32.mrf.mxu0
  %8372 = vmatprep.mubr.bf16.mxu0 0
  %8373 = vmatmul.mubr.bf16.gmra.mxu0 %v8130
  %v8374 = vpop.f32.mrf.mxu0
  %v8375 = vadd.f32 %v8046, %v8374
  %v8376 = vpop.f32.mrf.mxu0
  %v8377 = vpop.f32.mrf.mxu0
  %v8378 = vadd.f32 %v8046, %v8377
  %v8379 = vpop.f32.mrf.mxu0
  %8380 = vmatprep.mubr.bf16.mxu0 0
  %8381 = vmatmul.mubr.bf16.gmra.mxu0 %v8133
  %v8382 = vpop.f32.mrf.mxu0
  %v8383 = vadd.f32 %v8046, %v8382
  %v8384 = vpop.f32.mrf.mxu0
  %v8385 = vpop.f32.mrf.mxu0
  %v8386 = vadd.f32 %v8046, %v8385
  %v8387 = vpop.f32.mrf.mxu0
  %8388 = vmatprep.mubr.bf16.mxu0 0
  %8389 = vmatmul.mubr.bf16.gmra.mxu0 %v8136
  %v8390 = vpop.f32.mrf.mxu0
  %v8391 = vadd.f32 %v8046, %v8390
  %v8392 = vpop.f32.mrf.mxu0
  %v8393 = vpop.f32.mrf.mxu0
  %v8394 = vadd.f32 %v8046, %v8393
  %v8395 = vpop.f32.mrf.mxu0
  %8396 = vmatprep.mubr.bf16.mxu0 0
  %8397 = vmatmul.mubr.bf16.gmra.mxu0 %v8139
  %v8398 = vpop.f32.mrf.mxu0
  %v8399 = vadd.f32 %v8046, %v8398
  %v8400 = vpop.f32.mrf.mxu0
  %v8401 = vpop.f32.mrf.mxu0
  %v8402 = vadd.f32 %v8046, %v8401
  %v8403 = vpop.f32.mrf.mxu0
  %8404 = vmatprep.mubr.bf16.mxu0 0
  %8405 = vmatmul.mubr.bf16.gmra.mxu0 %v8142
  %v8406 = vpop.f32.mrf.mxu0
  %v8407 = vadd.f32 %v8046, %v8406
  %v8408 = vpop.f32.mrf.mxu0
  %v8409 = vpop.f32.mrf.mxu0
  %v8410 = vadd.f32 %v8046, %v8409
  %v8411 = vpop.f32.mrf.mxu0
  %8412 = vmatprep.mubr.bf16.mxu0 0
  %8413 = vmatmul.mubr.bf16.gmra.mxu0 %v8145
  %v8414 = vpop.f32.mrf.mxu0
  %v8415 = vadd.f32 %v8046, %v8414
  %v8416 = vpop.f32.mrf.mxu0
  %v8417 = vpop.f32.mrf.mxu0
  %v8418 = vadd.f32 %v8046, %v8417
  %v8419 = vpop.f32.mrf.mxu0
  %8420 = vmatprep.mubr.bf16.mxu0 0
  %8421 = vmatmul.mubr.bf16.gmra.mxu0 %v8148
  %v8422 = vpop.f32.mrf.mxu0
  %v8423 = vadd.f32 %v8046, %v8422
  %v8424 = vpop.f32.mrf.mxu0
  %v8425 = vpop.f32.mrf.mxu0
  %v8426 = vadd.f32 %v8046, %v8425
  %v8427 = vpop.f32.mrf.mxu0
  %8428 = vmatprep.mubr.bf16.mxu0 0
  %8429 = vmatmul.mubr.bf16.gmra.mxu0 %v8151
  %v8430 = vpop.f32.mrf.mxu0
  %v8431 = vadd.f32 %v8046, %v8430
  %v8432 = vpop.f32.mrf.mxu0
  %v8433 = vpop.f32.mrf.mxu0
  %v8434 = vadd.f32 %v8046, %v8433
  %v8435 = vpop.f32.mrf.mxu0
  %8436 = vmatprep.mubr.bf16.mxu0 0
  %8437 = vmatmul.mubr.bf16.gmra.mxu0 %v8154
  %v8438 = vpop.f32.mrf.mxu0
  %v8439 = vadd.f32 %v8046, %v8438
  %v8440 = vpop.f32.mrf.mxu0
  %v8441 = vpop.f32.mrf.mxu0
  %v8442 = vadd.f32 %v8046, %v8441
  %v8443 = vpop.f32.mrf.mxu0
  %8444 = vdwg.mxu0
  %v8445 = vpack.c.bf16 %v8194, %v8191
  %v8446 = vpack.c.bf16 %v8202, %v8199
  %v8447 = vpack.c.bf16 %v8210, %v8207
  %v8448 = vpack.c.bf16 %v8218, %v8215
  %v8449 = vpack.c.bf16 %v8226, %v8223
  %v8450 = vpack.c.bf16 %v8234, %v8231
  %v8451 = vpack.c.bf16 %v8242, %v8239
  %v8452 = vpack.c.bf16 %v8250, %v8247
  %v8453 = vpack.c.bf16 %v8258, %v8255
  %v8454 = vpack.c.bf16 %v8266, %v8263
  %v8455 = vpack.c.bf16 %v8274, %v8271
  %v8456 = vpack.c.bf16 %v8282, %v8279
  %v8457 = vpack.c.bf16 %v8290, %v8287
  %v8458 = vpack.c.bf16 %v8298, %v8295
  %v8459 = vpack.c.bf16 %v8306, %v8303
  %v8460 = vpack.c.bf16 %v8314, %v8311
  %v8461 = vpack.c.bf16 %v8322, %v8319
  %v8462 = vpack.c.bf16 %v8330, %v8327
  %v8463 = vpack.c.bf16 %v8338, %v8335
  %v8464 = vpack.c.bf16 %v8346, %v8343
  %v8465 = vpack.c.bf16 %v8354, %v8351
  %v8466 = vpack.c.bf16 %v8362, %v8359
  %v8467 = vpack.c.bf16 %v8370, %v8367
  %v8468 = vpack.c.bf16 %v8378, %v8375
  %v8469 = vpack.c.bf16 %v8386, %v8383
  %v8470 = vpack.c.bf16 %v8394, %v8391
  %v8471 = vpack.c.bf16 %v8402, %v8399
  %v8472 = vpack.c.bf16 %v8410, %v8407
  %v8473 = vpack.c.bf16 %v8418, %v8415
  %v8474 = vpack.c.bf16 %v8426, %v8423
  %v8475 = vpack.c.bf16 %v8434, %v8431
  %v8476 = vpack.c.bf16 %v8442, %v8439
  %8477 = vmatprep.subr.bf16.mxu0 0
  %8478 = vmatpush1.bf16.msra.mxu0 %v8452
  %8479 = vmatprep.subr.bf16.mxu0 0
  %8480 = vmatpush1.bf16.msra.mxu0 %v8451
  %8481 = vmatprep.subr.bf16.mxu0 0
  %8482 = vmatpush1.bf16.msra.mxu0 %v8450
  %8483 = vmatprep.subr.bf16.mxu0 0
  %8484 = vmatpush1.bf16.msra.mxu0 %v8449
  %8485 = vmatprep.subr.bf16.mxu0 0
  %8486 = vmatpush1.bf16.msra.mxu0 %v8448
  %8487 = vmatprep.subr.bf16.mxu0 0
  %8488 = vmatpush1.bf16.msra.mxu0 %v8447
  %8489 = vmatprep.subr.bf16.mxu0 0
  %8490 = vmatpush1.bf16.msra.mxu0 %v8446
  %8491 = vmatprep.subr.bf16.mxu0 0
  %8492 = vmatpush1.bf16.msra.mxu0 %v8445
  %8493 = vmatprep.subr.bf16.mxu0 0
  %8494 = vmatpush2.bf16.msra.mxu0 %v8460
  %8495 = vmatprep.subr.bf16.mxu0 0
  %8496 = vmatpush2.bf16.msra.mxu0 %v8459
  %8497 = vmatprep.subr.bf16.mxu0 0
  %8498 = vmatpush2.bf16.msra.mxu0 %v8458
  %8499 = vmatprep.subr.bf16.mxu0 0
  %8500 = vmatpush2.bf16.msra.mxu0 %v8457
  %8501 = vmatprep.subr.bf16.mxu0 0
  %8502 = vmatpush2.bf16.msra.mxu0 %v8456
  %8503 = vmatprep.subr.bf16.mxu0 0
  %8504 = vmatpush2.bf16.msra.mxu0 %v8455
  %8505 = vmatprep.subr.bf16.mxu0 0
  %8506 = vmatpush2.bf16.msra.mxu0 %v8454
  %8507 = vmatprep.subr.bf16.mxu0 0
  %8508 = vmatpush2.bf16.msra.mxu0 %v8453
  %8509 = vmatprep.mubr.bf16.mxu0 %v1346
  %8510 = vmatmul.mubr.bf16.gmra.mxu0 %v1345
  %v8511 = vpop.f32.mrf.mxu0
  %v8512 = vadd.f32 0.0, %v8511
  %v8513 = vpop.f32.mrf.mxu0
  %v8514 = vpop.f32.mrf.mxu0
  %v8515 = vadd.f32 0.0, %v8514
  %v8516 = vpop.f32.mrf.mxu0
  %8517 = vmatprep.mubr.bf16.mxu0 %v1350
  %8518 = vmatmul.mubr.bf16.gmra.mxu0 %v1349
  %v8519 = vpop.f32.mrf.mxu0
  %v8520 = vadd.f32 0.0, %v8519
  %v8521 = vpop.f32.mrf.mxu0
  %v8522 = vpop.f32.mrf.mxu0
  %v8523 = vadd.f32 0.0, %v8522
  %v8524 = vpop.f32.mrf.mxu0
  %8525 = vmatprep.mubr.bf16.mxu0 %v1354
  %8526 = vmatmul.mubr.bf16.gmra.mxu0 %v1353
  %v8527 = vpop.f32.mrf.mxu0
  %v8528 = vadd.f32 0.0, %v8527
  %v8529 = vpop.f32.mrf.mxu0
  %v8530 = vpop.f32.mrf.mxu0
  %v8531 = vadd.f32 0.0, %v8530
  %v8532 = vpop.f32.mrf.mxu0
  %8533 = vmatprep.mubr.bf16.mxu0 %v1358
  %8534 = vmatmul.mubr.bf16.gmra.mxu0 %v1357
  %v8535 = vpop.f32.mrf.mxu0
  %v8536 = vadd.f32 0.0, %v8535
  %v8537 = vpop.f32.mrf.mxu0
  %v8538 = vpop.f32.mrf.mxu0
  %v8539 = vadd.f32 0.0, %v8538
  %v8540 = vpop.f32.mrf.mxu0
  %8541 = vmatprep.mubr.bf16.mxu0 %v1362
  %8542 = vmatmul.mubr.bf16.gmra.mxu0 %v1361
  %v8543 = vpop.f32.mrf.mxu0
  %v8544 = vadd.f32 0.0, %v8543
  %v8545 = vpop.f32.mrf.mxu0
  %v8546 = vpop.f32.mrf.mxu0
  %v8547 = vadd.f32 0.0, %v8546
  %v8548 = vpop.f32.mrf.mxu0
  %8549 = vmatprep.mubr.bf16.mxu0 %v1366
  %8550 = vmatmul.mubr.bf16.gmra.mxu0 %v1365
  %v8551 = vpop.f32.mrf.mxu0
  %v8552 = vadd.f32 0.0, %v8551
  %v8553 = vpop.f32.mrf.mxu0
  %v8554 = vpop.f32.mrf.mxu0
  %v8555 = vadd.f32 0.0, %v8554
  %v8556 = vpop.f32.mrf.mxu0
  %8557 = vmatprep.mubr.bf16.mxu0 %v1370
  %8558 = vmatmul.mubr.bf16.gmra.mxu0 %v1369
  %v8559 = vpop.f32.mrf.mxu0
  %v8560 = vadd.f32 0.0, %v8559
  %v8561 = vpop.f32.mrf.mxu0
  %v8562 = vpop.f32.mrf.mxu0
  %v8563 = vadd.f32 0.0, %v8562
  %v8564 = vpop.f32.mrf.mxu0
  %8565 = vmatprep.mubr.bf16.mxu0 %v1374
  %8566 = vmatmul.mubr.bf16.gmra.mxu0 %v1373
  %v8567 = vpop.f32.mrf.mxu0
  %v8568 = vadd.f32 0.0, %v8567
  %v8569 = vpop.f32.mrf.mxu0
  %v8570 = vpop.f32.mrf.mxu0
  %v8571 = vadd.f32 0.0, %v8570
  %v8572 = vpop.f32.mrf.mxu0
  %8573 = vdwg.mxu0
  %8574 = vmatprep.subr.bf16.mxu0 0
  %8575 = vmatpush1.bf16.msra.mxu0 %v8468
  %8576 = vmatprep.subr.bf16.mxu0 0
  %8577 = vmatpush1.bf16.msra.mxu0 %v8467
  %8578 = vmatprep.subr.bf16.mxu0 0
  %8579 = vmatpush1.bf16.msra.mxu0 %v8466
  %8580 = vmatprep.subr.bf16.mxu0 0
  %8581 = vmatpush1.bf16.msra.mxu0 %v8465
  %8582 = vmatprep.subr.bf16.mxu0 0
  %8583 = vmatpush1.bf16.msra.mxu0 %v8464
  %8584 = vmatprep.subr.bf16.mxu0 0
  %8585 = vmatpush1.bf16.msra.mxu0 %v8463
  %8586 = vmatprep.subr.bf16.mxu0 0
  %8587 = vmatpush1.bf16.msra.mxu0 %v8462
  %8588 = vmatprep.subr.bf16.mxu0 0
  %8589 = vmatpush1.bf16.msra.mxu0 %v8461
  %8590 = vmatprep.subr.bf16.mxu0 0
  %8591 = vmatpush2.bf16.msra.mxu0 %v8476
  %8592 = vmatprep.subr.bf16.mxu0 0
  %8593 = vmatpush2.bf16.msra.mxu0 %v8475
  %8594 = vmatprep.subr.bf16.mxu0 0
  %8595 = vmatpush2.bf16.msra.mxu0 %v8474
  %8596 = vmatprep.subr.bf16.mxu0 0
  %8597 = vmatpush2.bf16.msra.mxu0 %v8473
  %8598 = vmatprep.subr.bf16.mxu0 0
  %8599 = vmatpush2.bf16.msra.mxu0 %v8472
  %8600 = vmatprep.subr.bf16.mxu0 0
  %8601 = vmatpush2.bf16.msra.mxu0 %v8471
  %8602 = vmatprep.subr.bf16.mxu0 0
  %8603 = vmatpush2.bf16.msra.mxu0 %v8470
  %8604 = vmatprep.subr.bf16.mxu0 0
  %8605 = vmatpush2.bf16.msra.mxu0 %v8469
  %8606 = vmatprep.mubr.bf16.mxu0 %v1348
  %8607 = vmatmul.mubr.bf16.gmra.mxu0 %v1347
  %v8608 = vpop.f32.mrf.mxu0
  %v8609 = vadd.f32 %v8512, %v8608
  %v8610 = vpop.f32.mrf.mxu0
  %v8611 = vpop.f32.mrf.mxu0
  %v8612 = vadd.f32 %v8515, %v8611
  %v8613 = vpop.f32.mrf.mxu0
  %8614 = vmatprep.mubr.bf16.mxu0 %v1352
  %8615 = vmatmul.mubr.bf16.gmra.mxu0 %v1351
  %v8616 = vpop.f32.mrf.mxu0
  %v8617 = vadd.f32 %v8520, %v8616
  %v8618 = vpop.f32.mrf.mxu0
  %v8619 = vpop.f32.mrf.mxu0
  %v8620 = vadd.f32 %v8523, %v8619
  %v8621 = vpop.f32.mrf.mxu0
  %8622 = vmatprep.mubr.bf16.mxu0 %v1356
  %8623 = vmatmul.mubr.bf16.gmra.mxu0 %v1355
  %v8624 = vpop.f32.mrf.mxu0
  %v8625 = vadd.f32 %v8528, %v8624
  %v8626 = vpop.f32.mrf.mxu0
  %v8627 = vpop.f32.mrf.mxu0
  %v8628 = vadd.f32 %v8531, %v8627
  %v8629 = vpop.f32.mrf.mxu0
  %8630 = vmatprep.mubr.bf16.mxu0 %v1360
  %8631 = vmatmul.mubr.bf16.gmra.mxu0 %v1359
  %v8632 = vpop.f32.mrf.mxu0
  %v8633 = vadd.f32 %v8536, %v8632
  %v8634 = vpop.f32.mrf.mxu0
  %v8635 = vpop.f32.mrf.mxu0
  %v8636 = vadd.f32 %v8539, %v8635
  %v8637 = vpop.f32.mrf.mxu0
  %8638 = vmatprep.mubr.bf16.mxu0 %v1364
  %8639 = vmatmul.mubr.bf16.gmra.mxu0 %v1363
  %v8640 = vpop.f32.mrf.mxu0
  %v8641 = vadd.f32 %v8544, %v8640
  %v8642 = vpop.f32.mrf.mxu0
  %v8643 = vpop.f32.mrf.mxu0
  %v8644 = vadd.f32 %v8547, %v8643
  %v8645 = vpop.f32.mrf.mxu0
  %8646 = vmatprep.mubr.bf16.mxu0 %v1368
  %8647 = vmatmul.mubr.bf16.gmra.mxu0 %v1367
  %v8648 = vpop.f32.mrf.mxu0
  %v8649 = vadd.f32 %v8552, %v8648
  %v8650 = vpop.f32.mrf.mxu0
  %v8651 = vpop.f32.mrf.mxu0
  %v8652 = vadd.f32 %v8555, %v8651
  %v8653 = vpop.f32.mrf.mxu0
  %8654 = vmatprep.mubr.bf16.mxu0 %v1372
  %8655 = vmatmul.mubr.bf16.gmra.mxu0 %v1371
  %v8656 = vpop.f32.mrf.mxu0
  %v8657 = vadd.f32 %v8560, %v8656
  %v8658 = vpop.f32.mrf.mxu0
  %v8659 = vpop.f32.mrf.mxu0
  %v8660 = vadd.f32 %v8563, %v8659
  %v8661 = vpop.f32.mrf.mxu0
  %8662 = vmatprep.mubr.bf16.mxu0 %v1376
  %8663 = vmatmul.mubr.bf16.gmra.mxu0 %v1375
  %v8664 = vpop.f32.mrf.mxu0
  %v8665 = vadd.f32 %v8568, %v8664
  %v8666 = vpop.f32.mrf.mxu0
  %v8667 = vpop.f32.mrf.mxu0
  %v8668 = vadd.f32 %v8571, %v8667
  %v8669 = vpop.f32.mrf.mxu0
  %8670 = vdwg.mxu0
  %v8671 = vld [vmem:[%s69] sm:$0xf]
  %v8672 = vld [vmem:[%s69 + $0x4] sm:$0xf]
  %v8673 = vld [vmem:[%s69 + $0x8] sm:$0xf]
  %v8674 = vld [vmem:[%s69 + $0xc] sm:$0xf]
  %v8675 = vld [vmem:[%s69 + $0x10] sm:$0xf]
  %v8676 = vld [vmem:[%s69 + $0x14] sm:$0xf]
  %v8677 = vld [vmem:[%s69 + $0x18] sm:$0xf]
  %v8678 = vld [vmem:[%s69 + $0x1c] sm:$0xf]
  %v8679 = vpack.c.bf16 %v8612, %v8609
  %v8680 = vpack.c.bf16 %v8620, %v8617
  %v8681 = vpack.c.bf16 %v8628, %v8625
  %v8682 = vpack.c.bf16 %v8636, %v8633
  %v8683 = vpack.c.bf16 %v8644, %v8641
  %v8684 = vpack.c.bf16 %v8652, %v8649
  %v8685 = vpack.c.bf16 %v8660, %v8657
  %v8686 = vpack.c.bf16 %v8668, %v8665
  %v8691 = vunpack.c.l.b16 %v8675
  %v8692 = vunpack.c.l.b16 %v8676
  %v8693 = vunpack.c.l.b16 %v8677
  %v8694 = vunpack.c.l.b16 %v8678
  %v8695 = vpack.c.b16 %v8692, %v8691
  %v8696 = vpack.c.b16 %v8694, %v8693
  %v8700 = vsel %vm1582, %v8679, 0
  %v8703 = vsel %vm1582, %v8680, 0
  %v8706 = vsel %vm1582, %v8681, 0
  %v8709 = vsel %vm1582, %v8682, 0
  %v8712 = vsel %vm1582, %v8683, 0
  %v8715 = vsel %vm1582, %v8684, 0
  %v8718 = vsel %vm1582, %v8685, 0
  %v8721 = vsel %vm1582, %v8686, 0
  %8723 = vmatprep.subr.bf16.mxu0 0
  %8724 = vmatpush1.bf16.msra.mxu0 0
  %8725 = vmatprep.subr.bf16.mxu0 0
  %8726 = vmatpush1.bf16.msra.mxu0 0
  %8727 = vmatprep.subr.bf16.mxu0 0
  %8728 = vmatpush1.bf16.msra.mxu0 0
  %8729 = vmatprep.subr.bf16.mxu0 0
  %8730 = vmatpush1.bf16.msra.mxu0 0
  %8731 = vmatprep.subr.bf16.mxu0 0
  %8732 = vmatpush1.bf16.msra.mxu0 0
  %8733 = vmatprep.subr.bf16.mxu0 0
  %8734 = vmatpush1.bf16.msra.mxu0 0
  %8735 = vmatprep.subr.bf16.mxu0 0
  %8736 = vmatpush1.bf16.msra.mxu0 %v8696
  %8737 = vmatprep.subr.bf16.mxu0 0
  %8738 = vmatpush1.bf16.msra.mxu0 %v8695
  %8739 = vmatprep.subr.bf16.mxu0 0
  %8740 = vmatpush2.bf16.msra.mxu0 0
  %8741 = vmatprep.subr.bf16.mxu0 0
  %8742 = vmatpush2.bf16.msra.mxu0 0
  %8743 = vmatprep.subr.bf16.mxu0 0
  %8744 = vmatpush2.bf16.msra.mxu0 0
  %8745 = vmatprep.subr.bf16.mxu0 0
  %8746 = vmatpush2.bf16.msra.mxu0 0
  %8747 = vmatprep.subr.bf16.mxu0 0
  %8748 = vmatpush2.bf16.msra.mxu0 0
  %8749 = vmatprep.subr.bf16.mxu0 0
  %8750 = vmatpush2.bf16.msra.mxu0 0
  %8751 = vmatprep.subr.bf16.mxu0 0
  %8752 = vmatpush2.bf16.msra.mxu0 0
  %8753 = vmatprep.subr.bf16.mxu0 0
  %8754 = vmatpush2.bf16.msra.mxu0 0
  %8755 = vmatprep.mubr.bf16.mxu0 0
  %8756 = vmatmul.mubr.bf16.gmra.mxu0 %v8700
  %v8757 = vpop.f32.mrf.mxu0
  %v8758 = vadd.f32 0.0, %v8757
  %v8759 = vpop.f32.mrf.mxu0
  %v8760 = vpop.f32.mrf.mxu0
  %v8761 = vadd.f32 0.0, %v8760
  %v8762 = vpop.f32.mrf.mxu0
  %8763 = vmatprep.mubr.bf16.mxu0 0
  %8764 = vmatmul.mubr.bf16.gmra.mxu0 %v8703
  %v8765 = vpop.f32.mrf.mxu0
  %v8766 = vadd.f32 0.0, %v8765
  %v8767 = vpop.f32.mrf.mxu0
  %v8768 = vpop.f32.mrf.mxu0
  %v8769 = vadd.f32 0.0, %v8768
  %v8770 = vpop.f32.mrf.mxu0
  %8771 = vmatprep.mubr.bf16.mxu0 0
  %8772 = vmatmul.mubr.bf16.gmra.mxu0 %v8706
  %v8773 = vpop.f32.mrf.mxu0
  %v8774 = vadd.f32 0.0, %v8773
  %v8775 = vpop.f32.mrf.mxu0
  %v8776 = vpop.f32.mrf.mxu0
  %v8777 = vadd.f32 0.0, %v8776
  %v8778 = vpop.f32.mrf.mxu0
  %8779 = vmatprep.mubr.bf16.mxu0 0
  %8780 = vmatmul.mubr.bf16.gmra.mxu0 %v8709
  %v8781 = vpop.f32.mrf.mxu0
  %v8782 = vadd.f32 0.0, %v8781
  %v8783 = vpop.f32.mrf.mxu0
  %v8784 = vpop.f32.mrf.mxu0
  %v8785 = vadd.f32 0.0, %v8784
  %v8786 = vpop.f32.mrf.mxu0
  %8787 = vmatprep.mubr.bf16.mxu0 0
  %8788 = vmatmul.mubr.bf16.gmra.mxu0 %v8712
  %v8789 = vpop.f32.mrf.mxu0
  %v8790 = vadd.f32 0.0, %v8789
  %v8791 = vpop.f32.mrf.mxu0
  %v8792 = vpop.f32.mrf.mxu0
  %v8793 = vadd.f32 0.0, %v8792
  %v8794 = vpop.f32.mrf.mxu0
  %8795 = vmatprep.mubr.bf16.mxu0 0
  %8796 = vmatmul.mubr.bf16.gmra.mxu0 %v8715
  %v8797 = vpop.f32.mrf.mxu0
  %v8798 = vadd.f32 0.0, %v8797
  %v8799 = vpop.f32.mrf.mxu0
  %v8800 = vpop.f32.mrf.mxu0
  %v8801 = vadd.f32 0.0, %v8800
  %v8802 = vpop.f32.mrf.mxu0
  %8803 = vmatprep.mubr.bf16.mxu0 0
  %8804 = vmatmul.mubr.bf16.gmra.mxu0 %v8718
  %v8805 = vpop.f32.mrf.mxu0
  %v8806 = vadd.f32 0.0, %v8805
  %v8807 = vpop.f32.mrf.mxu0
  %v8808 = vpop.f32.mrf.mxu0
  %v8809 = vadd.f32 0.0, %v8808
  %v8810 = vpop.f32.mrf.mxu0
  %8811 = vmatprep.mubr.bf16.mxu0 0
  %8812 = vmatmul.mubr.bf16.gmra.mxu0 %v8721
  %v8813 = vpop.f32.mrf.mxu0
  %v8814 = vadd.f32 0.0, %v8813
  %v8815 = vpop.f32.mrf.mxu0
  %v8816 = vpop.f32.mrf.mxu0
  %v8817 = vadd.f32 0.0, %v8816
  %v8818 = vpop.f32.mrf.mxu0
  %8819 = vdwg.mxu0
  %v8824 = vunpack.c.l.b16 %v8671
  %v8825 = vunpack.c.l.b16 %v8672
  %v8826 = vunpack.c.l.b16 %v8673
  %v8827 = vunpack.c.l.b16 %v8674
  %v8828 = vpack.c.b16 %v8825, %v8824
  %v8829 = vpack.c.b16 %v8827, %v8826
  %8832 = vmatprep.subr.bf16.mxu0 0
  %8833 = vmatpush1.bf16.msra.mxu0 0
  %8834 = vmatprep.subr.bf16.mxu0 0
  %8835 = vmatpush1.bf16.msra.mxu0 0
  %8836 = vmatprep.subr.bf16.mxu0 0
  %8837 = vmatpush1.bf16.msra.mxu0 0
  %8838 = vmatprep.subr.bf16.mxu0 0
  %8839 = vmatpush1.bf16.msra.mxu0 0
  %8840 = vmatprep.subr.bf16.mxu0 0
  %8841 = vmatpush1.bf16.msra.mxu0 0
  %8842 = vmatprep.subr.bf16.mxu0 0
  %8843 = vmatpush1.bf16.msra.mxu0 0
  %8844 = vmatprep.subr.bf16.mxu0 0
  %8845 = vmatpush1.bf16.msra.mxu0 %v8829
  %8846 = vmatprep.subr.bf16.mxu0 0
  %8847 = vmatpush1.bf16.msra.mxu0 %v8828
  %8848 = vmatprep.subr.bf16.mxu0 0
  %8849 = vmatpush2.bf16.msra.mxu0 0
  %8850 = vmatprep.subr.bf16.mxu0 0
  %8851 = vmatpush2.bf16.msra.mxu0 0
  %8852 = vmatprep.subr.bf16.mxu0 0
  %8853 = vmatpush2.bf16.msra.mxu0 0
  %8854 = vmatprep.subr.bf16.mxu0 0
  %8855 = vmatpush2.bf16.msra.mxu0 0
  %8856 = vmatprep.subr.bf16.mxu0 0
  %8857 = vmatpush2.bf16.msra.mxu0 0
  %8858 = vmatprep.subr.bf16.mxu0 0
  %8859 = vmatpush2.bf16.msra.mxu0 0
  %8860 = vmatprep.subr.bf16.mxu0 0
  %8861 = vmatpush2.bf16.msra.mxu0 0
  %8862 = vmatprep.subr.bf16.mxu0 0
  %8863 = vmatpush2.bf16.msra.mxu0 0
  %8864 = vmatprep.mubr.bf16.mxu0 0
  %8865 = vmatmul.mubr.bf16.gmra.mxu0 %v6395
  %v8866 = vpop.f32.mrf.mxu0
  %v8867 = vadd.f32 %v8758, %v8866
  %v8868 = vpop.f32.mrf.mxu0
  %v8869 = vpop.f32.mrf.mxu0
  %v8870 = vadd.f32 %v8761, %v8869
  %v8871 = vpop.f32.mrf.mxu0
  %8872 = vmatprep.mubr.bf16.mxu0 0
  %8873 = vmatmul.mubr.bf16.gmra.mxu0 %v6398
  %v8874 = vpop.f32.mrf.mxu0
  %v8875 = vadd.f32 %v8766, %v8874
  %v8876 = vpop.f32.mrf.mxu0
  %v8877 = vpop.f32.mrf.mxu0
  %v8878 = vadd.f32 %v8769, %v8877
  %v8879 = vpop.f32.mrf.mxu0
  %8880 = vmatprep.mubr.bf16.mxu0 0
  %8881 = vmatmul.mubr.bf16.gmra.mxu0 %v6401
  %v8882 = vpop.f32.mrf.mxu0
  %v8883 = vadd.f32 %v8774, %v8882
  %v8884 = vpop.f32.mrf.mxu0
  %v8885 = vpop.f32.mrf.mxu0
  %v8886 = vadd.f32 %v8777, %v8885
  %v8887 = vpop.f32.mrf.mxu0
  %8888 = vmatprep.mubr.bf16.mxu0 0
  %8889 = vmatmul.mubr.bf16.gmra.mxu0 %v6404
  %v8890 = vpop.f32.mrf.mxu0
  %v8891 = vadd.f32 %v8782, %v8890
  %v8892 = vpop.f32.mrf.mxu0
  %v8893 = vpop.f32.mrf.mxu0
  %v8894 = vadd.f32 %v8785, %v8893
  %v8895 = vpop.f32.mrf.mxu0
  %8896 = vmatprep.mubr.bf16.mxu0 0
  %8897 = vmatmul.mubr.bf16.gmra.mxu0 %v6407
  %v8898 = vpop.f32.mrf.mxu0
  %v8899 = vadd.f32 %v8790, %v8898
  %v8900 = vpop.f32.mrf.mxu0
  %v8901 = vpop.f32.mrf.mxu0
  %v8902 = vadd.f32 %v8793, %v8901
  %v8903 = vpop.f32.mrf.mxu0
  %8904 = vmatprep.mubr.bf16.mxu0 0
  %8905 = vmatmul.mubr.bf16.gmra.mxu0 %v6410
  %v8906 = vpop.f32.mrf.mxu0
  %v8907 = vadd.f32 %v8798, %v8906
  %v8908 = vpop.f32.mrf.mxu0
  %v8909 = vpop.f32.mrf.mxu0
  %v8910 = vadd.f32 %v8801, %v8909
  %v8911 = vpop.f32.mrf.mxu0
  %8912 = vmatprep.mubr.bf16.mxu0 0
  %8913 = vmatmul.mubr.bf16.gmra.mxu0 %v6413
  %v8914 = vpop.f32.mrf.mxu0
  %v8915 = vadd.f32 %v8806, %v8914
  %v8916 = vpop.f32.mrf.mxu0
  %v8917 = vpop.f32.mrf.mxu0
  %v8918 = vadd.f32 %v8809, %v8917
  %v8919 = vpop.f32.mrf.mxu0
  %8920 = vmatprep.mubr.bf16.mxu0 0
  %8921 = vmatmul.mubr.bf16.gmra.mxu0 %v6416
  %v8922 = vpop.f32.mrf.mxu0
  %v8923 = vadd.f32 %v8814, %v8922
  %v8924 = vpop.f32.mrf.mxu0
  %v8925 = vpop.f32.mrf.mxu0
  %v8926 = vadd.f32 %v8817, %v8925
  %v8927 = vpop.f32.mrf.mxu0
  %8928 = vdwg.mxu0
  %v8929 = vld [vmem:[%s71] sm:$0x1]
  %v8931 = vlaneseq
  %v8932 = vshrl.u32 %v8931, 7
  %v8933 = vsub.s32 0, %v8932
  %v8934 = vrot.slane %v8929, %v8933
  %v8936 = vadd.f32 %v8867, %v8934
  %v8937 = vadd.f32 %v8870, %v8934
  %v8938 = vadd.f32 %v8875, %v8934
  %v8939 = vadd.f32 %v8878, %v8934
  %v8940 = vadd.f32 %v8883, %v8934
  %v8941 = vadd.f32 %v8886, %v8934
  %v8942 = vadd.f32 %v8891, %v8934
  %v8943 = vadd.f32 %v8894, %v8934
  %v8944 = vadd.f32 %v8899, %v8934
  %v8945 = vadd.f32 %v8902, %v8934
  %v8946 = vadd.f32 %v8907, %v8934
  %v8947 = vadd.f32 %v8910, %v8934
  %v8948 = vadd.f32 %v8915, %v8934
  %v8949 = vadd.f32 %v8918, %v8934
  %v8950 = vadd.f32 %v8923, %v8934
  %v8951 = vadd.f32 %v8926, %v8934
  %v8952 = vmax.f32 %v8936, 0.0
  %v8953 = vmax.f32 %v8937, 0.0
  %v8954 = vmax.f32 %v8938, 0.0
  %v8955 = vmax.f32 %v8939, 0.0
  %v8956 = vmax.f32 %v8940, 0.0
  %v8957 = vmax.f32 %v8941, 0.0
  %v8958 = vmax.f32 %v8942, 0.0
  %v8959 = vmax.f32 %v8943, 0.0
  %v8960 = vmax.f32 %v8944, 0.0
  %v8961 = vmax.f32 %v8945, 0.0
  %v8962 = vmax.f32 %v8946, 0.0
  %v8963 = vmax.f32 %v8947, 0.0
  %v8964 = vmax.f32 %v8948, 0.0
  %v8965 = vmax.f32 %v8949, 0.0
  %v8966 = vmax.f32 %v8950, 0.0
  %v8967 = vmax.f32 %v8951, 0.0
  %v8968 = vld [vmem:[%s73] sm:$0xf]
  %v8969 = vld [vmem:[%s73 + $0x4] sm:$0xf]
  %v8970 = vld [vmem:[%s73 + $0x8] sm:$0xf]
  %v8971 = vld [vmem:[%s73 + $0xc] sm:$0xf]
  %v8972 = vpack.c.bf16 %v8953, %v8952
  %v8973 = vpack.c.bf16 %v8955, %v8954
  %v8974 = vpack.c.bf16 %v8957, %v8956
  %v8975 = vpack.c.bf16 %v8959, %v8958
  %v8976 = vpack.c.bf16 %v8961, %v8960
  %v8977 = vpack.c.bf16 %v8963, %v8962
  %v8978 = vpack.c.bf16 %v8965, %v8964
  %v8979 = vpack.c.bf16 %v8967, %v8966
  %v8980 = vld [vmem:[%s75] sm:$0x1]
  %v8982 = vlaneseq
  %v8983 = vshrl.u32 %v8982, 7
  %v8984 = vsub.s32 0, %v8983
  %v8985 = vrot.slane %v8980, %v8984
  %v8991 = vunpack.c.l.b16 %v8968
  %v8992 = vunpack.c.l.b16 %v8969
  %v8993 = vunpack.c.l.b16 %v8970
  %v8994 = vunpack.c.l.b16 %v8971
  %v8995 = vpack.c.b16 %v8992, %v8991
  %v8996 = vpack.c.b16 %v8994, %v8993
  %v9000 = vsel %vm1582, %v8972, 0
  %v9003 = vsel %vm1582, %v8973, 0
  %v9006 = vsel %vm1582, %v8974, 0
  %v9009 = vsel %vm1582, %v8975, 0
  %v9012 = vsel %vm1582, %v8976, 0
  %v9015 = vsel %vm1582, %v8977, 0
  %v9018 = vsel %vm1582, %v8978, 0
  %v9021 = vsel %vm1582, %v8979, 0
  %9023 = vmatprep.subr.bf16.mxu0 0
  %9024 = vmatpush1.bf16.msra.mxu0 0
  %9025 = vmatprep.subr.bf16.mxu0 0
  %9026 = vmatpush1.bf16.msra.mxu0 0
  %9027 = vmatprep.subr.bf16.mxu0 0
  %9028 = vmatpush1.bf16.msra.mxu0 0
  %9029 = vmatprep.subr.bf16.mxu0 0
  %9030 = vmatpush1.bf16.msra.mxu0 0
  %9031 = vmatprep.subr.bf16.mxu0 0
  %9032 = vmatpush1.bf16.msra.mxu0 0
  %9033 = vmatprep.subr.bf16.mxu0 0
  %9034 = vmatpush1.bf16.msra.mxu0 0
  %9035 = vmatprep.subr.bf16.mxu0 0
  %9036 = vmatpush1.bf16.msra.mxu0 %v8996
  %9037 = vmatprep.subr.bf16.mxu0 0
  %9038 = vmatpush1.bf16.msra.mxu0 %v8995
  %9039 = vmatprep.subr.bf16.mxu0 0
  %9040 = vmatpush2.bf16.msra.mxu0 0
  %9041 = vmatprep.subr.bf16.mxu0 0
  %9042 = vmatpush2.bf16.msra.mxu0 0
  %9043 = vmatprep.subr.bf16.mxu0 0
  %9044 = vmatpush2.bf16.msra.mxu0 0
  %9045 = vmatprep.subr.bf16.mxu0 0
  %9046 = vmatpush2.bf16.msra.mxu0 0
  %9047 = vmatprep.subr.bf16.mxu0 0
  %9048 = vmatpush2.bf16.msra.mxu0 0
  %9049 = vmatprep.subr.bf16.mxu0 0
  %9050 = vmatpush2.bf16.msra.mxu0 0
  %9051 = vmatprep.subr.bf16.mxu0 0
  %9052 = vmatpush2.bf16.msra.mxu0 0
  %9053 = vmatprep.subr.bf16.mxu0 0
  %9054 = vmatpush2.bf16.msra.mxu0 0
  %9055 = vmatprep.mubr.bf16.mxu0 0
  %9056 = vmatmul.mubr.bf16.gmra.mxu0 %v9000
  %v9057 = vpop.f32.mrf.mxu0
  %v9058 = vadd.f32 %v8985, %v9057
  %v9059 = vpop.f32.mrf.mxu0
  %v9060 = vpop.f32.mrf.mxu0
  %v9061 = vadd.f32 %v8985, %v9060
  %v9062 = vpop.f32.mrf.mxu0
  %9063 = vmatprep.mubr.bf16.mxu0 0
  %9064 = vmatmul.mubr.bf16.gmra.mxu0 %v9003
  %v9065 = vpop.f32.mrf.mxu0
  %v9066 = vadd.f32 %v8985, %v9065
  %v9067 = vpop.f32.mrf.mxu0
  %v9068 = vpop.f32.mrf.mxu0
  %v9069 = vadd.f32 %v8985, %v9068
  %v9070 = vpop.f32.mrf.mxu0
  %9071 = vmatprep.mubr.bf16.mxu0 0
  %9072 = vmatmul.mubr.bf16.gmra.mxu0 %v9006
  %v9073 = vpop.f32.mrf.mxu0
  %v9074 = vadd.f32 %v8985, %v9073
  %v9075 = vpop.f32.mrf.mxu0
  %v9076 = vpop.f32.mrf.mxu0
  %v9077 = vadd.f32 %v8985, %v9076
  %v9078 = vpop.f32.mrf.mxu0
  %9079 = vmatprep.mubr.bf16.mxu0 0
  %9080 = vmatmul.mubr.bf16.gmra.mxu0 %v9009
  %v9081 = vpop.f32.mrf.mxu0
  %v9082 = vadd.f32 %v8985, %v9081
  %v9083 = vpop.f32.mrf.mxu0
  %v9084 = vpop.f32.mrf.mxu0
  %v9085 = vadd.f32 %v8985, %v9084
  %v9086 = vpop.f32.mrf.mxu0
  %9087 = vmatprep.mubr.bf16.mxu0 0
  %9088 = vmatmul.mubr.bf16.gmra.mxu0 %v9012
  %v9089 = vpop.f32.mrf.mxu0
  %v9090 = vadd.f32 %v8985, %v9089
  %v9091 = vpop.f32.mrf.mxu0
  %v9092 = vpop.f32.mrf.mxu0
  %v9093 = vadd.f32 %v8985, %v9092
  %v9094 = vpop.f32.mrf.mxu0
  %9095 = vmatprep.mubr.bf16.mxu0 0
  %9096 = vmatmul.mubr.bf16.gmra.mxu0 %v9015
  %v9097 = vpop.f32.mrf.mxu0
  %v9098 = vadd.f32 %v8985, %v9097
  %v9099 = vpop.f32.mrf.mxu0
  %v9100 = vpop.f32.mrf.mxu0
  %v9101 = vadd.f32 %v8985, %v9100
  %v9102 = vpop.f32.mrf.mxu0
  %9103 = vmatprep.mubr.bf16.mxu0 0
  %9104 = vmatmul.mubr.bf16.gmra.mxu0 %v9018
  %v9105 = vpop.f32.mrf.mxu0
  %v9106 = vadd.f32 %v8985, %v9105
  %v9107 = vpop.f32.mrf.mxu0
  %v9108 = vpop.f32.mrf.mxu0
  %v9109 = vadd.f32 %v8985, %v9108
  %v9110 = vpop.f32.mrf.mxu0
  %9111 = vmatprep.mubr.bf16.mxu0 0
  %9112 = vmatmul.mubr.bf16.gmra.mxu0 %v9021
  %v9113 = vpop.f32.mrf.mxu0
  %v9114 = vadd.f32 %v8985, %v9113
  %v9115 = vpop.f32.mrf.mxu0
  %v9116 = vpop.f32.mrf.mxu0
  %v9117 = vadd.f32 %v8985, %v9116
  %v9118 = vpop.f32.mrf.mxu0
  %9119 = vdwg.mxu0
  %v9120 = vmax.f32 %v9058, 0.0
  %v9121 = vmax.f32 %v9061, 0.0
  %v9122 = vmax.f32 %v9066, 0.0
  %v9123 = vmax.f32 %v9069, 0.0
  %v9124 = vmax.f32 %v9074, 0.0
  %v9125 = vmax.f32 %v9077, 0.0
  %v9126 = vmax.f32 %v9082, 0.0
  %v9127 = vmax.f32 %v9085, 0.0
  %v9128 = vmax.f32 %v9090, 0.0
  %v9129 = vmax.f32 %v9093, 0.0
  %v9130 = vmax.f32 %v9098, 0.0
  %v9131 = vmax.f32 %v9101, 0.0
  %v9132 = vmax.f32 %v9106, 0.0
  %v9133 = vmax.f32 %v9109, 0.0
  %v9134 = vmax.f32 %v9114, 0.0
  %v9135 = vmax.f32 %v9117, 0.0
  %v9136 = vld [vmem:[%s77] sm:$0xf]
  %v9137 = vld [vmem:[%s77 + $0x4] sm:$0xf]
  %v9138 = vld [vmem:[%s77 + $0x8] sm:$0xf]
  %v9139 = vld [vmem:[%s77 + $0xc] sm:$0xf]
  %v9140 = vpack.c.bf16 %v9121, %v9120
  %v9141 = vpack.c.bf16 %v9123, %v9122
  %v9142 = vpack.c.bf16 %v9125, %v9124
  %v9143 = vpack.c.bf16 %v9127, %v9126
  %v9144 = vpack.c.bf16 %v9129, %v9128
  %v9145 = vpack.c.bf16 %v9131, %v9130
  %v9146 = vpack.c.bf16 %v9133, %v9132
  %v9147 = vpack.c.bf16 %v9135, %v9134
  %v9148 = vld [vmem:[%s79] sm:$0x1]
  %v9150 = vlaneseq
  %v9151 = vshrl.u32 %v9150, 7
  %v9152 = vsub.s32 0, %v9151
  %v9153 = vrot.slane %v9148, %v9152
  %v9159 = vunpack.c.l.b16 %v9136
  %v9160 = vunpack.c.l.b16 %v9137
  %v9161 = vunpack.c.l.b16 %v9138
  %v9162 = vunpack.c.l.b16 %v9139
  %v9163 = vpack.c.b16 %v9160, %v9159
  %v9164 = vpack.c.b16 %v9162, %v9161
  %v9168 = vsel %vm1582, %v9140, 0
  %v9171 = vsel %vm1582, %v9141, 0
  %v9174 = vsel %vm1582, %v9142, 0
  %v9177 = vsel %vm1582, %v9143, 0
  %v9180 = vsel %vm1582, %v9144, 0
  %v9183 = vsel %vm1582, %v9145, 0
  %v9186 = vsel %vm1582, %v9146, 0
  %v9189 = vsel %vm1582, %v9147, 0
  %9191 = vmatprep.subr.bf16.mxu0 0
  %9192 = vmatpush1.bf16.msra.mxu0 0
  %9193 = vmatprep.subr.bf16.mxu0 0
  %9194 = vmatpush1.bf16.msra.mxu0 0
  %9195 = vmatprep.subr.bf16.mxu0 0
  %9196 = vmatpush1.bf16.msra.mxu0 0
  %9197 = vmatprep.subr.bf16.mxu0 0
  %9198 = vmatpush1.bf16.msra.mxu0 0
  %9199 = vmatprep.subr.bf16.mxu0 0
  %9200 = vmatpush1.bf16.msra.mxu0 0
  %9201 = vmatprep.subr.bf16.mxu0 0
  %9202 = vmatpush1.bf16.msra.mxu0 0
  %9203 = vmatprep.subr.bf16.mxu0 0
  %9204 = vmatpush1.bf16.msra.mxu0 %v9164
  %9205 = vmatprep.subr.bf16.mxu0 0
  %9206 = vmatpush1.bf16.msra.mxu0 %v9163
  %9207 = vmatprep.subr.bf16.mxu0 0
  %9208 = vmatpush2.bf16.msra.mxu0 0
  %9209 = vmatprep.subr.bf16.mxu0 0
  %9210 = vmatpush2.bf16.msra.mxu0 0
  %9211 = vmatprep.subr.bf16.mxu0 0
  %9212 = vmatpush2.bf16.msra.mxu0 0
  %9213 = vmatprep.subr.bf16.mxu0 0
  %9214 = vmatpush2.bf16.msra.mxu0 0
  %9215 = vmatprep.subr.bf16.mxu0 0
  %9216 = vmatpush2.bf16.msra.mxu0 0
  %9217 = vmatprep.subr.bf16.mxu0 0
  %9218 = vmatpush2.bf16.msra.mxu0 0
  %9219 = vmatprep.subr.bf16.mxu0 0
  %9220 = vmatpush2.bf16.msra.mxu0 0
  %9221 = vmatprep.subr.bf16.mxu0 0
  %9222 = vmatpush2.bf16.msra.mxu0 0
  %9223 = vmatprep.mubr.bf16.mxu0 0
  %9224 = vmatmul.mubr.bf16.gmra.mxu0 %v9168
  %v9225 = vpop.f32.mrf.mxu0
  %v9226 = vadd.f32 %v9153, %v9225
  %v9227 = vpop.f32.mrf.mxu0
  %v9228 = vpop.f32.mrf.mxu0
  %v9229 = vadd.f32 %v9153, %v9228
  %v9230 = vpop.f32.mrf.mxu0
  %9231 = vmatprep.mubr.bf16.mxu0 0
  %9232 = vmatmul.mubr.bf16.gmra.mxu0 %v9171
  %v9233 = vpop.f32.mrf.mxu0
  %v9234 = vadd.f32 %v9153, %v9233
  %v9235 = vpop.f32.mrf.mxu0
  %v9236 = vpop.f32.mrf.mxu0
  %v9237 = vadd.f32 %v9153, %v9236
  %v9238 = vpop.f32.mrf.mxu0
  %9239 = vmatprep.mubr.bf16.mxu0 0
  %9240 = vmatmul.mubr.bf16.gmra.mxu0 %v9174
  %v9241 = vpop.f32.mrf.mxu0
  %v9242 = vadd.f32 %v9153, %v9241
  %v9243 = vpop.f32.mrf.mxu0
  %v9244 = vpop.f32.mrf.mxu0
  %v9245 = vadd.f32 %v9153, %v9244
  %v9246 = vpop.f32.mrf.mxu0
  %9247 = vmatprep.mubr.bf16.mxu0 0
  %9248 = vmatmul.mubr.bf16.gmra.mxu0 %v9177
  %v9249 = vpop.f32.mrf.mxu0
  %v9250 = vadd.f32 %v9153, %v9249
  %v9251 = vpop.f32.mrf.mxu0
  %v9252 = vpop.f32.mrf.mxu0
  %v9253 = vadd.f32 %v9153, %v9252
  %v9254 = vpop.f32.mrf.mxu0
  %9255 = vmatprep.mubr.bf16.mxu0 0
  %9256 = vmatmul.mubr.bf16.gmra.mxu0 %v9180
  %v9257 = vpop.f32.mrf.mxu0
  %v9258 = vadd.f32 %v9153, %v9257
  %v9259 = vpop.f32.mrf.mxu0
  %v9260 = vpop.f32.mrf.mxu0
  %v9261 = vadd.f32 %v9153, %v9260
  %v9262 = vpop.f32.mrf.mxu0
  %9263 = vmatprep.mubr.bf16.mxu0 0
  %9264 = vmatmul.mubr.bf16.gmra.mxu0 %v9183
  %v9265 = vpop.f32.mrf.mxu0
  %v9266 = vadd.f32 %v9153, %v9265
  %v9267 = vpop.f32.mrf.mxu0
  %v9268 = vpop.f32.mrf.mxu0
  %v9269 = vadd.f32 %v9153, %v9268
  %v9270 = vpop.f32.mrf.mxu0
  %9271 = vmatprep.mubr.bf16.mxu0 0
  %9272 = vmatmul.mubr.bf16.gmra.mxu0 %v9186
  %v9273 = vpop.f32.mrf.mxu0
  %v9274 = vadd.f32 %v9153, %v9273
  %v9275 = vpop.f32.mrf.mxu0
  %v9276 = vpop.f32.mrf.mxu0
  %v9277 = vadd.f32 %v9153, %v9276
  %v9278 = vpop.f32.mrf.mxu0
  %9279 = vmatprep.mubr.bf16.mxu0 0
  %9280 = vmatmul.mubr.bf16.gmra.mxu0 %v9189
  %v9281 = vpop.f32.mrf.mxu0
  %v9282 = vadd.f32 %v9153, %v9281
  %v9283 = vpop.f32.mrf.mxu0
  %v9284 = vpop.f32.mrf.mxu0
  %v9285 = vadd.f32 %v9153, %v9284
  %v9286 = vpop.f32.mrf.mxu0
  %9287 = vdwg.mxu0
  %v9288 = vadd.f32 %v6290, %v9226
  %v9289 = vadd.f32 %v6291, %v9229
  %v9290 = vadd.f32 %v6292, %v9234
  %v9291 = vadd.f32 %v6293, %v9237
  %v9292 = vadd.f32 %v6294, %v9242
  %v9293 = vadd.f32 %v6295, %v9245
  %v9294 = vadd.f32 %v6296, %v9250
  %v9295 = vadd.f32 %v6297, %v9253
  %v9296 = vadd.f32 %v6298, %v9258
  %v9297 = vadd.f32 %v6299, %v9261
  %v9298 = vadd.f32 %v6300, %v9266
  %v9299 = vadd.f32 %v6301, %v9269
  %v9300 = vadd.f32 %v6302, %v9274
  %v9301 = vadd.f32 %v6303, %v9277
  %v9302 = vadd.f32 %v6304, %v9282
  %v9303 = vadd.f32 %v6305, %v9285
  %v9304 = vld [vmem:[%s81] sm:$0xf]
  %v9305 = vld [vmem:[%s81 + $0x4] sm:$0xf]
  %v9306 = vld [vmem:[%s81 + $0x8] sm:$0xf]
  %v9307 = vld [vmem:[%s81 + $0xc] sm:$0xf]
  %v9308 = vpack.c.bf16 %v9289, %v9288
  %v9309 = vpack.c.bf16 %v9291, %v9290
  %v9310 = vpack.c.bf16 %v9293, %v9292
  %v9311 = vpack.c.bf16 %v9295, %v9294
  %v9312 = vpack.c.bf16 %v9297, %v9296
  %v9313 = vpack.c.bf16 %v9299, %v9298
  %v9314 = vpack.c.bf16 %v9301, %v9300
  %v9315 = vpack.c.bf16 %v9303, %v9302
  %v9316 = vld [vmem:[%s83] sm:$0x1]
  %v9318 = vlaneseq
  %v9319 = vshrl.u32 %v9318, 7
  %v9320 = vsub.s32 0, %v9319
  %v9321 = vrot.slane %v9316, %v9320
  %v9327 = vunpack.c.l.b16 %v9304
  %v9328 = vunpack.c.l.b16 %v9305
  %v9329 = vunpack.c.l.b16 %v9306
  %v9330 = vunpack.c.l.b16 %v9307
  %v9331 = vpack.c.b16 %v9328, %v9327
  %v9332 = vpack.c.b16 %v9330, %v9329
  %v9336 = vsel %vm1582, %v9308, 0
  %v9339 = vsel %vm1582, %v9309, 0
  %v9342 = vsel %vm1582, %v9310, 0
  %v9345 = vsel %vm1582, %v9311, 0
  %v9348 = vsel %vm1582, %v9312, 0
  %v9351 = vsel %vm1582, %v9313, 0
  %v9354 = vsel %vm1582, %v9314, 0
  %v9357 = vsel %vm1582, %v9315, 0
  %9359 = vmatprep.subr.bf16.mxu0 0
  %9360 = vmatpush1.bf16.msra.mxu0 0
  %9361 = vmatprep.subr.bf16.mxu0 0
  %9362 = vmatpush1.bf16.msra.mxu0 0
  %9363 = vmatprep.subr.bf16.mxu0 0
  %9364 = vmatpush1.bf16.msra.mxu0 0
  %9365 = vmatprep.subr.bf16.mxu0 0
  %9366 = vmatpush1.bf16.msra.mxu0 0
  %9367 = vmatprep.subr.bf16.mxu0 0
  %9368 = vmatpush1.bf16.msra.mxu0 0
  %9369 = vmatprep.subr.bf16.mxu0 0
  %9370 = vmatpush1.bf16.msra.mxu0 0
  %9371 = vmatprep.subr.bf16.mxu0 0
  %9372 = vmatpush1.bf16.msra.mxu0 %v9332
  %9373 = vmatprep.subr.bf16.mxu0 0
  %9374 = vmatpush1.bf16.msra.mxu0 %v9331
  %9375 = vmatprep.subr.bf16.mxu0 0
  %9376 = vmatpush2.bf16.msra.mxu0 0
  %9377 = vmatprep.subr.bf16.mxu0 0
  %9378 = vmatpush2.bf16.msra.mxu0 0
  %9379 = vmatprep.subr.bf16.mxu0 0
  %9380 = vmatpush2.bf16.msra.mxu0 0
  %9381 = vmatprep.subr.bf16.mxu0 0
  %9382 = vmatpush2.bf16.msra.mxu0 0
  %9383 = vmatprep.subr.bf16.mxu0 0
  %9384 = vmatpush2.bf16.msra.mxu0 0
  %9385 = vmatprep.subr.bf16.mxu0 0
  %9386 = vmatpush2.bf16.msra.mxu0 0
  %9387 = vmatprep.subr.bf16.mxu0 0
  %9388 = vmatpush2.bf16.msra.mxu0 0
  %9389 = vmatprep.subr.bf16.mxu0 0
  %9390 = vmatpush2.bf16.msra.mxu0 0
  %9391 = vmatprep.mubr.bf16.mxu0 0
  %9392 = vmatmul.mubr.bf16.gmra.mxu0 %v9336
  %v9393 = vpop.f32.mrf.mxu0
  %v9394 = vadd.f32 %v9321, %v9393
  %v9395 = vpop.f32.mrf.mxu0
  %v9396 = vpop.f32.mrf.mxu0
  %v9397 = vadd.f32 %v9321, %v9396
  %v9398 = vpop.f32.mrf.mxu0
  %9399 = vmatprep.mubr.bf16.mxu0 0
  %9400 = vmatmul.mubr.bf16.gmra.mxu0 %v9339
  %v9401 = vpop.f32.mrf.mxu0
  %v9402 = vadd.f32 %v9321, %v9401
  %v9403 = vpop.f32.mrf.mxu0
  %v9404 = vpop.f32.mrf.mxu0
  %v9405 = vadd.f32 %v9321, %v9404
  %v9406 = vpop.f32.mrf.mxu0
  %9407 = vmatprep.mubr.bf16.mxu0 0
  %9408 = vmatmul.mubr.bf16.gmra.mxu0 %v9342
  %v9409 = vpop.f32.mrf.mxu0
  %v9410 = vadd.f32 %v9321, %v9409
  %v9411 = vpop.f32.mrf.mxu0
  %v9412 = vpop.f32.mrf.mxu0
  %v9413 = vadd.f32 %v9321, %v9412
  %v9414 = vpop.f32.mrf.mxu0
  %9415 = vmatprep.mubr.bf16.mxu0 0
  %9416 = vmatmul.mubr.bf16.gmra.mxu0 %v9345
  %v9417 = vpop.f32.mrf.mxu0
  %v9418 = vadd.f32 %v9321, %v9417
  %v9419 = vpop.f32.mrf.mxu0
  %v9420 = vpop.f32.mrf.mxu0
  %v9421 = vadd.f32 %v9321, %v9420
  %v9422 = vpop.f32.mrf.mxu0
  %9423 = vmatprep.mubr.bf16.mxu0 0
  %9424 = vmatmul.mubr.bf16.gmra.mxu0 %v9348
  %v9425 = vpop.f32.mrf.mxu0
  %v9426 = vadd.f32 %v9321, %v9425
  %v9427 = vpop.f32.mrf.mxu0
  %v9428 = vpop.f32.mrf.mxu0
  %v9429 = vadd.f32 %v9321, %v9428
  %v9430 = vpop.f32.mrf.mxu0
  %9431 = vmatprep.mubr.bf16.mxu0 0
  %9432 = vmatmul.mubr.bf16.gmra.mxu0 %v9351
  %v9433 = vpop.f32.mrf.mxu0
  %v9434 = vadd.f32 %v9321, %v9433
  %v9435 = vpop.f32.mrf.mxu0
  %v9436 = vpop.f32.mrf.mxu0
  %v9437 = vadd.f32 %v9321, %v9436
  %v9438 = vpop.f32.mrf.mxu0
  %9439 = vmatprep.mubr.bf16.mxu0 0
  %9440 = vmatmul.mubr.bf16.gmra.mxu0 %v9354
  %v9441 = vpop.f32.mrf.mxu0
  %v9442 = vadd.f32 %v9321, %v9441
  %v9443 = vpop.f32.mrf.mxu0
  %v9444 = vpop.f32.mrf.mxu0
  %v9445 = vadd.f32 %v9321, %v9444
  %v9446 = vpop.f32.mrf.mxu0
  %9447 = vmatprep.mubr.bf16.mxu0 0
  %9448 = vmatmul.mubr.bf16.gmra.mxu0 %v9357
  %v9449 = vpop.f32.mrf.mxu0
  %v9450 = vadd.f32 %v9321, %v9449
  %v9451 = vpop.f32.mrf.mxu0
  %v9452 = vpop.f32.mrf.mxu0
  %v9453 = vadd.f32 %v9321, %v9452
  %v9454 = vpop.f32.mrf.mxu0
  %9455 = vdwg.mxu0
  %v9456 = vxor.u32 %v9394, 2147483648
  %v9457 = vxor.u32 %v9397, 2147483648
  %v9458 = vxor.u32 %v9402, 2147483648
  %v9459 = vxor.u32 %v9405, 2147483648
  %v9460 = vxor.u32 %v9410, 2147483648
  %v9461 = vxor.u32 %v9413, 2147483648
  %v9462 = vxor.u32 %v9418, 2147483648
  %v9463 = vxor.u32 %v9421, 2147483648
  %v9464 = vxor.u32 %v9426, 2147483648
  %v9465 = vxor.u32 %v9429, 2147483648
  %v9466 = vxor.u32 %v9434, 2147483648
  %v9467 = vxor.u32 %v9437, 2147483648
  %v9468 = vxor.u32 %v9442, 2147483648
  %v9469 = vxor.u32 %v9445, 2147483648
  %v9470 = vxor.u32 %v9450, 2147483648
  %v9471 = vxor.u32 %v9453, 2147483648
  %v9472 = vmul.f32 %v9456, 1.442695
  %v9473 = vpow.pop %v9472
  %v9474 = vmul.f32 %v9457, 1.442695
  %v9475 = vpow.pop %v9474
  %v9476 = vmul.f32 %v9458, 1.442695
  %v9477 = vpow.pop %v9476
  %v9478 = vmul.f32 %v9459, 1.442695
  %v9479 = vpow.pop %v9478
  %v9480 = vmul.f32 %v9460, 1.442695
  %v9481 = vpow.pop %v9480
  %v9482 = vmul.f32 %v9461, 1.442695
  %v9483 = vpow.pop %v9482
  %v9484 = vmul.f32 %v9462, 1.442695
  %v9485 = vpow.pop %v9484
  %v9486 = vmul.f32 %v9463, 1.442695
  %v9487 = vpow.pop %v9486
  %v9488 = vmul.f32 %v9464, 1.442695
  %v9489 = vpow.pop %v9488
  %v9490 = vmul.f32 %v9465, 1.442695
  %v9491 = vpow.pop %v9490
  %v9492 = vmul.f32 %v9466, 1.442695
  %v9493 = vpow.pop %v9492
  %v9494 = vmul.f32 %v9467, 1.442695
  %v9495 = vpow.pop %v9494
  %v9496 = vmul.f32 %v9468, 1.442695
  %v9497 = vpow.pop %v9496
  %v9498 = vmul.f32 %v9469, 1.442695
  %v9499 = vpow.pop %v9498
  %v9500 = vmul.f32 %v9470, 1.442695
  %v9501 = vpow.pop %v9500
  %v9502 = vmul.f32 %v9471, 1.442695
  %v9503 = vpow.pop %v9502
  %v9504 = vadd.f32 %v9473, 1.0
  %v9505 = vadd.f32 %v9475, 1.0
  %v9506 = vadd.f32 %v9477, 1.0
  %v9507 = vadd.f32 %v9479, 1.0
  %v9508 = vadd.f32 %v9481, 1.0
  %v9509 = vadd.f32 %v9483, 1.0
  %v9510 = vadd.f32 %v9485, 1.0
  %v9511 = vadd.f32 %v9487, 1.0
  %v9512 = vadd.f32 %v9489, 1.0
  %v9513 = vadd.f32 %v9491, 1.0
  %v9514 = vadd.f32 %v9493, 1.0
  %v9515 = vadd.f32 %v9495, 1.0
  %v9516 = vadd.f32 %v9497, 1.0
  %v9517 = vadd.f32 %v9499, 1.0
  %v9518 = vadd.f32 %v9501, 1.0
  %v9519 = vadd.f32 %v9503, 1.0
  %v9520 = vrcp.pop %v9504
  %v9521 = vmul.f32 1.0, %v9520
  %v9522 = vrcp.pop %v9505
  %v9523 = vmul.f32 1.0, %v9522
  %v9524 = vrcp.pop %v9506
  %v9525 = vmul.f32 1.0, %v9524
  %v9526 = vrcp.pop %v9507
  %v9527 = vmul.f32 1.0, %v9526
  %v9528 = vrcp.pop %v9508
  %v9529 = vmul.f32 1.0, %v9528
  %v9530 = vrcp.pop %v9509
  %v9531 = vmul.f32 1.0, %v9530
  %v9532 = vrcp.pop %v9510
  %v9533 = vmul.f32 1.0, %v9532
  %v9534 = vrcp.pop %v9511
  %v9535 = vmul.f32 1.0, %v9534
  %v9536 = vrcp.pop %v9512
  %v9537 = vmul.f32 1.0, %v9536
  %v9538 = vrcp.pop %v9513
  %v9539 = vmul.f32 1.0, %v9538
  %v9540 = vrcp.pop %v9514
  %v9541 = vmul.f32 1.0, %v9540
  %v9542 = vrcp.pop %v9515
  %v9543 = vmul.f32 1.0, %v9542
  %v9544 = vrcp.pop %v9516
  %v9545 = vmul.f32 1.0, %v9544
  %v9546 = vrcp.pop %v9517
  %v9547 = vmul.f32 1.0, %v9546
  %v9548 = vrcp.pop %v9518
  %v9549 = vmul.f32 1.0, %v9548
  %v9550 = vrcp.pop %v9519
  %v9551 = vmul.f32 1.0, %v9550
  %v9552 = vmul.f32 %v9394, %v9521
  %v9553 = vmul.f32 %v9397, %v9523
  %v9554 = vmul.f32 %v9402, %v9525
  %v9555 = vmul.f32 %v9405, %v9527
  %v9556 = vmul.f32 %v9410, %v9529
  %v9557 = vmul.f32 %v9413, %v9531
  %v9558 = vmul.f32 %v9418, %v9533
  %v9559 = vmul.f32 %v9421, %v9535
  %v9560 = vmul.f32 %v9426, %v9537
  %v9561 = vmul.f32 %v9429, %v9539
  %v9562 = vmul.f32 %v9434, %v9541
  %v9563 = vmul.f32 %v9437, %v9543
  %v9564 = vmul.f32 %v9442, %v9545
  %v9565 = vmul.f32 %v9445, %v9547
  %v9566 = vmul.f32 %v9450, %v9549
  %v9567 = vmul.f32 %v9453, %v9551
  %v9568 = vld [vmem:[%s85] sm:$0xf]
  %v9569 = vld [vmem:[%s85 + $0x4] sm:$0xf]
  %v9570 = vld [vmem:[%s85 + $0x8] sm:$0xf]
  %v9571 = vld [vmem:[%s85 + $0xc] sm:$0xf]
  %v9572 = vpack.c.bf16 %v9553, %v9552
  %v9573 = vpack.c.bf16 %v9555, %v9554
  %v9574 = vpack.c.bf16 %v9557, %v9556
  %v9575 = vpack.c.bf16 %v9559, %v9558
  %v9576 = vpack.c.bf16 %v9561, %v9560
  %v9577 = vpack.c.bf16 %v9563, %v9562
  %v9578 = vpack.c.bf16 %v9565, %v9564
  %v9579 = vpack.c.bf16 %v9567, %v9566
  %v9580 = vld [vmem:[%s87] sm:$0x1]
  %v9582 = vlaneseq
  %v9583 = vshrl.u32 %v9582, 7
  %v9584 = vsub.s32 0, %v9583
  %v9585 = vrot.slane %v9580, %v9584
  %v9591 = vunpack.c.l.b16 %v9568
  %v9592 = vunpack.c.l.b16 %v9569
  %v9593 = vunpack.c.l.b16 %v9570
  %v9594 = vunpack.c.l.b16 %v9571
  %v9595 = vpack.c.b16 %v9592, %v9591
  %v9596 = vpack.c.b16 %v9594, %v9593
  %v9600 = vsel %vm1582, %v9572, 0
  %v9603 = vsel %vm1582, %v9573, 0
  %v9606 = vsel %vm1582, %v9574, 0
  %v9609 = vsel %vm1582, %v9575, 0
  %v9612 = vsel %vm1582, %v9576, 0
  %v9615 = vsel %vm1582, %v9577, 0
  %v9618 = vsel %vm1582, %v9578, 0
  %v9621 = vsel %vm1582, %v9579, 0
  %9623 = vmatprep.subr.bf16.mxu0 0
  %9624 = vmatpush1.bf16.msra.mxu0 0
  %9625 = vmatprep.subr.bf16.mxu0 0
  %9626 = vmatpush1.bf16.msra.mxu0 0
  %9627 = vmatprep.subr.bf16.mxu0 0
  %9628 = vmatpush1.bf16.msra.mxu0 0
  %9629 = vmatprep.subr.bf16.mxu0 0
  %9630 = vmatpush1.bf16.msra.mxu0 0
  %9631 = vmatprep.subr.bf16.mxu0 0
  %9632 = vmatpush1.bf16.msra.mxu0 0
  %9633 = vmatprep.subr.bf16.mxu0 0
  %9634 = vmatpush1.bf16.msra.mxu0 0
  %9635 = vmatprep.subr.bf16.mxu0 0
  %9636 = vmatpush1.bf16.msra.mxu0 %v9596
  %9637 = vmatprep.subr.bf16.mxu0 0
  %9638 = vmatpush1.bf16.msra.mxu0 %v9595
  %9639 = vmatprep.subr.bf16.mxu0 0
  %9640 = vmatpush2.bf16.msra.mxu0 0
  %9641 = vmatprep.subr.bf16.mxu0 0
  %9642 = vmatpush2.bf16.msra.mxu0 0
  %9643 = vmatprep.subr.bf16.mxu0 0
  %9644 = vmatpush2.bf16.msra.mxu0 0
  %9645 = vmatprep.subr.bf16.mxu0 0
  %9646 = vmatpush2.bf16.msra.mxu0 0
  %9647 = vmatprep.subr.bf16.mxu0 0
  %9648 = vmatpush2.bf16.msra.mxu0 0
  %9649 = vmatprep.subr.bf16.mxu0 0
  %9650 = vmatpush2.bf16.msra.mxu0 0
  %9651 = vmatprep.subr.bf16.mxu0 0
  %9652 = vmatpush2.bf16.msra.mxu0 0
  %9653 = vmatprep.subr.bf16.mxu0 0
  %9654 = vmatpush2.bf16.msra.mxu0 0
  %9655 = vmatprep.mubr.bf16.mxu0 0
  %9656 = vmatmul.mubr.bf16.gmra.mxu0 %v9600
  %v9657 = vpop.f32.mrf.mxu0
  %v9658 = vadd.f32 %v9585, %v9657
  %v9659 = vpop.f32.mrf.mxu0
  %v9660 = vpop.f32.mrf.mxu0
  %v9661 = vadd.f32 %v9585, %v9660
  %v9662 = vpop.f32.mrf.mxu0
  %9663 = vmatprep.mubr.bf16.mxu0 0
  %9664 = vmatmul.mubr.bf16.gmra.mxu0 %v9603
  %v9665 = vpop.f32.mrf.mxu0
  %v9666 = vadd.f32 %v9585, %v9665
  %v9667 = vpop.f32.mrf.mxu0
  %v9668 = vpop.f32.mrf.mxu0
  %v9669 = vadd.f32 %v9585, %v9668
  %v9670 = vpop.f32.mrf.mxu0
  %9671 = vmatprep.mubr.bf16.mxu0 0
  %9672 = vmatmul.mubr.bf16.gmra.mxu0 %v9606
  %v9673 = vpop.f32.mrf.mxu0
  %v9674 = vadd.f32 %v9585, %v9673
  %v9675 = vpop.f32.mrf.mxu0
  %v9676 = vpop.f32.mrf.mxu0
  %v9677 = vadd.f32 %v9585, %v9676
  %v9678 = vpop.f32.mrf.mxu0
  %9679 = vmatprep.mubr.bf16.mxu0 0
  %9680 = vmatmul.mubr.bf16.gmra.mxu0 %v9609
  %v9681 = vpop.f32.mrf.mxu0
  %v9682 = vadd.f32 %v9585, %v9681
  %v9683 = vpop.f32.mrf.mxu0
  %v9684 = vpop.f32.mrf.mxu0
  %v9685 = vadd.f32 %v9585, %v9684
  %v9686 = vpop.f32.mrf.mxu0
  %9687 = vmatprep.mubr.bf16.mxu0 0
  %9688 = vmatmul.mubr.bf16.gmra.mxu0 %v9612
  %v9689 = vpop.f32.mrf.mxu0
  %v9690 = vadd.f32 %v9585, %v9689
  %v9691 = vpop.f32.mrf.mxu0
  %v9692 = vpop.f32.mrf.mxu0
  %v9693 = vadd.f32 %v9585, %v9692
  %v9694 = vpop.f32.mrf.mxu0
  %9695 = vmatprep.mubr.bf16.mxu0 0
  %9696 = vmatmul.mubr.bf16.gmra.mxu0 %v9615
  %v9697 = vpop.f32.mrf.mxu0
  %v9698 = vadd.f32 %v9585, %v9697
  %v9699 = vpop.f32.mrf.mxu0
  %v9700 = vpop.f32.mrf.mxu0
  %v9701 = vadd.f32 %v9585, %v9700
  %v9702 = vpop.f32.mrf.mxu0
  %9703 = vmatprep.mubr.bf16.mxu0 0
  %9704 = vmatmul.mubr.bf16.gmra.mxu0 %v9618
  %v9705 = vpop.f32.mrf.mxu0
  %v9706 = vadd.f32 %v9585, %v9705
  %v9707 = vpop.f32.mrf.mxu0
  %v9708 = vpop.f32.mrf.mxu0
  %v9709 = vadd.f32 %v9585, %v9708
  %v9710 = vpop.f32.mrf.mxu0
  %9711 = vmatprep.mubr.bf16.mxu0 0
  %9712 = vmatmul.mubr.bf16.gmra.mxu0 %v9621
  %v9713 = vpop.f32.mrf.mxu0
  %v9714 = vadd.f32 %v9585, %v9713
  %v9715 = vpop.f32.mrf.mxu0
  %v9716 = vpop.f32.mrf.mxu0
  %v9717 = vadd.f32 %v9585, %v9716
  %v9718 = vpop.f32.mrf.mxu0
  %9719 = vdwg.mxu0
  %v9720 = vxor.u32 %v9658, 2147483648
  %v9721 = vxor.u32 %v9661, 2147483648
  %v9722 = vxor.u32 %v9666, 2147483648
  %v9723 = vxor.u32 %v9669, 2147483648
  %v9724 = vxor.u32 %v9674, 2147483648
  %v9725 = vxor.u32 %v9677, 2147483648
  %v9726 = vxor.u32 %v9682, 2147483648
  %v9727 = vxor.u32 %v9685, 2147483648
  %v9728 = vxor.u32 %v9690, 2147483648
  %v9729 = vxor.u32 %v9693, 2147483648
  %v9730 = vxor.u32 %v9698, 2147483648
  %v9731 = vxor.u32 %v9701, 2147483648
  %v9732 = vxor.u32 %v9706, 2147483648
  %v9733 = vxor.u32 %v9709, 2147483648
  %v9734 = vxor.u32 %v9714, 2147483648
  %v9735 = vxor.u32 %v9717, 2147483648
  %v9736 = vmul.f32 %v9720, 1.442695
  %v9737 = vpow.pop %v9736
  %v9738 = vmul.f32 %v9721, 1.442695
  %v9739 = vpow.pop %v9738
  %v9740 = vmul.f32 %v9722, 1.442695
  %v9741 = vpow.pop %v9740
  %v9742 = vmul.f32 %v9723, 1.442695
  %v9743 = vpow.pop %v9742
  %v9744 = vmul.f32 %v9724, 1.442695
  %v9745 = vpow.pop %v9744
  %v9746 = vmul.f32 %v9725, 1.442695
  %v9747 = vpow.pop %v9746
  %v9748 = vmul.f32 %v9726, 1.442695
  %v9749 = vpow.pop %v9748
  %v9750 = vmul.f32 %v9727, 1.442695
  %v9751 = vpow.pop %v9750
  %v9752 = vmul.f32 %v9728, 1.442695
  %v9753 = vpow.pop %v9752
  %v9754 = vmul.f32 %v9729, 1.442695
  %v9755 = vpow.pop %v9754
  %v9756 = vmul.f32 %v9730, 1.442695
  %v9757 = vpow.pop %v9756
  %v9758 = vmul.f32 %v9731, 1.442695
  %v9759 = vpow.pop %v9758
  %v9760 = vmul.f32 %v9732, 1.442695
  %v9761 = vpow.pop %v9760
  %v9762 = vmul.f32 %v9733, 1.442695
  %v9763 = vpow.pop %v9762
  %v9764 = vmul.f32 %v9734, 1.442695
  %v9765 = vpow.pop %v9764
  %v9766 = vmul.f32 %v9735, 1.442695
  %v9767 = vpow.pop %v9766
  %v9768 = vadd.f32 %v9737, 1.0
  %v9769 = vadd.f32 %v9739, 1.0
  %v9770 = vadd.f32 %v9741, 1.0
  %v9771 = vadd.f32 %v9743, 1.0
  %v9772 = vadd.f32 %v9745, 1.0
  %v9773 = vadd.f32 %v9747, 1.0
  %v9774 = vadd.f32 %v9749, 1.0
  %v9775 = vadd.f32 %v9751, 1.0
  %v9776 = vadd.f32 %v9753, 1.0
  %v9777 = vadd.f32 %v9755, 1.0
  %v9778 = vadd.f32 %v9757, 1.0
  %v9779 = vadd.f32 %v9759, 1.0
  %v9780 = vadd.f32 %v9761, 1.0
  %v9781 = vadd.f32 %v9763, 1.0
  %v9782 = vadd.f32 %v9765, 1.0
  %v9783 = vadd.f32 %v9767, 1.0
  %v9784 = vrcp.pop %v9768
  %v9785 = vmul.f32 1.0, %v9784
  %v9786 = vrcp.pop %v9769
  %v9787 = vmul.f32 1.0, %v9786
  %v9788 = vrcp.pop %v9770
  %v9789 = vmul.f32 1.0, %v9788
  %v9790 = vrcp.pop %v9771
  %v9791 = vmul.f32 1.0, %v9790
  %v9792 = vrcp.pop %v9772
  %v9793 = vmul.f32 1.0, %v9792
  %v9794 = vrcp.pop %v9773
  %v9795 = vmul.f32 1.0, %v9794
  %v9796 = vrcp.pop %v9774
  %v9797 = vmul.f32 1.0, %v9796
  %v9798 = vrcp.pop %v9775
  %v9799 = vmul.f32 1.0, %v9798
  %v9800 = vrcp.pop %v9776
  %v9801 = vmul.f32 1.0, %v9800
  %v9802 = vrcp.pop %v9777
  %v9803 = vmul.f32 1.0, %v9802
  %v9804 = vrcp.pop %v9778
  %v9805 = vmul.f32 1.0, %v9804
  %v9806 = vrcp.pop %v9779
  %v9807 = vmul.f32 1.0, %v9806
  %v9808 = vrcp.pop %v9780
  %v9809 = vmul.f32 1.0, %v9808
  %v9810 = vrcp.pop %v9781
  %v9811 = vmul.f32 1.0, %v9810
  %v9812 = vrcp.pop %v9782
  %v9813 = vmul.f32 1.0, %v9812
  %v9814 = vrcp.pop %v9783
  %v9815 = vmul.f32 1.0, %v9814
  %v9816 = vmul.f32 %v9658, %v9785
  %v9817 = vmul.f32 %v9661, %v9787
  %v9818 = vmul.f32 %v9666, %v9789
  %v9819 = vmul.f32 %v9669, %v9791
  %v9820 = vmul.f32 %v9674, %v9793
  %v9821 = vmul.f32 %v9677, %v9795
  %v9822 = vmul.f32 %v9682, %v9797
  %v9823 = vmul.f32 %v9685, %v9799
  %v9824 = vmul.f32 %v9690, %v9801
  %v9825 = vmul.f32 %v9693, %v9803
  %v9826 = vmul.f32 %v9698, %v9805
  %v9827 = vmul.f32 %v9701, %v9807
  %v9828 = vmul.f32 %v9706, %v9809
  %v9829 = vmul.f32 %v9709, %v9811
  %v9830 = vmul.f32 %v9714, %v9813
  %v9831 = vmul.f32 %v9717, %v9815
  %v9832 = vld [vmem:[%s89] sm:$0xf]
  %v9833 = vld [vmem:[%s89 + $0x4] sm:$0xf]
  %v9834 = vld [vmem:[%s89 + $0x8] sm:$0xf]
  %v9835 = vld [vmem:[%s89 + $0xc] sm:$0xf]
  %v9836 = vpack.c.bf16 %v9817, %v9816
  %v9837 = vpack.c.bf16 %v9819, %v9818
  %v9838 = vpack.c.bf16 %v9821, %v9820
  %v9839 = vpack.c.bf16 %v9823, %v9822
  %v9840 = vpack.c.bf16 %v9825, %v9824
  %v9841 = vpack.c.bf16 %v9827, %v9826
  %v9842 = vpack.c.bf16 %v9829, %v9828
  %v9843 = vpack.c.bf16 %v9831, %v9830
  %v9844 = vld [vmem:[%s91] sm:$0x1]
  %v9846 = vlaneseq
  %v9847 = vshrl.u32 %v9846, 7
  %v9848 = vsub.s32 0, %v9847
  %v9849 = vrot.slane %v9844, %v9848
  %v9855 = vunpack.c.l.b16 %v9832
  %v9856 = vunpack.c.l.b16 %v9833
  %v9857 = vunpack.c.l.b16 %v9834
  %v9858 = vunpack.c.l.b16 %v9835
  %v9859 = vpack.c.b16 %v9856, %v9855
  %v9860 = vpack.c.b16 %v9858, %v9857
  %v9864 = vsel %vm1582, %v9836, 0
  %v9867 = vsel %vm1582, %v9837, 0
  %v9870 = vsel %vm1582, %v9838, 0
  %v9873 = vsel %vm1582, %v9839, 0
  %v9876 = vsel %vm1582, %v9840, 0
  %v9879 = vsel %vm1582, %v9841, 0
  %v9882 = vsel %vm1582, %v9842, 0
  %v9885 = vsel %vm1582, %v9843, 0
  %9887 = vmatprep.subr.bf16.mxu0 0
  %9888 = vmatpush1.bf16.msra.mxu0 0
  %9889 = vmatprep.subr.bf16.mxu0 0
  %9890 = vmatpush1.bf16.msra.mxu0 0
  %9891 = vmatprep.subr.bf16.mxu0 0
  %9892 = vmatpush1.bf16.msra.mxu0 0
  %9893 = vmatprep.subr.bf16.mxu0 0
  %9894 = vmatpush1.bf16.msra.mxu0 0
  %9895 = vmatprep.subr.bf16.mxu0 0
  %9896 = vmatpush1.bf16.msra.mxu0 0
  %9897 = vmatprep.subr.bf16.mxu0 0
  %9898 = vmatpush1.bf16.msra.mxu0 0
  %9899 = vmatprep.subr.bf16.mxu0 0
  %9900 = vmatpush1.bf16.msra.mxu0 %v9860
  %9901 = vmatprep.subr.bf16.mxu0 0
  %9902 = vmatpush1.bf16.msra.mxu0 %v9859
  %9903 = vmatprep.subr.bf16.mxu0 0
  %9904 = vmatpush2.bf16.msra.mxu0 0
  %9905 = vmatprep.subr.bf16.mxu0 0
  %9906 = vmatpush2.bf16.msra.mxu0 0
  %9907 = vmatprep.subr.bf16.mxu0 0
  %9908 = vmatpush2.bf16.msra.mxu0 0
  %9909 = vmatprep.subr.bf16.mxu0 0
  %9910 = vmatpush2.bf16.msra.mxu0 0
  %9911 = vmatprep.subr.bf16.mxu0 0
  %9912 = vmatpush2.bf16.msra.mxu0 0
  %9913 = vmatprep.subr.bf16.mxu0 0
  %9914 = vmatpush2.bf16.msra.mxu0 0
  %9915 = vmatprep.subr.bf16.mxu0 0
  %9916 = vmatpush2.bf16.msra.mxu0 0
  %9917 = vmatprep.subr.bf16.mxu0 0
  %9918 = vmatpush2.bf16.msra.mxu0 0
  %9919 = vmatprep.mubr.bf16.mxu0 0
  %9920 = vmatmul.mubr.bf16.gmra.mxu0 %v9864
  %v9921 = vpop.f32.mrf.mxu0
  %v9922 = vadd.f32 %v9849, %v9921
  %v9923 = vpop.f32.mrf.mxu0
  %v9924 = vpop.f32.mrf.mxu0
  %v9925 = vadd.f32 %v9849, %v9924
  %v9926 = vpop.f32.mrf.mxu0
  %9927 = vmatprep.mubr.bf16.mxu0 0
  %9928 = vmatmul.mubr.bf16.gmra.mxu0 %v9867
  %v9929 = vpop.f32.mrf.mxu0
  %v9930 = vadd.f32 %v9849, %v9929
  %v9931 = vpop.f32.mrf.mxu0
  %v9932 = vpop.f32.mrf.mxu0
  %v9933 = vadd.f32 %v9849, %v9932
  %v9934 = vpop.f32.mrf.mxu0
  %9935 = vmatprep.mubr.bf16.mxu0 0
  %9936 = vmatmul.mubr.bf16.gmra.mxu0 %v9870
  %v9937 = vpop.f32.mrf.mxu0
  %v9938 = vadd.f32 %v9849, %v9937
  %v9939 = vpop.f32.mrf.mxu0
  %v9940 = vpop.f32.mrf.mxu0
  %v9941 = vadd.f32 %v9849, %v9940
  %v9942 = vpop.f32.mrf.mxu0
  %9943 = vmatprep.mubr.bf16.mxu0 0
  %9944 = vmatmul.mubr.bf16.gmra.mxu0 %v9873
  %v9945 = vpop.f32.mrf.mxu0
  %v9946 = vadd.f32 %v9849, %v9945
  %v9947 = vpop.f32.mrf.mxu0
  %v9948 = vpop.f32.mrf.mxu0
  %v9949 = vadd.f32 %v9849, %v9948
  %v9950 = vpop.f32.mrf.mxu0
  %9951 = vmatprep.mubr.bf16.mxu0 0
  %9952 = vmatmul.mubr.bf16.gmra.mxu0 %v9876
  %v9953 = vpop.f32.mrf.mxu0
  %v9954 = vadd.f32 %v9849, %v9953
  %v9955 = vpop.f32.mrf.mxu0
  %v9956 = vpop.f32.mrf.mxu0
  %v9957 = vadd.f32 %v9849, %v9956
  %v9958 = vpop.f32.mrf.mxu0
  %9959 = vmatprep.mubr.bf16.mxu0 0
  %9960 = vmatmul.mubr.bf16.gmra.mxu0 %v9879
  %v9961 = vpop.f32.mrf.mxu0
  %v9962 = vadd.f32 %v9849, %v9961
  %v9963 = vpop.f32.mrf.mxu0
  %v9964 = vpop.f32.mrf.mxu0
  %v9965 = vadd.f32 %v9849, %v9964
  %v9966 = vpop.f32.mrf.mxu0
  %9967 = vmatprep.mubr.bf16.mxu0 0
  %9968 = vmatmul.mubr.bf16.gmra.mxu0 %v9882
  %v9969 = vpop.f32.mrf.mxu0
  %v9970 = vadd.f32 %v9849, %v9969
  %v9971 = vpop.f32.mrf.mxu0
  %v9972 = vpop.f32.mrf.mxu0
  %v9973 = vadd.f32 %v9849, %v9972
  %v9974 = vpop.f32.mrf.mxu0
  %9975 = vmatprep.mubr.bf16.mxu0 0
  %9976 = vmatmul.mubr.bf16.gmra.mxu0 %v9885
  %v9977 = vpop.f32.mrf.mxu0
  %v9978 = vadd.f32 %v9849, %v9977
  %v9979 = vpop.f32.mrf.mxu0
  %v9980 = vpop.f32.mrf.mxu0
  %v9981 = vadd.f32 %v9849, %v9980
  %v9982 = vpop.f32.mrf.mxu0
  %9983 = vdwg.mxu0
  %9984 = vst [vmem:[%s93] sm:$0xff] %v9922
  %9985 = vst [vmem:[%s93 + $0x8] sm:$0xff] %v9925
  %9986 = vst [vmem:[%s93 + $0x10] sm:$0xff] %v9930
  %9987 = vst [vmem:[%s93 + $0x18] sm:$0xff] %v9933
  %9988 = vst [vmem:[%s93 + $0x20] sm:$0xff] %v9938
  %9989 = vst [vmem:[%s93 + $0x28] sm:$0xff] %v9941
  %9990 = vst [vmem:[%s93 + $0x30] sm:$0xff] %v9946
  %9991 = vst [vmem:[%s93 + $0x38] sm:$0xff] %v9949
  %9992 = vst [vmem:[%s93 + $0x40] sm:$0xff] %v9954
  %9993 = vst [vmem:[%s93 + $0x48] sm:$0xff] %v9957
  %9994 = vst [vmem:[%s93 + $0x50] sm:$0xff] %v9962
  %9995 = vst [vmem:[%s93 + $0x58] sm:$0xff] %v9965
  %9996 = vst [vmem:[%s93 + $0x60] sm:$0xff] %v9970
  %9997 = vst [vmem:[%s93 + $0x68] sm:$0xff] %v9973
  %9998 = vst [vmem:[%s93 + $0x70] sm:$0xff] %v9978
  %9999 = vst [vmem:[%s93 + $0x78] sm:$0xff] %v9981
  // Predicated region
  $region186: #{node_movement_forward.1} parent=0 // pred_check
    _
  $region187: #{node_movement_forward.1} parent=0 // pred_check_branch
    %10001 = sbr.rel (0) target = $region189
  $region188: #{node_movement_forward.1} parent=0 // pred_region
    _
  $region189: #{node_movement_forward.1} parent=0 // pred_fallthru
    _
  // Predicated region
  $region190: #{node_movement_forward.1} parent=0 // pred_check
    _
  $region191: #{node_movement_forward.1} parent=0 // pred_check_branch
    %10003 = sbr.rel (0) target = $region193
  $region192: #{node_movement_forward.1} parent=0 // pred_region
    _
  $region193: #{node_movement_forward.1} parent=0 // pred_fallthru
    _

</llo_original>
